<compile_context>
chip_gen: v7x
topology: tpu7x:2x2x1
jax: 0.10.0
libtpu: 0.0.40
codegen_flags: <defaults>
</compile_context>

<pallas_src>
import functools

import numpy as np
import jax
import jax.numpy as jnp
from jax import lax
from jax.experimental import pallas as pl
from jax.experimental.pallas import tpu as pltpu

EPS = 1e-5
LANE = 128


def _round_up(x, m):
    return (x + m - 1) // m * m


@functools.lru_cache(maxsize=None)
def _vmem_limit_bytes():
    cap = 128 * 1024 * 1024
    try:
        info = pltpu.get_tpu_info()
        cap = int(getattr(info, "vmem_capacity_bytes", cap) or cap)
    except Exception:
        pass
    if cap <= 64 * 1024 * 1024:        # v7x-class: 64 MiB physical VMEM
        return 48 * 1024 * 1024
    return 96 * 1024 * 1024            # v5e / v6e: 128 MiB physical VMEM


def _compiler_params(n_grid_axes):
    return pltpu.CompilerParams(
        dimension_semantics=("parallel",) * n_grid_axes,   # independent blocks -> megacore
        vmem_limit_bytes=_vmem_limit_bytes(),
    )


def _pick_row_tile(rows, max_tile=1024):
    """Largest row tile <= max_tile that divides `rows` and is a multiple of 8."""
    if rows <= max_tile:
        return rows
    for nt in range(2, rows // 8 + 1):
        if rows % nt == 0:
            rt = rows // nt
            if rt % 8 == 0 and rt <= max_tile:
                return rt
    return rows


# ----------------------------- Pallas kernels ------------------------------ #

def _conv1x1_in_kernel(x_ref, w_ref, y_ref, ssum_ref, ssq_ref):
    """Stage 1: y = x @ w (x already bf16, zero in pad rows/channels) + BN stats."""
    y = jnp.dot(x_ref[...], w_ref[...], preferred_element_type=jnp.float32)
    yb = y.astype(jnp.bfloat16)
    y_ref[...] = yb
    yf = yb.astype(jnp.float32)
    ssum_ref[0] = jnp.sum(yf, axis=0, keepdims=True)
    ssq_ref[0] = jnp.sum(yf * yf, axis=0, keepdims=True)


def _conv1x1_bnrelu_kernel(x_ref, sc_ref, sh_ref, mask_ref, w_ref,
                           y_ref, ssum_ref, ssq_ref):
    """Stage 3: y = (relu(x*scale + shift) * mask) @ w  + per-block BN stats."""
    h = jnp.maximum(x_ref[...].astype(jnp.float32) * sc_ref[...] + sh_ref[...], 0.0)
    h = h * mask_ref[...]                      # zero padded / garbage rows
    y = jnp.dot(h.astype(jnp.bfloat16), w_ref[...],
                preferred_element_type=jnp.float32)
    yb = y.astype(jnp.bfloat16)
    y_ref[...] = yb
    yf = yb.astype(jnp.float32)
    ssum_ref[0] = jnp.sum(yf, axis=0, keepdims=True)
    ssq_ref[0] = jnp.sum(yf * yf, axis=0, keepdims=True)


def _conv3x3_kernel(y1_ref, sc_ref, sh_ref, mask_ref, w2p_ref,
                    y2_ref, ssum_ref, ssq_ref, ext_ref, *, rows, wp2, pad):
    """Stage 2: bn1+relu then a 3x3 SAME conv done fully in VMEM.

    The per-image flattened tile is written (once, sublane-aligned) into a
    zero-extended scratch; the conv is 3 MXU dots of K=3*Cin (one per kernel
    row), each LHS being the lane-concatenation of the (-1,0,+1) shifted row
    slices.  Accumulation happens in values (no scratch read-modify-write).
    The valid-pixel mask supplies the conv zero padding and zeroes garbage
    rows before statistics / storage.
    """
    cin = y1_ref.shape[1]
    h = jnp.maximum(y1_ref[...].astype(jnp.float32) * sc_ref[...] + sh_ref[...], 0.0)
    h = h * mask_ref[...]                      # conv zero-padding lives here

    # extended buffer: pad zeros | image | pad zeros  (all stores aligned)
    zeros_pad = jnp.zeros((pad, cin), jnp.float32)
    ext_ref[pl.ds(0, pad), :] = zeros_pad
    ext_ref[pl.ds(pad + rows, pad), :] = zeros_pad
    ext_ref[pl.ds(pad, rows), :] = h

    y = None
    for kh in range(3):                        # unrolled: 3 dots of K = 3*cin
        off = pad + (kh - 1) * wp2             # sublane-aligned base per kernel row
        lhs = jnp.concatenate(
            [ext_ref[pl.ds(off - 1, rows), :],     # kw = 0 (dx = -1)
             ext_ref[pl.ds(off, rows), :],         # kw = 1 (dx =  0)
             ext_ref[pl.ds(off + 1, rows), :]],    # kw = 2 (dx = +1)
            axis=1).astype(jnp.bfloat16)
        d = jnp.dot(lhs, w2p_ref[kh], preferred_element_type=jnp.float32)
        y = d if y is None else y + d

    yb = y.astype(jnp.bfloat16).astype(jnp.float32) * mask_ref[...]
    y2_ref[...] = yb.astype(jnp.bfloat16)
    ssum_ref[0] = jnp.sum(yb, axis=0, keepdims=True)
    ssq_ref[0] = jnp.sum(yb * yb, axis=0, keepdims=True)


def _bn_add_relu_kernel(y_ref, sc_ref, sh_ref, res_ref, o_ref):
    """Stage 4: out = relu(y*scale + shift + residual)."""
    o_ref[...] = jnp.maximum(
        y_ref[...].astype(jnp.float32) * sc_ref[...] + sh_ref[...]
        + res_ref[...].astype(jnp.float32), 0.0)


# --------------------------- pallas_call wrappers --------------------------- #

def _conv1x1_in_stage(x, w, *, n_img, rows, rt):
    cin, cout = w.shape
    n_rt = rows // rt
    return pl.pallas_call(
        _conv1x1_in_kernel,
        grid=(n_img, n_rt),
        in_specs=[
            pl.BlockSpec((rt, cin), lambda n, r: (n * n_rt + r, 0)),
            pl.BlockSpec((cin, cout), lambda n, r: (0, 0)),        # resident weight
        ],
        out_specs=(
            pl.BlockSpec((rt, cout), lambda n, r: (n * n_rt + r, 0)),
            pl.BlockSpec((1, 1, cout), lambda n, r: (n * n_rt + r, 0, 0)),
            pl.BlockSpec((1, 1, cout), lambda n, r: (n * n_rt + r, 0, 0)),
        ),
        out_shape=(
            jax.ShapeDtypeStruct((n_img * rows, cout), jnp.bfloat16),
            jax.ShapeDtypeStruct((n_img * n_rt, 1, cout), jnp.float32),
            jax.ShapeDtypeStruct((n_img * n_rt, 1, cout), jnp.float32),
        ),
        compiler_params=_compiler_params(2),
    )(x, w)


def _conv1x1_bnrelu_stage(x, scale, shift, mask, w, *, n_img, rows, rt):
    cin, cout = w.shape
    n_rt = rows // rt
    return pl.pallas_call(
        _conv1x1_bnrelu_kernel,
        grid=(n_img, n_rt),
        in_specs=[
            pl.BlockSpec((rt, cin), lambda n, r: (n * n_rt + r, 0)),
            pl.BlockSpec((1, cin), lambda n, r: (0, 0)),           # resident scale
            pl.BlockSpec((1, cin), lambda n, r: (0, 0)),           # resident shift
            pl.BlockSpec((rt, 1), lambda n, r: (r, 0)),            # per-row-tile mask
            pl.BlockSpec((cin, cout), lambda n, r: (0, 0)),        # resident weight
        ],
        out_specs=(
            pl.BlockSpec((rt, cout), lambda n, r: (n * n_rt + r, 0)),
            pl.BlockSpec((1, 1, cout), lambda n, r: (n * n_rt + r, 0, 0)),
            pl.BlockSpec((1, 1, cout), lambda n, r: (n * n_rt + r, 0, 0)),
        ),
        out_shape=(
            jax.ShapeDtypeStruct((n_img * rows, cout), jnp.bfloat16),
            jax.ShapeDtypeStruct((n_img * n_rt, 1, cout), jnp.float32),
            jax.ShapeDtypeStruct((n_img * n_rt, 1, cout), jnp.float32),
        ),
        compiler_params=_compiler_params(2),
    )(x, scale, shift, mask, w)


def _conv3x3_stage(y1, scale, shift, mask, w2p, *, n_img, rows, wp2, pad):
    cin = w2p.shape[1] // 3
    cout = w2p.shape[2]
    kern = functools.partial(_conv3x3_kernel, rows=rows, wp2=wp2, pad=pad)
    return pl.pallas_call(
        kern,
        grid=(n_img,),
        in_specs=[
            pl.BlockSpec((rows, cin), lambda n: (n, 0)),
            pl.BlockSpec((1, cin), lambda n: (0, 0)),
            pl.BlockSpec((1, cin), lambda n: (0, 0)),
            pl.BlockSpec((rows, 1), lambda n: (0, 0)),
            pl.BlockSpec((3, 3 * cin, cout), lambda n: (0, 0, 0)),  # packed 3x3 weights
        ],
        out_specs=(
            pl.BlockSpec((rows, cout), lambda n: (n, 0)),
            pl.BlockSpec((1, 1, cout), lambda n: (n, 0, 0)),
            pl.BlockSpec((1, 1, cout), lambda n: (n, 0, 0)),
        ),
        out_shape=(
            jax.ShapeDtypeStruct((n_img * rows, cout), jnp.bfloat16),
            jax.ShapeDtypeStruct((n_img, 1, cout), jnp.float32),
            jax.ShapeDtypeStruct((n_img, 1, cout), jnp.float32),
        ),
        scratch_shapes=[
            pltpu.VMEM((rows + 2 * pad, cin), jnp.float32),   # extended image
        ],
        compiler_params=_compiler_params(1),
    )(y1, scale, shift, mask, w2p)


def _bn_add_relu_stage(y, scale, shift, res, *, n_img, rows, rt):
    cp = y.shape[1]
    n_rt = rows // rt
    return pl.pallas_call(
        _bn_add_relu_kernel,
        grid=(n_img, n_rt),
        in_specs=[
            pl.BlockSpec((rt, cp), lambda n, r: (n * n_rt + r, 0)),
            pl.BlockSpec((1, cp), lambda n, r: (0, 0)),
            pl.BlockSpec((1, cp), lambda n, r: (0, 0)),
            pl.BlockSpec((rt, cp), lambda n, r: (n * n_rt + r, 0)),  # bf16 residual
        ],
        out_specs=pl.BlockSpec((rt, cp), lambda n, r: (n * n_rt + r, 0)),
        out_shape=jax.ShapeDtypeStruct((n_img * rows, cp), jnp.float32),
        compiler_params=_compiler_params(2),
    )(y, scale, shift, res)


def _fold_bn(ssum, ssq, gamma, beta, count):
    """Fold batch statistics into a single per-channel FMA: y*scale + shift."""
    s0 = jnp.sum(ssum, axis=0)            # (1, C)
    s1 = jnp.sum(ssq, axis=0)             # (1, C)
    mean = s0 / count
    var = s1 / count - mean * mean        # biased variance, E[y^2] - E[y]^2
    scale = gamma * lax.rsqrt(var + EPS)
    shift = beta - mean * scale
    return scale, shift


# ------------------------------ Bottleneck ---------------------------------- #

def init_bottleneck_params(key, inplanes, planes):
    """Deterministic synthetic parameters (PyTorch shape correspondence)."""
    width = planes                # base_width=64, groups=1 -> width == planes
    cout = planes * 4             # expansion = 4
    ks = jax.random.split(key, 9)
    f32 = jnp.float32
    return dict(
        w1=jax.random.normal(ks[0], (inplanes, width), f32) / np.sqrt(inplanes),
        g1=1.0 + 0.1 * jax.random.normal(ks[1], (1, width), f32),
        b1=0.1 * jax.random.normal(ks[2], (1, width), f32),
        w2=jax.random.normal(ks[3], (3, 3, width, width), f32) / np.sqrt(9 * width),
        g2=1.0 + 0.1 * jax.random.normal(ks[4], (1, width), f32),
        b2=0.1 * jax.random.normal(ks[5], (1, width), f32),
        w3=jax.random.normal(ks[6], (width, cout), f32) / np.sqrt(width),
        g3=1.0 + 0.1 * jax.random.normal(ks[7], (1, cout), f32),
        b3=0.1 * jax.random.normal(ks[8], (1, cout), f32),
    )


def bottleneck_forward(x_nchw, params):
    """Forward pass of Bottleneck. Input/output are NCHW (PyTorch convention)."""
    n, c, h, w = x_nchw.shape
    width = params["w1"].shape[1]
    cout = params["w3"].shape[1]
    assert c == cout, "downsample is None -> inplanes must equal planes * expansion"

    # lane-dense channel padding (multiples of 128).  NOTE: wasteful for tiny
    # widths (test uses width=4); realistic ResNet widths keep the waste <=2x.
    cin_p = _round_up(c, LANE)
    wid_p = _round_up(width, LANE)
    co_p = _round_up(cout, LANE)

    # spatially padded, flattened per-image layout.  wp2 is a multiple of 8 so
    # the per-kernel-row vertical shifts in the 3x3 stage are sublane-aligned.
    hp2 = h + 2
    wp2 = _round_up(w + 2, 8)
    rows = hp2 * wp2                          # multiple of 8
    pad = wp2 + 8                             # aligned halo (>= wp2 + 1)
    rt = _pick_row_tile(rows)                 # row tile for 1x1 / elementwise stages
    count = float(n * h * w)                  # BN statistics over valid pixels only

    # ---- layout prep (plain JAX: pad + reshape only, no compute) ----
    x_nhwc = jnp.transpose(x_nchw, (0, 2, 3, 1))
    xp = jnp.pad(x_nhwc, ((0, 0), (1, 1), (1, wp2 - w - 1), (0, cin_p - c)))
    xp_flat = xp.astype(jnp.bfloat16).reshape(n * rows, cin_p)   # bf16 stream + residual

    # valid-pixel mask over the padded flattened layout (identical per image)
    ri = np.arange(rows)
    valid = ((ri // wp2 >= 1) & (ri // wp2 <= h) &
             (ri % wp2 >= 1) & (ri % wp2 <= w))
    mask = jnp.asarray(valid.astype(np.float32).reshape(rows, 1))

    # padded bf16 weights; padded gamma/beta (pad channels get gamma=beta=0)
    bf16 = jnp.bfloat16
    w1 = jnp.zeros((cin_p, wid_p), bf16).at[:c, :width].set(params["w1"].astype(bf16))
    w3 = jnp.zeros((wid_p, co_p), bf16).at[:width, :cout].set(params["w3"].astype(bf16))
    # 3x3 weights packed per kernel row: (3, 3*wid_p, wid_p), kw stacked along K
    w2p = jnp.zeros((3, 3 * wid_p, wid_p), bf16)
    for kh in range(3):
        for kw in range(3):
            w2p = w2p.at[kh, kw * wid_p:kw * wid_p + width, :width].set(
                params["w2"][kh, kw].astype(bf16))

    g1 = jnp.zeros((1, wid_p), jnp.float32).at[:, :width].set(params["g1"])
    b1 = jnp.zeros((1, wid_p), jnp.float32).at[:, :width].set(params["b1"])
    g2 = jnp.zeros((1, wid_p), jnp.float32).at[:, :width].set(params["g2"])
    b2 = jnp.zeros((1, wid_p), jnp.float32).at[:, :width].set(params["b2"])
    g3 = jnp.zeros((1, co_p), jnp.float32).at[:, :cout].set(params["g3"])
    b3 = jnp.zeros((1, co_p), jnp.float32).at[:, :cout].set(params["b3"])

    # ---- stage 1: conv1 (1x1) on bf16 input + bn1 partial statistics ----
    y1, s1, q1 = _conv1x1_in_stage(xp_flat, w1, n_img=n, rows=rows, rt=rt)
    sc1, sh1 = _fold_bn(s1, q1, g1, b1, count)

    # ---- stage 2: bn1+relu fused into in-VMEM 3x3 conv + bn2 partial stats ----
    y2, s2, q2 = _conv3x3_stage(y1, sc1, sh1, mask, w2p,
                                n_img=n, rows=rows, wp2=wp2, pad=pad)
    sc2, sh2 = _fold_bn(s2, q2, g2, b2, count)

    # ---- stage 3: bn2+relu fused into conv3 (1x1) + bn3 partial stats ----
    y3, s3, q3 = _conv1x1_bnrelu_stage(y2, sc2, sh2, mask, w3,
                                       n_img=n, rows=rows, rt=rt)
    sc3, sh3 = _fold_bn(s3, q3, g3, b3, count)

    # ---- stage 4: bn3 + (bf16) residual add + relu ----
    out_flat = _bn_add_relu_stage(y3, sc3, sh3, xp_flat, n_img=n, rows=rows, rt=rt)

    out = out_flat.reshape(n, hp2, wp2, co_p)[:, 1:h + 1, 1:w + 1, :cout]
    return jnp.transpose(out, (0, 3, 1, 2))   # back to NCHW


# ---------------------------- plain-JAX reference --------------------------- #
# Mirrors the kernels' mixed-precision matmul/storage policy (bf16 matmul
# inputs, bf16 storage of pre-BN conv outputs, f32 accumulation / BN math).
# The residual add here stays f32 (the kernel adds the bf16-rounded input),
# which bounds the extra deviation by ~|x| * 2^-9.

def bottleneck_reference(x_nchw, params):
    f32, bf16 = jnp.float32, jnp.bfloat16
    x = jnp.transpose(x_nchw, (0, 2, 3, 1)).astype(f32)

    def bn(y, g, b):
        mean = jnp.mean(y, axis=(0, 1, 2), keepdims=True)
        var = jnp.mean(y * y, axis=(0, 1, 2), keepdims=True) - mean * mean
        return ((y - mean) * lax.rsqrt(var + EPS) * g.reshape(1, 1, 1, -1)
                + b.reshape(1, 1, 1, -1))

    def q(y):  # bf16 storage rounding of the pre-BN conv outputs
        return y.astype(bf16).astype(f32)

    y1 = q(jnp.einsum("nhwc,cd->nhwd", x.astype(bf16), params["w1"].astype(bf16),
                      preferred_element_type=f32))
    h1 = jnp.maximum(bn(y1, params["g1"], params["b1"]), 0.0).astype(bf16)
    y2 = q(lax.conv_general_dilated(h1, params["w2"].astype(bf16), (1, 1), "SAME",
                                    dimension_numbers=("NHWC", "HWIO", "NHWC"),
                                    preferred_element_type=f32))
    h2 = jnp.maximum(bn(y2, params["g2"], params["b2"]), 0.0).astype(bf16)
    y3 = q(jnp.einsum("nhwc,cd->nhwd", h2, params["w3"].astype(bf16),
                      preferred_element_type=f32))
    out = jnp.maximum(bn(y3, params["g3"], params["b3"]) + x, 0.0)
    return jnp.transpose(out, (0, 3, 1, 2))


# ----------------------------------- main ----------------------------------- #

if __name__ == "__main__":
    key = jax.random.PRNGKey(0)
    kx, kp = jax.random.split(key)

    N, planes, H, W = 2, 4, 16, 16
    inplanes = planes * 4          # 16, required for the identity add (no downsample)

    x = jax.random.normal(kx, (N, inplanes, H, W), jnp.float32)
    params = init_bottleneck_params(kp, inplanes, planes)

    fwd = jax.jit(bottleneck_forward)
    out = jax.block_until_ready(fwd(x, params))

    assert out.shape == (N, inplanes, H, W)
    ref = bottleneck_reference(x, params)
    # atol covers the bf16 residual rounding (~|x| * 2^-9 <= ~0.01 at these shapes)
    np.testing.assert_allclose(np.asarray(out), np.asarray(ref), rtol=1e-2, atol=2e-2)

    print("KERNEL_OK")
</pallas_src>

<mosaic_0001>
module attributes {stable_mosaic.version = 11 : i64} {
  func.func @_conv1x1_in_kernel(%arg0: i32, %arg1: i32, %arg2: memref<432x128xbf16, #tpu.memory_space<vmem>>, %arg3: memref<128x128xbf16, #tpu.memory_space<vmem>>, %arg4: memref<432x128xbf16, #tpu.memory_space<vmem>>, %arg5: memref<1x1x128xf32, #tpu.memory_space<vmem>>, %arg6: memref<1x1x128xf32, #tpu.memory_space<vmem>>) attributes {dimension_semantics = [#tpu.dimension_semantics<parallel>, #tpu.dimension_semantics<parallel>], iteration_bounds = array<i64: 2, 1>, scalar_prefetch = 0 : i64, scratch_operands = 0 : i64, tpu.core_type = #tpu.core_type<tc>, window_params = [{transform_indices = @transform_0, window_bounds = array<i64: 432, 128>}, {pipeline_mode = #tpu.pipeline_mode<synchronous>, transform_indices = @transform_1, window_bounds = array<i64: 128, 128>}, {transform_indices = @transform_2, window_bounds = array<i64: 432, 128>}, {transform_indices = @transform_3, window_bounds = array<i64: 1, 1, 128>}, {transform_indices = @transform_4, window_bounds = array<i64: 1, 1, 128>}]} {
    %c0 = arith.constant 0 : index
    %c0_0 = arith.constant 0 : index
    %0 = vector.load %arg2[%c0, %c0_0] : memref<432x128xbf16, #tpu.memory_space<vmem>>, vector<432x128xbf16>
    %c0_1 = arith.constant 0 : index
    %c0_2 = arith.constant 0 : index
    %1 = vector.load %arg3[%c0_1, %c0_2] : memref<128x128xbf16, #tpu.memory_space<vmem>>, vector<128x128xbf16>
    %cst = arith.constant dense<0.000000e+00> : vector<432x128xf32>
    %2 = tpu.matmul %0, %1, %cst {dimension_numbers = #tpu.dot_dimension_numbers<[1], [0], [0], [1], [0, 0, 1, 1], [], []>} : vector<432x128xbf16>, vector<128x128xbf16>, vector<432x128xf32> -> vector<432x128xf32>
    %3 = arith.truncf %2 : vector<432x128xf32> to vector<432x128xbf16>
    %c0_3 = arith.constant 0 : index
    %c0_4 = arith.constant 0 : index
    %4 = vector.load %arg4[%c0_3, %c0_4] : memref<432x128xbf16, #tpu.memory_space<vmem>>, vector<432x128xbf16>
    tpu.vector_store %arg4[%c0_3, %c0_4], %3 {strides = array<i32>} : memref<432x128xbf16, #tpu.memory_space<vmem>>, vector<432x128xbf16>,
    %5 = arith.extf %3 : vector<432x128xbf16> to vector<432x128xf32>
    %cst_5 = arith.constant dense<0.000000e+00> : vector<128xf32>
    %6 = vector.multi_reduction <add>, %5, %cst_5 [0] : vector<432x128xf32> to vector<128xf32>
    %7 = vector.shape_cast %6 : vector<128xf32> to vector<1x128xf32>
    %c0_6 = arith.constant 0 : index
    %c0_7 = arith.constant 0 : index
    %c0_8 = arith.constant 0 : index
    %8 = vector.load %arg5[%c0_6, %c0_7, %c0_8] : memref<1x1x128xf32, #tpu.memory_space<vmem>>, vector<1x1x128xf32>
    %9 = vector.shape_cast %8 : vector<1x1x128xf32> to vector<1x128xf32>
    %10 = vector.shape_cast %7 : vector<1x128xf32> to vector<1x1x128xf32>
    tpu.vector_store %arg5[%c0_6, %c0_7, %c0_8], %10 {strides = array<i32>} : memref<1x1x128xf32, #tpu.memory_space<vmem>>, vector<1x1x128xf32>,
    %11 = arith.mulf %5, %5 : vector<432x128xf32>
    %cst_9 = arith.constant dense<0.000000e+00> : vector<128xf32>
    %12 = vector.multi_reduction <add>, %11, %cst_9 [0] : vector<432x128xf32> to vector<128xf32>
    %13 = vector.shape_cast %12 : vector<128xf32> to vector<1x128xf32>
    %c0_10 = arith.constant 0 : index
    %c0_11 = arith.constant 0 : index
    %c0_12 = arith.constant 0 : index
    %14 = vector.load %arg6[%c0_10, %c0_11, %c0_12] : memref<1x1x128xf32, #tpu.memory_space<vmem>>, vector<1x1x128xf32>
    %15 = vector.shape_cast %14 : vector<1x1x128xf32> to vector<1x128xf32>
    %16 = vector.shape_cast %13 : vector<1x128xf32> to vector<1x1x128xf32>
    tpu.vector_store %arg6[%c0_10, %c0_11, %c0_12], %16 {strides = array<i32>} : memref<1x1x128xf32, #tpu.memory_space<vmem>>, vector<1x1x128xf32>,
    return
  }
  func.func @transform_0(%arg0: i32, %arg1: i32) -> (i32, i32) {
    %c1_i32 = arith.constant 1 : i32
    %0 = arith.muli %arg0, %c1_i32 : i32
    %1 = arith.addi %0, %arg1 : i32
    %c0_i32 = arith.constant 0 : i32
    %c0_i32_0 = arith.constant 0 : i32
    return %1, %c0_i32 : i32, i32
  }
  func.func @transform_1(%arg0: i32, %arg1: i32) -> (i32, i32) {
    %c0_i32 = arith.constant 0 : i32
    %c0_i32_0 = arith.constant 0 : i32
    %c0_i32_1 = arith.constant 0 : i32
    return %c0_i32, %c0_i32_0 : i32, i32
  }
  func.func @transform_2(%arg0: i32, %arg1: i32) -> (i32, i32) {
    %c1_i32 = arith.constant 1 : i32
    %0 = arith.muli %arg0, %c1_i32 : i32
    %1 = arith.addi %0, %arg1 : i32
    %c0_i32 = arith.constant 0 : i32
    %c0_i32_0 = arith.constant 0 : i32
    return %1, %c0_i32 : i32, i32
  }
  func.func @transform_3(%arg0: i32, %arg1: i32) -> (i32, i32, i32) {
    %c1_i32 = arith.constant 1 : i32
    %0 = arith.muli %arg0, %c1_i32 : i32
    %1 = arith.addi %0, %arg1 : i32
    %c0_i32 = arith.constant 0 : i32
    %c0_i32_0 = arith.constant 0 : i32
    %c0_i32_1 = arith.constant 0 : i32
    return %1, %c0_i32, %c0_i32_0 : i32, i32, i32
  }
  func.func @transform_4(%arg0: i32, %arg1: i32) -> (i32, i32, i32) {
    %c1_i32 = arith.constant 1 : i32
    %0 = arith.muli %arg0, %c1_i32 : i32
    %1 = arith.addi %0, %arg1 : i32
    %c0_i32 = arith.constant 0 : i32
    %c0_i32_0 = arith.constant 0 : i32
    %c0_i32_1 = arith.constant 0 : i32
    return %1, %c0_i32, %c0_i32_0 : i32, i32, i32
  }
}

module attributes {stable_mosaic.version = 11 : i64} {
  func.func @_conv3x3_kernel(%arg0: i32, %arg1: memref<432x128xbf16, #tpu.memory_space<vmem>>, %arg2: memref<1x128xf32, #tpu.memory_space<vmem>>, %arg3: memref<1x128xf32, #tpu.memory_space<vmem>>, %arg4: memref<432x1xf32, #tpu.memory_space<vmem>>, %arg5: memref<3x384x128xbf16, #tpu.memory_space<vmem>>, %arg6: memref<432x128xbf16, #tpu.memory_space<vmem>>, %arg7: memref<1x1x128xf32, #tpu.memory_space<vmem>>, %arg8: memref<1x1x128xf32, #tpu.memory_space<vmem>>, %arg9: memref<496x128xf32, #tpu.memory_space<vmem>>) attributes {dimension_semantics = [#tpu.dimension_semantics<parallel>], iteration_bounds = array<i64: 2>, scalar_prefetch = 0 : i64, scratch_operands = 1 : i64, tpu.core_type = #tpu.core_type<tc>, window_params = [{transform_indices = @transform_0, window_bounds = array<i64: 432, 128>}, {pipeline_mode = #tpu.pipeline_mode<synchronous>, transform_indices = @transform_1, window_bounds = array<i64: 1, 128>}, {pipeline_mode = #tpu.pipeline_mode<synchronous>, transform_indices = @transform_2, window_bounds = array<i64: 1, 128>}, {pipeline_mode = #tpu.pipeline_mode<synchronous>, transform_indices = @transform_3, window_bounds = array<i64: 432, 1>}, {pipeline_mode = #tpu.pipeline_mode<synchronous>, transform_indices = @transform_4, window_bounds = array<i64: 3, 384, 128>}, {transform_indices = @transform_5, window_bounds = array<i64: 432, 128>}, {transform_indices = @transform_6, window_bounds = array<i64: 1, 1, 128>}, {transform_indices = @transform_7, window_bounds = array<i64: 1, 1, 128>}]} {
    %c0 = arith.constant 0 : index
    %c0_0 = arith.constant 0 : index
    %0 = vector.load %arg1[%c0, %c0_0] : memref<432x128xbf16, #tpu.memory_space<vmem>>, vector<432x128xbf16>
    %1 = arith.extf %0 : vector<432x128xbf16> to vector<432x128xf32>
    %c0_1 = arith.constant 0 : index
    %c0_2 = arith.constant 0 : index
    %2 = vector.load %arg2[%c0_1, %c0_2] : memref<1x128xf32, #tpu.memory_space<vmem>>, vector<1x128xf32>
    %3 = vector.broadcast %2 : vector<1x128xf32> to vector<432x128xf32>
    %4 = arith.mulf %1, %3 : vector<432x128xf32>
    %c0_3 = arith.constant 0 : index
    %c0_4 = arith.constant 0 : index
    %5 = vector.load %arg3[%c0_3, %c0_4] : memref<1x128xf32, #tpu.memory_space<vmem>>, vector<1x128xf32>
    %6 = vector.broadcast %5 : vector<1x128xf32> to vector<432x128xf32>
    %7 = arith.addf %4, %6 : vector<432x128xf32>
    %cst = arith.constant 0.000000e+00 : f32
    %8 = vector.broadcast %cst : f32 to vector<432x128xf32>
    %9 = arith.maximumf %7, %8 : vector<432x128xf32>
    %c0_5 = arith.constant 0 : index
    %c0_6 = arith.constant 0 : index
    %10 = vector.load %arg4[%c0_5, %c0_6] : memref<432x1xf32, #tpu.memory_space<vmem>>, vector<432x1xf32>
    %11 = vector.broadcast %10 : vector<432x1xf32> to vector<432x128xf32>
    %12 = arith.mulf %9, %11 : vector<432x128xf32>
    %cst_7 = arith.constant 0.000000e+00 : f32
    %13 = vector.broadcast %cst_7 : f32 to vector<32x128xf32>
    %c0_8 = arith.constant 0 : index
    %c0_9 = arith.constant 0 : index
    %14 = vector.load %arg9[%c0_8, %c0_9] : memref<496x128xf32, #tpu.memory_space<vmem>>, vector<32x128xf32>
    tpu.vector_store %arg9[%c0_8, %c0_9], %13 {strides = array<i32>} : memref<496x128xf32, #tpu.memory_space<vmem>>, vector<32x128xf32>,
    %c464 = arith.constant 464 : index
    %c0_10 = arith.constant 0 : index
    %15 = vector.load %arg9[%c464, %c0_10] : memref<496x128xf32, #tpu.memory_space<vmem>>, vector<32x128xf32>
    tpu.vector_store %arg9[%c464, %c0_10], %13 {strides = array<i32>} : memref<496x128xf32, #tpu.memory_space<vmem>>, vector<32x128xf32>,
    %c32 = arith.constant 32 : index
    %c0_11 = arith.constant 0 : index
    %16 = vector.load %arg9[%c32, %c0_11] : memref<496x128xf32, #tpu.memory_space<vmem>>, vector<432x128xf32>
    tpu.vector_store %arg9[%c32, %c0_11], %12 {strides = array<i32>} : memref<496x128xf32, #tpu.memory_space<vmem>>, vector<432x128xf32>,
    %c7 = arith.constant 7 : index
    %c0_12 = arith.constant 0 : index
    %17 = vector.load %arg9[%c7, %c0_12] : memref<496x128xf32, #tpu.memory_space<vmem>>, vector<432x128xf32>
    %c8 = arith.constant 8 : index
    %c0_13 = arith.constant 0 : index
    %18 = vector.load %arg9[%c8, %c0_13] : memref<496x128xf32, #tpu.memory_space<vmem>>, vector<432x128xf32>
    %c9 = arith.constant 9 : index
    %c0_14 = arith.constant 0 : index
    %19 = vector.load %arg9[%c9, %c0_14] : memref<496x128xf32, #tpu.memory_space<vmem>>, vector<432x128xf32>
    %20 = tpu.concatenate %17, %18, %19 in 1 : vector<432x128xf32>, vector<432x128xf32>, vector<432x128xf32> -> vector<432x384xf32>
    %21 = arith.truncf %20 : vector<432x384xf32> to vector<432x384xbf16>
    %c0_15 = arith.constant 0 : index
    %c0_16 = arith.constant 0 : index
    %c0_17 = arith.constant 0 : index
    %22 = vector.load %arg5[%c0_15, %c0_16, %c0_17] : memref<3x384x128xbf16, #tpu.memory_space<vmem>>, vector<1x384x128xbf16>
    %23 = vector.shape_cast %22 : vector<1x384x128xbf16> to vector<384x128xbf16>
    %cst_18 = arith.constant dense<0.000000e+00> : vector<432x128xf32>
    %24 = tpu.matmul %21, %23, %cst_18 {dimension_numbers = #tpu.dot_dimension_numbers<[1], [0], [0], [1], [0, 0, 1, 1], [], []>} : vector<432x384xbf16>, vector<384x128xbf16>, vector<432x128xf32> -> vector<432x128xf32>
    %c31 = arith.constant 31 : index
    %c0_19 = arith.constant 0 : index
    %25 = vector.load %arg9[%c31, %c0_19] : memref<496x128xf32, #tpu.memory_space<vmem>>, vector<432x128xf32>
    %c32_20 = arith.constant 32 : index
    %c0_21 = arith.constant 0 : index
    %26 = vector.load %arg9[%c32_20, %c0_21] : memref<496x128xf32, #tpu.memory_space<vmem>>, vector<432x128xf32>
    %c33 = arith.constant 33 : index
    %c0_22 = arith.constant 0 : index
    %27 = vector.load %arg9[%c33, %c0_22] : memref<496x128xf32, #tpu.memory_space<vmem>>, vector<432x128xf32>
    %28 = tpu.concatenate %25, %26, %27 in 1 : vector<432x128xf32>, vector<432x128xf32>, vector<432x128xf32> -> vector<432x384xf32>
    %29 = arith.truncf %28 : vector<432x384xf32> to vector<432x384xbf16>
    %c1 = arith.constant 1 : index
    %c0_23 = arith.constant 0 : index
    %c0_24 = arith.constant 0 : index
    %30 = vector.load %arg5[%c1, %c0_23, %c0_24] : memref<3x384x128xbf16, #tpu.memory_space<vmem>>, vector<1x384x128xbf16>
    %31 = vector.shape_cast %30 : vector<1x384x128xbf16> to vector<384x128xbf16>
    %cst_25 = arith.constant dense<0.000000e+00> : vector<432x128xf32>
    %32 = tpu.matmul %29, %31, %cst_25 {dimension_numbers = #tpu.dot_dimension_numbers<[1], [0], [0], [1], [0, 0, 1, 1], [], []>} : vector<432x384xbf16>, vector<384x128xbf16>, vector<432x128xf32> -> vector<432x128xf32>
    %33 = arith.addf %24, %32 : vector<432x128xf32>
    %c55 = arith.constant 55 : index
    %c0_26 = arith.constant 0 : index
    %34 = vector.load %arg9[%c55, %c0_26] : memref<496x128xf32, #tpu.memory_space<vmem>>, vector<432x128xf32>
    %c56 = arith.constant 56 : index
    %c0_27 = arith.constant 0 : index
    %35 = vector.load %arg9[%c56, %c0_27] : memref<496x128xf32, #tpu.memory_space<vmem>>, vector<432x128xf32>
    %c57 = arith.constant 57 : index
    %c0_28 = arith.constant 0 : index
    %36 = vector.load %arg9[%c57, %c0_28] : memref<496x128xf32, #tpu.memory_space<vmem>>, vector<432x128xf32>
    %37 = tpu.concatenate %34, %35, %36 in 1 : vector<432x128xf32>, vector<432x128xf32>, vector<432x128xf32> -> vector<432x384xf32>
    %38 = arith.truncf %37 : vector<432x384xf32> to vector<432x384xbf16>
    %c2 = arith.constant 2 : index
    %c0_29 = arith.constant 0 : index
    %c0_30 = arith.constant 0 : index
    %39 = vector.load %arg5[%c2, %c0_29, %c0_30] : memref<3x384x128xbf16, #tpu.memory_space<vmem>>, vector<1x384x128xbf16>
    %40 = vector.shape_cast %39 : vector<1x384x128xbf16> to vector<384x128xbf16>
    %cst_31 = arith.constant dense<0.000000e+00> : vector<432x128xf32>
    %41 = tpu.matmul %38, %40, %cst_31 {dimension_numbers = #tpu.dot_dimension_numbers<[1], [0], [0], [1], [0, 0, 1, 1], [], []>} : vector<432x384xbf16>, vector<384x128xbf16>, vector<432x128xf32> -> vector<432x128xf32>
    %42 = arith.addf %33, %41 : vector<432x128xf32>
    %43 = arith.truncf %42 : vector<432x128xf32> to vector<432x128xbf16>
    %44 = arith.extf %43 : vector<432x128xbf16> to vector<432x128xf32>
    %c0_32 = arith.constant 0 : index
    %c0_33 = arith.constant 0 : index
    %45 = vector.load %arg4[%c0_32, %c0_33] : memref<432x1xf32, #tpu.memory_space<vmem>>, vector<432x1xf32>
    %46 = vector.broadcast %45 : vector<432x1xf32> to vector<432x128xf32>
    %47 = arith.mulf %44, %46 : vector<432x128xf32>
    %48 = arith.truncf %47 : vector<432x128xf32> to vector<432x128xbf16>
    %c0_34 = arith.constant 0 : index
    %c0_35 = arith.constant 0 : index
    %49 = vector.load %arg6[%c0_34, %c0_35] : memref<432x128xbf16, #tpu.memory_space<vmem>>, vector<432x128xbf16>
    tpu.vector_store %arg6[%c0_34, %c0_35], %48 {strides = array<i32>} : memref<432x128xbf16, #tpu.memory_space<vmem>>, vector<432x128xbf16>,
    %cst_36 = arith.constant dense<0.000000e+00> : vector<128xf32>
    %50 = vector.multi_reduction <add>, %47, %cst_36 [0] : vector<432x128xf32> to vector<128xf32>
    %51 = vector.shape_cast %50 : vector<128xf32> to vector<1x128xf32>
    %c0_37 = arith.constant 0 : index
    %c0_38 = arith.constant 0 : index
    %c0_39 = arith.constant 0 : index
    %52 = vector.load %arg7[%c0_37, %c0_38, %c0_39] : memref<1x1x128xf32, #tpu.memory_space<vmem>>, vector<1x1x128xf32>
    %53 = vector.shape_cast %52 : vector<1x1x128xf32> to vector<1x128xf32>
    %54 = vector.shape_cast %51 : vector<1x128xf32> to vector<1x1x128xf32>
    tpu.vector_store %arg7[%c0_37, %c0_38, %c0_39], %54 {strides = array<i32>} : memref<1x1x128xf32, #tpu.memory_space<vmem>>, vector<1x1x128xf32>,
    %55 = arith.mulf %47, %47 : vector<432x128xf32>
    %cst_40 = arith.constant dense<0.000000e+00> : vector<128xf32>
    %56 = vector.multi_reduction <add>, %55, %cst_40 [0] : vector<432x128xf32> to vector<128xf32>
    %57 = vector.shape_cast %56 : vector<128xf32> to vector<1x128xf32>
    %c0_41 = arith.constant 0 : index
    %c0_42 = arith.constant 0 : index
    %c0_43 = arith.constant 0 : index
    %58 = vector.load %arg8[%c0_41, %c0_42, %c0_43] : memref<1x1x128xf32, #tpu.memory_space<vmem>>, vector<1x1x128xf32>
    %59 = vector.shape_cast %58 : vector<1x1x128xf32> to vector<1x128xf32>
    %60 = vector.shape_cast %57 : vector<1x128xf32> to vector<1x1x128xf32>
    tpu.vector_store %arg8[%c0_41, %c0_42, %c0_43], %60 {strides = array<i32>} : memref<1x1x128xf32, #tpu.memory_space<vmem>>, vector<1x1x128xf32>,
    return
  }
  func.func @transform_0(%arg0: i32) -> (i32, i32) {
    %c0_i32 = arith.constant 0 : i32
    %c0_i32_0 = arith.constant 0 : i32
    return %arg0, %c0_i32 : i32, i32
  }
  func.func @transform_1(%arg0: i32) -> (i32, i32) {
    %c0_i32 = arith.constant 0 : i32
    %c0_i32_0 = arith.constant 0 : i32
    %c0_i32_1 = arith.constant 0 : i32
    return %c0_i32, %c0_i32_0 : i32, i32
  }
  func.func @transform_2(%arg0: i32) -> (i32, i32) {
    %c0_i32 = arith.constant 0 : i32
    %c0_i32_0 = arith.constant 0 : i32
    %c0_i32_1 = arith.constant 0 : i32
    return %c0_i32, %c0_i32_0 : i32, i32
  }
  func.func @transform_3(%arg0: i32) -> (i32, i32) {
    %c0_i32 = arith.constant 0 : i32
    %c0_i32_0 = arith.constant 0 : i32
    %c0_i32_1 = arith.constant 0 : i32
    return %c0_i32, %c0_i32_0 : i32, i32
  }
  func.func @transform_4(%arg0: i32) -> (i32, i32, i32) {
    %c0_i32 = arith.constant 0 : i32
    %c0_i32_0 = arith.constant 0 : i32
    %c0_i32_1 = arith.constant 0 : i32
    %c0_i32_2 = arith.constant 0 : i32
    return %c0_i32, %c0_i32_0, %c0_i32_1 : i32, i32, i32
  }
  func.func @transform_5(%arg0: i32) -> (i32, i32) {
    %c0_i32 = arith.constant 0 : i32
    %c0_i32_0 = arith.constant 0 : i32
    return %arg0, %c0_i32 : i32, i32
  }
  func.func @transform_6(%arg0: i32) -> (i32, i32, i32) {
    %c0_i32 = arith.constant 0 : i32
    %c0_i32_0 = arith.constant 0 : i32
    %c0_i32_1 = arith.constant 0 : i32
    return %arg0, %c0_i32, %c0_i32_0 : i32, i32, i32
  }
  func.func @transform_7(%arg0: i32) -> (i32, i32, i32) {
    %c0_i32 = arith.constant 0 : i32
    %c0_i32_0 = arith.constant 0 : i32
    %c0_i32_1 = arith.constant 0 : i32
    return %arg0, %c0_i32, %c0_i32_0 : i32, i32, i32
  }
}

module attributes {stable_mosaic.version = 11 : i64} {
  func.func @_conv1x1_bnrelu_kernel(%arg0: i32, %arg1: i32, %arg2: memref<432x128xbf16, #tpu.memory_space<vmem>>, %arg3: memref<1x128xf32, #tpu.memory_space<vmem>>, %arg4: memref<1x128xf32, #tpu.memory_space<vmem>>, %arg5: memref<432x1xf32, #tpu.memory_space<vmem>>, %arg6: memref<128x128xbf16, #tpu.memory_space<vmem>>, %arg7: memref<432x128xbf16, #tpu.memory_space<vmem>>, %arg8: memref<1x1x128xf32, #tpu.memory_space<vmem>>, %arg9: memref<1x1x128xf32, #tpu.memory_space<vmem>>) attributes {dimension_semantics = [#tpu.dimension_semantics<parallel>, #tpu.dimension_semantics<parallel>], iteration_bounds = array<i64: 2, 1>, scalar_prefetch = 0 : i64, scratch_operands = 0 : i64, tpu.core_type = #tpu.core_type<tc>, window_params = [{transform_indices = @transform_0, window_bounds = array<i64: 432, 128>}, {pipeline_mode = #tpu.pipeline_mode<synchronous>, transform_indices = @transform_1, window_bounds = array<i64: 1, 128>}, {pipeline_mode = #tpu.pipeline_mode<synchronous>, transform_indices = @transform_2, window_bounds = array<i64: 1, 128>}, {transform_indices = @transform_3, window_bounds = array<i64: 432, 1>}, {pipeline_mode = #tpu.pipeline_mode<synchronous>, transform_indices = @transform_4, window_bounds = array<i64: 128, 128>}, {transform_indices = @transform_5, window_bounds = array<i64: 432, 128>}, {transform_indices = @transform_6, window_bounds = array<i64: 1, 1, 128>}, {transform_indices = @transform_7, window_bounds = array<i64: 1, 1, 128>}]} {
    %c0 = arith.constant 0 : index
    %c0_0 = arith.constant 0 : index
    %0 = vector.load %arg2[%c0, %c0_0] : memref<432x128xbf16, #tpu.memory_space<vmem>>, vector<432x128xbf16>
    %1 = arith.extf %0 : vector<432x128xbf16> to vector<432x128xf32>
    %c0_1 = arith.constant 0 : index
    %c0_2 = arith.constant 0 : index
    %2 = vector.load %arg3[%c0_1, %c0_2] : memref<1x128xf32, #tpu.memory_space<vmem>>, vector<1x128xf32>
    %3 = vector.broadcast %2 : vector<1x128xf32> to vector<432x128xf32>
    %4 = arith.mulf %1, %3 : vector<432x128xf32>
    %c0_3 = arith.constant 0 : index
    %c0_4 = arith.constant 0 : index
    %5 = vector.load %arg4[%c0_3, %c0_4] : memref<1x128xf32, #tpu.memory_space<vmem>>, vector<1x128xf32>
    %6 = vector.broadcast %5 : vector<1x128xf32> to vector<432x128xf32>
    %7 = arith.addf %4, %6 : vector<432x128xf32>
    %cst = arith.constant 0.000000e+00 : f32
    %8 = vector.broadcast %cst : f32 to vector<432x128xf32>
    %9 = arith.maximumf %7, %8 : vector<432x128xf32>
    %c0_5 = arith.constant 0 : index
    %c0_6 = arith.constant 0 : index
    %10 = vector.load %arg5[%c0_5, %c0_6] : memref<432x1xf32, #tpu.memory_space<vmem>>, vector<432x1xf32>
    %11 = vector.broadcast %10 : vector<432x1xf32> to vector<432x128xf32>
    %12 = arith.mulf %9, %11 : vector<432x128xf32>
    %13 = arith.truncf %12 : vector<432x128xf32> to vector<432x128xbf16>
    %c0_7 = arith.constant 0 : index
    %c0_8 = arith.constant 0 : index
    %14 = vector.load %arg6[%c0_7, %c0_8] : memref<128x128xbf16, #tpu.memory_space<vmem>>, vector<128x128xbf16>
    %cst_9 = arith.constant dense<0.000000e+00> : vector<432x128xf32>
    %15 = tpu.matmul %13, %14, %cst_9 {dimension_numbers = #tpu.dot_dimension_numbers<[1], [0], [0], [1], [0, 0, 1, 1], [], []>} : vector<432x128xbf16>, vector<128x128xbf16>, vector<432x128xf32> -> vector<432x128xf32>
    %16 = arith.truncf %15 : vector<432x128xf32> to vector<432x128xbf16>
    %c0_10 = arith.constant 0 : index
    %c0_11 = arith.constant 0 : index
    %17 = vector.load %arg7[%c0_10, %c0_11] : memref<432x128xbf16, #tpu.memory_space<vmem>>, vector<432x128xbf16>
    tpu.vector_store %arg7[%c0_10, %c0_11], %16 {strides = array<i32>} : memref<432x128xbf16, #tpu.memory_space<vmem>>, vector<432x128xbf16>,
    %18 = arith.extf %16 : vector<432x128xbf16> to vector<432x128xf32>
    %cst_12 = arith.constant dense<0.000000e+00> : vector<128xf32>
    %19 = vector.multi_reduction <add>, %18, %cst_12 [0] : vector<432x128xf32> to vector<128xf32>
    %20 = vector.shape_cast %19 : vector<128xf32> to vector<1x128xf32>
    %c0_13 = arith.constant 0 : index
    %c0_14 = arith.constant 0 : index
    %c0_15 = arith.constant 0 : index
    %21 = vector.load %arg8[%c0_13, %c0_14, %c0_15] : memref<1x1x128xf32, #tpu.memory_space<vmem>>, vector<1x1x128xf32>
    %22 = vector.shape_cast %21 : vector<1x1x128xf32> to vector<1x128xf32>
    %23 = vector.shape_cast %20 : vector<1x128xf32> to vector<1x1x128xf32>
    tpu.vector_store %arg8[%c0_13, %c0_14, %c0_15], %23 {strides = array<i32>} : memref<1x1x128xf32, #tpu.memory_space<vmem>>, vector<1x1x128xf32>,
    %24 = arith.mulf %18, %18 : vector<432x128xf32>
    %cst_16 = arith.constant dense<0.000000e+00> : vector<128xf32>
    %25 = vector.multi_reduction <add>, %24, %cst_16 [0] : vector<432x128xf32> to vector<128xf32>
    %26 = vector.shape_cast %25 : vector<128xf32> to vector<1x128xf32>
    %c0_17 = arith.constant 0 : index
    %c0_18 = arith.constant 0 : index
    %c0_19 = arith.constant 0 : index
    %27 = vector.load %arg9[%c0_17, %c0_18, %c0_19] : memref<1x1x128xf32, #tpu.memory_space<vmem>>, vector<1x1x128xf32>
    %28 = vector.shape_cast %27 : vector<1x1x128xf32> to vector<1x128xf32>
    %29 = vector.shape_cast %26 : vector<1x128xf32> to vector<1x1x128xf32>
    tpu.vector_store %arg9[%c0_17, %c0_18, %c0_19], %29 {strides = array<i32>} : memref<1x1x128xf32, #tpu.memory_space<vmem>>, vector<1x1x128xf32>,
    return
  }
  func.func @transform_0(%arg0: i32, %arg1: i32) -> (i32, i32) {
    %c1_i32 = arith.constant 1 : i32
    %0 = arith.muli %arg0, %c1_i32 : i32
    %1 = arith.addi %0, %arg1 : i32
    %c0_i32 = arith.constant 0 : i32
    %c0_i32_0 = arith.constant 0 : i32
    return %1, %c0_i32 : i32, i32
  }
  func.func @transform_1(%arg0: i32, %arg1: i32) -> (i32, i32) {
    %c0_i32 = arith.constant 0 : i32
    %c0_i32_0 = arith.constant 0 : i32
    %c0_i32_1 = arith.constant 0 : i32
    return %c0_i32, %c0_i32_0 : i32, i32
  }
  func.func @transform_2(%arg0: i32, %arg1: i32) -> (i32, i32) {
    %c0_i32 = arith.constant 0 : i32
    %c0_i32_0 = arith.constant 0 : i32
    %c0_i32_1 = arith.constant 0 : i32
    return %c0_i32, %c0_i32_0 : i32, i32
  }
  func.func @transform_3(%arg0: i32, %arg1: i32) -> (i32, i32) {
    %c0_i32 = arith.constant 0 : i32
    %c0_i32_0 = arith.constant 0 : i32
    return %arg1, %c0_i32 : i32, i32
  }
  func.func @transform_4(%arg0: i32, %arg1: i32) -> (i32, i32) {
    %c0_i32 = arith.constant 0 : i32
    %c0_i32_0 = arith.constant 0 : i32
    %c0_i32_1 = arith.constant 0 : i32
    return %c0_i32, %c0_i32_0 : i32, i32
  }
  func.func @transform_5(%arg0: i32, %arg1: i32) -> (i32, i32) {
    %c1_i32 = arith.constant 1 : i32
    %0 = arith.muli %arg0, %c1_i32 : i32
    %1 = arith.addi %0, %arg1 : i32
    %c0_i32 = arith.constant 0 : i32
    %c0_i32_0 = arith.constant 0 : i32
    return %1, %c0_i32 : i32, i32
  }
  func.func @transform_6(%arg0: i32, %arg1: i32) -> (i32, i32, i32) {
    %c1_i32 = arith.constant 1 : i32
    %0 = arith.muli %arg0, %c1_i32 : i32
    %1 = arith.addi %0, %arg1 : i32
    %c0_i32 = arith.constant 0 : i32
    %c0_i32_0 = arith.constant 0 : i32
    %c0_i32_1 = arith.constant 0 : i32
    return %1, %c0_i32, %c0_i32_0 : i32, i32, i32
  }
  func.func @transform_7(%arg0: i32, %arg1: i32) -> (i32, i32, i32) {
    %c1_i32 = arith.constant 1 : i32
    %0 = arith.muli %arg0, %c1_i32 : i32
    %1 = arith.addi %0, %arg1 : i32
    %c0_i32 = arith.constant 0 : i32
    %c0_i32_0 = arith.constant 0 : i32
    %c0_i32_1 = arith.constant 0 : i32
    return %1, %c0_i32, %c0_i32_0 : i32, i32, i32
  }
}

module attributes {stable_mosaic.version = 11 : i64} {
  func.func @_bn_add_relu_kernel(%arg0: i32, %arg1: i32, %arg2: memref<432x128xbf16, #tpu.memory_space<vmem>>, %arg3: memref<1x128xf32, #tpu.memory_space<vmem>>, %arg4: memref<1x128xf32, #tpu.memory_space<vmem>>, %arg5: memref<432x128xbf16, #tpu.memory_space<vmem>>, %arg6: memref<432x128xf32, #tpu.memory_space<vmem>>) attributes {dimension_semantics = [#tpu.dimension_semantics<parallel>, #tpu.dimension_semantics<parallel>], iteration_bounds = array<i64: 2, 1>, scalar_prefetch = 0 : i64, scratch_operands = 0 : i64, tpu.core_type = #tpu.core_type<tc>, window_params = [{transform_indices = @transform_0, window_bounds = array<i64: 432, 128>}, {pipeline_mode = #tpu.pipeline_mode<synchronous>, transform_indices = @transform_1, window_bounds = array<i64: 1, 128>}, {pipeline_mode = #tpu.pipeline_mode<synchronous>, transform_indices = @transform_2, window_bounds = array<i64: 1, 128>}, {transform_indices = @transform_3, window_bounds = array<i64: 432, 128>}, {transform_indices = @transform_4, window_bounds = array<i64: 432, 128>}]} {
    %c0 = arith.constant 0 : index
    %c0_0 = arith.constant 0 : index
    %0 = vector.load %arg2[%c0, %c0_0] : memref<432x128xbf16, #tpu.memory_space<vmem>>, vector<432x128xbf16>
    %1 = arith.extf %0 : vector<432x128xbf16> to vector<432x128xf32>
    %c0_1 = arith.constant 0 : index
    %c0_2 = arith.constant 0 : index
    %2 = vector.load %arg3[%c0_1, %c0_2] : memref<1x128xf32, #tpu.memory_space<vmem>>, vector<1x128xf32>
    %3 = vector.broadcast %2 : vector<1x128xf32> to vector<432x128xf32>
    %4 = arith.mulf %1, %3 : vector<432x128xf32>
    %c0_3 = arith.constant 0 : index
    %c0_4 = arith.constant 0 : index
    %5 = vector.load %arg4[%c0_3, %c0_4] : memref<1x128xf32, #tpu.memory_space<vmem>>, vector<1x128xf32>
    %6 = vector.broadcast %5 : vector<1x128xf32> to vector<432x128xf32>
    %7 = arith.addf %4, %6 : vector<432x128xf32>
    %c0_5 = arith.constant 0 : index
    %c0_6 = arith.constant 0 : index
    %8 = vector.load %arg5[%c0_5, %c0_6] : memref<432x128xbf16, #tpu.memory_space<vmem>>, vector<432x128xbf16>
    %9 = arith.extf %8 : vector<432x128xbf16> to vector<432x128xf32>
    %10 = arith.addf %7, %9 : vector<432x128xf32>
    %cst = arith.constant 0.000000e+00 : f32
    %11 = vector.broadcast %cst : f32 to vector<432x128xf32>
    %12 = arith.maximumf %10, %11 : vector<432x128xf32>
    %c0_7 = arith.constant 0 : index
    %c0_8 = arith.constant 0 : index
    %13 = vector.load %arg6[%c0_7, %c0_8] : memref<432x128xf32, #tpu.memory_space<vmem>>, vector<432x128xf32>
    tpu.vector_store %arg6[%c0_7, %c0_8], %12 {strides = array<i32>} : memref<432x128xf32, #tpu.memory_space<vmem>>, vector<432x128xf32>,
    return
  }
  func.func @transform_0(%arg0: i32, %arg1: i32) -> (i32, i32) {
    %c1_i32 = arith.constant 1 : i32
    %0 = arith.muli %arg0, %c1_i32 : i32
    %1 = arith.addi %0, %arg1 : i32
    %c0_i32 = arith.constant 0 : i32
    %c0_i32_0 = arith.constant 0 : i32
    return %1, %c0_i32 : i32, i32
  }
  func.func @transform_1(%arg0: i32, %arg1: i32) -> (i32, i32) {
    %c0_i32 = arith.constant 0 : i32
    %c0_i32_0 = arith.constant 0 : i32
    %c0_i32_1 = arith.constant 0 : i32
    return %c0_i32, %c0_i32_0 : i32, i32
  }
  func.func @transform_2(%arg0: i32, %arg1: i32) -> (i32, i32) {
    %c0_i32 = arith.constant 0 : i32
    %c0_i32_0 = arith.constant 0 : i32
    %c0_i32_1 = arith.constant 0 : i32
    return %c0_i32, %c0_i32_0 : i32, i32
  }
  func.func @transform_3(%arg0: i32, %arg1: i32) -> (i32, i32) {
    %c1_i32 = arith.constant 1 : i32
    %0 = arith.muli %arg0, %c1_i32 : i32
    %1 = arith.addi %0, %arg1 : i32
    %c0_i32 = arith.constant 0 : i32
    %c0_i32_0 = arith.constant 0 : i32
    return %1, %c0_i32 : i32, i32
  }
  func.func @transform_4(%arg0: i32, %arg1: i32) -> (i32, i32) {
    %c1_i32 = arith.constant 1 : i32
    %0 = arith.muli %arg0, %c1_i32 : i32
    %1 = arith.addi %0, %arg1 : i32
    %c0_i32 = arith.constant 0 : i32
    %c0_i32_0 = arith.constant 0 : i32
    return %1, %c0_i32 : i32, i32
  }
}

</mosaic_0001>

<llo_original>
// kernel: bottleneck_forward.4
$region0: #{bottleneck_forward.4}
  #allocation0 [shape = 'u32[]', space=smem, size = 0x4, offset = 0x4, fixed_abs, tag = 'smem constant byte address 0x4 - core index']
  #allocation1 [shape = 'u32[144,128]{1,0:T(1,128)}', space=vmem, size = 0x12000, scoped, tag = 'internal scratch']
  %s0 = inlined_call_operand.hbm [shape: bf16[864,128], index: 0, kind: input, shape index: {}]
  %s1 = inlined_call_operand.hbm [shape: bf16[128,128], index: 1, kind: input, shape index: {}]
  %s2 = inlined_call_operand.hbm [shape: bf16[864,128], index: 2, kind: output, shape index: {0}]
  %s3 = inlined_call_operand.hbm [shape: f32[2,1,128], index: 3, kind: output, shape index: {1}]
  %s4 = inlined_call_operand.hbm [shape: f32[2,1,128], index: 4, kind: output, shape index: {2}]
  %5 = xla_tuple %s2, %s3, %s4
  %s6 = sld [smem:[#allocation0]]
  $region65: #{bottleneck_forward.4} parent=0
    _
  %s8 = ssub.s32 1, %s6
  %s9 = scalar_select 0, %s8, %s6
  $region1: #{bottleneck_forward.4} parent=0
    #allocation2 [shape = 'u8[221184]{0}', space=vmem, size = 0x36000, scoped, tag = 'input window, operand 0']
    #allocation3 [shape = 's32[2]{0}', space=sflag, size = 0x8, scoped, tag = 'scoped memory for bottleneck_forward.4']
    #allocation4 [shape = 's32[2]{0}', space=sflag, size = 0x8, scoped, tag = 'scoped memory for bottleneck_forward.4']
    #allocation5 [shape = 'u8[32768]{0}', space=vmem, size = 0x8000, scoped, tag = 'input window, operand 1, single buffered']
    #allocation6 [shape = 's32[1]{0}', space=sflag, size = 0x4, scoped, tag = 'scoped memory for bottleneck_forward.4']
    #allocation7 [shape = 'u8[221184]{0}', space=vmem, size = 0x36000, scoped, tag = 'output window, operand 0']
    #allocation8 [shape = 'u8[1024]{0}', space=vmem, size = 0x400, scoped, tag = 'output window, operand 1']
    #allocation9 [shape = 's32[2]{0}', space=sflag, size = 0x8, scoped, tag = 'scoped memory for bottleneck_forward.4']
    #allocation10 [shape = 'u8[1024]{0}', space=vmem, size = 0x400, scoped, tag = 'output window, operand 2']
    %10 = vsyncpa [#allocation3], 0
    %s11 = scalar_lea.sflag [#allocation3], 1
    %12 = vsyncpa %s11, 0
    %13 = vsyncpa [#allocation6], 0
    %14 = vsyncpa [#allocation4], 0
    %s15 = scalar_lea.sflag [#allocation4], 1
    %16 = vsyncpa %s15, 0
    %17 = vsyncpa [#allocation9], 0
    %s18 = scalar_lea.sflag [#allocation9], 1
    %19 = vsyncpa %s18, 0
    loop: start=0, step=1, limit=4
    $region2: #{bottleneck_forward.4} parent=1 // loop_pre_header
      _
    $region3: #{bottleneck_forward.4} parent=1 // loop_header
      %s21 = sphi 0, %s25
      %p22 = scmp.ge.s32.totalorder %s21, 4
      %s28 = sphi 0, %s40
      %s29 = sphi 0, %s36
      %s30 = sphi 0, %s28
      %s31 = sphi 0, %s29
      %s32 = sphi 0, %s30
      %s33 = sphi 0, %s31
      %s45 = sphi 0, %s47
      %s48 = sphi 0, %s45
      %s49 = sphi 0, %s48
      %s65 = sphi 0, %s49
      %s69 = sphi 0, %s69
      %s71 = sphi 0, %s69
      %s72 = sphi 0, %s71
      %s86 = sphi 0, %s72
      %s94 = sphi 0, %s96
      %s97 = sphi 0, %s94
      %s98 = sphi 0, %s97
      %s114 = sphi 0, %s98
      %s122 = sphi 0, %s124
      %s125 = sphi 0, %s122
      %s126 = sphi 0, %s125
      %s142 = sphi 0, %s126
      %s150 = sphi 0, %s152
      %s153 = sphi 0, %s150
      %s154 = sphi 0, %s153
      %s170 = sphi 0, %s154
    $region4: #{bottleneck_forward.4} parent=1 // loop_header_branch
      %24 = sbr.rel (%p22) target = $region8
    $region5: #{bottleneck_forward.4} parent=1 // loop_body
      %s26 = ssub.s32 %s21, 1
      %s27 = ssub.s32 %s21, 2
      %s34 = sadd.s32 1, %s29
      %p35 = scmp.ge.s32.totalorder %s34, 1
      %s36 = scalar_select %p35, 0, %s34
      %s37 = sadd.s32 1, %s28
      %s38 = scalar_select %p35, %s37, %s28
      %p39 = scmp.ge.s32.totalorder %s38, 2
      %s40 = scalar_select %p39, 0, %s38
      %s41 = sadd.s32 %s28, %s29
      %s42 = sadd.s32 %s40, %s36
      %s43 = ssub.s32 %s41, %s42
      %p44 = scmp.eq.s32.totalorder %s43, 0
      %s46 = sadd.s32 %s45, 1
      %s47 = scalar_select %p44, %s45, %s46
      %p50 = pneg %p44
      %p51 = scmp.eq.s32.totalorder %s21, 1
      %p52 = por %p50, %p51
      %p53 = scmp.ne.s32.totalorder %s45, %s48
      %p54 = scmp.eq.s32.totalorder %s21, 0
      %p55 = por %p53, %p54
      %p56 = scmp.ne.s32.totalorder %s45, %s48
      %p57 = scmp.eq.s32.totalorder %s26, 1
      %p58 = por %p56, %p57
      %p59 = scmp.ne.s32.totalorder %s48, %s49
      %p60 = scmp.eq.s32.totalorder %s26, 0
      %p61 = por %p59, %p60
      %p62 = scmp.ne.s32.totalorder %s48, %s49
      %p63 = scmp.eq.s32.totalorder %s27, 1
      %p64 = por %p62, %p63
      %p66 = scmp.ne.s32.totalorder %s49, %s65
      %p67 = scmp.eq.s32.totalorder %s27, 0
      %p68 = por %p66, %p67
      %s70 = sadd.s32 %s69, 1
      %p73 = scmp.eq.s32.totalorder %s21, 1
      %p74 = scmp.ne.s32.totalorder %s69, %s71
      %p75 = scmp.eq.s32.totalorder %s21, 0
      %p76 = por %p74, %p75
      %p77 = scmp.ne.s32.totalorder %s69, %s71
      %p78 = scmp.eq.s32.totalorder %s26, 1
      %p79 = por %p77, %p78
      %p80 = scmp.ne.s32.totalorder %s71, %s72
      %p81 = scmp.eq.s32.totalorder %s26, 0
      %p82 = por %p80, %p81
      %p83 = scmp.ne.s32.totalorder %s71, %s72
      %p84 = scmp.eq.s32.totalorder %s27, 1
      %p85 = por %p83, %p84
      %p87 = scmp.ne.s32.totalorder %s72, %s86
      %p88 = scmp.eq.s32.totalorder %s27, 0
      %p89 = por %p87, %p88
      %s90 = sadd.s32 %s28, %s29
      %s91 = sadd.s32 %s40, %s36
      %s92 = ssub.s32 %s90, %s91
      %p93 = scmp.eq.s32.totalorder %s92, 0
      %s95 = sadd.s32 %s94, 1
      %s96 = scalar_select %p93, %s94, %s95
      %p99 = pneg %p93
      %p100 = scmp.eq.s32.totalorder %s21, 1
      %p101 = por %p99, %p100
      %p102 = scmp.ne.s32.totalorder %s94, %s97
      %p103 = scmp.eq.s32.totalorder %s21, 0
      %p104 = por %p102, %p103
      %p105 = scmp.ne.s32.totalorder %s94, %s97
      %p106 = scmp.eq.s32.totalorder %s26, 1
      %p107 = por %p105, %p106
      %p108 = scmp.ne.s32.totalorder %s97, %s98
      %p109 = scmp.eq.s32.totalorder %s26, 0
      %p110 = por %p108, %p109
      %p111 = scmp.ne.s32.totalorder %s97, %s98
      %p112 = scmp.eq.s32.totalorder %s27, 1
      %p113 = por %p111, %p112
      %p115 = scmp.ne.s32.totalorder %s98, %s114
      %p116 = scmp.eq.s32.totalorder %s27, 0
      %p117 = por %p115, %p116
      %s118 = sadd.s32 %s28, %s29
      %s119 = sadd.s32 %s40, %s36
      %s120 = ssub.s32 %s118, %s119
      %p121 = scmp.eq.s32.totalorder %s120, 0
      %s123 = sadd.s32 %s122, 1
      %s124 = scalar_select %p121, %s122, %s123
      %p127 = pneg %p121
      %p128 = scmp.eq.s32.totalorder %s21, 1
      %p129 = por %p127, %p128
      %p130 = scmp.ne.s32.totalorder %s122, %s125
      %p131 = scmp.eq.s32.totalorder %s21, 0
      %p132 = por %p130, %p131
      %p133 = scmp.ne.s32.totalorder %s122, %s125
      %p134 = scmp.eq.s32.totalorder %s26, 1
      %p135 = por %p133, %p134
      %p136 = scmp.ne.s32.totalorder %s125, %s126
      %p137 = scmp.eq.s32.totalorder %s26, 0
      %p138 = por %p136, %p137
      %p139 = scmp.ne.s32.totalorder %s125, %s126
      %p140 = scmp.eq.s32.totalorder %s27, 1
      %p141 = por %p139, %p140
      %p143 = scmp.ne.s32.totalorder %s126, %s142
      %p144 = scmp.eq.s32.totalorder %s27, 0
      %p145 = por %p143, %p144
      %s146 = sadd.s32 %s28, %s29
      %s147 = sadd.s32 %s40, %s36
      %s148 = ssub.s32 %s146, %s147
      %p149 = scmp.eq.s32.totalorder %s148, 0
      %s151 = sadd.s32 %s150, 1
      %s152 = scalar_select %p149, %s150, %s151
      %p155 = pneg %p149
      %p156 = scmp.eq.s32.totalorder %s21, 1
      %p157 = por %p155, %p156
      %p158 = scmp.ne.s32.totalorder %s150, %s153
      %p159 = scmp.eq.s32.totalorder %s21, 0
      %p160 = por %p158, %p159
      %p161 = scmp.ne.s32.totalorder %s150, %s153
      %p162 = scmp.eq.s32.totalorder %s26, 1
      %p163 = por %p161, %p162
      %p164 = scmp.ne.s32.totalorder %s153, %s154
      %p165 = scmp.eq.s32.totalorder %s26, 0
      %p166 = por %p164, %p165
      %p167 = scmp.ne.s32.totalorder %s153, %s154
      %p168 = scmp.eq.s32.totalorder %s27, 1
      %p169 = por %p167, %p168
      %p171 = scmp.ne.s32.totalorder %s154, %s170
      %p172 = scmp.eq.s32.totalorder %s27, 0
      %p173 = por %p171, %p172
      %p174 = scmp.le.s32.totalorder 1, %s21
      %p175 = scmp.lt.s32.totalorder %s21, 3
      %p176 = pnand %p174, %p175
      %p177 = pneg %p176
      // Predicated region
      $region9: #{bottleneck_forward.4} parent=5 // pred_check
        _
      $region10: #{bottleneck_forward.4} parent=5 // pred_check_branch
        %179 = sbr.rel (%p176) target = $region12
      $region11: #{bottleneck_forward.4} parent=5 // pred_region
        %s180 = ssub.s32 %s21, 1
        // Predicated region
        $region13: #{bottleneck_forward.4} parent=11 // pred_check
          %p181 = pneg %p82
        $region14: #{bottleneck_forward.4} parent=11 // pred_check_branch
          %183 = sbr.rel (%p181) target = $region16
        $region15: #{bottleneck_forward.4} parent=11 // pred_region
          %s185 = ssub.s32 1024, 1024
          %186 = vsyncadd [#allocation6], %s185
          %s187 = sshll.u32 [#allocation5], 4
          %s188 = int_to_ptr.vmem [resolvable:$true] %s187
          %193 = dma.hbm_to_vmem [thread:$0]  %s1, 1024, %s188, [#allocation6], 64, 64, 4
        $region16: #{bottleneck_forward.4} parent=11 // pred_fallthru
          _
      $region12: #{bottleneck_forward.4} parent=5 // pred_fallthru
        _
      %p194 = scmp.lt.s32.totalorder %s21, 2
      // Predicated region
      $region17: #{bottleneck_forward.4} parent=5 // pred_check
        %p195 = pneg %p194
      $region18: #{bottleneck_forward.4} parent=5 // pred_check_branch
        %197 = sbr.rel (%p195) target = $region20
      $region19: #{bottleneck_forward.4} parent=5 // pred_region
        // Predicated region
        $region21: #{bottleneck_forward.4} parent=19 // pred_check
          %p198 = pneg %p55
        $region22: #{bottleneck_forward.4} parent=19 // pred_check_branch
          %200 = sbr.rel (%p198) target = $region24
        $region23: #{bottleneck_forward.4} parent=19 // pred_region
          %s201 = sand.u32 %s45, 1
          %s202 = scalar_lea.sflag [#allocation3], %s201
          %s203 = sand.u32 %s45, 1
          %s204 = smul.addr %s203, 216
          %s205 = scalar_lea.vmem [#allocation2], %s204
          %s206 = sadd.s32 %s28, %s29
          %s207 = smul.u32 54, %s206
          %s209 = ssub.s32 3456, 3456
          %210 = vsyncadd %s202, %s209
          %s211 = smul.addr %s207, 64
          %s212 = scalar_lea.hbm %s0, %s211
          %s213 = sshll.u32 %s205, 4
          %s214 = int_to_ptr.vmem [resolvable:$true] %s213
          %219 = dma.hbm_to_vmem [thread:$0]  %s212, 3456, %s214, %s202, 64, 64, 4
        $region24: #{bottleneck_forward.4} parent=19 // pred_fallthru
          _
      $region20: #{bottleneck_forward.4} parent=5 // pred_fallthru
        _
      %p220 = scmp.le.s32.totalorder 1, %s21
      %p221 = scmp.lt.s32.totalorder %s21, 3
      %p222 = pnand %p220, %p221
      %p223 = pneg %p222
      // Predicated region
      $region25: #{bottleneck_forward.4} parent=5 // pred_check
        _
      $region26: #{bottleneck_forward.4} parent=5 // pred_check_branch
        %225 = sbr.rel (%p222) target = $region28
      $region27: #{bottleneck_forward.4} parent=5 // pred_region
        %s226 = ssub.s32 %s21, 1
        %s227 = sand.u32 %s48, 1
        %s228 = scalar_lea.sflag [#allocation3], %s227
        %s229 = sand.u32 %s48, 1
        %s230 = smul.addr %s229, 216
        %s231 = scalar_lea.vmem [#allocation2], %s230
        // Predicated region
        $region29: #{bottleneck_forward.4} parent=27 // pred_check
          %p232 = pneg %p61
        $region30: #{bottleneck_forward.4} parent=27 // pred_check_branch
          %234 = sbr.rel (%p232) target = $region32
        $region31: #{bottleneck_forward.4} parent=27 // pred_region
          %235 = dma.done %s228, 3456
        $region32: #{bottleneck_forward.4} parent=27 // pred_fallthru
          _
        // Predicated region
        $region33: #{bottleneck_forward.4} parent=27 // pred_check
          %p236 = pneg %p82
        $region34: #{bottleneck_forward.4} parent=27 // pred_check_branch
          %238 = sbr.rel (%p236) target = $region36
        $region35: #{bottleneck_forward.4} parent=27 // pred_region
          %239 = dma.done [#allocation6], 1024
        $region36: #{bottleneck_forward.4} parent=27 // pred_fallthru
          _
        %s240 = sand.u32 %s48, 1
        %s241 = scalar_lea.sflag [#allocation3], %s240
        %s242 = sand.u32 %s48, 1
        %s243 = smul.addr %s242, 216
        %s244 = scalar_lea.vmem [#allocation2], %s243
        %p245 = pneg %p61
        %p246 = pneg %p58
        %p247 = pneg %p82
        %p248 = pneg %p79
        %p249 = pneg %p110
        %p250 = pneg %p107
        %s251 = sand.u32 %s97, 1
        %s252 = scalar_lea.sflag [#allocation4], %s251
        %s253 = sand.u32 %s97, 1
        %s254 = smul.addr %s253, 216
        %s255 = scalar_lea.vmem [#allocation7], %s254
        %p256 = pneg %p138
        %p257 = pneg %p135
        %s258 = sand.u32 %s26, 1
        %s259 = scalar_lea.sflag [#allocation9], %s258
        %s260 = sand.u32 %s125, 1
        %s261 = scalar_lea.vmem [#allocation8], %s260
        %p262 = pneg %p166
        %p263 = pneg %p163
        %s264 = sand.u32 %s26, 1
        %s265 = scalar_lea.sflag [#allocation9], %s264
        %s266 = sand.u32 %s153, 1
        %s267 = scalar_lea.vmem [#allocation10], %s266
        %s268 = sadd.s32 %s30, %s31
        %s269 = smul.u32 54, %s268
        %s270 = sadd.s32 %s30, %s31
        %s271 = smul.u32 54, %s270
        %s272 = sadd.s32 %s30, %s31
        %s273 = sadd.s32 %s30, %s31
        %v275 = vld [vmem:[%s231] sm:$0xf]
        %v276 = vld [vmem:[%s231 + $0x4] sm:$0xf]
        %v277 = vld [vmem:[%s231 + $0x8] sm:$0xf]
        %v278 = vld [vmem:[%s231 + $0xc] sm:$0xf]
        %v279 = vld [vmem:[%s231 + $0x10] sm:$0xf]
        %v280 = vld [vmem:[%s231 + $0x14] sm:$0xf]
        %v281 = vld [vmem:[%s231 + $0x18] sm:$0xf]
        %v282 = vld [vmem:[%s231 + $0x1c] sm:$0xf]
        %v283 = vld [vmem:[%s231 + $0x20] sm:$0xf]
        %v284 = vld [vmem:[%s231 + $0x24] sm:$0xf]
        %v285 = vld [vmem:[%s231 + $0x28] sm:$0xf]
        %v286 = vld [vmem:[%s231 + $0x2c] sm:$0xf]
        %v287 = vld [vmem:[%s231 + $0x30] sm:$0xf]
        %v288 = vld [vmem:[%s231 + $0x34] sm:$0xf]
        %v289 = vld [vmem:[%s231 + $0x38] sm:$0xf]
        %v290 = vld [vmem:[%s231 + $0x3c] sm:$0xf]
        %v291 = vld [vmem:[%s231 + $0x40] sm:$0xf]
        %v292 = vld [vmem:[%s231 + $0x44] sm:$0xf]
        %v293 = vld [vmem:[%s231 + $0x48] sm:$0xf]
        %v294 = vld [vmem:[%s231 + $0x4c] sm:$0xf]
        %v295 = vld [vmem:[%s231 + $0x50] sm:$0xf]
        %v296 = vld [vmem:[%s231 + $0x54] sm:$0xf]
        %v297 = vld [vmem:[%s231 + $0x58] sm:$0xf]
        %v298 = vld [vmem:[%s231 + $0x5c] sm:$0xf]
        %v299 = vld [vmem:[%s231 + $0x60] sm:$0xf]
        %v300 = vld [vmem:[%s231 + $0x64] sm:$0xf]
        %v301 = vld [vmem:[%s231 + $0x68] sm:$0xf]
        %v302 = vld [vmem:[%s231 + $0x6c] sm:$0xf]
        %v303 = vld [vmem:[%s231 + $0x70] sm:$0xf]
        %v304 = vld [vmem:[%s231 + $0x74] sm:$0xf]
        %v305 = vld [vmem:[%s231 + $0x78] sm:$0xf]
        %v306 = vld [vmem:[%s231 + $0x7c] sm:$0xf]
        %v307 = vld [vmem:[%s231 + $0x80] sm:$0xf]
        %v308 = vld [vmem:[%s231 + $0x84] sm:$0xf]
        %v309 = vld [vmem:[%s231 + $0x88] sm:$0xf]
        %v310 = vld [vmem:[%s231 + $0x8c] sm:$0xf]
        %v311 = vld [vmem:[%s231 + $0x90] sm:$0xf]
        %v312 = vld [vmem:[%s231 + $0x94] sm:$0xf]
        %v313 = vld [vmem:[%s231 + $0x98] sm:$0xf]
        %v314 = vld [vmem:[%s231 + $0x9c] sm:$0xf]
        %v315 = vld [vmem:[%s231 + $0xa0] sm:$0xf]
        %v316 = vld [vmem:[%s231 + $0xa4] sm:$0xf]
        %v317 = vld [vmem:[%s231 + $0xa8] sm:$0xf]
        %v318 = vld [vmem:[%s231 + $0xac] sm:$0xf]
        %v319 = vld [vmem:[%s231 + $0xb0] sm:$0xf]
        %v320 = vld [vmem:[%s231 + $0xb4] sm:$0xf]
        %v321 = vld [vmem:[%s231 + $0xb8] sm:$0xf]
        %v322 = vld [vmem:[%s231 + $0xbc] sm:$0xf]
        %v323 = vld [vmem:[%s231 + $0xc0] sm:$0xf]
        %v324 = vld [vmem:[%s231 + $0xc4] sm:$0xf]
        %v325 = vld [vmem:[%s231 + $0xc8] sm:$0xf]
        %v326 = vld [vmem:[%s231 + $0xcc] sm:$0xf]
        %v327 = vld [vmem:[%s231 + $0xd0] sm:$0xf]
        %v328 = vld [vmem:[%s231 + $0xd4] sm:$0xf]
        %v329 = vld [vmem:[#allocation5] sm:$0xf]
        %v330 = vld [vmem:[#allocation5 + $0x4] sm:$0xf]
        %v331 = vld [vmem:[#allocation5 + $0x8] sm:$0xf]
        %v332 = vld [vmem:[#allocation5 + $0xc] sm:$0xf]
        %v333 = vld [vmem:[#allocation5 + $0x10] sm:$0xf]
        %v334 = vld [vmem:[#allocation5 + $0x14] sm:$0xf]
        %v335 = vld [vmem:[#allocation5 + $0x18] sm:$0xf]
        %v336 = vld [vmem:[#allocation5 + $0x1c] sm:$0xf]
        %v337 = vld [vmem:[#allocation5 + $0x20] sm:$0xf]
        %v338 = vld [vmem:[#allocation5 + $0x24] sm:$0xf]
        %v339 = vld [vmem:[#allocation5 + $0x28] sm:$0xf]
        %v340 = vld [vmem:[#allocation5 + $0x2c] sm:$0xf]
        %v341 = vld [vmem:[#allocation5 + $0x30] sm:$0xf]
        %v342 = vld [vmem:[#allocation5 + $0x34] sm:$0xf]
        %v343 = vld [vmem:[#allocation5 + $0x38] sm:$0xf]
        %v344 = vld [vmem:[#allocation5 + $0x3c] sm:$0xf]
        %v399 = vunpack.c.l.b16 %v275
        %v400 = vunpack.c.l.b16 %v276
        %v401 = vunpack.c.l.b16 %v277
        %v402 = vunpack.c.l.b16 %v278
        %v403 = vunpack.c.l.b16 %v279
        %v404 = vunpack.c.l.b16 %v280
        %v405 = vunpack.c.l.b16 %v281
        %v406 = vunpack.c.l.b16 %v282
        %v407 = vunpack.c.l.b16 %v283
        %v408 = vunpack.c.l.b16 %v284
        %v409 = vunpack.c.l.b16 %v285
        %v410 = vunpack.c.l.b16 %v286
        %v411 = vunpack.c.l.b16 %v287
        %v412 = vunpack.c.l.b16 %v288
        %v413 = vunpack.c.l.b16 %v289
        %v414 = vunpack.c.l.b16 %v290
        %v415 = vunpack.c.l.b16 %v291
        %v416 = vunpack.c.l.b16 %v292
        %v417 = vunpack.c.l.b16 %v293
        %v418 = vunpack.c.l.b16 %v294
        %v419 = vunpack.c.l.b16 %v295
        %v420 = vunpack.c.l.b16 %v296
        %v421 = vunpack.c.l.b16 %v297
        %v422 = vunpack.c.l.b16 %v298
        %v423 = vunpack.c.l.b16 %v299
        %v424 = vunpack.c.l.b16 %v300
        %v425 = vunpack.c.l.b16 %v301
        %v426 = vunpack.c.l.b16 %v302
        %v427 = vunpack.c.l.b16 %v303
        %v428 = vunpack.c.l.b16 %v304
        %v429 = vunpack.c.l.b16 %v305
        %v430 = vunpack.c.l.b16 %v306
        %v431 = vunpack.c.l.b16 %v307
        %v432 = vunpack.c.l.b16 %v308
        %v433 = vunpack.c.l.b16 %v309
        %v434 = vunpack.c.l.b16 %v310
        %v435 = vunpack.c.l.b16 %v311
        %v436 = vunpack.c.l.b16 %v312
        %v437 = vunpack.c.l.b16 %v313
        %v438 = vunpack.c.l.b16 %v314
        %v439 = vunpack.c.l.b16 %v315
        %v440 = vunpack.c.l.b16 %v316
        %v441 = vunpack.c.l.b16 %v317
        %v442 = vunpack.c.l.b16 %v318
        %v443 = vunpack.c.l.b16 %v319
        %v444 = vunpack.c.l.b16 %v320
        %v445 = vunpack.c.l.b16 %v321
        %v446 = vunpack.c.l.b16 %v322
        %v447 = vunpack.c.l.b16 %v323
        %v448 = vunpack.c.l.b16 %v324
        %v449 = vunpack.c.l.b16 %v325
        %v450 = vunpack.c.l.b16 %v326
        %v451 = vunpack.c.l.b16 %v327
        %v452 = vunpack.c.l.b16 %v328
        %v453 = vpack.c.b16 %v400, %v399
        %v454 = vpack.c.b16 %v402, %v401
        %v455 = vpack.c.b16 %v404, %v403
        %v456 = vpack.c.b16 %v406, %v405
        %v457 = vpack.c.b16 %v408, %v407
        %v458 = vpack.c.b16 %v410, %v409
        %v459 = vpack.c.b16 %v412, %v411
        %v460 = vpack.c.b16 %v414, %v413
        %v461 = vpack.c.b16 %v416, %v415
        %v462 = vpack.c.b16 %v418, %v417
        %v463 = vpack.c.b16 %v420, %v419
        %v464 = vpack.c.b16 %v422, %v421
        %v465 = vpack.c.b16 %v424, %v423
        %v466 = vpack.c.b16 %v426, %v425
        %v467 = vpack.c.b16 %v428, %v427
        %v468 = vpack.c.b16 %v430, %v429
        %v469 = vpack.c.b16 %v432, %v431
        %v470 = vpack.c.b16 %v434, %v433
        %v471 = vpack.c.b16 %v436, %v435
        %v472 = vpack.c.b16 %v438, %v437
        %v473 = vpack.c.b16 %v440, %v439
        %v474 = vpack.c.b16 %v442, %v441
        %v475 = vpack.c.b16 %v444, %v443
        %v476 = vpack.c.b16 %v446, %v445
        %v477 = vpack.c.b16 %v448, %v447
        %v478 = vpack.c.b16 %v450, %v449
        %v479 = vpack.c.b16 %v452, %v451
        %v523 = vunpack.c.l.b16 %v329
        %v524 = vunpack.c.l.b16 %v330
        %v525 = vunpack.c.l.b16 %v331
        %v526 = vunpack.c.l.b16 %v332
        %v527 = vunpack.c.l.b16 %v333
        %v528 = vunpack.c.l.b16 %v334
        %v529 = vunpack.c.l.b16 %v335
        %v530 = vunpack.c.l.b16 %v336
        %v531 = vunpack.c.l.b16 %v337
        %v532 = vunpack.c.l.b16 %v338
        %v533 = vunpack.c.l.b16 %v339
        %v534 = vunpack.c.l.b16 %v340
        %v535 = vunpack.c.l.b16 %v341
        %v536 = vunpack.c.l.b16 %v342
        %v537 = vunpack.c.l.b16 %v343
        %v538 = vunpack.c.l.b16 %v344
        %v539 = vpack.c.b16 %v524, %v523
        %v540 = vpack.c.b16 %v526, %v525
        %v541 = vpack.c.b16 %v528, %v527
        %v542 = vpack.c.b16 %v530, %v529
        %v543 = vpack.c.b16 %v532, %v531
        %v544 = vpack.c.b16 %v534, %v533
        %v545 = vpack.c.b16 %v536, %v535
        %v546 = vpack.c.b16 %v538, %v537
        %555 = vmatprep.subr.bf16.mxu0 0
        %556 = vmatpush1.bf16.msra.mxu0 %v539
        %557 = vmatprep.subr.bf16.mxu0 0
        %558 = vmatpush1.bf16.msra.mxu0 %v540
        %559 = vmatprep.subr.bf16.mxu0 0
        %560 = vmatpush1.bf16.msra.mxu0 %v541
        %561 = vmatprep.subr.bf16.mxu0 0
        %562 = vmatpush1.bf16.msra.mxu0 %v542
        %563 = vmatprep.subr.bf16.mxu0 0
        %564 = vmatpush1.bf16.msra.mxu0 %v543
        %565 = vmatprep.subr.bf16.mxu0 0
        %566 = vmatpush1.bf16.msra.mxu0 %v544
        %567 = vmatprep.subr.bf16.mxu0 0
        %568 = vmatpush1.bf16.msra.mxu0 %v545
        %569 = vmatprep.subr.bf16.mxu0 0
        %570 = vmatpush1.bf16.msra.mxu0 %v546
        %571 = vmatprep.subr.bf16.mxu0 0
        %572 = vmatpush1.bf16.msra.mxu0 0
        %573 = vmatprep.subr.bf16.mxu0 0
        %574 = vmatpush1.bf16.msra.mxu0 0
        %575 = vmatprep.subr.bf16.mxu0 0
        %576 = vmatpush1.bf16.msra.mxu0 0
        %577 = vmatprep.subr.bf16.mxu0 0
        %578 = vmatpush1.bf16.msra.mxu0 0
        %579 = vmatprep.subr.bf16.mxu0 0
        %580 = vmatpush1.bf16.msra.mxu0 0
        %581 = vmatprep.subr.bf16.mxu0 0
        %582 = vmatpush1.bf16.msra.mxu0 0
        %583 = vmatprep.subr.bf16.mxu0 0
        %584 = vmatpush1.bf16.msra.mxu0 0
        %585 = vmatprep.subr.bf16.mxu0 0
        %586 = vmatpush1.bf16.msra.mxu0 0
        %587 = vmatprep.mubr.bf16.mxu0 0
        %588 = vmatmul.mubr.bf16.gmra.mrb[0].mxu0 %v453
        %v589 = vpop.f32.mrb[0].mxu0
        %v590 = vadd.f32 0.0, %v589
        %v591 = vpop.f32.mrb[0].mxu0
        %v592 = vpop.f32.mrb[0].mxu0
        %v593 = vadd.f32 0.0, %v592
        %v594 = vpop.f32.mrb[0].mxu0
        %595 = vmatprep.mubr.bf16.mxu0 0
        %596 = vmatmul.mubr.bf16.gmra.mrb[0].mxu0 %v454
        %v597 = vpop.f32.mrb[0].mxu0
        %v598 = vadd.f32 0.0, %v597
        %v599 = vpop.f32.mrb[0].mxu0
        %v600 = vpop.f32.mrb[0].mxu0
        %v601 = vadd.f32 0.0, %v600
        %v602 = vpop.f32.mrb[0].mxu0
        %603 = vmatprep.mubr.bf16.mxu0 0
        %604 = vmatmul.mubr.bf16.gmra.mrb[0].mxu0 %v455
        %v605 = vpop.f32.mrb[0].mxu0
        %v606 = vadd.f32 0.0, %v605
        %v607 = vpop.f32.mrb[0].mxu0
        %v608 = vpop.f32.mrb[0].mxu0
        %v609 = vadd.f32 0.0, %v608
        %v610 = vpop.f32.mrb[0].mxu0
        %611 = vmatprep.mubr.bf16.mxu0 0
        %612 = vmatmul.mubr.bf16.gmra.mrb[0].mxu0 %v456
        %v613 = vpop.f32.mrb[0].mxu0
        %v614 = vadd.f32 0.0, %v613
        %v615 = vpop.f32.mrb[0].mxu0
        %v616 = vpop.f32.mrb[0].mxu0
        %v617 = vadd.f32 0.0, %v616
        %v618 = vpop.f32.mrb[0].mxu0
        %619 = vmatprep.mubr.bf16.mxu0 0
        %620 = vmatmul.mubr.bf16.gmra.mrb[0].mxu0 %v457
        %v621 = vpop.f32.mrb[0].mxu0
        %v622 = vadd.f32 0.0, %v621
        %v623 = vpop.f32.mrb[0].mxu0
        %v624 = vpop.f32.mrb[0].mxu0
        %v625 = vadd.f32 0.0, %v624
        %v626 = vpop.f32.mrb[0].mxu0
        %627 = vmatprep.mubr.bf16.mxu0 0
        %628 = vmatmul.mubr.bf16.gmra.mrb[0].mxu0 %v458
        %v629 = vpop.f32.mrb[0].mxu0
        %v630 = vadd.f32 0.0, %v629
        %v631 = vpop.f32.mrb[0].mxu0
        %v632 = vpop.f32.mrb[0].mxu0
        %v633 = vadd.f32 0.0, %v632
        %v634 = vpop.f32.mrb[0].mxu0
        %635 = vmatprep.mubr.bf16.mxu0 0
        %636 = vmatmul.mubr.bf16.gmra.mrb[0].mxu0 %v459
        %v637 = vpop.f32.mrb[0].mxu0
        %v638 = vadd.f32 0.0, %v637
        %v639 = vpop.f32.mrb[0].mxu0
        %v640 = vpop.f32.mrb[0].mxu0
        %v641 = vadd.f32 0.0, %v640
        %v642 = vpop.f32.mrb[0].mxu0
        %643 = vmatprep.mubr.bf16.mxu0 0
        %644 = vmatmul.mubr.bf16.gmra.mrb[0].mxu0 %v460
        %v645 = vpop.f32.mrb[0].mxu0
        %v646 = vadd.f32 0.0, %v645
        %v647 = vpop.f32.mrb[0].mxu0
        %v648 = vpop.f32.mrb[0].mxu0
        %v649 = vadd.f32 0.0, %v648
        %v650 = vpop.f32.mrb[0].mxu0
        %651 = vmatprep.mubr.bf16.mxu0 0
        %652 = vmatmul.mubr.bf16.gmra.mrb[0].mxu0 %v461
        %v653 = vpop.f32.mrb[0].mxu0
        %v654 = vadd.f32 0.0, %v653
        %v655 = vpop.f32.mrb[0].mxu0
        %v656 = vpop.f32.mrb[0].mxu0
        %v657 = vadd.f32 0.0, %v656
        %v658 = vpop.f32.mrb[0].mxu0
        %659 = vmatprep.mubr.bf16.mxu0 0
        %660 = vmatmul.mubr.bf16.gmra.mrb[0].mxu0 %v462
        %v661 = vpop.f32.mrb[0].mxu0
        %v662 = vadd.f32 0.0, %v661
        %v663 = vpop.f32.mrb[0].mxu0
        %v664 = vpop.f32.mrb[0].mxu0
        %v665 = vadd.f32 0.0, %v664
        %v666 = vpop.f32.mrb[0].mxu0
        %667 = vmatprep.mubr.bf16.mxu0 0
        %668 = vmatmul.mubr.bf16.gmra.mrb[0].mxu0 %v463
        %v669 = vpop.f32.mrb[0].mxu0
        %v670 = vadd.f32 0.0, %v669
        %v671 = vpop.f32.mrb[0].mxu0
        %v672 = vpop.f32.mrb[0].mxu0
        %v673 = vadd.f32 0.0, %v672
        %v674 = vpop.f32.mrb[0].mxu0
        %675 = vmatprep.mubr.bf16.mxu0 0
        %676 = vmatmul.mubr.bf16.gmra.mrb[0].mxu0 %v464
        %v677 = vpop.f32.mrb[0].mxu0
        %v678 = vadd.f32 0.0, %v677
        %v679 = vpop.f32.mrb[0].mxu0
        %v680 = vpop.f32.mrb[0].mxu0
        %v681 = vadd.f32 0.0, %v680
        %v682 = vpop.f32.mrb[0].mxu0
        %683 = vmatprep.mubr.bf16.mxu0 0
        %684 = vmatmul.mubr.bf16.gmra.mrb[0].mxu0 %v465
        %v685 = vpop.f32.mrb[0].mxu0
        %v686 = vadd.f32 0.0, %v685
        %v687 = vpop.f32.mrb[0].mxu0
        %v688 = vpop.f32.mrb[0].mxu0
        %v689 = vadd.f32 0.0, %v688
        %v690 = vpop.f32.mrb[0].mxu0
        %691 = vmatprep.mubr.bf16.mxu0 0
        %692 = vmatmul.mubr.bf16.gmra.mrb[0].mxu0 %v466
        %v693 = vpop.f32.mrb[0].mxu0
        %v694 = vadd.f32 0.0, %v693
        %v695 = vpop.f32.mrb[0].mxu0
        %v696 = vpop.f32.mrb[0].mxu0
        %v697 = vadd.f32 0.0, %v696
        %v698 = vpop.f32.mrb[0].mxu0
        %699 = vmatprep.mubr.bf16.mxu0 0
        %700 = vmatmul.mubr.bf16.gmra.mrb[0].mxu0 %v467
        %v701 = vpop.f32.mrb[0].mxu0
        %v702 = vadd.f32 0.0, %v701
        %v703 = vpop.f32.mrb[0].mxu0
        %v704 = vpop.f32.mrb[0].mxu0
        %v705 = vadd.f32 0.0, %v704
        %v706 = vpop.f32.mrb[0].mxu0
        %707 = vmatprep.mubr.bf16.mxu0 0
        %708 = vmatmul.mubr.bf16.gmra.mrb[0].mxu0 %v468
        %v709 = vpop.f32.mrb[0].mxu0
        %v710 = vadd.f32 0.0, %v709
        %v711 = vpop.f32.mrb[0].mxu0
        %v712 = vpop.f32.mrb[0].mxu0
        %v713 = vadd.f32 0.0, %v712
        %v714 = vpop.f32.mrb[0].mxu0
        %715 = vmatprep.mubr.bf16.mxu0 0
        %716 = vmatmul.mubr.bf16.gmra.mrb[0].mxu0 %v469
        %v717 = vpop.f32.mrb[0].mxu0
        %v718 = vadd.f32 0.0, %v717
        %v719 = vpop.f32.mrb[0].mxu0
        %v720 = vpop.f32.mrb[0].mxu0
        %v721 = vadd.f32 0.0, %v720
        %v722 = vpop.f32.mrb[0].mxu0
        %723 = vmatprep.mubr.bf16.mxu0 0
        %724 = vmatmul.mubr.bf16.gmra.mrb[0].mxu0 %v470
        %v725 = vpop.f32.mrb[0].mxu0
        %v726 = vadd.f32 0.0, %v725
        %v727 = vpop.f32.mrb[0].mxu0
        %v728 = vpop.f32.mrb[0].mxu0
        %v729 = vadd.f32 0.0, %v728
        %v730 = vpop.f32.mrb[0].mxu0
        %731 = vmatprep.mubr.bf16.mxu0 0
        %732 = vmatmul.mubr.bf16.gmra.mrb[0].mxu0 %v471
        %v733 = vpop.f32.mrb[0].mxu0
        %v734 = vadd.f32 0.0, %v733
        %v735 = vpop.f32.mrb[0].mxu0
        %v736 = vpop.f32.mrb[0].mxu0
        %v737 = vadd.f32 0.0, %v736
        %v738 = vpop.f32.mrb[0].mxu0
        %739 = vmatprep.mubr.bf16.mxu0 0
        %740 = vmatmul.mubr.bf16.gmra.mrb[0].mxu0 %v472
        %v741 = vpop.f32.mrb[0].mxu0
        %v742 = vadd.f32 0.0, %v741
        %v743 = vpop.f32.mrb[0].mxu0
        %v744 = vpop.f32.mrb[0].mxu0
        %v745 = vadd.f32 0.0, %v744
        %v746 = vpop.f32.mrb[0].mxu0
        %747 = vmatprep.mubr.bf16.mxu0 0
        %748 = vmatmul.mubr.bf16.gmra.mrb[0].mxu0 %v473
        %v749 = vpop.f32.mrb[0].mxu0
        %v750 = vadd.f32 0.0, %v749
        %v751 = vpop.f32.mrb[0].mxu0
        %v752 = vpop.f32.mrb[0].mxu0
        %v753 = vadd.f32 0.0, %v752
        %v754 = vpop.f32.mrb[0].mxu0
        %755 = vmatprep.mubr.bf16.mxu0 0
        %756 = vmatmul.mubr.bf16.gmra.mrb[0].mxu0 %v474
        %v757 = vpop.f32.mrb[0].mxu0
        %v758 = vadd.f32 0.0, %v757
        %v759 = vpop.f32.mrb[0].mxu0
        %v760 = vpop.f32.mrb[0].mxu0
        %v761 = vadd.f32 0.0, %v760
        %v762 = vpop.f32.mrb[0].mxu0
        %763 = vmatprep.mubr.bf16.mxu0 0
        %764 = vmatmul.mubr.bf16.gmra.mrb[0].mxu0 %v475
        %v765 = vpop.f32.mrb[0].mxu0
        %v766 = vadd.f32 0.0, %v765
        %v767 = vpop.f32.mrb[0].mxu0
        %v768 = vpop.f32.mrb[0].mxu0
        %v769 = vadd.f32 0.0, %v768
        %v770 = vpop.f32.mrb[0].mxu0
        %771 = vmatprep.mubr.bf16.mxu0 0
        %772 = vmatmul.mubr.bf16.gmra.mrb[0].mxu0 %v476
        %v773 = vpop.f32.mrb[0].mxu0
        %v774 = vadd.f32 0.0, %v773
        %v775 = vpop.f32.mrb[0].mxu0
        %v776 = vpop.f32.mrb[0].mxu0
        %v777 = vadd.f32 0.0, %v776
        %v778 = vpop.f32.mrb[0].mxu0
        %779 = vmatprep.mubr.bf16.mxu0 0
        %780 = vmatmul.mubr.bf16.gmra.mrb[0].mxu0 %v477
        %v781 = vpop.f32.mrb[0].mxu0
        %v782 = vadd.f32 0.0, %v781
        %v783 = vpop.f32.mrb[0].mxu0
        %v784 = vpop.f32.mrb[0].mxu0
        %v785 = vadd.f32 0.0, %v784
        %v786 = vpop.f32.mrb[0].mxu0
        %787 = vmatprep.mubr.bf16.mxu0 0
        %788 = vmatmul.mubr.bf16.gmra.mrb[0].mxu0 %v478
        %v789 = vpop.f32.mrb[0].mxu0
        %v790 = vadd.f32 0.0, %v789
        %v791 = vpop.f32.mrb[0].mxu0
        %v792 = vpop.f32.mrb[0].mxu0
        %v793 = vadd.f32 0.0, %v792
        %v794 = vpop.f32.mrb[0].mxu0
        %795 = vmatprep.mubr.bf16.mxu0 0
        %796 = vmatmul.mubr.bf16.gmra.mrb[0].mxu0 %v479
        %v797 = vpop.f32.mrb[0].mxu0
        %v798 = vadd.f32 0.0, %v797
        %v799 = vpop.f32.mrb[0].mxu0
        %v800 = vpop.f32.mrb[0].mxu0
        %v801 = vadd.f32 0.0, %v800
        %v802 = vpop.f32.mrb[0].mxu0
        %803 = vdwg.mxu0
        %v804 = vpack.c.bf16 %v593, %v590
        %v805 = vpack.c.bf16 %v601, %v598
        %v806 = vpack.c.bf16 %v609, %v606
        %v807 = vpack.c.bf16 %v617, %v614
        %v808 = vpack.c.bf16 %v625, %v622
        %v809 = vpack.c.bf16 %v633, %v630
        %v810 = vpack.c.bf16 %v641, %v638
        %v811 = vpack.c.bf16 %v649, %v646
        %v812 = vpack.c.bf16 %v657, %v654
        %v813 = vpack.c.bf16 %v665, %v662
        %v814 = vpack.c.bf16 %v673, %v670
        %v815 = vpack.c.bf16 %v681, %v678
        %v816 = vpack.c.bf16 %v689, %v686
        %v817 = vpack.c.bf16 %v697, %v694
        %v818 = vpack.c.bf16 %v705, %v702
        %v819 = vpack.c.bf16 %v713, %v710
        %v820 = vpack.c.bf16 %v721, %v718
        %v821 = vpack.c.bf16 %v729, %v726
        %v822 = vpack.c.bf16 %v737, %v734
        %v823 = vpack.c.bf16 %v745, %v742
        %v824 = vpack.c.bf16 %v753, %v750
        %v825 = vpack.c.bf16 %v761, %v758
        %v826 = vpack.c.bf16 %v769, %v766
        %v827 = vpack.c.bf16 %v777, %v774
        %v828 = vpack.c.bf16 %v785, %v782
        %v829 = vpack.c.bf16 %v793, %v790
        %v830 = vpack.c.bf16 %v801, %v798
        %v858 = vunpack.c.l.b16 %v804
        %v859 = vunpack.c.h.b16 %v804
        %v860 = vunpack.c.l.b16 %v805
        %v861 = vunpack.c.h.b16 %v805
        %v862 = vunpack.c.l.b16 %v806
        %v863 = vunpack.c.h.b16 %v806
        %v864 = vunpack.c.l.b16 %v807
        %v865 = vunpack.c.h.b16 %v807
        %v866 = vunpack.c.l.b16 %v808
        %v867 = vunpack.c.h.b16 %v808
        %v868 = vunpack.c.l.b16 %v809
        %v869 = vunpack.c.h.b16 %v809
        %v870 = vunpack.c.l.b16 %v810
        %v871 = vunpack.c.h.b16 %v810
        %v872 = vunpack.c.l.b16 %v811
        %v873 = vunpack.c.h.b16 %v811
        %v874 = vunpack.c.l.b16 %v812
        %v875 = vunpack.c.h.b16 %v812
        %v876 = vunpack.c.l.b16 %v813
        %v877 = vunpack.c.h.b16 %v813
        %v878 = vunpack.c.l.b16 %v814
        %v879 = vunpack.c.h.b16 %v814
        %v880 = vunpack.c.l.b16 %v815
        %v881 = vunpack.c.h.b16 %v815
        %v882 = vunpack.c.l.b16 %v816
        %v883 = vunpack.c.h.b16 %v816
        %v884 = vunpack.c.l.b16 %v817
        %v885 = vunpack.c.h.b16 %v817
        %v886 = vunpack.c.l.b16 %v818
        %v887 = vunpack.c.h.b16 %v818
        %v888 = vunpack.c.l.b16 %v819
        %v889 = vunpack.c.h.b16 %v819
        %v890 = vunpack.c.l.b16 %v820
        %v891 = vunpack.c.h.b16 %v820
        %v892 = vunpack.c.l.b16 %v821
        %v893 = vunpack.c.h.b16 %v821
        %v894 = vunpack.c.l.b16 %v822
        %v895 = vunpack.c.h.b16 %v822
        %v896 = vunpack.c.l.b16 %v823
        %v897 = vunpack.c.h.b16 %v823
        %v898 = vunpack.c.l.b16 %v824
        %v899 = vunpack.c.h.b16 %v824
        %v900 = vunpack.c.l.b16 %v825
        %v901 = vunpack.c.h.b16 %v825
        %v902 = vunpack.c.l.b16 %v826
        %v903 = vunpack.c.h.b16 %v826
        %v904 = vunpack.c.l.b16 %v827
        %v905 = vunpack.c.h.b16 %v827
        %v906 = vunpack.c.l.b16 %v828
        %v907 = vunpack.c.h.b16 %v828
        %v908 = vunpack.c.l.b16 %v829
        %v909 = vunpack.c.h.b16 %v829
        %v910 = vunpack.c.l.b16 %v830
        %v911 = vunpack.c.h.b16 %v830
        %v912 = vpack.c.b16 %v858, %v858
        %v913 = vpack.c.b16 %v859, %v859
        %v914 = vpack.c.b16 %v860, %v860
        %v915 = vpack.c.b16 %v861, %v861
        %v916 = vpack.c.b16 %v862, %v862
        %v917 = vpack.c.b16 %v863, %v863
        %v918 = vpack.c.b16 %v864, %v864
        %v919 = vpack.c.b16 %v865, %v865
        %v920 = vpack.c.b16 %v866, %v866
        %v921 = vpack.c.b16 %v867, %v867
        %v922 = vpack.c.b16 %v868, %v868
        %v923 = vpack.c.b16 %v869, %v869
        %v924 = vpack.c.b16 %v870, %v870
        %v925 = vpack.c.b16 %v871, %v871
        %v926 = vpack.c.b16 %v872, %v872
        %v927 = vpack.c.b16 %v873, %v873
        %v928 = vpack.c.b16 %v874, %v874
        %v929 = vpack.c.b16 %v875, %v875
        %v930 = vpack.c.b16 %v876, %v876
        %v931 = vpack.c.b16 %v877, %v877
        %v932 = vpack.c.b16 %v878, %v878
        %v933 = vpack.c.b16 %v879, %v879
        %v934 = vpack.c.b16 %v880, %v880
        %v935 = vpack.c.b16 %v881, %v881
        %v936 = vpack.c.b16 %v882, %v882
        %v937 = vpack.c.b16 %v883, %v883
        %v938 = vpack.c.b16 %v884, %v884
        %v939 = vpack.c.b16 %v885, %v885
        %v940 = vpack.c.b16 %v886, %v886
        %v941 = vpack.c.b16 %v887, %v887
        %v942 = vpack.c.b16 %v888, %v888
        %v943 = vpack.c.b16 %v889, %v889
        %v944 = vpack.c.b16 %v890, %v890
        %v945 = vpack.c.b16 %v891, %v891
        %v946 = vpack.c.b16 %v892, %v892
        %v947 = vpack.c.b16 %v893, %v893
        %v948 = vpack.c.b16 %v894, %v894
        %v949 = vpack.c.b16 %v895, %v895
        %v950 = vpack.c.b16 %v896, %v896
        %v951 = vpack.c.b16 %v897, %v897
        %v952 = vpack.c.b16 %v898, %v898
        %v953 = vpack.c.b16 %v899, %v899
        %v954 = vpack.c.b16 %v900, %v900
        %v955 = vpack.c.b16 %v901, %v901
        %v956 = vpack.c.b16 %v902, %v902
        %v957 = vpack.c.b16 %v903, %v903
        %v958 = vpack.c.b16 %v904, %v904
        %v959 = vpack.c.b16 %v905, %v905
        %v960 = vpack.c.b16 %v906, %v906
        %v961 = vpack.c.b16 %v907, %v907
        %v962 = vpack.c.b16 %v908, %v908
        %v963 = vpack.c.b16 %v909, %v909
        %v964 = vpack.c.b16 %v910, %v910
        %v965 = vpack.c.b16 %v911, %v911
        %1020 = vst [vmem:[%s255] sm:$0xf] %v912
        %1021 = vst [vmem:[%s255 + $0x4] sm:$0xf] %v913
        %1022 = vst [vmem:[%s255 + $0x8] sm:$0xf] %v914
        %1023 = vst [vmem:[%s255 + $0xc] sm:$0xf] %v915
        %1024 = vst [vmem:[%s255 + $0x10] sm:$0xf] %v916
        %1025 = vst [vmem:[%s255 + $0x14] sm:$0xf] %v917
        %1026 = vst [vmem:[%s255 + $0x18] sm:$0xf] %v918
        %1027 = vst [vmem:[%s255 + $0x1c] sm:$0xf] %v919
        %1028 = vst [vmem:[%s255 + $0x20] sm:$0xf] %v920
        %1029 = vst [vmem:[%s255 + $0x24] sm:$0xf] %v921
        %1030 = vst [vmem:[%s255 + $0x28] sm:$0xf] %v922
        %1031 = vst [vmem:[%s255 + $0x2c] sm:$0xf] %v923
        %1032 = vst [vmem:[%s255 + $0x30] sm:$0xf] %v924
        %1033 = vst [vmem:[%s255 + $0x34] sm:$0xf] %v925
        %1034 = vst [vmem:[%s255 + $0x38] sm:$0xf] %v926
        %1035 = vst [vmem:[%s255 + $0x3c] sm:$0xf] %v927
        %1036 = vst [vmem:[%s255 + $0x40] sm:$0xf] %v928
        %1037 = vst [vmem:[%s255 + $0x44] sm:$0xf] %v929
        %1038 = vst [vmem:[%s255 + $0x48] sm:$0xf] %v930
        %1039 = vst [vmem:[%s255 + $0x4c] sm:$0xf] %v931
        %1040 = vst [vmem:[%s255 + $0x50] sm:$0xf] %v932
        %1041 = vst [vmem:[%s255 + $0x54] sm:$0xf] %v933
        %1042 = vst [vmem:[%s255 + $0x58] sm:$0xf] %v934
        %1043 = vst [vmem:[%s255 + $0x5c] sm:$0xf] %v935
        %1044 = vst [vmem:[%s255 + $0x60] sm:$0xf] %v936
        %1045 = vst [vmem:[%s255 + $0x64] sm:$0xf] %v937
        %1046 = vst [vmem:[%s255 + $0x68] sm:$0xf] %v938
        %1047 = vst [vmem:[%s255 + $0x6c] sm:$0xf] %v939
        %1048 = vst [vmem:[%s255 + $0x70] sm:$0xf] %v940
        %1049 = vst [vmem:[%s255 + $0x74] sm:$0xf] %v941
        %1050 = vst [vmem:[%s255 + $0x78] sm:$0xf] %v942
        %1051 = vst [vmem:[%s255 + $0x7c] sm:$0xf] %v943
        %1052 = vst [vmem:[%s255 + $0x80] sm:$0xf] %v944
        %1053 = vst [vmem:[%s255 + $0x84] sm:$0xf] %v945
        %1054 = vst [vmem:[%s255 + $0x88] sm:$0xf] %v946
        %1055 = vst [vmem:[%s255 + $0x8c] sm:$0xf] %v947
        %1056 = vst [vmem:[%s255 + $0x90] sm:$0xf] %v948
        %1057 = vst [vmem:[%s255 + $0x94] sm:$0xf] %v949
        %1058 = vst [vmem:[%s255 + $0x98] sm:$0xf] %v950
        %1059 = vst [vmem:[%s255 + $0x9c] sm:$0xf] %v951
        %1060 = vst [vmem:[%s255 + $0xa0] sm:$0xf] %v952
        %1061 = vst [vmem:[%s255 + $0xa4] sm:$0xf] %v953
        %1062 = vst [vmem:[%s255 + $0xa8] sm:$0xf] %v954
        %1063 = vst [vmem:[%s255 + $0xac] sm:$0xf] %v955
        %1064 = vst [vmem:[%s255 + $0xb0] sm:$0xf] %v956
        %1065 = vst [vmem:[%s255 + $0xb4] sm:$0xf] %v957
        %1066 = vst [vmem:[%s255 + $0xb8] sm:$0xf] %v958
        %1067 = vst [vmem:[%s255 + $0xbc] sm:$0xf] %v959
        %1068 = vst [vmem:[%s255 + $0xc0] sm:$0xf] %v960
        %1069 = vst [vmem:[%s255 + $0xc4] sm:$0xf] %v961
        %1070 = vst [vmem:[%s255 + $0xc8] sm:$0xf] %v962
        %1071 = vst [vmem:[%s255 + $0xcc] sm:$0xf] %v963
        %1072 = vst [vmem:[%s255 + $0xd0] sm:$0xf] %v964
        %1073 = vst [vmem:[%s255 + $0xd4] sm:$0xf] %v965
        %v1074 = vunpack.c.l.bf16 %v804
        %v1075 = vunpack.c.h.bf16 %v804
        %v1076 = vunpack.c.l.bf16 %v805
        %v1077 = vunpack.c.h.bf16 %v805
        %v1078 = vunpack.c.l.bf16 %v806
        %v1079 = vunpack.c.h.bf16 %v806
        %v1080 = vunpack.c.l.bf16 %v807
        %v1081 = vunpack.c.h.bf16 %v807
        %v1082 = vunpack.c.l.bf16 %v808
        %v1083 = vunpack.c.h.bf16 %v808
        %v1084 = vunpack.c.l.bf16 %v809
        %v1085 = vunpack.c.h.bf16 %v809
        %v1086 = vunpack.c.l.bf16 %v810
        %v1087 = vunpack.c.h.bf16 %v810
        %v1088 = vunpack.c.l.bf16 %v811
        %v1089 = vunpack.c.h.bf16 %v811
        %v1090 = vunpack.c.l.bf16 %v812
        %v1091 = vunpack.c.h.bf16 %v812
        %v1092 = vunpack.c.l.bf16 %v813
        %v1093 = vunpack.c.h.bf16 %v813
        %v1094 = vunpack.c.l.bf16 %v814
        %v1095 = vunpack.c.h.bf16 %v814
        %v1096 = vunpack.c.l.bf16 %v815
        %v1097 = vunpack.c.h.bf16 %v815
        %v1098 = vunpack.c.l.bf16 %v816
        %v1099 = vunpack.c.h.bf16 %v816
        %v1100 = vunpack.c.l.bf16 %v817
        %v1101 = vunpack.c.h.bf16 %v817
        %v1102 = vunpack.c.l.bf16 %v818
        %v1103 = vunpack.c.h.bf16 %v818
        %v1104 = vunpack.c.l.bf16 %v819
        %v1105 = vunpack.c.h.bf16 %v819
        %v1106 = vunpack.c.l.bf16 %v820
        %v1107 = vunpack.c.h.bf16 %v820
        %v1108 = vunpack.c.l.bf16 %v821
        %v1109 = vunpack.c.h.bf16 %v821
        %v1110 = vunpack.c.l.bf16 %v822
        %v1111 = vunpack.c.h.bf16 %v822
        %v1112 = vunpack.c.l.bf16 %v823
        %v1113 = vunpack.c.h.bf16 %v823
        %v1114 = vunpack.c.l.bf16 %v824
        %v1115 = vunpack.c.h.bf16 %v824
        %v1116 = vunpack.c.l.bf16 %v825
        %v1117 = vunpack.c.h.bf16 %v825
        %v1118 = vunpack.c.l.bf16 %v826
        %v1119 = vunpack.c.h.bf16 %v826
        %v1120 = vunpack.c.l.bf16 %v827
        %v1121 = vunpack.c.h.bf16 %v827
        %v1122 = vunpack.c.l.bf16 %v828
        %v1123 = vunpack.c.h.bf16 %v828
        %v1124 = vunpack.c.l.bf16 %v829
        %v1125 = vunpack.c.h.bf16 %v829
        %v1126 = vunpack.c.l.bf16 %v830
        %v1127 = vunpack.c.h.bf16 %v830
        %v1128 = vadd.f32 %v1074, %v1075
        %v1129 = vadd.f32 %v1128, %v1076
        %v1130 = vadd.f32 %v1129, %v1077
        %v1131 = vadd.f32 %v1130, %v1078
        %v1132 = vadd.f32 %v1131, %v1079
        %v1133 = vadd.f32 %v1132, %v1080
        %v1134 = vadd.f32 %v1133, %v1081
        %v1135 = vadd.f32 %v1134, %v1082
        %v1136 = vadd.f32 %v1135, %v1083
        %v1137 = vadd.f32 %v1136, %v1084
        %v1138 = vadd.f32 %v1137, %v1085
        %v1139 = vadd.f32 %v1138, %v1086
        %v1140 = vadd.f32 %v1139, %v1087
        %v1141 = vadd.f32 %v1140, %v1088
        %v1142 = vadd.f32 %v1141, %v1089
        %v1143 = vadd.f32 %v1142, %v1090
        %v1144 = vadd.f32 %v1143, %v1091
        %v1145 = vadd.f32 %v1144, %v1092
        %v1146 = vadd.f32 %v1145, %v1093
        %v1147 = vadd.f32 %v1146, %v1094
        %v1148 = vadd.f32 %v1147, %v1095
        %v1149 = vadd.f32 %v1148, %v1096
        %v1150 = vadd.f32 %v1149, %v1097
        %v1151 = vadd.f32 %v1150, %v1098
        %v1152 = vadd.f32 %v1151, %v1099
        %v1153 = vadd.f32 %v1152, %v1100
        %v1154 = vadd.f32 %v1153, %v1101
        %v1155 = vadd.f32 %v1154, %v1102
        %v1156 = vadd.f32 %v1155, %v1103
        %v1157 = vadd.f32 %v1156, %v1104
        %v1158 = vadd.f32 %v1157, %v1105
        %v1159 = vadd.f32 %v1158, %v1106
        %v1160 = vadd.f32 %v1159, %v1107
        %v1161 = vadd.f32 %v1160, %v1108
        %v1162 = vadd.f32 %v1161, %v1109
        %v1163 = vadd.f32 %v1162, %v1110
        %v1164 = vadd.f32 %v1163, %v1111
        %v1165 = vadd.f32 %v1164, %v1112
        %v1166 = vadd.f32 %v1165, %v1113
        %v1167 = vadd.f32 %v1166, %v1114
        %v1168 = vadd.f32 %v1167, %v1115
        %v1169 = vadd.f32 %v1168, %v1116
        %v1170 = vadd.f32 %v1169, %v1117
        %v1171 = vadd.f32 %v1170, %v1118
        %v1172 = vadd.f32 %v1171, %v1119
        %v1173 = vadd.f32 %v1172, %v1120
        %v1174 = vadd.f32 %v1173, %v1121
        %v1175 = vadd.f32 %v1174, %v1122
        %v1176 = vadd.f32 %v1175, %v1123
        %v1177 = vadd.f32 %v1176, %v1124
        %v1178 = vadd.f32 %v1177, %v1125
        %v1179 = vadd.f32 %v1178, %v1126
        %v1180 = vadd.f32 %v1179, %v1127
        %v1181 = vrot.slane %v1180, 4
        %v1182 = vadd.f32 %v1180, %v1181
        %v1183 = vrot.slane %v1182, 2
        %v1184 = vadd.f32 %v1182, %v1183
        %v1185 = vrot.slane %v1184, 1
        %v1186 = vadd.f32 %v1184, %v1185
        %1187 = vst [vmem:[%s261] sm:$0x1] %v1186
        %v1188 = vmul.f32 %v1074, %v1074
        %v1189 = vmul.f32 %v1075, %v1075
        %v1190 = vmul.f32 %v1076, %v1076
        %v1191 = vmul.f32 %v1077, %v1077
        %v1192 = vmul.f32 %v1078, %v1078
        %v1193 = vmul.f32 %v1079, %v1079
        %v1194 = vmul.f32 %v1080, %v1080
        %v1195 = vmul.f32 %v1081, %v1081
        %v1196 = vmul.f32 %v1082, %v1082
        %v1197 = vmul.f32 %v1083, %v1083
        %v1198 = vmul.f32 %v1084, %v1084
        %v1199 = vmul.f32 %v1085, %v1085
        %v1200 = vmul.f32 %v1086, %v1086
        %v1201 = vmul.f32 %v1087, %v1087
        %v1202 = vmul.f32 %v1088, %v1088
        %v1203 = vmul.f32 %v1089, %v1089
        %v1204 = vmul.f32 %v1090, %v1090
        %v1205 = vmul.f32 %v1091, %v1091
        %v1206 = vmul.f32 %v1092, %v1092
        %v1207 = vmul.f32 %v1093, %v1093
        %v1208 = vmul.f32 %v1094, %v1094
        %v1209 = vmul.f32 %v1095, %v1095
        %v1210 = vmul.f32 %v1096, %v1096
        %v1211 = vmul.f32 %v1097, %v1097
        %v1212 = vmul.f32 %v1098, %v1098
        %v1213 = vmul.f32 %v1099, %v1099
        %v1214 = vmul.f32 %v1100, %v1100
        %v1215 = vmul.f32 %v1101, %v1101
        %v1216 = vmul.f32 %v1102, %v1102
        %v1217 = vmul.f32 %v1103, %v1103
        %v1218 = vmul.f32 %v1104, %v1104
        %v1219 = vmul.f32 %v1105, %v1105
        %v1220 = vmul.f32 %v1106, %v1106
        %v1221 = vmul.f32 %v1107, %v1107
        %v1222 = vmul.f32 %v1108, %v1108
        %v1223 = vmul.f32 %v1109, %v1109
        %v1224 = vmul.f32 %v1110, %v1110
        %v1225 = vmul.f32 %v1111, %v1111
        %v1226 = vmul.f32 %v1112, %v1112
        %v1227 = vmul.f32 %v1113, %v1113
        %v1228 = vmul.f32 %v1114, %v1114
        %v1229 = vmul.f32 %v1115, %v1115
        %v1230 = vmul.f32 %v1116, %v1116
        %v1231 = vmul.f32 %v1117, %v1117
        %v1232 = vmul.f32 %v1118, %v1118
        %v1233 = vmul.f32 %v1119, %v1119
        %v1234 = vmul.f32 %v1120, %v1120
        %v1235 = vmul.f32 %v1121, %v1121
        %v1236 = vmul.f32 %v1122, %v1122
        %v1237 = vmul.f32 %v1123, %v1123
        %v1238 = vmul.f32 %v1124, %v1124
        %v1239 = vmul.f32 %v1125, %v1125
        %v1240 = vmul.f32 %v1126, %v1126
        %v1241 = vmul.f32 %v1127, %v1127
        %v1242 = vadd.f32 %v1188, %v1189
        %v1243 = vadd.f32 %v1242, %v1190
        %v1244 = vadd.f32 %v1243, %v1191
        %v1245 = vadd.f32 %v1244, %v1192
        %v1246 = vadd.f32 %v1245, %v1193
        %v1247 = vadd.f32 %v1246, %v1194
        %v1248 = vadd.f32 %v1247, %v1195
        %v1249 = vadd.f32 %v1248, %v1196
        %v1250 = vadd.f32 %v1249, %v1197
        %v1251 = vadd.f32 %v1250, %v1198
        %v1252 = vadd.f32 %v1251, %v1199
        %v1253 = vadd.f32 %v1252, %v1200
        %v1254 = vadd.f32 %v1253, %v1201
        %v1255 = vadd.f32 %v1254, %v1202
        %v1256 = vadd.f32 %v1255, %v1203
        %v1257 = vadd.f32 %v1256, %v1204
        %v1258 = vadd.f32 %v1257, %v1205
        %v1259 = vadd.f32 %v1258, %v1206
        %v1260 = vadd.f32 %v1259, %v1207
        %v1261 = vadd.f32 %v1260, %v1208
        %v1262 = vadd.f32 %v1261, %v1209
        %v1263 = vadd.f32 %v1262, %v1210
        %v1264 = vadd.f32 %v1263, %v1211
        %v1265 = vadd.f32 %v1264, %v1212
        %v1266 = vadd.f32 %v1265, %v1213
        %v1267 = vadd.f32 %v1266, %v1214
        %v1268 = vadd.f32 %v1267, %v1215
        %v1269 = vadd.f32 %v1268, %v1216
        %v1270 = vadd.f32 %v1269, %v1217
        %v1271 = vadd.f32 %v1270, %v1218
        %v1272 = vadd.f32 %v1271, %v1219
        %v1273 = vadd.f32 %v1272, %v1220
        %v1274 = vadd.f32 %v1273, %v1221
        %v1275 = vadd.f32 %v1274, %v1222
        %v1276 = vadd.f32 %v1275, %v1223
        %v1277 = vadd.f32 %v1276, %v1224
        %v1278 = vadd.f32 %v1277, %v1225
        %v1279 = vadd.f32 %v1278, %v1226
        %v1280 = vadd.f32 %v1279, %v1227
        %v1281 = vadd.f32 %v1280, %v1228
        %v1282 = vadd.f32 %v1281, %v1229
        %v1283 = vadd.f32 %v1282, %v1230
        %v1284 = vadd.f32 %v1283, %v1231
        %v1285 = vadd.f32 %v1284, %v1232
        %v1286 = vadd.f32 %v1285, %v1233
        %v1287 = vadd.f32 %v1286, %v1234
        %v1288 = vadd.f32 %v1287, %v1235
        %v1289 = vadd.f32 %v1288, %v1236
        %v1290 = vadd.f32 %v1289, %v1237
        %v1291 = vadd.f32 %v1290, %v1238
        %v1292 = vadd.f32 %v1291, %v1239
        %v1293 = vadd.f32 %v1292, %v1240
        %v1294 = vadd.f32 %v1293, %v1241
        %v1295 = vrot.slane %v1294, 4
        %v1296 = vadd.f32 %v1294, %v1295
        %v1297 = vrot.slane %v1296, 2
        %v1298 = vadd.f32 %v1296, %v1297
        %v1299 = vrot.slane %v1298, 1
        %v1300 = vadd.f32 %v1298, %v1299
        %1301 = vst [vmem:[%s267] sm:$0x1] %v1300
        %s1302 = sand.u32 %s97, 1
        %s1303 = scalar_lea.sflag [#allocation4], %s1302
        %s1304 = sand.u32 %s97, 1
        %s1305 = smul.addr %s1304, 216
        %s1306 = scalar_lea.vmem [#allocation7], %s1305
        %s1307 = sand.u32 %s26, 1
        %s1308 = scalar_lea.sflag [#allocation9], %s1307
        %s1309 = sand.u32 %s125, 1
        %s1310 = scalar_lea.vmem [#allocation8], %s1309
        %s1311 = sand.u32 %s26, 1
        %s1312 = scalar_lea.sflag [#allocation9], %s1311
        %s1313 = sand.u32 %s153, 1
        %s1314 = scalar_lea.vmem [#allocation10], %s1313
        // Predicated region
        $region37: #{bottleneck_forward.4} parent=27 // pred_check
          %p1315 = pneg %p107
        $region38: #{bottleneck_forward.4} parent=27 // pred_check_branch
          %1317 = sbr.rel (%p1315) target = $region40
        $region39: #{bottleneck_forward.4} parent=27 // pred_region
          %s1318 = sadd.s32 %s30, %s31
          %s1319 = smul.u32 54, %s1318
          %s1321 = ssub.s32 3456, 3456
          %1322 = vsyncadd %s1303, %s1321
          %s1323 = smul.addr %s1319, 64
          %s1324 = scalar_lea.hbm %s2, %s1323
          %s1325 = sshll.u32 %s1306, 4
          %s1326 = int_to_ptr.vmem [resolvable:$true] %s1325
          %1331 = dma.vmem_to_hbm [thread:$0]  %s1326, 3456, %s1324, %s1303, 64, 64, 4
        $region40: #{bottleneck_forward.4} parent=27 // pred_fallthru
          _
        // Predicated region
        $region41: #{bottleneck_forward.4} parent=27 // pred_check
          %p1332 = pneg %p135
        $region42: #{bottleneck_forward.4} parent=27 // pred_check_branch
          %1334 = sbr.rel (%p1332) target = $region44
        $region43: #{bottleneck_forward.4} parent=27 // pred_region
          %s1335 = sadd.s32 %s30, %s31
          %s1337 = ssub.s32 16, 16
          %1338 = vsyncadd %s1308, %s1337
          %s1339 = smul.addr %s1335, 16
          %s1340 = scalar_lea.hbm %s3, %s1339
          %s1342 = sshll.u32 %s1310, 4
          %s1343 = int_to_ptr.vmem [resolvable:$true] %s1342
          %1345 = dma.vmem_to_hbm [thread:$0]  %s1343, 16, %s1340, %s1308
        $region44: #{bottleneck_forward.4} parent=27 // pred_fallthru
          _
        // Predicated region
        $region45: #{bottleneck_forward.4} parent=27 // pred_check
          %p1346 = pneg %p163
        $region46: #{bottleneck_forward.4} parent=27 // pred_check_branch
          %1348 = sbr.rel (%p1346) target = $region48
        $region47: #{bottleneck_forward.4} parent=27 // pred_region
          %s1349 = sadd.s32 %s30, %s31
          %s1351 = ssub.s32 16, 16
          %1352 = vsyncadd %s1312, %s1351
          %s1353 = smul.addr %s1349, 16
          %s1354 = scalar_lea.hbm %s4, %s1353
          %s1356 = sshll.u32 %s1314, 4
          %s1357 = int_to_ptr.vmem [resolvable:$true] %s1356
          %1359 = dma.vmem_to_hbm [thread:$0]  %s1357, 16, %s1354, %s1312
        $region48: #{bottleneck_forward.4} parent=27 // pred_fallthru
          _
      $region28: #{bottleneck_forward.4} parent=5 // pred_fallthru
        _
      %p1360 = scmp.le.s32.totalorder 2, %s21
      // Predicated region
      $region49: #{bottleneck_forward.4} parent=5 // pred_check
        %p1361 = pneg %p1360
      $region50: #{bottleneck_forward.4} parent=5 // pred_check_branch
        %1363 = sbr.rel (%p1361) target = $region52
      $region51: #{bottleneck_forward.4} parent=5 // pred_region
        %s1364 = ssub.s32 %s21, 2
        // Predicated region
        $region53: #{bottleneck_forward.4} parent=51 // pred_check
          %p1365 = pneg %p113
        $region54: #{bottleneck_forward.4} parent=51 // pred_check_branch
          %1367 = sbr.rel (%p1365) target = $region56
        $region55: #{bottleneck_forward.4} parent=51 // pred_region
          %s1368 = sand.u32 %s98, 1
          %s1369 = scalar_lea.sflag [#allocation4], %s1368
          %s1370 = sand.u32 %s98, 1
          %s1371 = smul.addr %s1370, 216
          %s1372 = scalar_lea.vmem [#allocation7], %s1371
          %1373 = dma.done %s1369, 3456
        $region56: #{bottleneck_forward.4} parent=51 // pred_fallthru
          _
        // Predicated region
        $region57: #{bottleneck_forward.4} parent=51 // pred_check
          %p1374 = pneg %p141
        $region58: #{bottleneck_forward.4} parent=51 // pred_check_branch
          %1376 = sbr.rel (%p1374) target = $region60
        $region59: #{bottleneck_forward.4} parent=51 // pred_region
          %s1377 = sand.u32 %s27, 1
          %s1378 = scalar_lea.sflag [#allocation9], %s1377
          %s1379 = sand.u32 %s126, 1
          %s1380 = scalar_lea.vmem [#allocation8], %s1379
          %1381 = dma.done %s1378, 16
        $region60: #{bottleneck_forward.4} parent=51 // pred_fallthru
          _
        // Predicated region
        $region61: #{bottleneck_forward.4} parent=51 // pred_check
          %p1382 = pneg %p169
        $region62: #{bottleneck_forward.4} parent=51 // pred_check_branch
          %1384 = sbr.rel (%p1382) target = $region64
        $region63: #{bottleneck_forward.4} parent=51 // pred_region
          %s1385 = sand.u32 %s27, 1
          %s1386 = scalar_lea.sflag [#allocation9], %s1385
          %s1387 = sand.u32 %s154, 1
          %s1388 = scalar_lea.vmem [#allocation10], %s1387
          %1389 = dma.done %s1386, 16
        $region64: #{bottleneck_forward.4} parent=51 // pred_fallthru
          _
      $region52: #{bottleneck_forward.4} parent=5 // pred_fallthru
        _
    $region6: #{bottleneck_forward.4} parent=1 // loop_footer
      %s25 = sadd.s32 1, %s21
    $region7: #{bottleneck_forward.4} parent=1 // loop_footer_branch
      %20 = sbr.rel target = $region3
    $region8: #{bottleneck_forward.4} parent=1 // loop_exit
      _
    %1390 = vsyncpa [#allocation3], 1
    %s1391 = scalar_lea.sflag [#allocation3], 1
    %1392 = vsyncpa %s1391, 1
    %1393 = vsyncpa [#allocation6], 1
    %1394 = vsyncpa [#allocation4], 1
    %s1395 = scalar_lea.sflag [#allocation4], 1
    %1396 = vsyncpa %s1395, 1
    %1397 = vsyncpa [#allocation9], 1
    %s1398 = scalar_lea.sflag [#allocation9], 1
    %1399 = vsyncpa %s1398, 1

// kernel: bottleneck_forward.7
$region0: #{bottleneck_forward.7}
  #allocation0 [shape = 'u32[]', space=smem, size = 0x4, offset = 0x4, fixed_abs, tag = 'smem constant byte address 0x4 - core index']
  #allocation1 [shape = 'u32[144,128]{1,0:T(1,128)}', space=vmem, size = 0x12000, scoped, tag = 'internal scratch']
  %s0 = inlined_call_operand.hbm [shape: bf16[864,128], index: 0, kind: input, shape index: {}]
  %s1 = inlined_call_operand.hbm [shape: f32[1,128], index: 1, kind: input, shape index: {}]
  %s2 = inlined_call_operand.hbm [shape: f32[1,128], index: 2, kind: input, shape index: {}]
  %s3 = inlined_call_operand.hbm [shape: bf16[864,128], index: 3, kind: input, shape index: {}]
  %s4 = inlined_call_operand.hbm [shape: f32[864,128], index: 4, kind: output, shape index: {}]
  %s5 = sld [smem:[#allocation0]]
  $region65: #{bottleneck_forward.7} parent=0
    _
  %s7 = ssub.s32 1, %s5
  %s8 = scalar_select 0, %s7, %s5
  $region1: #{bottleneck_forward.7} parent=0
    #allocation2 [shape = 'u8[221184]{0}', space=vmem, size = 0x36000, scoped, tag = 'input window, operand 0']
    #allocation3 [shape = 's32[2]{0}', space=sflag, size = 0x8, scoped, tag = 'scoped memory for bottleneck_forward.7']
    #allocation4 [shape = 's32[2]{0}', space=sflag, size = 0x8, scoped, tag = 'scoped memory for bottleneck_forward.7']
    #allocation5 [shape = 'u8[512]{0}', space=vmem, size = 0x400, scoped, tag = 'input window, operand 1, single buffered']
    #allocation6 [shape = 's32[1]{0}', space=sflag, size = 0x4, scoped, tag = 'scoped memory for bottleneck_forward.7']
    #allocation7 [shape = 'u8[512]{0}', space=vmem, size = 0x400, scoped, tag = 'input window, operand 2, single buffered']
    #allocation8 [shape = 'u8[221184]{0}', space=vmem, size = 0x36000, scoped, tag = 'input window, operand 3']
    #allocation9 [shape = 's32[2]{0}', space=sflag, size = 0x8, scoped, tag = 'scoped memory for bottleneck_forward.7']
    #allocation10 [shape = 'u8[442368]{0}', space=vmem, size = 0x6c000, scoped, tag = 'output window, operand 0']
    %9 = vsyncpa [#allocation3], 0
    %s10 = scalar_lea.sflag [#allocation3], 1
    %11 = vsyncpa %s10, 0
    %12 = vsyncpa [#allocation6], 0
    %13 = vsyncpa [#allocation9], 0
    %s14 = scalar_lea.sflag [#allocation9], 1
    %15 = vsyncpa %s14, 0
    %16 = vsyncpa [#allocation4], 0
    %s17 = scalar_lea.sflag [#allocation4], 1
    %18 = vsyncpa %s17, 0
    loop: start=0, step=1, limit=4
    $region2: #{bottleneck_forward.7} parent=1 // loop_pre_header
      _
    $region3: #{bottleneck_forward.7} parent=1 // loop_header
      %s20 = sphi 0, %s24
      %p21 = scmp.ge.s32.totalorder %s20, 4
      %s27 = sphi 0, %s39
      %s28 = sphi 0, %s35
      %s29 = sphi 0, %s27
      %s30 = sphi 0, %s28
      %s31 = sphi 0, %s29
      %s32 = sphi 0, %s30
      %s44 = sphi 0, %s46
      %s47 = sphi 0, %s44
      %s48 = sphi 0, %s47
      %s64 = sphi 0, %s48
      %s68 = sphi 0, %s68
      %s70 = sphi 0, %s68
      %s71 = sphi 0, %s70
      %s85 = sphi 0, %s71
      %s89 = sphi 0, %s89
      %s91 = sphi 0, %s89
      %s92 = sphi 0, %s91
      %s106 = sphi 0, %s92
      %s114 = sphi 0, %s116
      %s117 = sphi 0, %s114
      %s118 = sphi 0, %s117
      %s134 = sphi 0, %s118
      %s142 = sphi 0, %s144
      %s145 = sphi 0, %s142
      %s146 = sphi 0, %s145
      %s162 = sphi 0, %s146
    $region4: #{bottleneck_forward.7} parent=1 // loop_header_branch
      %23 = sbr.rel (%p21) target = $region8
    $region5: #{bottleneck_forward.7} parent=1 // loop_body
      %s25 = ssub.s32 %s20, 1
      %s26 = ssub.s32 %s20, 2
      %s33 = sadd.s32 1, %s28
      %p34 = scmp.ge.s32.totalorder %s33, 1
      %s35 = scalar_select %p34, 0, %s33
      %s36 = sadd.s32 1, %s27
      %s37 = scalar_select %p34, %s36, %s27
      %p38 = scmp.ge.s32.totalorder %s37, 2
      %s39 = scalar_select %p38, 0, %s37
      %s40 = sadd.s32 %s27, %s28
      %s41 = sadd.s32 %s39, %s35
      %s42 = ssub.s32 %s40, %s41
      %p43 = scmp.eq.s32.totalorder %s42, 0
      %s45 = sadd.s32 %s44, 1
      %s46 = scalar_select %p43, %s44, %s45
      %p49 = pneg %p43
      %p50 = scmp.eq.s32.totalorder %s20, 1
      %p51 = por %p49, %p50
      %p52 = scmp.ne.s32.totalorder %s44, %s47
      %p53 = scmp.eq.s32.totalorder %s20, 0
      %p54 = por %p52, %p53
      %p55 = scmp.ne.s32.totalorder %s44, %s47
      %p56 = scmp.eq.s32.totalorder %s25, 1
      %p57 = por %p55, %p56
      %p58 = scmp.ne.s32.totalorder %s47, %s48
      %p59 = scmp.eq.s32.totalorder %s25, 0
      %p60 = por %p58, %p59
      %p61 = scmp.ne.s32.totalorder %s47, %s48
      %p62 = scmp.eq.s32.totalorder %s26, 1
      %p63 = por %p61, %p62
      %p65 = scmp.ne.s32.totalorder %s48, %s64
      %p66 = scmp.eq.s32.totalorder %s26, 0
      %p67 = por %p65, %p66
      %s69 = sadd.s32 %s68, 1
      %p72 = scmp.eq.s32.totalorder %s20, 1
      %p73 = scmp.ne.s32.totalorder %s68, %s70
      %p74 = scmp.eq.s32.totalorder %s20, 0
      %p75 = por %p73, %p74
      %p76 = scmp.ne.s32.totalorder %s68, %s70
      %p77 = scmp.eq.s32.totalorder %s25, 1
      %p78 = por %p76, %p77
      %p79 = scmp.ne.s32.totalorder %s70, %s71
      %p80 = scmp.eq.s32.totalorder %s25, 0
      %p81 = por %p79, %p80
      %p82 = scmp.ne.s32.totalorder %s70, %s71
      %p83 = scmp.eq.s32.totalorder %s26, 1
      %p84 = por %p82, %p83
      %p86 = scmp.ne.s32.totalorder %s71, %s85
      %p87 = scmp.eq.s32.totalorder %s26, 0
      %p88 = por %p86, %p87
      %s90 = sadd.s32 %s89, 1
      %p93 = scmp.eq.s32.totalorder %s20, 1
      %p94 = scmp.ne.s32.totalorder %s89, %s91
      %p95 = scmp.eq.s32.totalorder %s20, 0
      %p96 = por %p94, %p95
      %p97 = scmp.ne.s32.totalorder %s89, %s91
      %p98 = scmp.eq.s32.totalorder %s25, 1
      %p99 = por %p97, %p98
      %p100 = scmp.ne.s32.totalorder %s91, %s92
      %p101 = scmp.eq.s32.totalorder %s25, 0
      %p102 = por %p100, %p101
      %p103 = scmp.ne.s32.totalorder %s91, %s92
      %p104 = scmp.eq.s32.totalorder %s26, 1
      %p105 = por %p103, %p104
      %p107 = scmp.ne.s32.totalorder %s92, %s106
      %p108 = scmp.eq.s32.totalorder %s26, 0
      %p109 = por %p107, %p108
      %s110 = sadd.s32 %s27, %s28
      %s111 = sadd.s32 %s39, %s35
      %s112 = ssub.s32 %s110, %s111
      %p113 = scmp.eq.s32.totalorder %s112, 0
      %s115 = sadd.s32 %s114, 1
      %s116 = scalar_select %p113, %s114, %s115
      %p119 = pneg %p113
      %p120 = scmp.eq.s32.totalorder %s20, 1
      %p121 = por %p119, %p120
      %p122 = scmp.ne.s32.totalorder %s114, %s117
      %p123 = scmp.eq.s32.totalorder %s20, 0
      %p124 = por %p122, %p123
      %p125 = scmp.ne.s32.totalorder %s114, %s117
      %p126 = scmp.eq.s32.totalorder %s25, 1
      %p127 = por %p125, %p126
      %p128 = scmp.ne.s32.totalorder %s117, %s118
      %p129 = scmp.eq.s32.totalorder %s25, 0
      %p130 = por %p128, %p129
      %p131 = scmp.ne.s32.totalorder %s117, %s118
      %p132 = scmp.eq.s32.totalorder %s26, 1
      %p133 = por %p131, %p132
      %p135 = scmp.ne.s32.totalorder %s118, %s134
      %p136 = scmp.eq.s32.totalorder %s26, 0
      %p137 = por %p135, %p136
      %s138 = sadd.s32 %s27, %s28
      %s139 = sadd.s32 %s39, %s35
      %s140 = ssub.s32 %s138, %s139
      %p141 = scmp.eq.s32.totalorder %s140, 0
      %s143 = sadd.s32 %s142, 1
      %s144 = scalar_select %p141, %s142, %s143
      %p147 = pneg %p141
      %p148 = scmp.eq.s32.totalorder %s20, 1
      %p149 = por %p147, %p148
      %p150 = scmp.ne.s32.totalorder %s142, %s145
      %p151 = scmp.eq.s32.totalorder %s20, 0
      %p152 = por %p150, %p151
      %p153 = scmp.ne.s32.totalorder %s142, %s145
      %p154 = scmp.eq.s32.totalorder %s25, 1
      %p155 = por %p153, %p154
      %p156 = scmp.ne.s32.totalorder %s145, %s146
      %p157 = scmp.eq.s32.totalorder %s25, 0
      %p158 = por %p156, %p157
      %p159 = scmp.ne.s32.totalorder %s145, %s146
      %p160 = scmp.eq.s32.totalorder %s26, 1
      %p161 = por %p159, %p160
      %p163 = scmp.ne.s32.totalorder %s146, %s162
      %p164 = scmp.eq.s32.totalorder %s26, 0
      %p165 = por %p163, %p164
      %p166 = scmp.le.s32.totalorder 1, %s20
      %p167 = scmp.lt.s32.totalorder %s20, 3
      %p168 = pnand %p166, %p167
      %p169 = pneg %p168
      // Predicated region
      $region9: #{bottleneck_forward.7} parent=5 // pred_check
        _
      $region10: #{bottleneck_forward.7} parent=5 // pred_check_branch
        %171 = sbr.rel (%p168) target = $region12
      $region11: #{bottleneck_forward.7} parent=5 // pred_region
        %s172 = ssub.s32 %s20, 1
        // Predicated region
        $region13: #{bottleneck_forward.7} parent=11 // pred_check
          %p173 = pneg %p81
        $region14: #{bottleneck_forward.7} parent=11 // pred_check_branch
          %175 = sbr.rel (%p173) target = $region16
        $region15: #{bottleneck_forward.7} parent=11 // pred_region
          %s177 = ssub.s32 16, 16
          %178 = vsyncadd [#allocation6], %s177
          %s180 = sshll.u32 [#allocation5], 4
          %s181 = int_to_ptr.vmem [resolvable:$true] %s180
          %183 = dma.hbm_to_vmem [thread:$0]  %s1, 16, %s181, [#allocation6]
        $region16: #{bottleneck_forward.7} parent=11 // pred_fallthru
          _
        // Predicated region
        $region17: #{bottleneck_forward.7} parent=11 // pred_check
          %p184 = pneg %p102
        $region18: #{bottleneck_forward.7} parent=11 // pred_check_branch
          %186 = sbr.rel (%p184) target = $region20
        $region19: #{bottleneck_forward.7} parent=11 // pred_region
          %s188 = ssub.s32 16, 16
          %189 = vsyncadd [#allocation6], %s188
          %s191 = sshll.u32 [#allocation7], 4
          %s192 = int_to_ptr.vmem [resolvable:$true] %s191
          %194 = dma.hbm_to_vmem [thread:$0]  %s2, 16, %s192, [#allocation6]
        $region20: #{bottleneck_forward.7} parent=11 // pred_fallthru
          _
      $region12: #{bottleneck_forward.7} parent=5 // pred_fallthru
        _
      %p195 = scmp.lt.s32.totalorder %s20, 2
      // Predicated region
      $region21: #{bottleneck_forward.7} parent=5 // pred_check
        %p196 = pneg %p195
      $region22: #{bottleneck_forward.7} parent=5 // pred_check_branch
        %198 = sbr.rel (%p196) target = $region24
      $region23: #{bottleneck_forward.7} parent=5 // pred_region
        // Predicated region
        $region25: #{bottleneck_forward.7} parent=23 // pred_check
          %p199 = pneg %p54
        $region26: #{bottleneck_forward.7} parent=23 // pred_check_branch
          %201 = sbr.rel (%p199) target = $region28
        $region27: #{bottleneck_forward.7} parent=23 // pred_region
          %s202 = sand.u32 %s44, 1
          %s203 = scalar_lea.sflag [#allocation3], %s202
          %s204 = sand.u32 %s44, 1
          %s205 = smul.addr %s204, 216
          %s206 = scalar_lea.vmem [#allocation2], %s205
          %s207 = sadd.s32 %s27, %s28
          %s208 = smul.u32 54, %s207
          %s210 = ssub.s32 3456, 3456
          %211 = vsyncadd %s203, %s210
          %s212 = smul.addr %s208, 64
          %s213 = scalar_lea.hbm %s0, %s212
          %s214 = sshll.u32 %s206, 4
          %s215 = int_to_ptr.vmem [resolvable:$true] %s214
          %220 = dma.hbm_to_vmem [thread:$0]  %s213, 3456, %s215, %s203, 64, 64, 4
        $region28: #{bottleneck_forward.7} parent=23 // pred_fallthru
          _
        // Predicated region
        $region29: #{bottleneck_forward.7} parent=23 // pred_check
          %p221 = pneg %p124
        $region30: #{bottleneck_forward.7} parent=23 // pred_check_branch
          %223 = sbr.rel (%p221) target = $region32
        $region31: #{bottleneck_forward.7} parent=23 // pred_region
          %s224 = sand.u32 %s114, 1
          %s225 = scalar_lea.sflag [#allocation9], %s224
          %s226 = sand.u32 %s114, 1
          %s227 = smul.addr %s226, 216
          %s228 = scalar_lea.vmem [#allocation8], %s227
          %s229 = sadd.s32 %s27, %s28
          %s230 = smul.u32 54, %s229
          %s232 = ssub.s32 3456, 3456
          %233 = vsyncadd %s225, %s232
          %s234 = smul.addr %s230, 64
          %s235 = scalar_lea.hbm %s3, %s234
          %s236 = sshll.u32 %s228, 4
          %s237 = int_to_ptr.vmem [resolvable:$true] %s236
          %242 = dma.hbm_to_vmem [thread:$0]  %s235, 3456, %s237, %s225, 64, 64, 4
        $region32: #{bottleneck_forward.7} parent=23 // pred_fallthru
          _
      $region24: #{bottleneck_forward.7} parent=5 // pred_fallthru
        _
      %p243 = scmp.le.s32.totalorder 1, %s20
      %p244 = scmp.lt.s32.totalorder %s20, 3
      %p245 = pnand %p243, %p244
      %p246 = pneg %p245
      // Predicated region
      $region33: #{bottleneck_forward.7} parent=5 // pred_check
        _
      $region34: #{bottleneck_forward.7} parent=5 // pred_check_branch
        %248 = sbr.rel (%p245) target = $region36
      $region35: #{bottleneck_forward.7} parent=5 // pred_region
        %s249 = ssub.s32 %s20, 1
        %s250 = sand.u32 %s47, 1
        %s251 = scalar_lea.sflag [#allocation3], %s250
        %s252 = sand.u32 %s47, 1
        %s253 = smul.addr %s252, 216
        %s254 = scalar_lea.vmem [#allocation2], %s253
        // Predicated region
        $region37: #{bottleneck_forward.7} parent=35 // pred_check
          %p255 = pneg %p60
        $region38: #{bottleneck_forward.7} parent=35 // pred_check_branch
          %257 = sbr.rel (%p255) target = $region40
        $region39: #{bottleneck_forward.7} parent=35 // pred_region
          %258 = dma.done %s251, 3456
        $region40: #{bottleneck_forward.7} parent=35 // pred_fallthru
          _
        // Predicated region
        $region41: #{bottleneck_forward.7} parent=35 // pred_check
          %p259 = pneg %p81
        $region42: #{bottleneck_forward.7} parent=35 // pred_check_branch
          %261 = sbr.rel (%p259) target = $region44
        $region43: #{bottleneck_forward.7} parent=35 // pred_region
          %262 = dma.done [#allocation6], 16
        $region44: #{bottleneck_forward.7} parent=35 // pred_fallthru
          _
        // Predicated region
        $region45: #{bottleneck_forward.7} parent=35 // pred_check
          %p263 = pneg %p102
        $region46: #{bottleneck_forward.7} parent=35 // pred_check_branch
          %265 = sbr.rel (%p263) target = $region48
        $region47: #{bottleneck_forward.7} parent=35 // pred_region
          %266 = dma.done [#allocation6], 16
        $region48: #{bottleneck_forward.7} parent=35 // pred_fallthru
          _
        %s267 = sand.u32 %s117, 1
        %s268 = scalar_lea.sflag [#allocation9], %s267
        %s269 = sand.u32 %s117, 1
        %s270 = smul.addr %s269, 216
        %s271 = scalar_lea.vmem [#allocation8], %s270
        // Predicated region
        $region49: #{bottleneck_forward.7} parent=35 // pred_check
          %p272 = pneg %p130
        $region50: #{bottleneck_forward.7} parent=35 // pred_check_branch
          %274 = sbr.rel (%p272) target = $region52
        $region51: #{bottleneck_forward.7} parent=35 // pred_region
          %275 = dma.done %s268, 3456
        $region52: #{bottleneck_forward.7} parent=35 // pred_fallthru
          _
        %s276 = sand.u32 %s47, 1
        %s277 = scalar_lea.sflag [#allocation3], %s276
        %s278 = sand.u32 %s47, 1
        %s279 = smul.addr %s278, 216
        %s280 = scalar_lea.vmem [#allocation2], %s279
        %p281 = pneg %p60
        %p282 = pneg %p57
        %p283 = pneg %p81
        %p284 = pneg %p78
        %p285 = pneg %p102
        %p286 = pneg %p99
        %s287 = sand.u32 %s117, 1
        %s288 = scalar_lea.sflag [#allocation9], %s287
        %s289 = sand.u32 %s117, 1
        %s290 = smul.addr %s289, 216
        %s291 = scalar_lea.vmem [#allocation8], %s290
        %p292 = pneg %p130
        %p293 = pneg %p127
        %p294 = pneg %p158
        %p295 = pneg %p155
        %s296 = sand.u32 %s145, 1
        %s297 = scalar_lea.sflag [#allocation4], %s296
        %s298 = sand.u32 %s145, 1
        %s299 = smul.addr %s298, 432
        %s300 = scalar_lea.vmem [#allocation10], %s299
        %s301 = sadd.s32 %s29, %s30
        %s302 = smul.u32 54, %s301
        %s303 = sadd.s32 %s29, %s30
        %s304 = smul.u32 54, %s303
        %s305 = sadd.s32 %s29, %s30
        %s306 = smul.u32 54, %s305
        %v307 = vld [vmem:[%s254] sm:$0xf]
        %v308 = vld [vmem:[%s254 + $0x4] sm:$0xf]
        %v309 = vld [vmem:[%s254 + $0x8] sm:$0xf]
        %v310 = vld [vmem:[%s254 + $0xc] sm:$0xf]
        %v311 = vld [vmem:[%s254 + $0x10] sm:$0xf]
        %v312 = vld [vmem:[%s254 + $0x14] sm:$0xf]
        %v313 = vld [vmem:[%s254 + $0x18] sm:$0xf]
        %v314 = vld [vmem:[%s254 + $0x1c] sm:$0xf]
        %v315 = vld [vmem:[%s254 + $0x20] sm:$0xf]
        %v316 = vld [vmem:[%s254 + $0x24] sm:$0xf]
        %v317 = vld [vmem:[%s254 + $0x28] sm:$0xf]
        %v318 = vld [vmem:[%s254 + $0x2c] sm:$0xf]
        %v319 = vld [vmem:[%s254 + $0x30] sm:$0xf]
        %v320 = vld [vmem:[%s254 + $0x34] sm:$0xf]
        %v321 = vld [vmem:[%s254 + $0x38] sm:$0xf]
        %v322 = vld [vmem:[%s254 + $0x3c] sm:$0xf]
        %v323 = vld [vmem:[%s254 + $0x40] sm:$0xf]
        %v324 = vld [vmem:[%s254 + $0x44] sm:$0xf]
        %v325 = vld [vmem:[%s254 + $0x48] sm:$0xf]
        %v326 = vld [vmem:[%s254 + $0x4c] sm:$0xf]
        %v327 = vld [vmem:[%s254 + $0x50] sm:$0xf]
        %v328 = vld [vmem:[%s254 + $0x54] sm:$0xf]
        %v329 = vld [vmem:[%s254 + $0x58] sm:$0xf]
        %v330 = vld [vmem:[%s254 + $0x5c] sm:$0xf]
        %v331 = vld [vmem:[%s254 + $0x60] sm:$0xf]
        %v332 = vld [vmem:[%s254 + $0x64] sm:$0xf]
        %v333 = vld [vmem:[%s254 + $0x68] sm:$0xf]
        %v334 = vld [vmem:[%s254 + $0x6c] sm:$0xf]
        %v335 = vld [vmem:[%s254 + $0x70] sm:$0xf]
        %v336 = vld [vmem:[%s254 + $0x74] sm:$0xf]
        %v337 = vld [vmem:[%s254 + $0x78] sm:$0xf]
        %v338 = vld [vmem:[%s254 + $0x7c] sm:$0xf]
        %v339 = vld [vmem:[%s254 + $0x80] sm:$0xf]
        %v340 = vld [vmem:[%s254 + $0x84] sm:$0xf]
        %v341 = vld [vmem:[%s254 + $0x88] sm:$0xf]
        %v342 = vld [vmem:[%s254 + $0x8c] sm:$0xf]
        %v343 = vld [vmem:[%s254 + $0x90] sm:$0xf]
        %v344 = vld [vmem:[%s254 + $0x94] sm:$0xf]
        %v345 = vld [vmem:[%s254 + $0x98] sm:$0xf]
        %v346 = vld [vmem:[%s254 + $0x9c] sm:$0xf]
        %v347 = vld [vmem:[%s254 + $0xa0] sm:$0xf]
        %v348 = vld [vmem:[%s254 + $0xa4] sm:$0xf]
        %v349 = vld [vmem:[%s254 + $0xa8] sm:$0xf]
        %v350 = vld [vmem:[%s254 + $0xac] sm:$0xf]
        %v351 = vld [vmem:[%s254 + $0xb0] sm:$0xf]
        %v352 = vld [vmem:[%s254 + $0xb4] sm:$0xf]
        %v353 = vld [vmem:[%s254 + $0xb8] sm:$0xf]
        %v354 = vld [vmem:[%s254 + $0xbc] sm:$0xf]
        %v355 = vld [vmem:[%s254 + $0xc0] sm:$0xf]
        %v356 = vld [vmem:[%s254 + $0xc4] sm:$0xf]
        %v357 = vld [vmem:[%s254 + $0xc8] sm:$0xf]
        %v358 = vld [vmem:[%s254 + $0xcc] sm:$0xf]
        %v359 = vld [vmem:[%s254 + $0xd0] sm:$0xf]
        %v360 = vld [vmem:[%s254 + $0xd4] sm:$0xf]
        %v361 = vunpack.c.l.bf16 %v307
        %v362 = vunpack.c.l.bf16 %v308
        %v363 = vunpack.c.l.bf16 %v309
        %v364 = vunpack.c.l.bf16 %v310
        %v365 = vunpack.c.l.bf16 %v311
        %v366 = vunpack.c.l.bf16 %v312
        %v367 = vunpack.c.l.bf16 %v313
        %v368 = vunpack.c.l.bf16 %v314
        %v369 = vunpack.c.l.bf16 %v315
        %v370 = vunpack.c.l.bf16 %v316
        %v371 = vunpack.c.l.bf16 %v317
        %v372 = vunpack.c.l.bf16 %v318
        %v373 = vunpack.c.l.bf16 %v319
        %v374 = vunpack.c.l.bf16 %v320
        %v375 = vunpack.c.l.bf16 %v321
        %v376 = vunpack.c.l.bf16 %v322
        %v377 = vunpack.c.l.bf16 %v323
        %v378 = vunpack.c.l.bf16 %v324
        %v379 = vunpack.c.l.bf16 %v325
        %v380 = vunpack.c.l.bf16 %v326
        %v381 = vunpack.c.l.bf16 %v327
        %v382 = vunpack.c.l.bf16 %v328
        %v383 = vunpack.c.l.bf16 %v329
        %v384 = vunpack.c.l.bf16 %v330
        %v385 = vunpack.c.l.bf16 %v331
        %v386 = vunpack.c.l.bf16 %v332
        %v387 = vunpack.c.l.bf16 %v333
        %v388 = vunpack.c.l.bf16 %v334
        %v389 = vunpack.c.l.bf16 %v335
        %v390 = vunpack.c.l.bf16 %v336
        %v391 = vunpack.c.l.bf16 %v337
        %v392 = vunpack.c.l.bf16 %v338
        %v393 = vunpack.c.l.bf16 %v339
        %v394 = vunpack.c.l.bf16 %v340
        %v395 = vunpack.c.l.bf16 %v341
        %v396 = vunpack.c.l.bf16 %v342
        %v397 = vunpack.c.l.bf16 %v343
        %v398 = vunpack.c.l.bf16 %v344
        %v399 = vunpack.c.l.bf16 %v345
        %v400 = vunpack.c.l.bf16 %v346
        %v401 = vunpack.c.l.bf16 %v347
        %v402 = vunpack.c.l.bf16 %v348
        %v403 = vunpack.c.l.bf16 %v349
        %v404 = vunpack.c.l.bf16 %v350
        %v405 = vunpack.c.l.bf16 %v351
        %v406 = vunpack.c.l.bf16 %v352
        %v407 = vunpack.c.l.bf16 %v353
        %v408 = vunpack.c.l.bf16 %v354
        %v409 = vunpack.c.l.bf16 %v355
        %v410 = vunpack.c.l.bf16 %v356
        %v411 = vunpack.c.l.bf16 %v357
        %v412 = vunpack.c.l.bf16 %v358
        %v413 = vunpack.c.l.bf16 %v359
        %v414 = vunpack.c.l.bf16 %v360
        %v415 = vld [vmem:[#allocation5] sm:$0x1]
        %v417 = vlaneseq
        %v418 = vshrl.u32 %v417, 7
        %v419 = vsub.s32 0, %v418
        %v420 = vrot.slane %v415, %v419
        %v422 = vmul.f32 %v361, %v420
        %v423 = vmul.f32 %v362, %v420
        %v424 = vmul.f32 %v363, %v420
        %v425 = vmul.f32 %v364, %v420
        %v426 = vmul.f32 %v365, %v420
        %v427 = vmul.f32 %v366, %v420
        %v428 = vmul.f32 %v367, %v420
        %v429 = vmul.f32 %v368, %v420
        %v430 = vmul.f32 %v369, %v420
        %v431 = vmul.f32 %v370, %v420
        %v432 = vmul.f32 %v371, %v420
        %v433 = vmul.f32 %v372, %v420
        %v434 = vmul.f32 %v373, %v420
        %v435 = vmul.f32 %v374, %v420
        %v436 = vmul.f32 %v375, %v420
        %v437 = vmul.f32 %v376, %v420
        %v438 = vmul.f32 %v377, %v420
        %v439 = vmul.f32 %v378, %v420
        %v440 = vmul.f32 %v379, %v420
        %v441 = vmul.f32 %v380, %v420
        %v442 = vmul.f32 %v381, %v420
        %v443 = vmul.f32 %v382, %v420
        %v444 = vmul.f32 %v383, %v420
        %v445 = vmul.f32 %v384, %v420
        %v446 = vmul.f32 %v385, %v420
        %v447 = vmul.f32 %v386, %v420
        %v448 = vmul.f32 %v387, %v420
        %v449 = vmul.f32 %v388, %v420
        %v450 = vmul.f32 %v389, %v420
        %v451 = vmul.f32 %v390, %v420
        %v452 = vmul.f32 %v391, %v420
        %v453 = vmul.f32 %v392, %v420
        %v454 = vmul.f32 %v393, %v420
        %v455 = vmul.f32 %v394, %v420
        %v456 = vmul.f32 %v395, %v420
        %v457 = vmul.f32 %v396, %v420
        %v458 = vmul.f32 %v397, %v420
        %v459 = vmul.f32 %v398, %v420
        %v460 = vmul.f32 %v399, %v420
        %v461 = vmul.f32 %v400, %v420
        %v462 = vmul.f32 %v401, %v420
        %v463 = vmul.f32 %v402, %v420
        %v464 = vmul.f32 %v403, %v420
        %v465 = vmul.f32 %v404, %v420
        %v466 = vmul.f32 %v405, %v420
        %v467 = vmul.f32 %v406, %v420
        %v468 = vmul.f32 %v407, %v420
        %v469 = vmul.f32 %v408, %v420
        %v470 = vmul.f32 %v409, %v420
        %v471 = vmul.f32 %v410, %v420
        %v472 = vmul.f32 %v411, %v420
        %v473 = vmul.f32 %v412, %v420
        %v474 = vmul.f32 %v413, %v420
        %v475 = vmul.f32 %v414, %v420
        %v476 = vld [vmem:[#allocation7] sm:$0x1]
        %v478 = vlaneseq
        %v479 = vshrl.u32 %v478, 7
        %v480 = vsub.s32 0, %v479
        %v481 = vrot.slane %v476, %v480
        %v483 = vadd.f32 %v422, %v481
        %v484 = vadd.f32 %v423, %v481
        %v485 = vadd.f32 %v424, %v481
        %v486 = vadd.f32 %v425, %v481
        %v487 = vadd.f32 %v426, %v481
        %v488 = vadd.f32 %v427, %v481
        %v489 = vadd.f32 %v428, %v481
        %v490 = vadd.f32 %v429, %v481
        %v491 = vadd.f32 %v430, %v481
        %v492 = vadd.f32 %v431, %v481
        %v493 = vadd.f32 %v432, %v481
        %v494 = vadd.f32 %v433, %v481
        %v495 = vadd.f32 %v434, %v481
        %v496 = vadd.f32 %v435, %v481
        %v497 = vadd.f32 %v436, %v481
        %v498 = vadd.f32 %v437, %v481
        %v499 = vadd.f32 %v438, %v481
        %v500 = vadd.f32 %v439, %v481
        %v501 = vadd.f32 %v440, %v481
        %v502 = vadd.f32 %v441, %v481
        %v503 = vadd.f32 %v442, %v481
        %v504 = vadd.f32 %v443, %v481
        %v505 = vadd.f32 %v444, %v481
        %v506 = vadd.f32 %v445, %v481
        %v507 = vadd.f32 %v446, %v481
        %v508 = vadd.f32 %v447, %v481
        %v509 = vadd.f32 %v448, %v481
        %v510 = vadd.f32 %v449, %v481
        %v511 = vadd.f32 %v450, %v481
        %v512 = vadd.f32 %v451, %v481
        %v513 = vadd.f32 %v452, %v481
        %v514 = vadd.f32 %v453, %v481
        %v515 = vadd.f32 %v454, %v481
        %v516 = vadd.f32 %v455, %v481
        %v517 = vadd.f32 %v456, %v481
        %v518 = vadd.f32 %v457, %v481
        %v519 = vadd.f32 %v458, %v481
        %v520 = vadd.f32 %v459, %v481
        %v521 = vadd.f32 %v460, %v481
        %v522 = vadd.f32 %v461, %v481
        %v523 = vadd.f32 %v462, %v481
        %v524 = vadd.f32 %v463, %v481
        %v525 = vadd.f32 %v464, %v481
        %v526 = vadd.f32 %v465, %v481
        %v527 = vadd.f32 %v466, %v481
        %v528 = vadd.f32 %v467, %v481
        %v529 = vadd.f32 %v468, %v481
        %v530 = vadd.f32 %v469, %v481
        %v531 = vadd.f32 %v470, %v481
        %v532 = vadd.f32 %v471, %v481
        %v533 = vadd.f32 %v472, %v481
        %v534 = vadd.f32 %v473, %v481
        %v535 = vadd.f32 %v474, %v481
        %v536 = vadd.f32 %v475, %v481
        %v537 = vld [vmem:[%s271] sm:$0xf]
        %v538 = vld [vmem:[%s271 + $0x4] sm:$0xf]
        %v539 = vld [vmem:[%s271 + $0x8] sm:$0xf]
        %v540 = vld [vmem:[%s271 + $0xc] sm:$0xf]
        %v541 = vld [vmem:[%s271 + $0x10] sm:$0xf]
        %v542 = vld [vmem:[%s271 + $0x14] sm:$0xf]
        %v543 = vld [vmem:[%s271 + $0x18] sm:$0xf]
        %v544 = vld [vmem:[%s271 + $0x1c] sm:$0xf]
        %v545 = vld [vmem:[%s271 + $0x20] sm:$0xf]
        %v546 = vld [vmem:[%s271 + $0x24] sm:$0xf]
        %v547 = vld [vmem:[%s271 + $0x28] sm:$0xf]
        %v548 = vld [vmem:[%s271 + $0x2c] sm:$0xf]
        %v549 = vld [vmem:[%s271 + $0x30] sm:$0xf]
        %v550 = vld [vmem:[%s271 + $0x34] sm:$0xf]
        %v551 = vld [vmem:[%s271 + $0x38] sm:$0xf]
        %v552 = vld [vmem:[%s271 + $0x3c] sm:$0xf]
        %v553 = vld [vmem:[%s271 + $0x40] sm:$0xf]
        %v554 = vld [vmem:[%s271 + $0x44] sm:$0xf]
        %v555 = vld [vmem:[%s271 + $0x48] sm:$0xf]
        %v556 = vld [vmem:[%s271 + $0x4c] sm:$0xf]
        %v557 = vld [vmem:[%s271 + $0x50] sm:$0xf]
        %v558 = vld [vmem:[%s271 + $0x54] sm:$0xf]
        %v559 = vld [vmem:[%s271 + $0x58] sm:$0xf]
        %v560 = vld [vmem:[%s271 + $0x5c] sm:$0xf]
        %v561 = vld [vmem:[%s271 + $0x60] sm:$0xf]
        %v562 = vld [vmem:[%s271 + $0x64] sm:$0xf]
        %v563 = vld [vmem:[%s271 + $0x68] sm:$0xf]
        %v564 = vld [vmem:[%s271 + $0x6c] sm:$0xf]
        %v565 = vld [vmem:[%s271 + $0x70] sm:$0xf]
        %v566 = vld [vmem:[%s271 + $0x74] sm:$0xf]
        %v567 = vld [vmem:[%s271 + $0x78] sm:$0xf]
        %v568 = vld [vmem:[%s271 + $0x7c] sm:$0xf]
        %v569 = vld [vmem:[%s271 + $0x80] sm:$0xf]
        %v570 = vld [vmem:[%s271 + $0x84] sm:$0xf]
        %v571 = vld [vmem:[%s271 + $0x88] sm:$0xf]
        %v572 = vld [vmem:[%s271 + $0x8c] sm:$0xf]
        %v573 = vld [vmem:[%s271 + $0x90] sm:$0xf]
        %v574 = vld [vmem:[%s271 + $0x94] sm:$0xf]
        %v575 = vld [vmem:[%s271 + $0x98] sm:$0xf]
        %v576 = vld [vmem:[%s271 + $0x9c] sm:$0xf]
        %v577 = vld [vmem:[%s271 + $0xa0] sm:$0xf]
        %v578 = vld [vmem:[%s271 + $0xa4] sm:$0xf]
        %v579 = vld [vmem:[%s271 + $0xa8] sm:$0xf]
        %v580 = vld [vmem:[%s271 + $0xac] sm:$0xf]
        %v581 = vld [vmem:[%s271 + $0xb0] sm:$0xf]
        %v582 = vld [vmem:[%s271 + $0xb4] sm:$0xf]
        %v583 = vld [vmem:[%s271 + $0xb8] sm:$0xf]
        %v584 = vld [vmem:[%s271 + $0xbc] sm:$0xf]
        %v585 = vld [vmem:[%s271 + $0xc0] sm:$0xf]
        %v586 = vld [vmem:[%s271 + $0xc4] sm:$0xf]
        %v587 = vld [vmem:[%s271 + $0xc8] sm:$0xf]
        %v588 = vld [vmem:[%s271 + $0xcc] sm:$0xf]
        %v589 = vld [vmem:[%s271 + $0xd0] sm:$0xf]
        %v590 = vld [vmem:[%s271 + $0xd4] sm:$0xf]
        %v591 = vunpack.c.l.bf16 %v537
        %v592 = vunpack.c.l.bf16 %v538
        %v593 = vunpack.c.l.bf16 %v539
        %v594 = vunpack.c.l.bf16 %v540
        %v595 = vunpack.c.l.bf16 %v541
        %v596 = vunpack.c.l.bf16 %v542
        %v597 = vunpack.c.l.bf16 %v543
        %v598 = vunpack.c.l.bf16 %v544
        %v599 = vunpack.c.l.bf16 %v545
        %v600 = vunpack.c.l.bf16 %v546
        %v601 = vunpack.c.l.bf16 %v547
        %v602 = vunpack.c.l.bf16 %v548
        %v603 = vunpack.c.l.bf16 %v549
        %v604 = vunpack.c.l.bf16 %v550
        %v605 = vunpack.c.l.bf16 %v551
        %v606 = vunpack.c.l.bf16 %v552
        %v607 = vunpack.c.l.bf16 %v553
        %v608 = vunpack.c.l.bf16 %v554
        %v609 = vunpack.c.l.bf16 %v555
        %v610 = vunpack.c.l.bf16 %v556
        %v611 = vunpack.c.l.bf16 %v557
        %v612 = vunpack.c.l.bf16 %v558
        %v613 = vunpack.c.l.bf16 %v559
        %v614 = vunpack.c.l.bf16 %v560
        %v615 = vunpack.c.l.bf16 %v561
        %v616 = vunpack.c.l.bf16 %v562
        %v617 = vunpack.c.l.bf16 %v563
        %v618 = vunpack.c.l.bf16 %v564
        %v619 = vunpack.c.l.bf16 %v565
        %v620 = vunpack.c.l.bf16 %v566
        %v621 = vunpack.c.l.bf16 %v567
        %v622 = vunpack.c.l.bf16 %v568
        %v623 = vunpack.c.l.bf16 %v569
        %v624 = vunpack.c.l.bf16 %v570
        %v625 = vunpack.c.l.bf16 %v571
        %v626 = vunpack.c.l.bf16 %v572
        %v627 = vunpack.c.l.bf16 %v573
        %v628 = vunpack.c.l.bf16 %v574
        %v629 = vunpack.c.l.bf16 %v575
        %v630 = vunpack.c.l.bf16 %v576
        %v631 = vunpack.c.l.bf16 %v577
        %v632 = vunpack.c.l.bf16 %v578
        %v633 = vunpack.c.l.bf16 %v579
        %v634 = vunpack.c.l.bf16 %v580
        %v635 = vunpack.c.l.bf16 %v581
        %v636 = vunpack.c.l.bf16 %v582
        %v637 = vunpack.c.l.bf16 %v583
        %v638 = vunpack.c.l.bf16 %v584
        %v639 = vunpack.c.l.bf16 %v585
        %v640 = vunpack.c.l.bf16 %v586
        %v641 = vunpack.c.l.bf16 %v587
        %v642 = vunpack.c.l.bf16 %v588
        %v643 = vunpack.c.l.bf16 %v589
        %v644 = vunpack.c.l.bf16 %v590
        %v645 = vadd.f32 %v483, %v591
        %v646 = vadd.f32 %v484, %v592
        %v647 = vadd.f32 %v485, %v593
        %v648 = vadd.f32 %v486, %v594
        %v649 = vadd.f32 %v487, %v595
        %v650 = vadd.f32 %v488, %v596
        %v651 = vadd.f32 %v489, %v597
        %v652 = vadd.f32 %v490, %v598
        %v653 = vadd.f32 %v491, %v599
        %v654 = vadd.f32 %v492, %v600
        %v655 = vadd.f32 %v493, %v601
        %v656 = vadd.f32 %v494, %v602
        %v657 = vadd.f32 %v495, %v603
        %v658 = vadd.f32 %v496, %v604
        %v659 = vadd.f32 %v497, %v605
        %v660 = vadd.f32 %v498, %v606
        %v661 = vadd.f32 %v499, %v607
        %v662 = vadd.f32 %v500, %v608
        %v663 = vadd.f32 %v501, %v609
        %v664 = vadd.f32 %v502, %v610
        %v665 = vadd.f32 %v503, %v611
        %v666 = vadd.f32 %v504, %v612
        %v667 = vadd.f32 %v505, %v613
        %v668 = vadd.f32 %v506, %v614
        %v669 = vadd.f32 %v507, %v615
        %v670 = vadd.f32 %v508, %v616
        %v671 = vadd.f32 %v509, %v617
        %v672 = vadd.f32 %v510, %v618
        %v673 = vadd.f32 %v511, %v619
        %v674 = vadd.f32 %v512, %v620
        %v675 = vadd.f32 %v513, %v621
        %v676 = vadd.f32 %v514, %v622
        %v677 = vadd.f32 %v515, %v623
        %v678 = vadd.f32 %v516, %v624
        %v679 = vadd.f32 %v517, %v625
        %v680 = vadd.f32 %v518, %v626
        %v681 = vadd.f32 %v519, %v627
        %v682 = vadd.f32 %v520, %v628
        %v683 = vadd.f32 %v521, %v629
        %v684 = vadd.f32 %v522, %v630
        %v685 = vadd.f32 %v523, %v631
        %v686 = vadd.f32 %v524, %v632
        %v687 = vadd.f32 %v525, %v633
        %v688 = vadd.f32 %v526, %v634
        %v689 = vadd.f32 %v527, %v635
        %v690 = vadd.f32 %v528, %v636
        %v691 = vadd.f32 %v529, %v637
        %v692 = vadd.f32 %v530, %v638
        %v693 = vadd.f32 %v531, %v639
        %v694 = vadd.f32 %v532, %v640
        %v695 = vadd.f32 %v533, %v641
        %v696 = vadd.f32 %v534, %v642
        %v697 = vadd.f32 %v535, %v643
        %v698 = vadd.f32 %v536, %v644
        %v699 = vmax.f32 %v645, 0.0
        %v700 = vmax.f32 %v646, 0.0
        %v701 = vmax.f32 %v647, 0.0
        %v702 = vmax.f32 %v648, 0.0
        %v703 = vmax.f32 %v649, 0.0
        %v704 = vmax.f32 %v650, 0.0
        %v705 = vmax.f32 %v651, 0.0
        %v706 = vmax.f32 %v652, 0.0
        %v707 = vmax.f32 %v653, 0.0
        %v708 = vmax.f32 %v654, 0.0
        %v709 = vmax.f32 %v655, 0.0
        %v710 = vmax.f32 %v656, 0.0
        %v711 = vmax.f32 %v657, 0.0
        %v712 = vmax.f32 %v658, 0.0
        %v713 = vmax.f32 %v659, 0.0
        %v714 = vmax.f32 %v660, 0.0
        %v715 = vmax.f32 %v661, 0.0
        %v716 = vmax.f32 %v662, 0.0
        %v717 = vmax.f32 %v663, 0.0
        %v718 = vmax.f32 %v664, 0.0
        %v719 = vmax.f32 %v665, 0.0
        %v720 = vmax.f32 %v666, 0.0
        %v721 = vmax.f32 %v667, 0.0
        %v722 = vmax.f32 %v668, 0.0
        %v723 = vmax.f32 %v669, 0.0
        %v724 = vmax.f32 %v670, 0.0
        %v725 = vmax.f32 %v671, 0.0
        %v726 = vmax.f32 %v672, 0.0
        %v727 = vmax.f32 %v673, 0.0
        %v728 = vmax.f32 %v674, 0.0
        %v729 = vmax.f32 %v675, 0.0
        %v730 = vmax.f32 %v676, 0.0
        %v731 = vmax.f32 %v677, 0.0
        %v732 = vmax.f32 %v678, 0.0
        %v733 = vmax.f32 %v679, 0.0
        %v734 = vmax.f32 %v680, 0.0
        %v735 = vmax.f32 %v681, 0.0
        %v736 = vmax.f32 %v682, 0.0
        %v737 = vmax.f32 %v683, 0.0
        %v738 = vmax.f32 %v684, 0.0
        %v739 = vmax.f32 %v685, 0.0
        %v740 = vmax.f32 %v686, 0.0
        %v741 = vmax.f32 %v687, 0.0
        %v742 = vmax.f32 %v688, 0.0
        %v743 = vmax.f32 %v689, 0.0
        %v744 = vmax.f32 %v690, 0.0
        %v745 = vmax.f32 %v691, 0.0
        %v746 = vmax.f32 %v692, 0.0
        %v747 = vmax.f32 %v693, 0.0
        %v748 = vmax.f32 %v694, 0.0
        %v749 = vmax.f32 %v695, 0.0
        %v750 = vmax.f32 %v696, 0.0
        %v751 = vmax.f32 %v697, 0.0
        %v752 = vmax.f32 %v698, 0.0
        %753 = vst [vmem:[%s300] sm:$0xff] %v699
        %754 = vst [vmem:[%s300 + $0x8] sm:$0xff] %v700
        %755 = vst [vmem:[%s300 + $0x10] sm:$0xff] %v701
        %756 = vst [vmem:[%s300 + $0x18] sm:$0xff] %v702
        %757 = vst [vmem:[%s300 + $0x20] sm:$0xff] %v703
        %758 = vst [vmem:[%s300 + $0x28] sm:$0xff] %v704
        %759 = vst [vmem:[%s300 + $0x30] sm:$0xff] %v705
        %760 = vst [vmem:[%s300 + $0x38] sm:$0xff] %v706
        %761 = vst [vmem:[%s300 + $0x40] sm:$0xff] %v707
        %762 = vst [vmem:[%s300 + $0x48] sm:$0xff] %v708
        %763 = vst [vmem:[%s300 + $0x50] sm:$0xff] %v709
        %764 = vst [vmem:[%s300 + $0x58] sm:$0xff] %v710
        %765 = vst [vmem:[%s300 + $0x60] sm:$0xff] %v711
        %766 = vst [vmem:[%s300 + $0x68] sm:$0xff] %v712
        %767 = vst [vmem:[%s300 + $0x70] sm:$0xff] %v713
        %768 = vst [vmem:[%s300 + $0x78] sm:$0xff] %v714
        %769 = vst [vmem:[%s300 + $0x80] sm:$0xff] %v715
        %770 = vst [vmem:[%s300 + $0x88] sm:$0xff] %v716
        %771 = vst [vmem:[%s300 + $0x90] sm:$0xff] %v717
        %772 = vst [vmem:[%s300 + $0x98] sm:$0xff] %v718
        %773 = vst [vmem:[%s300 + $0xa0] sm:$0xff] %v719
        %774 = vst [vmem:[%s300 + $0xa8] sm:$0xff] %v720
        %775 = vst [vmem:[%s300 + $0xb0] sm:$0xff] %v721
        %776 = vst [vmem:[%s300 + $0xb8] sm:$0xff] %v722
        %777 = vst [vmem:[%s300 + $0xc0] sm:$0xff] %v723
        %778 = vst [vmem:[%s300 + $0xc8] sm:$0xff] %v724
        %779 = vst [vmem:[%s300 + $0xd0] sm:$0xff] %v725
        %780 = vst [vmem:[%s300 + $0xd8] sm:$0xff] %v726
        %781 = vst [vmem:[%s300 + $0xe0] sm:$0xff] %v727
        %782 = vst [vmem:[%s300 + $0xe8] sm:$0xff] %v728
        %783 = vst [vmem:[%s300 + $0xf0] sm:$0xff] %v729
        %784 = vst [vmem:[%s300 + $0xf8] sm:$0xff] %v730
        %785 = vst [vmem:[%s300 + $0x100] sm:$0xff] %v731
        %786 = vst [vmem:[%s300 + $0x108] sm:$0xff] %v732
        %787 = vst [vmem:[%s300 + $0x110] sm:$0xff] %v733
        %788 = vst [vmem:[%s300 + $0x118] sm:$0xff] %v734
        %789 = vst [vmem:[%s300 + $0x120] sm:$0xff] %v735
        %790 = vst [vmem:[%s300 + $0x128] sm:$0xff] %v736
        %791 = vst [vmem:[%s300 + $0x130] sm:$0xff] %v737
        %792 = vst [vmem:[%s300 + $0x138] sm:$0xff] %v738
        %793 = vst [vmem:[%s300 + $0x140] sm:$0xff] %v739
        %794 = vst [vmem:[%s300 + $0x148] sm:$0xff] %v740
        %795 = vst [vmem:[%s300 + $0x150] sm:$0xff] %v741
        %796 = vst [vmem:[%s300 + $0x158] sm:$0xff] %v742
        %797 = vst [vmem:[%s300 + $0x160] sm:$0xff] %v743
        %798 = vst [vmem:[%s300 + $0x168] sm:$0xff] %v744
        %799 = vst [vmem:[%s300 + $0x170] sm:$0xff] %v745
        %800 = vst [vmem:[%s300 + $0x178] sm:$0xff] %v746
        %801 = vst [vmem:[%s300 + $0x180] sm:$0xff] %v747
        %802 = vst [vmem:[%s300 + $0x188] sm:$0xff] %v748
        %803 = vst [vmem:[%s300 + $0x190] sm:$0xff] %v749
        %804 = vst [vmem:[%s300 + $0x198] sm:$0xff] %v750
        %805 = vst [vmem:[%s300 + $0x1a0] sm:$0xff] %v751
        %806 = vst [vmem:[%s300 + $0x1a8] sm:$0xff] %v752
        %s807 = sand.u32 %s145, 1
        %s808 = scalar_lea.sflag [#allocation4], %s807
        %s809 = sand.u32 %s145, 1
        %s810 = smul.addr %s809, 432
        %s811 = scalar_lea.vmem [#allocation10], %s810
        // Predicated region
        $region53: #{bottleneck_forward.7} parent=35 // pred_check
          %p812 = pneg %p155
        $region54: #{bottleneck_forward.7} parent=35 // pred_check_branch
          %814 = sbr.rel (%p812) target = $region56
        $region55: #{bottleneck_forward.7} parent=35 // pred_region
          %s815 = sadd.s32 %s29, %s30
          %s816 = smul.u32 54, %s815
          %s818 = ssub.s32 6912, 6912
          %819 = vsyncadd %s808, %s818
          %s820 = smul.addr %s816, 128
          %s821 = scalar_lea.hbm %s4, %s820
          %s822 = sshll.u32 %s811, 4
          %s823 = int_to_ptr.vmem [resolvable:$true] %s822
          %828 = dma.vmem_to_hbm [thread:$0]  %s823, 6912, %s821, %s808, 128, 128, 8
        $region56: #{bottleneck_forward.7} parent=35 // pred_fallthru
          _
      $region36: #{bottleneck_forward.7} parent=5 // pred_fallthru
        _
      %p829 = scmp.le.s32.totalorder 2, %s20
      // Predicated region
      $region57: #{bottleneck_forward.7} parent=5 // pred_check
        %p830 = pneg %p829
      $region58: #{bottleneck_forward.7} parent=5 // pred_check_branch
        %832 = sbr.rel (%p830) target = $region60
      $region59: #{bottleneck_forward.7} parent=5 // pred_region
        %s833 = ssub.s32 %s20, 2
        // Predicated region
        $region61: #{bottleneck_forward.7} parent=59 // pred_check
          %p834 = pneg %p161
        $region62: #{bottleneck_forward.7} parent=59 // pred_check_branch
          %836 = sbr.rel (%p834) target = $region64
        $region63: #{bottleneck_forward.7} parent=59 // pred_region
          %s837 = sand.u32 %s146, 1
          %s838 = scalar_lea.sflag [#allocation4], %s837
          %s839 = sand.u32 %s146, 1
          %s840 = smul.addr %s839, 432
          %s841 = scalar_lea.vmem [#allocation10], %s840
          %842 = dma.done %s838, 6912
        $region64: #{bottleneck_forward.7} parent=59 // pred_fallthru
          _
      $region60: #{bottleneck_forward.7} parent=5 // pred_fallthru
        _
    $region6: #{bottleneck_forward.7} parent=1 // loop_footer
      %s24 = sadd.s32 1, %s20
    $region7: #{bottleneck_forward.7} parent=1 // loop_footer_branch
      %19 = sbr.rel target = $region3
    $region8: #{bottleneck_forward.7} parent=1 // loop_exit
      _
    %843 = vsyncpa [#allocation3], 1
    %s844 = scalar_lea.sflag [#allocation3], 1
    %845 = vsyncpa %s844, 1
    %846 = vsyncpa [#allocation6], 1
    %847 = vsyncpa [#allocation9], 1
    %s848 = scalar_lea.sflag [#allocation9], 1
    %849 = vsyncpa %s848, 1
    %850 = vsyncpa [#allocation4], 1
    %s851 = scalar_lea.sflag [#allocation4], 1
    %852 = vsyncpa %s851, 1

// kernel: bottleneck_forward.6
$region0: #{bottleneck_forward.6}
  #allocation0 [shape = 'u32[]', space=smem, size = 0x4, offset = 0x4, fixed_abs, tag = 'smem constant byte address 0x4 - core index']
  #allocation1 [shape = 'u32[144,128]{1,0:T(1,128)}', space=vmem, size = 0x12000, scoped, tag = 'internal scratch']
  %s0 = inlined_call_operand.hbm [shape: bf16[864,128], index: 0, kind: input, shape index: {}]
  %s1 = inlined_call_operand.hbm [shape: f32[1,128], index: 1, kind: input, shape index: {}]
  %s2 = inlined_call_operand.hbm [shape: f32[1,128], index: 2, kind: input, shape index: {}]
  %s3 = inlined_call_operand.hbm [shape: f32[432,1], index: 3, kind: input, shape index: {}]
  %s4 = inlined_call_operand.hbm [shape: bf16[128,128], index: 4, kind: input, shape index: {}]
  %s5 = inlined_call_operand.hbm [shape: bf16[864,128], index: 5, kind: output, shape index: {0}]
  %s6 = inlined_call_operand.hbm [shape: f32[2,1,128], index: 6, kind: output, shape index: {1}]
  %s7 = inlined_call_operand.hbm [shape: f32[2,1,128], index: 7, kind: output, shape index: {2}]
  %8 = xla_tuple %s5, %s6, %s7
  %s9 = sld [smem:[#allocation0]]
  $region89: #{bottleneck_forward.6} parent=0
    _
  %s11 = ssub.s32 1, %s9
  %s12 = scalar_select 0, %s11, %s9
  $region1: #{bottleneck_forward.6} parent=0
    #allocation2 [shape = 'u8[221184]{0}', space=vmem, size = 0x36000, scoped, tag = 'input window, operand 0']
    #allocation3 [shape = 's32[2]{0}', space=sflag, size = 0x8, scoped, tag = 'scoped memory for bottleneck_forward.6']
    #allocation4 [shape = 's32[2]{0}', space=sflag, size = 0x8, scoped, tag = 'scoped memory for bottleneck_forward.6']
    #allocation5 [shape = 'u8[512]{0}', space=vmem, size = 0x400, scoped, tag = 'input window, operand 1, single buffered']
    #allocation6 [shape = 's32[1]{0}', space=sflag, size = 0x4, scoped, tag = 'scoped memory for bottleneck_forward.6']
    #allocation7 [shape = 'u8[512]{0}', space=vmem, size = 0x400, scoped, tag = 'input window, operand 2, single buffered']
    #allocation8 [shape = 'u8[221184]{0}', space=vmem, size = 0x36000, scoped, tag = 'input window, operand 3, single buffered']
    #allocation9 [shape = 's32[1]{0}', space=sflag, size = 0x4, scoped, tag = 'scoped memory for bottleneck_forward.6']
    #allocation10 [shape = 'u8[32768]{0}', space=vmem, size = 0x8000, scoped, tag = 'input window, operand 4, single buffered']
    #allocation11 [shape = 'u8[221184]{0}', space=vmem, size = 0x36000, scoped, tag = 'output window, operand 0']
    #allocation12 [shape = 'u8[1024]{0}', space=vmem, size = 0x400, scoped, tag = 'output window, operand 1']
    #allocation13 [shape = 's32[2]{0}', space=sflag, size = 0x8, scoped, tag = 'scoped memory for bottleneck_forward.6']
    #allocation14 [shape = 'u8[1024]{0}', space=vmem, size = 0x400, scoped, tag = 'output window, operand 2']
    %13 = vsyncpa [#allocation3], 0
    %s14 = scalar_lea.sflag [#allocation3], 1
    %15 = vsyncpa %s14, 0
    %16 = vsyncpa [#allocation6], 0
    %17 = vsyncpa [#allocation9], 0
    %18 = vsyncpa [#allocation4], 0
    %s19 = scalar_lea.sflag [#allocation4], 1
    %20 = vsyncpa %s19, 0
    %21 = vsyncpa [#allocation13], 0
    %s22 = scalar_lea.sflag [#allocation13], 1
    %23 = vsyncpa %s22, 0
    loop: start=0, step=1, limit=4
    $region2: #{bottleneck_forward.6} parent=1 // loop_pre_header
      _
    $region3: #{bottleneck_forward.6} parent=1 // loop_header
      %s25 = sphi 0, %s29
      %p26 = scmp.ge.s32.totalorder %s25, 4
      %s32 = sphi 0, %s44
      %s33 = sphi 0, %s40
      %s34 = sphi 0, %s32
      %s35 = sphi 0, %s33
      %s36 = sphi 0, %s34
      %s37 = sphi 0, %s35
      %s49 = sphi 0, %s51
      %s52 = sphi 0, %s49
      %s53 = sphi 0, %s52
      %s69 = sphi 0, %s53
      %s73 = sphi 0, %s73
      %s75 = sphi 0, %s73
      %s76 = sphi 0, %s75
      %s90 = sphi 0, %s76
      %s94 = sphi 0, %s94
      %s96 = sphi 0, %s94
      %s97 = sphi 0, %s96
      %s111 = sphi 0, %s97
      %s117 = sphi 0, %s119
      %s120 = sphi 0, %s117
      %s121 = sphi 0, %s120
      %s137 = sphi 0, %s121
      %s141 = sphi 0, %s141
      %s143 = sphi 0, %s141
      %s144 = sphi 0, %s143
      %s158 = sphi 0, %s144
      %s166 = sphi 0, %s168
      %s169 = sphi 0, %s166
      %s170 = sphi 0, %s169
      %s186 = sphi 0, %s170
      %s194 = sphi 0, %s196
      %s197 = sphi 0, %s194
      %s198 = sphi 0, %s197
      %s214 = sphi 0, %s198
      %s222 = sphi 0, %s224
      %s225 = sphi 0, %s222
      %s226 = sphi 0, %s225
      %s242 = sphi 0, %s226
    $region4: #{bottleneck_forward.6} parent=1 // loop_header_branch
      %28 = sbr.rel (%p26) target = $region8
    $region5: #{bottleneck_forward.6} parent=1 // loop_body
      %s30 = ssub.s32 %s25, 1
      %s31 = ssub.s32 %s25, 2
      %s38 = sadd.s32 1, %s33
      %p39 = scmp.ge.s32.totalorder %s38, 1
      %s40 = scalar_select %p39, 0, %s38
      %s41 = sadd.s32 1, %s32
      %s42 = scalar_select %p39, %s41, %s32
      %p43 = scmp.ge.s32.totalorder %s42, 2
      %s44 = scalar_select %p43, 0, %s42
      %s45 = sadd.s32 %s32, %s33
      %s46 = sadd.s32 %s44, %s40
      %s47 = ssub.s32 %s45, %s46
      %p48 = scmp.eq.s32.totalorder %s47, 0
      %s50 = sadd.s32 %s49, 1
      %s51 = scalar_select %p48, %s49, %s50
      %p54 = pneg %p48
      %p55 = scmp.eq.s32.totalorder %s25, 1
      %p56 = por %p54, %p55
      %p57 = scmp.ne.s32.totalorder %s49, %s52
      %p58 = scmp.eq.s32.totalorder %s25, 0
      %p59 = por %p57, %p58
      %p60 = scmp.ne.s32.totalorder %s49, %s52
      %p61 = scmp.eq.s32.totalorder %s30, 1
      %p62 = por %p60, %p61
      %p63 = scmp.ne.s32.totalorder %s52, %s53
      %p64 = scmp.eq.s32.totalorder %s30, 0
      %p65 = por %p63, %p64
      %p66 = scmp.ne.s32.totalorder %s52, %s53
      %p67 = scmp.eq.s32.totalorder %s31, 1
      %p68 = por %p66, %p67
      %p70 = scmp.ne.s32.totalorder %s53, %s69
      %p71 = scmp.eq.s32.totalorder %s31, 0
      %p72 = por %p70, %p71
      %s74 = sadd.s32 %s73, 1
      %p77 = scmp.eq.s32.totalorder %s25, 1
      %p78 = scmp.ne.s32.totalorder %s73, %s75
      %p79 = scmp.eq.s32.totalorder %s25, 0
      %p80 = por %p78, %p79
      %p81 = scmp.ne.s32.totalorder %s73, %s75
      %p82 = scmp.eq.s32.totalorder %s30, 1
      %p83 = por %p81, %p82
      %p84 = scmp.ne.s32.totalorder %s75, %s76
      %p85 = scmp.eq.s32.totalorder %s30, 0
      %p86 = por %p84, %p85
      %p87 = scmp.ne.s32.totalorder %s75, %s76
      %p88 = scmp.eq.s32.totalorder %s31, 1
      %p89 = por %p87, %p88
      %p91 = scmp.ne.s32.totalorder %s76, %s90
      %p92 = scmp.eq.s32.totalorder %s31, 0
      %p93 = por %p91, %p92
      %s95 = sadd.s32 %s94, 1
      %p98 = scmp.eq.s32.totalorder %s25, 1
      %p99 = scmp.ne.s32.totalorder %s94, %s96
      %p100 = scmp.eq.s32.totalorder %s25, 0
      %p101 = por %p99, %p100
      %p102 = scmp.ne.s32.totalorder %s94, %s96
      %p103 = scmp.eq.s32.totalorder %s30, 1
      %p104 = por %p102, %p103
      %p105 = scmp.ne.s32.totalorder %s96, %s97
      %p106 = scmp.eq.s32.totalorder %s30, 0
      %p107 = por %p105, %p106
      %p108 = scmp.ne.s32.totalorder %s96, %s97
      %p109 = scmp.eq.s32.totalorder %s31, 1
      %p110 = por %p108, %p109
      %p112 = scmp.ne.s32.totalorder %s97, %s111
      %p113 = scmp.eq.s32.totalorder %s31, 0
      %p114 = por %p112, %p113
      %s115 = ssub.s32 %s33, %s40
      %p116 = scmp.eq.s32.totalorder %s115, 0
      %s118 = sadd.s32 %s117, 1
      %s119 = scalar_select %p116, %s117, %s118
      %p122 = pneg %p116
      %p123 = scmp.eq.s32.totalorder %s25, 1
      %p124 = por %p122, %p123
      %p125 = scmp.ne.s32.totalorder %s117, %s120
      %p126 = scmp.eq.s32.totalorder %s25, 0
      %p127 = por %p125, %p126
      %p128 = scmp.ne.s32.totalorder %s117, %s120
      %p129 = scmp.eq.s32.totalorder %s30, 1
      %p130 = por %p128, %p129
      %p131 = scmp.ne.s32.totalorder %s120, %s121
      %p132 = scmp.eq.s32.totalorder %s30, 0
      %p133 = por %p131, %p132
      %p134 = scmp.ne.s32.totalorder %s120, %s121
      %p135 = scmp.eq.s32.totalorder %s31, 1
      %p136 = por %p134, %p135
      %p138 = scmp.ne.s32.totalorder %s121, %s137
      %p139 = scmp.eq.s32.totalorder %s31, 0
      %p140 = por %p138, %p139
      %s142 = sadd.s32 %s141, 1
      %p145 = scmp.eq.s32.totalorder %s25, 1
      %p146 = scmp.ne.s32.totalorder %s141, %s143
      %p147 = scmp.eq.s32.totalorder %s25, 0
      %p148 = por %p146, %p147
      %p149 = scmp.ne.s32.totalorder %s141, %s143
      %p150 = scmp.eq.s32.totalorder %s30, 1
      %p151 = por %p149, %p150
      %p152 = scmp.ne.s32.totalorder %s143, %s144
      %p153 = scmp.eq.s32.totalorder %s30, 0
      %p154 = por %p152, %p153
      %p155 = scmp.ne.s32.totalorder %s143, %s144
      %p156 = scmp.eq.s32.totalorder %s31, 1
      %p157 = por %p155, %p156
      %p159 = scmp.ne.s32.totalorder %s144, %s158
      %p160 = scmp.eq.s32.totalorder %s31, 0
      %p161 = por %p159, %p160
      %s162 = sadd.s32 %s32, %s33
      %s163 = sadd.s32 %s44, %s40
      %s164 = ssub.s32 %s162, %s163
      %p165 = scmp.eq.s32.totalorder %s164, 0
      %s167 = sadd.s32 %s166, 1
      %s168 = scalar_select %p165, %s166, %s167
      %p171 = pneg %p165
      %p172 = scmp.eq.s32.totalorder %s25, 1
      %p173 = por %p171, %p172
      %p174 = scmp.ne.s32.totalorder %s166, %s169
      %p175 = scmp.eq.s32.totalorder %s25, 0
      %p176 = por %p174, %p175
      %p177 = scmp.ne.s32.totalorder %s166, %s169
      %p178 = scmp.eq.s32.totalorder %s30, 1
      %p179 = por %p177, %p178
      %p180 = scmp.ne.s32.totalorder %s169, %s170
      %p181 = scmp.eq.s32.totalorder %s30, 0
      %p182 = por %p180, %p181
      %p183 = scmp.ne.s32.totalorder %s169, %s170
      %p184 = scmp.eq.s32.totalorder %s31, 1
      %p185 = por %p183, %p184
      %p187 = scmp.ne.s32.totalorder %s170, %s186
      %p188 = scmp.eq.s32.totalorder %s31, 0
      %p189 = por %p187, %p188
      %s190 = sadd.s32 %s32, %s33
      %s191 = sadd.s32 %s44, %s40
      %s192 = ssub.s32 %s190, %s191
      %p193 = scmp.eq.s32.totalorder %s192, 0
      %s195 = sadd.s32 %s194, 1
      %s196 = scalar_select %p193, %s194, %s195
      %p199 = pneg %p193
      %p200 = scmp.eq.s32.totalorder %s25, 1
      %p201 = por %p199, %p200
      %p202 = scmp.ne.s32.totalorder %s194, %s197
      %p203 = scmp.eq.s32.totalorder %s25, 0
      %p204 = por %p202, %p203
      %p205 = scmp.ne.s32.totalorder %s194, %s197
      %p206 = scmp.eq.s32.totalorder %s30, 1
      %p207 = por %p205, %p206
      %p208 = scmp.ne.s32.totalorder %s197, %s198
      %p209 = scmp.eq.s32.totalorder %s30, 0
      %p210 = por %p208, %p209
      %p211 = scmp.ne.s32.totalorder %s197, %s198
      %p212 = scmp.eq.s32.totalorder %s31, 1
      %p213 = por %p211, %p212
      %p215 = scmp.ne.s32.totalorder %s198, %s214
      %p216 = scmp.eq.s32.totalorder %s31, 0
      %p217 = por %p215, %p216
      %s218 = sadd.s32 %s32, %s33
      %s219 = sadd.s32 %s44, %s40
      %s220 = ssub.s32 %s218, %s219
      %p221 = scmp.eq.s32.totalorder %s220, 0
      %s223 = sadd.s32 %s222, 1
      %s224 = scalar_select %p221, %s222, %s223
      %p227 = pneg %p221
      %p228 = scmp.eq.s32.totalorder %s25, 1
      %p229 = por %p227, %p228
      %p230 = scmp.ne.s32.totalorder %s222, %s225
      %p231 = scmp.eq.s32.totalorder %s25, 0
      %p232 = por %p230, %p231
      %p233 = scmp.ne.s32.totalorder %s222, %s225
      %p234 = scmp.eq.s32.totalorder %s30, 1
      %p235 = por %p233, %p234
      %p236 = scmp.ne.s32.totalorder %s225, %s226
      %p237 = scmp.eq.s32.totalorder %s30, 0
      %p238 = por %p236, %p237
      %p239 = scmp.ne.s32.totalorder %s225, %s226
      %p240 = scmp.eq.s32.totalorder %s31, 1
      %p241 = por %p239, %p240
      %p243 = scmp.ne.s32.totalorder %s226, %s242
      %p244 = scmp.eq.s32.totalorder %s31, 0
      %p245 = por %p243, %p244
      %p246 = scmp.le.s32.totalorder 1, %s25
      %p247 = scmp.lt.s32.totalorder %s25, 3
      %p248 = pnand %p246, %p247
      %p249 = pneg %p248
      // Predicated region
      $region9: #{bottleneck_forward.6} parent=5 // pred_check
        _
      $region10: #{bottleneck_forward.6} parent=5 // pred_check_branch
        %251 = sbr.rel (%p248) target = $region12
      $region11: #{bottleneck_forward.6} parent=5 // pred_region
        %s252 = ssub.s32 %s25, 1
        // Predicated region
        $region13: #{bottleneck_forward.6} parent=11 // pred_check
          %p253 = pneg %p86
        $region14: #{bottleneck_forward.6} parent=11 // pred_check_branch
          %255 = sbr.rel (%p253) target = $region16
        $region15: #{bottleneck_forward.6} parent=11 // pred_region
          %s257 = ssub.s32 16, 16
          %258 = vsyncadd [#allocation6], %s257
          %s260 = sshll.u32 [#allocation5], 4
          %s261 = int_to_ptr.vmem [resolvable:$true] %s260
          %263 = dma.hbm_to_vmem [thread:$0]  %s1, 16, %s261, [#allocation6]
        $region16: #{bottleneck_forward.6} parent=11 // pred_fallthru
          _
        // Predicated region
        $region17: #{bottleneck_forward.6} parent=11 // pred_check
          %p264 = pneg %p107
        $region18: #{bottleneck_forward.6} parent=11 // pred_check_branch
          %266 = sbr.rel (%p264) target = $region20
        $region19: #{bottleneck_forward.6} parent=11 // pred_region
          %s268 = ssub.s32 16, 16
          %269 = vsyncadd [#allocation6], %s268
          %s271 = sshll.u32 [#allocation7], 4
          %s272 = int_to_ptr.vmem [resolvable:$true] %s271
          %274 = dma.hbm_to_vmem [thread:$0]  %s2, 16, %s272, [#allocation6]
        $region20: #{bottleneck_forward.6} parent=11 // pred_fallthru
          _
        // Predicated region
        $region21: #{bottleneck_forward.6} parent=11 // pred_check
          %p275 = pneg %p133
        $region22: #{bottleneck_forward.6} parent=11 // pred_check_branch
          %277 = sbr.rel (%p275) target = $region24
        $region23: #{bottleneck_forward.6} parent=11 // pred_region
          %s278 = smul.u32 54, %s35
          %s280 = ssub.s32 6912, 6912
          %281 = vsyncadd [#allocation9], %s280
          %s282 = smul.addr %s278, 128
          %s283 = scalar_lea.hbm %s3, %s282
          %s284 = sshll.u32 [#allocation8], 4
          %s285 = int_to_ptr.vmem [resolvable:$true] %s284
          %290 = dma.hbm_to_vmem [thread:$0]  %s283, 6912, %s285, [#allocation9], 128, 128, 8
        $region24: #{bottleneck_forward.6} parent=11 // pred_fallthru
          _
        // Predicated region
        $region25: #{bottleneck_forward.6} parent=11 // pred_check
          %p291 = pneg %p154
        $region26: #{bottleneck_forward.6} parent=11 // pred_check_branch
          %293 = sbr.rel (%p291) target = $region28
        $region27: #{bottleneck_forward.6} parent=11 // pred_region
          %s295 = ssub.s32 1024, 1024
          %296 = vsyncadd [#allocation9], %s295
          %s297 = sshll.u32 [#allocation10], 4
          %s298 = int_to_ptr.vmem [resolvable:$true] %s297
          %303 = dma.hbm_to_vmem [thread:$0]  %s4, 1024, %s298, [#allocation9], 64, 64, 4
        $region28: #{bottleneck_forward.6} parent=11 // pred_fallthru
          _
      $region12: #{bottleneck_forward.6} parent=5 // pred_fallthru
        _
      %p304 = scmp.lt.s32.totalorder %s25, 2
      // Predicated region
      $region29: #{bottleneck_forward.6} parent=5 // pred_check
        %p305 = pneg %p304
      $region30: #{bottleneck_forward.6} parent=5 // pred_check_branch
        %307 = sbr.rel (%p305) target = $region32
      $region31: #{bottleneck_forward.6} parent=5 // pred_region
        // Predicated region
        $region33: #{bottleneck_forward.6} parent=31 // pred_check
          %p308 = pneg %p59
        $region34: #{bottleneck_forward.6} parent=31 // pred_check_branch
          %310 = sbr.rel (%p308) target = $region36
        $region35: #{bottleneck_forward.6} parent=31 // pred_region
          %s311 = sand.u32 %s49, 1
          %s312 = scalar_lea.sflag [#allocation3], %s311
          %s313 = sand.u32 %s49, 1
          %s314 = smul.addr %s313, 216
          %s315 = scalar_lea.vmem [#allocation2], %s314
          %s316 = sadd.s32 %s32, %s33
          %s317 = smul.u32 54, %s316
          %s319 = ssub.s32 3456, 3456
          %320 = vsyncadd %s312, %s319
          %s321 = smul.addr %s317, 64
          %s322 = scalar_lea.hbm %s0, %s321
          %s323 = sshll.u32 %s315, 4
          %s324 = int_to_ptr.vmem [resolvable:$true] %s323
          %329 = dma.hbm_to_vmem [thread:$0]  %s322, 3456, %s324, %s312, 64, 64, 4
        $region36: #{bottleneck_forward.6} parent=31 // pred_fallthru
          _
      $region32: #{bottleneck_forward.6} parent=5 // pred_fallthru
        _
      %p330 = scmp.le.s32.totalorder 1, %s25
      %p331 = scmp.lt.s32.totalorder %s25, 3
      %p332 = pnand %p330, %p331
      %p333 = pneg %p332
      // Predicated region
      $region37: #{bottleneck_forward.6} parent=5 // pred_check
        _
      $region38: #{bottleneck_forward.6} parent=5 // pred_check_branch
        %335 = sbr.rel (%p332) target = $region40
      $region39: #{bottleneck_forward.6} parent=5 // pred_region
        %s336 = ssub.s32 %s25, 1
        %s337 = sand.u32 %s52, 1
        %s338 = scalar_lea.sflag [#allocation3], %s337
        %s339 = sand.u32 %s52, 1
        %s340 = smul.addr %s339, 216
        %s341 = scalar_lea.vmem [#allocation2], %s340
        // Predicated region
        $region41: #{bottleneck_forward.6} parent=39 // pred_check
          %p342 = pneg %p65
        $region42: #{bottleneck_forward.6} parent=39 // pred_check_branch
          %344 = sbr.rel (%p342) target = $region44
        $region43: #{bottleneck_forward.6} parent=39 // pred_region
          %345 = dma.done %s338, 3456
        $region44: #{bottleneck_forward.6} parent=39 // pred_fallthru
          _
        // Predicated region
        $region45: #{bottleneck_forward.6} parent=39 // pred_check
          %p346 = pneg %p86
        $region46: #{bottleneck_forward.6} parent=39 // pred_check_branch
          %348 = sbr.rel (%p346) target = $region48
        $region47: #{bottleneck_forward.6} parent=39 // pred_region
          %349 = dma.done [#allocation6], 16
        $region48: #{bottleneck_forward.6} parent=39 // pred_fallthru
          _
        // Predicated region
        $region49: #{bottleneck_forward.6} parent=39 // pred_check
          %p350 = pneg %p107
        $region50: #{bottleneck_forward.6} parent=39 // pred_check_branch
          %352 = sbr.rel (%p350) target = $region52
        $region51: #{bottleneck_forward.6} parent=39 // pred_region
          %353 = dma.done [#allocation6], 16
        $region52: #{bottleneck_forward.6} parent=39 // pred_fallthru
          _
        // Predicated region
        $region53: #{bottleneck_forward.6} parent=39 // pred_check
          %p354 = pneg %p133
        $region54: #{bottleneck_forward.6} parent=39 // pred_check_branch
          %356 = sbr.rel (%p354) target = $region56
        $region55: #{bottleneck_forward.6} parent=39 // pred_region
          %357 = dma.done [#allocation9], 6912
        $region56: #{bottleneck_forward.6} parent=39 // pred_fallthru
          _
        // Predicated region
        $region57: #{bottleneck_forward.6} parent=39 // pred_check
          %p358 = pneg %p154
        $region58: #{bottleneck_forward.6} parent=39 // pred_check_branch
          %360 = sbr.rel (%p358) target = $region60
        $region59: #{bottleneck_forward.6} parent=39 // pred_region
          %361 = dma.done [#allocation9], 1024
        $region60: #{bottleneck_forward.6} parent=39 // pred_fallthru
          _
        %s362 = sand.u32 %s52, 1
        %s363 = scalar_lea.sflag [#allocation3], %s362
        %s364 = sand.u32 %s52, 1
        %s365 = smul.addr %s364, 216
        %s366 = scalar_lea.vmem [#allocation2], %s365
        %p367 = pneg %p65
        %p368 = pneg %p62
        %p369 = pneg %p86
        %p370 = pneg %p83
        %p371 = pneg %p107
        %p372 = pneg %p104
        %p373 = pneg %p133
        %p374 = pneg %p130
        %p375 = pneg %p154
        %p376 = pneg %p151
        %p377 = pneg %p182
        %p378 = pneg %p179
        %s379 = sand.u32 %s169, 1
        %s380 = scalar_lea.sflag [#allocation4], %s379
        %s381 = sand.u32 %s169, 1
        %s382 = smul.addr %s381, 216
        %s383 = scalar_lea.vmem [#allocation11], %s382
        %p384 = pneg %p210
        %p385 = pneg %p207
        %s386 = sand.u32 %s30, 1
        %s387 = scalar_lea.sflag [#allocation13], %s386
        %s388 = sand.u32 %s197, 1
        %s389 = scalar_lea.vmem [#allocation12], %s388
        %p390 = pneg %p238
        %p391 = pneg %p235
        %s392 = sand.u32 %s30, 1
        %s393 = scalar_lea.sflag [#allocation13], %s392
        %s394 = sand.u32 %s225, 1
        %s395 = scalar_lea.vmem [#allocation14], %s394
        %s396 = sadd.s32 %s34, %s35
        %s397 = smul.u32 54, %s396
        %s398 = smul.u32 54, %s35
        %s399 = sadd.s32 %s34, %s35
        %s400 = smul.u32 54, %s399
        %s401 = sadd.s32 %s34, %s35
        %s402 = sadd.s32 %s34, %s35
        %v404 = vld [vmem:[%s341] sm:$0xf]
        %v405 = vld [vmem:[%s341 + $0x4] sm:$0xf]
        %v406 = vld [vmem:[%s341 + $0x8] sm:$0xf]
        %v407 = vld [vmem:[%s341 + $0xc] sm:$0xf]
        %v408 = vld [vmem:[%s341 + $0x10] sm:$0xf]
        %v409 = vld [vmem:[%s341 + $0x14] sm:$0xf]
        %v410 = vld [vmem:[%s341 + $0x18] sm:$0xf]
        %v411 = vld [vmem:[%s341 + $0x1c] sm:$0xf]
        %v412 = vld [vmem:[%s341 + $0x20] sm:$0xf]
        %v413 = vld [vmem:[%s341 + $0x24] sm:$0xf]
        %v414 = vld [vmem:[%s341 + $0x28] sm:$0xf]
        %v415 = vld [vmem:[%s341 + $0x2c] sm:$0xf]
        %v416 = vld [vmem:[%s341 + $0x30] sm:$0xf]
        %v417 = vld [vmem:[%s341 + $0x34] sm:$0xf]
        %v418 = vld [vmem:[%s341 + $0x38] sm:$0xf]
        %v419 = vld [vmem:[%s341 + $0x3c] sm:$0xf]
        %v420 = vld [vmem:[%s341 + $0x40] sm:$0xf]
        %v421 = vld [vmem:[%s341 + $0x44] sm:$0xf]
        %v422 = vld [vmem:[%s341 + $0x48] sm:$0xf]
        %v423 = vld [vmem:[%s341 + $0x4c] sm:$0xf]
        %v424 = vld [vmem:[%s341 + $0x50] sm:$0xf]
        %v425 = vld [vmem:[%s341 + $0x54] sm:$0xf]
        %v426 = vld [vmem:[%s341 + $0x58] sm:$0xf]
        %v427 = vld [vmem:[%s341 + $0x5c] sm:$0xf]
        %v428 = vld [vmem:[%s341 + $0x60] sm:$0xf]
        %v429 = vld [vmem:[%s341 + $0x64] sm:$0xf]
        %v430 = vld [vmem:[%s341 + $0x68] sm:$0xf]
        %v431 = vld [vmem:[%s341 + $0x6c] sm:$0xf]
        %v432 = vld [vmem:[%s341 + $0x70] sm:$0xf]
        %v433 = vld [vmem:[%s341 + $0x74] sm:$0xf]
        %v434 = vld [vmem:[%s341 + $0x78] sm:$0xf]
        %v435 = vld [vmem:[%s341 + $0x7c] sm:$0xf]
        %v436 = vld [vmem:[%s341 + $0x80] sm:$0xf]
        %v437 = vld [vmem:[%s341 + $0x84] sm:$0xf]
        %v438 = vld [vmem:[%s341 + $0x88] sm:$0xf]
        %v439 = vld [vmem:[%s341 + $0x8c] sm:$0xf]
        %v440 = vld [vmem:[%s341 + $0x90] sm:$0xf]
        %v441 = vld [vmem:[%s341 + $0x94] sm:$0xf]
        %v442 = vld [vmem:[%s341 + $0x98] sm:$0xf]
        %v443 = vld [vmem:[%s341 + $0x9c] sm:$0xf]
        %v444 = vld [vmem:[%s341 + $0xa0] sm:$0xf]
        %v445 = vld [vmem:[%s341 + $0xa4] sm:$0xf]
        %v446 = vld [vmem:[%s341 + $0xa8] sm:$0xf]
        %v447 = vld [vmem:[%s341 + $0xac] sm:$0xf]
        %v448 = vld [vmem:[%s341 + $0xb0] sm:$0xf]
        %v449 = vld [vmem:[%s341 + $0xb4] sm:$0xf]
        %v450 = vld [vmem:[%s341 + $0xb8] sm:$0xf]
        %v451 = vld [vmem:[%s341 + $0xbc] sm:$0xf]
        %v452 = vld [vmem:[%s341 + $0xc0] sm:$0xf]
        %v453 = vld [vmem:[%s341 + $0xc4] sm:$0xf]
        %v454 = vld [vmem:[%s341 + $0xc8] sm:$0xf]
        %v455 = vld [vmem:[%s341 + $0xcc] sm:$0xf]
        %v456 = vld [vmem:[%s341 + $0xd0] sm:$0xf]
        %v457 = vld [vmem:[%s341 + $0xd4] sm:$0xf]
        %v458 = vunpack.c.l.bf16 %v404
        %v459 = vunpack.c.l.bf16 %v405
        %v460 = vunpack.c.l.bf16 %v406
        %v461 = vunpack.c.l.bf16 %v407
        %v462 = vunpack.c.l.bf16 %v408
        %v463 = vunpack.c.l.bf16 %v409
        %v464 = vunpack.c.l.bf16 %v410
        %v465 = vunpack.c.l.bf16 %v411
        %v466 = vunpack.c.l.bf16 %v412
        %v467 = vunpack.c.l.bf16 %v413
        %v468 = vunpack.c.l.bf16 %v414
        %v469 = vunpack.c.l.bf16 %v415
        %v470 = vunpack.c.l.bf16 %v416
        %v471 = vunpack.c.l.bf16 %v417
        %v472 = vunpack.c.l.bf16 %v418
        %v473 = vunpack.c.l.bf16 %v419
        %v474 = vunpack.c.l.bf16 %v420
        %v475 = vunpack.c.l.bf16 %v421
        %v476 = vunpack.c.l.bf16 %v422
        %v477 = vunpack.c.l.bf16 %v423
        %v478 = vunpack.c.l.bf16 %v424
        %v479 = vunpack.c.l.bf16 %v425
        %v480 = vunpack.c.l.bf16 %v426
        %v481 = vunpack.c.l.bf16 %v427
        %v482 = vunpack.c.l.bf16 %v428
        %v483 = vunpack.c.l.bf16 %v429
        %v484 = vunpack.c.l.bf16 %v430
        %v485 = vunpack.c.l.bf16 %v431
        %v486 = vunpack.c.l.bf16 %v432
        %v487 = vunpack.c.l.bf16 %v433
        %v488 = vunpack.c.l.bf16 %v434
        %v489 = vunpack.c.l.bf16 %v435
        %v490 = vunpack.c.l.bf16 %v436
        %v491 = vunpack.c.l.bf16 %v437
        %v492 = vunpack.c.l.bf16 %v438
        %v493 = vunpack.c.l.bf16 %v439
        %v494 = vunpack.c.l.bf16 %v440
        %v495 = vunpack.c.l.bf16 %v441
        %v496 = vunpack.c.l.bf16 %v442
        %v497 = vunpack.c.l.bf16 %v443
        %v498 = vunpack.c.l.bf16 %v444
        %v499 = vunpack.c.l.bf16 %v445
        %v500 = vunpack.c.l.bf16 %v446
        %v501 = vunpack.c.l.bf16 %v447
        %v502 = vunpack.c.l.bf16 %v448
        %v503 = vunpack.c.l.bf16 %v449
        %v504 = vunpack.c.l.bf16 %v450
        %v505 = vunpack.c.l.bf16 %v451
        %v506 = vunpack.c.l.bf16 %v452
        %v507 = vunpack.c.l.bf16 %v453
        %v508 = vunpack.c.l.bf16 %v454
        %v509 = vunpack.c.l.bf16 %v455
        %v510 = vunpack.c.l.bf16 %v456
        %v511 = vunpack.c.l.bf16 %v457
        %v512 = vld [vmem:[#allocation5] sm:$0x1]
        %v514 = vlaneseq
        %v515 = vshrl.u32 %v514, 7
        %v516 = vsub.s32 0, %v515
        %v517 = vrot.slane %v512, %v516
        %v519 = vmul.f32 %v458, %v517
        %v520 = vmul.f32 %v459, %v517
        %v521 = vmul.f32 %v460, %v517
        %v522 = vmul.f32 %v461, %v517
        %v523 = vmul.f32 %v462, %v517
        %v524 = vmul.f32 %v463, %v517
        %v525 = vmul.f32 %v464, %v517
        %v526 = vmul.f32 %v465, %v517
        %v527 = vmul.f32 %v466, %v517
        %v528 = vmul.f32 %v467, %v517
        %v529 = vmul.f32 %v468, %v517
        %v530 = vmul.f32 %v469, %v517
        %v531 = vmul.f32 %v470, %v517
        %v532 = vmul.f32 %v471, %v517
        %v533 = vmul.f32 %v472, %v517
        %v534 = vmul.f32 %v473, %v517
        %v535 = vmul.f32 %v474, %v517
        %v536 = vmul.f32 %v475, %v517
        %v537 = vmul.f32 %v476, %v517
        %v538 = vmul.f32 %v477, %v517
        %v539 = vmul.f32 %v478, %v517
        %v540 = vmul.f32 %v479, %v517
        %v541 = vmul.f32 %v480, %v517
        %v542 = vmul.f32 %v481, %v517
        %v543 = vmul.f32 %v482, %v517
        %v544 = vmul.f32 %v483, %v517
        %v545 = vmul.f32 %v484, %v517
        %v546 = vmul.f32 %v485, %v517
        %v547 = vmul.f32 %v486, %v517
        %v548 = vmul.f32 %v487, %v517
        %v549 = vmul.f32 %v488, %v517
        %v550 = vmul.f32 %v489, %v517
        %v551 = vmul.f32 %v490, %v517
        %v552 = vmul.f32 %v491, %v517
        %v553 = vmul.f32 %v492, %v517
        %v554 = vmul.f32 %v493, %v517
        %v555 = vmul.f32 %v494, %v517
        %v556 = vmul.f32 %v495, %v517
        %v557 = vmul.f32 %v496, %v517
        %v558 = vmul.f32 %v497, %v517
        %v559 = vmul.f32 %v498, %v517
        %v560 = vmul.f32 %v499, %v517
        %v561 = vmul.f32 %v500, %v517
        %v562 = vmul.f32 %v501, %v517
        %v563 = vmul.f32 %v502, %v517
        %v564 = vmul.f32 %v503, %v517
        %v565 = vmul.f32 %v504, %v517
        %v566 = vmul.f32 %v505, %v517
        %v567 = vmul.f32 %v506, %v517
        %v568 = vmul.f32 %v507, %v517
        %v569 = vmul.f32 %v508, %v517
        %v570 = vmul.f32 %v509, %v517
        %v571 = vmul.f32 %v510, %v517
        %v572 = vmul.f32 %v511, %v517
        %v573 = vld [vmem:[#allocation7] sm:$0x1]
        %v575 = vlaneseq
        %v576 = vshrl.u32 %v575, 7
        %v577 = vsub.s32 0, %v576
        %v578 = vrot.slane %v573, %v577
        %v580 = vadd.f32 %v519, %v578
        %v581 = vadd.f32 %v520, %v578
        %v582 = vadd.f32 %v521, %v578
        %v583 = vadd.f32 %v522, %v578
        %v584 = vadd.f32 %v523, %v578
        %v585 = vadd.f32 %v524, %v578
        %v586 = vadd.f32 %v525, %v578
        %v587 = vadd.f32 %v526, %v578
        %v588 = vadd.f32 %v527, %v578
        %v589 = vadd.f32 %v528, %v578
        %v590 = vadd.f32 %v529, %v578
        %v591 = vadd.f32 %v530, %v578
        %v592 = vadd.f32 %v531, %v578
        %v593 = vadd.f32 %v532, %v578
        %v594 = vadd.f32 %v533, %v578
        %v595 = vadd.f32 %v534, %v578
        %v596 = vadd.f32 %v535, %v578
        %v597 = vadd.f32 %v536, %v578
        %v598 = vadd.f32 %v537, %v578
        %v599 = vadd.f32 %v538, %v578
        %v600 = vadd.f32 %v539, %v578
        %v601 = vadd.f32 %v540, %v578
        %v602 = vadd.f32 %v541, %v578
        %v603 = vadd.f32 %v542, %v578
        %v604 = vadd.f32 %v543, %v578
        %v605 = vadd.f32 %v544, %v578
        %v606 = vadd.f32 %v545, %v578
        %v607 = vadd.f32 %v546, %v578
        %v608 = vadd.f32 %v547, %v578
        %v609 = vadd.f32 %v548, %v578
        %v610 = vadd.f32 %v549, %v578
        %v611 = vadd.f32 %v550, %v578
        %v612 = vadd.f32 %v551, %v578
        %v613 = vadd.f32 %v552, %v578
        %v614 = vadd.f32 %v553, %v578
        %v615 = vadd.f32 %v554, %v578
        %v616 = vadd.f32 %v555, %v578
        %v617 = vadd.f32 %v556, %v578
        %v618 = vadd.f32 %v557, %v578
        %v619 = vadd.f32 %v558, %v578
        %v620 = vadd.f32 %v559, %v578
        %v621 = vadd.f32 %v560, %v578
        %v622 = vadd.f32 %v561, %v578
        %v623 = vadd.f32 %v562, %v578
        %v624 = vadd.f32 %v563, %v578
        %v625 = vadd.f32 %v564, %v578
        %v626 = vadd.f32 %v565, %v578
        %v627 = vadd.f32 %v566, %v578
        %v628 = vadd.f32 %v567, %v578
        %v629 = vadd.f32 %v568, %v578
        %v630 = vadd.f32 %v569, %v578
        %v631 = vadd.f32 %v570, %v578
        %v632 = vadd.f32 %v571, %v578
        %v633 = vadd.f32 %v572, %v578
        %v634 = vmax.f32 %v580, 0.0
        %v635 = vmax.f32 %v581, 0.0
        %v636 = vmax.f32 %v582, 0.0
        %v637 = vmax.f32 %v583, 0.0
        %v638 = vmax.f32 %v584, 0.0
        %v639 = vmax.f32 %v585, 0.0
        %v640 = vmax.f32 %v586, 0.0
        %v641 = vmax.f32 %v587, 0.0
        %v642 = vmax.f32 %v588, 0.0
        %v643 = vmax.f32 %v589, 0.0
        %v644 = vmax.f32 %v590, 0.0
        %v645 = vmax.f32 %v591, 0.0
        %v646 = vmax.f32 %v592, 0.0
        %v647 = vmax.f32 %v593, 0.0
        %v648 = vmax.f32 %v594, 0.0
        %v649 = vmax.f32 %v595, 0.0
        %v650 = vmax.f32 %v596, 0.0
        %v651 = vmax.f32 %v597, 0.0
        %v652 = vmax.f32 %v598, 0.0
        %v653 = vmax.f32 %v599, 0.0
        %v654 = vmax.f32 %v600, 0.0
        %v655 = vmax.f32 %v601, 0.0
        %v656 = vmax.f32 %v602, 0.0
        %v657 = vmax.f32 %v603, 0.0
        %v658 = vmax.f32 %v604, 0.0
        %v659 = vmax.f32 %v605, 0.0
        %v660 = vmax.f32 %v606, 0.0
        %v661 = vmax.f32 %v607, 0.0
        %v662 = vmax.f32 %v608, 0.0
        %v663 = vmax.f32 %v609, 0.0
        %v664 = vmax.f32 %v610, 0.0
        %v665 = vmax.f32 %v611, 0.0
        %v666 = vmax.f32 %v612, 0.0
        %v667 = vmax.f32 %v613, 0.0
        %v668 = vmax.f32 %v614, 0.0
        %v669 = vmax.f32 %v615, 0.0
        %v670 = vmax.f32 %v616, 0.0
        %v671 = vmax.f32 %v617, 0.0
        %v672 = vmax.f32 %v618, 0.0
        %v673 = vmax.f32 %v619, 0.0
        %v674 = vmax.f32 %v620, 0.0
        %v675 = vmax.f32 %v621, 0.0
        %v676 = vmax.f32 %v622, 0.0
        %v677 = vmax.f32 %v623, 0.0
        %v678 = vmax.f32 %v624, 0.0
        %v679 = vmax.f32 %v625, 0.0
        %v680 = vmax.f32 %v626, 0.0
        %v681 = vmax.f32 %v627, 0.0
        %v682 = vmax.f32 %v628, 0.0
        %v683 = vmax.f32 %v629, 0.0
        %v684 = vmax.f32 %v630, 0.0
        %v685 = vmax.f32 %v631, 0.0
        %v686 = vmax.f32 %v632, 0.0
        %v687 = vmax.f32 %v633, 0.0
        %v688 = vld [vmem:[#allocation8] sm:$0xff]
        %v689 = vld [vmem:[#allocation8 + $0x8] sm:$0xff]
        %v690 = vld [vmem:[#allocation8 + $0x10] sm:$0xff]
        %v691 = vld [vmem:[#allocation8 + $0x18] sm:$0xff]
        %v692 = vld [vmem:[#allocation8 + $0x20] sm:$0xff]
        %v693 = vld [vmem:[#allocation8 + $0x28] sm:$0xff]
        %v694 = vld [vmem:[#allocation8 + $0x30] sm:$0xff]
        %v695 = vld [vmem:[#allocation8 + $0x38] sm:$0xff]
        %v696 = vld [vmem:[#allocation8 + $0x40] sm:$0xff]
        %v697 = vld [vmem:[#allocation8 + $0x48] sm:$0xff]
        %v698 = vld [vmem:[#allocation8 + $0x50] sm:$0xff]
        %v699 = vld [vmem:[#allocation8 + $0x58] sm:$0xff]
        %v700 = vld [vmem:[#allocation8 + $0x60] sm:$0xff]
        %v701 = vld [vmem:[#allocation8 + $0x68] sm:$0xff]
        %v702 = vld [vmem:[#allocation8 + $0x70] sm:$0xff]
        %v703 = vld [vmem:[#allocation8 + $0x78] sm:$0xff]
        %v704 = vld [vmem:[#allocation8 + $0x80] sm:$0xff]
        %v705 = vld [vmem:[#allocation8 + $0x88] sm:$0xff]
        %v706 = vld [vmem:[#allocation8 + $0x90] sm:$0xff]
        %v707 = vld [vmem:[#allocation8 + $0x98] sm:$0xff]
        %v708 = vld [vmem:[#allocation8 + $0xa0] sm:$0xff]
        %v709 = vld [vmem:[#allocation8 + $0xa8] sm:$0xff]
        %v710 = vld [vmem:[#allocation8 + $0xb0] sm:$0xff]
        %v711 = vld [vmem:[#allocation8 + $0xb8] sm:$0xff]
        %v712 = vld [vmem:[#allocation8 + $0xc0] sm:$0xff]
        %v713 = vld [vmem:[#allocation8 + $0xc8] sm:$0xff]
        %v714 = vld [vmem:[#allocation8 + $0xd0] sm:$0xff]
        %v715 = vld [vmem:[#allocation8 + $0xd8] sm:$0xff]
        %v716 = vld [vmem:[#allocation8 + $0xe0] sm:$0xff]
        %v717 = vld [vmem:[#allocation8 + $0xe8] sm:$0xff]
        %v718 = vld [vmem:[#allocation8 + $0xf0] sm:$0xff]
        %v719 = vld [vmem:[#allocation8 + $0xf8] sm:$0xff]
        %v720 = vld [vmem:[#allocation8 + $0x100] sm:$0xff]
        %v721 = vld [vmem:[#allocation8 + $0x108] sm:$0xff]
        %v722 = vld [vmem:[#allocation8 + $0x110] sm:$0xff]
        %v723 = vld [vmem:[#allocation8 + $0x118] sm:$0xff]
        %v724 = vld [vmem:[#allocation8 + $0x120] sm:$0xff]
        %v725 = vld [vmem:[#allocation8 + $0x128] sm:$0xff]
        %v726 = vld [vmem:[#allocation8 + $0x130] sm:$0xff]
        %v727 = vld [vmem:[#allocation8 + $0x138] sm:$0xff]
        %v728 = vld [vmem:[#allocation8 + $0x140] sm:$0xff]
        %v729 = vld [vmem:[#allocation8 + $0x148] sm:$0xff]
        %v730 = vld [vmem:[#allocation8 + $0x150] sm:$0xff]
        %v731 = vld [vmem:[#allocation8 + $0x158] sm:$0xff]
        %v732 = vld [vmem:[#allocation8 + $0x160] sm:$0xff]
        %v733 = vld [vmem:[#allocation8 + $0x168] sm:$0xff]
        %v734 = vld [vmem:[#allocation8 + $0x170] sm:$0xff]
        %v735 = vld [vmem:[#allocation8 + $0x178] sm:$0xff]
        %v736 = vld [vmem:[#allocation8 + $0x180] sm:$0xff]
        %v737 = vld [vmem:[#allocation8 + $0x188] sm:$0xff]
        %v738 = vld [vmem:[#allocation8 + $0x190] sm:$0xff]
        %v739 = vld [vmem:[#allocation8 + $0x198] sm:$0xff]
        %v740 = vld [vmem:[#allocation8 + $0x1a0] sm:$0xff]
        %v741 = vld [vmem:[#allocation8 + $0x1a8] sm:$0xff]
        %743 = vset.pattern.permute.xlu0 0
        %744 = vperm.xlu0 %743, %v688
        %v745 = vpop.permute.xlu0 %744
        %748 = vset.pattern.permute.xlu0 0
        %749 = vperm.xlu0 %748, %v689
        %v750 = vpop.permute.xlu0 %749
        %753 = vset.pattern.permute.xlu0 0
        %754 = vperm.xlu0 %753, %v690
        %v755 = vpop.permute.xlu0 %754
        %758 = vset.pattern.permute.xlu0 0
        %759 = vperm.xlu0 %758, %v691
        %v760 = vpop.permute.xlu0 %759
        %763 = vset.pattern.permute.xlu0 0
        %764 = vperm.xlu0 %763, %v692
        %v765 = vpop.permute.xlu0 %764
        %768 = vset.pattern.permute.xlu0 0
        %769 = vperm.xlu0 %768, %v693
        %v770 = vpop.permute.xlu0 %769
        %773 = vset.pattern.permute.xlu0 0
        %774 = vperm.xlu0 %773, %v694
        %v775 = vpop.permute.xlu0 %774
        %778 = vset.pattern.permute.xlu0 0
        %779 = vperm.xlu0 %778, %v695
        %v780 = vpop.permute.xlu0 %779
        %783 = vset.pattern.permute.xlu0 0
        %784 = vperm.xlu0 %783, %v696
        %v785 = vpop.permute.xlu0 %784
        %788 = vset.pattern.permute.xlu0 0
        %789 = vperm.xlu0 %788, %v697
        %v790 = vpop.permute.xlu0 %789
        %793 = vset.pattern.permute.xlu0 0
        %794 = vperm.xlu0 %793, %v698
        %v795 = vpop.permute.xlu0 %794
        %798 = vset.pattern.permute.xlu0 0
        %799 = vperm.xlu0 %798, %v699
        %v800 = vpop.permute.xlu0 %799
        %803 = vset.pattern.permute.xlu0 0
        %804 = vperm.xlu0 %803, %v700
        %v805 = vpop.permute.xlu0 %804
        %808 = vset.pattern.permute.xlu0 0
        %809 = vperm.xlu0 %808, %v701
        %v810 = vpop.permute.xlu0 %809
        %813 = vset.pattern.permute.xlu0 0
        %814 = vperm.xlu0 %813, %v702
        %v815 = vpop.permute.xlu0 %814
        %818 = vset.pattern.permute.xlu0 0
        %819 = vperm.xlu0 %818, %v703
        %v820 = vpop.permute.xlu0 %819
        %823 = vset.pattern.permute.xlu0 0
        %824 = vperm.xlu0 %823, %v704
        %v825 = vpop.permute.xlu0 %824
        %828 = vset.pattern.permute.xlu0 0
        %829 = vperm.xlu0 %828, %v705
        %v830 = vpop.permute.xlu0 %829
        %833 = vset.pattern.permute.xlu0 0
        %834 = vperm.xlu0 %833, %v706
        %v835 = vpop.permute.xlu0 %834
        %838 = vset.pattern.permute.xlu0 0
        %839 = vperm.xlu0 %838, %v707
        %v840 = vpop.permute.xlu0 %839
        %843 = vset.pattern.permute.xlu0 0
        %844 = vperm.xlu0 %843, %v708
        %v845 = vpop.permute.xlu0 %844
        %848 = vset.pattern.permute.xlu0 0
        %849 = vperm.xlu0 %848, %v709
        %v850 = vpop.permute.xlu0 %849
        %853 = vset.pattern.permute.xlu0 0
        %854 = vperm.xlu0 %853, %v710
        %v855 = vpop.permute.xlu0 %854
        %858 = vset.pattern.permute.xlu0 0
        %859 = vperm.xlu0 %858, %v711
        %v860 = vpop.permute.xlu0 %859
        %863 = vset.pattern.permute.xlu0 0
        %864 = vperm.xlu0 %863, %v712
        %v865 = vpop.permute.xlu0 %864
        %868 = vset.pattern.permute.xlu0 0
        %869 = vperm.xlu0 %868, %v713
        %v870 = vpop.permute.xlu0 %869
        %873 = vset.pattern.permute.xlu0 0
        %874 = vperm.xlu0 %873, %v714
        %v875 = vpop.permute.xlu0 %874
        %878 = vset.pattern.permute.xlu0 0
        %879 = vperm.xlu0 %878, %v715
        %v880 = vpop.permute.xlu0 %879
        %883 = vset.pattern.permute.xlu0 0
        %884 = vperm.xlu0 %883, %v716
        %v885 = vpop.permute.xlu0 %884
        %888 = vset.pattern.permute.xlu0 0
        %889 = vperm.xlu0 %888, %v717
        %v890 = vpop.permute.xlu0 %889
        %893 = vset.pattern.permute.xlu0 0
        %894 = vperm.xlu0 %893, %v718
        %v895 = vpop.permute.xlu0 %894
        %898 = vset.pattern.permute.xlu0 0
        %899 = vperm.xlu0 %898, %v719
        %v900 = vpop.permute.xlu0 %899
        %903 = vset.pattern.permute.xlu0 0
        %904 = vperm.xlu0 %903, %v720
        %v905 = vpop.permute.xlu0 %904
        %908 = vset.pattern.permute.xlu0 0
        %909 = vperm.xlu0 %908, %v721
        %v910 = vpop.permute.xlu0 %909
        %913 = vset.pattern.permute.xlu0 0
        %914 = vperm.xlu0 %913, %v722
        %v915 = vpop.permute.xlu0 %914
        %918 = vset.pattern.permute.xlu0 0
        %919 = vperm.xlu0 %918, %v723
        %v920 = vpop.permute.xlu0 %919
        %923 = vset.pattern.permute.xlu0 0
        %924 = vperm.xlu0 %923, %v724
        %v925 = vpop.permute.xlu0 %924
        %928 = vset.pattern.permute.xlu0 0
        %929 = vperm.xlu0 %928, %v725
        %v930 = vpop.permute.xlu0 %929
        %933 = vset.pattern.permute.xlu0 0
        %934 = vperm.xlu0 %933, %v726
        %v935 = vpop.permute.xlu0 %934
        %938 = vset.pattern.permute.xlu0 0
        %939 = vperm.xlu0 %938, %v727
        %v940 = vpop.permute.xlu0 %939
        %943 = vset.pattern.permute.xlu0 0
        %944 = vperm.xlu0 %943, %v728
        %v945 = vpop.permute.xlu0 %944
        %948 = vset.pattern.permute.xlu0 0
        %949 = vperm.xlu0 %948, %v729
        %v950 = vpop.permute.xlu0 %949
        %953 = vset.pattern.permute.xlu0 0
        %954 = vperm.xlu0 %953, %v730
        %v955 = vpop.permute.xlu0 %954
        %958 = vset.pattern.permute.xlu0 0
        %959 = vperm.xlu0 %958, %v731
        %v960 = vpop.permute.xlu0 %959
        %963 = vset.pattern.permute.xlu0 0
        %964 = vperm.xlu0 %963, %v732
        %v965 = vpop.permute.xlu0 %964
        %968 = vset.pattern.permute.xlu0 0
        %969 = vperm.xlu0 %968, %v733
        %v970 = vpop.permute.xlu0 %969
        %973 = vset.pattern.permute.xlu0 0
        %974 = vperm.xlu0 %973, %v734
        %v975 = vpop.permute.xlu0 %974
        %978 = vset.pattern.permute.xlu0 0
        %979 = vperm.xlu0 %978, %v735
        %v980 = vpop.permute.xlu0 %979
        %983 = vset.pattern.permute.xlu0 0
        %984 = vperm.xlu0 %983, %v736
        %v985 = vpop.permute.xlu0 %984
        %988 = vset.pattern.permute.xlu0 0
        %989 = vperm.xlu0 %988, %v737
        %v990 = vpop.permute.xlu0 %989
        %993 = vset.pattern.permute.xlu0 0
        %994 = vperm.xlu0 %993, %v738
        %v995 = vpop.permute.xlu0 %994
        %998 = vset.pattern.permute.xlu0 0
        %999 = vperm.xlu0 %998, %v739
        %v1000 = vpop.permute.xlu0 %999
        %1003 = vset.pattern.permute.xlu0 0
        %1004 = vperm.xlu0 %1003, %v740
        %v1005 = vpop.permute.xlu0 %1004
        %1008 = vset.pattern.permute.xlu0 0
        %1009 = vperm.xlu0 %1008, %v741
        %v1010 = vpop.permute.xlu0 %1009
        %v1012 = vmul.f32 %v634, %v745
        %v1013 = vmul.f32 %v635, %v750
        %v1014 = vmul.f32 %v636, %v755
        %v1015 = vmul.f32 %v637, %v760
        %v1016 = vmul.f32 %v638, %v765
        %v1017 = vmul.f32 %v639, %v770
        %v1018 = vmul.f32 %v640, %v775
        %v1019 = vmul.f32 %v641, %v780
        %v1020 = vmul.f32 %v642, %v785
        %v1021 = vmul.f32 %v643, %v790
        %v1022 = vmul.f32 %v644, %v795
        %v1023 = vmul.f32 %v645, %v800
        %v1024 = vmul.f32 %v646, %v805
        %v1025 = vmul.f32 %v647, %v810
        %v1026 = vmul.f32 %v648, %v815
        %v1027 = vmul.f32 %v649, %v820
        %v1028 = vmul.f32 %v650, %v825
        %v1029 = vmul.f32 %v651, %v830
        %v1030 = vmul.f32 %v652, %v835
        %v1031 = vmul.f32 %v653, %v840
        %v1032 = vmul.f32 %v654, %v845
        %v1033 = vmul.f32 %v655, %v850
        %v1034 = vmul.f32 %v656, %v855
        %v1035 = vmul.f32 %v657, %v860
        %v1036 = vmul.f32 %v658, %v865
        %v1037 = vmul.f32 %v659, %v870
        %v1038 = vmul.f32 %v660, %v875
        %v1039 = vmul.f32 %v661, %v880
        %v1040 = vmul.f32 %v662, %v885
        %v1041 = vmul.f32 %v663, %v890
        %v1042 = vmul.f32 %v664, %v895
        %v1043 = vmul.f32 %v665, %v900
        %v1044 = vmul.f32 %v666, %v905
        %v1045 = vmul.f32 %v667, %v910
        %v1046 = vmul.f32 %v668, %v915
        %v1047 = vmul.f32 %v669, %v920
        %v1048 = vmul.f32 %v670, %v925
        %v1049 = vmul.f32 %v671, %v930
        %v1050 = vmul.f32 %v672, %v935
        %v1051 = vmul.f32 %v673, %v940
        %v1052 = vmul.f32 %v674, %v945
        %v1053 = vmul.f32 %v675, %v950
        %v1054 = vmul.f32 %v676, %v955
        %v1055 = vmul.f32 %v677, %v960
        %v1056 = vmul.f32 %v678, %v965
        %v1057 = vmul.f32 %v679, %v970
        %v1058 = vmul.f32 %v680, %v975
        %v1059 = vmul.f32 %v681, %v980
        %v1060 = vmul.f32 %v682, %v985
        %v1061 = vmul.f32 %v683, %v990
        %v1062 = vmul.f32 %v684, %v995
        %v1063 = vmul.f32 %v685, %v1000
        %v1064 = vmul.f32 %v686, %v1005
        %v1065 = vmul.f32 %v687, %v1010
        %v1066 = vpack.c.bf16 %v1013, %v1012
        %v1067 = vpack.c.bf16 %v1015, %v1014
        %v1068 = vpack.c.bf16 %v1017, %v1016
        %v1069 = vpack.c.bf16 %v1019, %v1018
        %v1070 = vpack.c.bf16 %v1021, %v1020
        %v1071 = vpack.c.bf16 %v1023, %v1022
        %v1072 = vpack.c.bf16 %v1025, %v1024
        %v1073 = vpack.c.bf16 %v1027, %v1026
        %v1074 = vpack.c.bf16 %v1029, %v1028
        %v1075 = vpack.c.bf16 %v1031, %v1030
        %v1076 = vpack.c.bf16 %v1033, %v1032
        %v1077 = vpack.c.bf16 %v1035, %v1034
        %v1078 = vpack.c.bf16 %v1037, %v1036
        %v1079 = vpack.c.bf16 %v1039, %v1038
        %v1080 = vpack.c.bf16 %v1041, %v1040
        %v1081 = vpack.c.bf16 %v1043, %v1042
        %v1082 = vpack.c.bf16 %v1045, %v1044
        %v1083 = vpack.c.bf16 %v1047, %v1046
        %v1084 = vpack.c.bf16 %v1049, %v1048
        %v1085 = vpack.c.bf16 %v1051, %v1050
        %v1086 = vpack.c.bf16 %v1053, %v1052
        %v1087 = vpack.c.bf16 %v1055, %v1054
        %v1088 = vpack.c.bf16 %v1057, %v1056
        %v1089 = vpack.c.bf16 %v1059, %v1058
        %v1090 = vpack.c.bf16 %v1061, %v1060
        %v1091 = vpack.c.bf16 %v1063, %v1062
        %v1092 = vpack.c.bf16 %v1065, %v1064
        %v1093 = vld [vmem:[#allocation10] sm:$0xf]
        %v1094 = vld [vmem:[#allocation10 + $0x4] sm:$0xf]
        %v1095 = vld [vmem:[#allocation10 + $0x8] sm:$0xf]
        %v1096 = vld [vmem:[#allocation10 + $0xc] sm:$0xf]
        %v1097 = vld [vmem:[#allocation10 + $0x10] sm:$0xf]
        %v1098 = vld [vmem:[#allocation10 + $0x14] sm:$0xf]
        %v1099 = vld [vmem:[#allocation10 + $0x18] sm:$0xf]
        %v1100 = vld [vmem:[#allocation10 + $0x1c] sm:$0xf]
        %v1101 = vld [vmem:[#allocation10 + $0x20] sm:$0xf]
        %v1102 = vld [vmem:[#allocation10 + $0x24] sm:$0xf]
        %v1103 = vld [vmem:[#allocation10 + $0x28] sm:$0xf]
        %v1104 = vld [vmem:[#allocation10 + $0x2c] sm:$0xf]
        %v1105 = vld [vmem:[#allocation10 + $0x30] sm:$0xf]
        %v1106 = vld [vmem:[#allocation10 + $0x34] sm:$0xf]
        %v1107 = vld [vmem:[#allocation10 + $0x38] sm:$0xf]
        %v1108 = vld [vmem:[#allocation10 + $0x3c] sm:$0xf]
        %v1125 = vunpack.c.l.b16 %v1093
        %v1126 = vunpack.c.l.b16 %v1094
        %v1127 = vunpack.c.l.b16 %v1095
        %v1128 = vunpack.c.l.b16 %v1096
        %v1129 = vunpack.c.l.b16 %v1097
        %v1130 = vunpack.c.l.b16 %v1098
        %v1131 = vunpack.c.l.b16 %v1099
        %v1132 = vunpack.c.l.b16 %v1100
        %v1133 = vunpack.c.l.b16 %v1101
        %v1134 = vunpack.c.l.b16 %v1102
        %v1135 = vunpack.c.l.b16 %v1103
        %v1136 = vunpack.c.l.b16 %v1104
        %v1137 = vunpack.c.l.b16 %v1105
        %v1138 = vunpack.c.l.b16 %v1106
        %v1139 = vunpack.c.l.b16 %v1107
        %v1140 = vunpack.c.l.b16 %v1108
        %v1141 = vpack.c.b16 %v1126, %v1125
        %v1142 = vpack.c.b16 %v1128, %v1127
        %v1143 = vpack.c.b16 %v1130, %v1129
        %v1144 = vpack.c.b16 %v1132, %v1131
        %v1145 = vpack.c.b16 %v1134, %v1133
        %v1146 = vpack.c.b16 %v1136, %v1135
        %v1147 = vpack.c.b16 %v1138, %v1137
        %v1148 = vpack.c.b16 %v1140, %v1139
        %1157 = vmatprep.subr.bf16.mxu0 0
        %1158 = vmatpush1.bf16.msra.mxu0 %v1141
        %1159 = vmatprep.subr.bf16.mxu0 0
        %1160 = vmatpush1.bf16.msra.mxu0 %v1142
        %1161 = vmatprep.subr.bf16.mxu0 0
        %1162 = vmatpush1.bf16.msra.mxu0 %v1143
        %1163 = vmatprep.subr.bf16.mxu0 0
        %1164 = vmatpush1.bf16.msra.mxu0 %v1144
        %1165 = vmatprep.subr.bf16.mxu0 0
        %1166 = vmatpush1.bf16.msra.mxu0 %v1145
        %1167 = vmatprep.subr.bf16.mxu0 0
        %1168 = vmatpush1.bf16.msra.mxu0 %v1146
        %1169 = vmatprep.subr.bf16.mxu0 0
        %1170 = vmatpush1.bf16.msra.mxu0 %v1147
        %1171 = vmatprep.subr.bf16.mxu0 0
        %1172 = vmatpush1.bf16.msra.mxu0 %v1148
        %1173 = vmatprep.subr.bf16.mxu0 0
        %1174 = vmatpush1.bf16.msra.mxu0 0
        %1175 = vmatprep.subr.bf16.mxu0 0
        %1176 = vmatpush1.bf16.msra.mxu0 0
        %1177 = vmatprep.subr.bf16.mxu0 0
        %1178 = vmatpush1.bf16.msra.mxu0 0
        %1179 = vmatprep.subr.bf16.mxu0 0
        %1180 = vmatpush1.bf16.msra.mxu0 0
        %1181 = vmatprep.subr.bf16.mxu0 0
        %1182 = vmatpush1.bf16.msra.mxu0 0
        %1183 = vmatprep.subr.bf16.mxu0 0
        %1184 = vmatpush1.bf16.msra.mxu0 0
        %1185 = vmatprep.subr.bf16.mxu0 0
        %1186 = vmatpush1.bf16.msra.mxu0 0
        %1187 = vmatprep.subr.bf16.mxu0 0
        %1188 = vmatpush1.bf16.msra.mxu0 0
        %1189 = vmatprep.mubr.bf16.mxu0 0
        %1190 = vmatmul.mubr.bf16.gmra.mrb[0].mxu0 %v1066
        %v1191 = vpop.f32.mrb[0].mxu0
        %v1192 = vadd.f32 0.0, %v1191
        %v1193 = vpop.f32.mrb[0].mxu0
        %v1194 = vpop.f32.mrb[0].mxu0
        %v1195 = vadd.f32 0.0, %v1194
        %v1196 = vpop.f32.mrb[0].mxu0
        %1197 = vmatprep.mubr.bf16.mxu0 0
        %1198 = vmatmul.mubr.bf16.gmra.mrb[0].mxu0 %v1067
        %v1199 = vpop.f32.mrb[0].mxu0
        %v1200 = vadd.f32 0.0, %v1199
        %v1201 = vpop.f32.mrb[0].mxu0
        %v1202 = vpop.f32.mrb[0].mxu0
        %v1203 = vadd.f32 0.0, %v1202
        %v1204 = vpop.f32.mrb[0].mxu0
        %1205 = vmatprep.mubr.bf16.mxu0 0
        %1206 = vmatmul.mubr.bf16.gmra.mrb[0].mxu0 %v1068
        %v1207 = vpop.f32.mrb[0].mxu0
        %v1208 = vadd.f32 0.0, %v1207
        %v1209 = vpop.f32.mrb[0].mxu0
        %v1210 = vpop.f32.mrb[0].mxu0
        %v1211 = vadd.f32 0.0, %v1210
        %v1212 = vpop.f32.mrb[0].mxu0
        %1213 = vmatprep.mubr.bf16.mxu0 0
        %1214 = vmatmul.mubr.bf16.gmra.mrb[0].mxu0 %v1069
        %v1215 = vpop.f32.mrb[0].mxu0
        %v1216 = vadd.f32 0.0, %v1215
        %v1217 = vpop.f32.mrb[0].mxu0
        %v1218 = vpop.f32.mrb[0].mxu0
        %v1219 = vadd.f32 0.0, %v1218
        %v1220 = vpop.f32.mrb[0].mxu0
        %1221 = vmatprep.mubr.bf16.mxu0 0
        %1222 = vmatmul.mubr.bf16.gmra.mrb[0].mxu0 %v1070
        %v1223 = vpop.f32.mrb[0].mxu0
        %v1224 = vadd.f32 0.0, %v1223
        %v1225 = vpop.f32.mrb[0].mxu0
        %v1226 = vpop.f32.mrb[0].mxu0
        %v1227 = vadd.f32 0.0, %v1226
        %v1228 = vpop.f32.mrb[0].mxu0
        %1229 = vmatprep.mubr.bf16.mxu0 0
        %1230 = vmatmul.mubr.bf16.gmra.mrb[0].mxu0 %v1071
        %v1231 = vpop.f32.mrb[0].mxu0
        %v1232 = vadd.f32 0.0, %v1231
        %v1233 = vpop.f32.mrb[0].mxu0
        %v1234 = vpop.f32.mrb[0].mxu0
        %v1235 = vadd.f32 0.0, %v1234
        %v1236 = vpop.f32.mrb[0].mxu0
        %1237 = vmatprep.mubr.bf16.mxu0 0
        %1238 = vmatmul.mubr.bf16.gmra.mrb[0].mxu0 %v1072
        %v1239 = vpop.f32.mrb[0].mxu0
        %v1240 = vadd.f32 0.0, %v1239
        %v1241 = vpop.f32.mrb[0].mxu0
        %v1242 = vpop.f32.mrb[0].mxu0
        %v1243 = vadd.f32 0.0, %v1242
        %v1244 = vpop.f32.mrb[0].mxu0
        %1245 = vmatprep.mubr.bf16.mxu0 0
        %1246 = vmatmul.mubr.bf16.gmra.mrb[0].mxu0 %v1073
        %v1247 = vpop.f32.mrb[0].mxu0
        %v1248 = vadd.f32 0.0, %v1247
        %v1249 = vpop.f32.mrb[0].mxu0
        %v1250 = vpop.f32.mrb[0].mxu0
        %v1251 = vadd.f32 0.0, %v1250
        %v1252 = vpop.f32.mrb[0].mxu0
        %1253 = vmatprep.mubr.bf16.mxu0 0
        %1254 = vmatmul.mubr.bf16.gmra.mrb[0].mxu0 %v1074
        %v1255 = vpop.f32.mrb[0].mxu0
        %v1256 = vadd.f32 0.0, %v1255
        %v1257 = vpop.f32.mrb[0].mxu0
        %v1258 = vpop.f32.mrb[0].mxu0
        %v1259 = vadd.f32 0.0, %v1258
        %v1260 = vpop.f32.mrb[0].mxu0
        %1261 = vmatprep.mubr.bf16.mxu0 0
        %1262 = vmatmul.mubr.bf16.gmra.mrb[0].mxu0 %v1075
        %v1263 = vpop.f32.mrb[0].mxu0
        %v1264 = vadd.f32 0.0, %v1263
        %v1265 = vpop.f32.mrb[0].mxu0
        %v1266 = vpop.f32.mrb[0].mxu0
        %v1267 = vadd.f32 0.0, %v1266
        %v1268 = vpop.f32.mrb[0].mxu0
        %1269 = vmatprep.mubr.bf16.mxu0 0
        %1270 = vmatmul.mubr.bf16.gmra.mrb[0].mxu0 %v1076
        %v1271 = vpop.f32.mrb[0].mxu0
        %v1272 = vadd.f32 0.0, %v1271
        %v1273 = vpop.f32.mrb[0].mxu0
        %v1274 = vpop.f32.mrb[0].mxu0
        %v1275 = vadd.f32 0.0, %v1274
        %v1276 = vpop.f32.mrb[0].mxu0
        %1277 = vmatprep.mubr.bf16.mxu0 0
        %1278 = vmatmul.mubr.bf16.gmra.mrb[0].mxu0 %v1077
        %v1279 = vpop.f32.mrb[0].mxu0
        %v1280 = vadd.f32 0.0, %v1279
        %v1281 = vpop.f32.mrb[0].mxu0
        %v1282 = vpop.f32.mrb[0].mxu0
        %v1283 = vadd.f32 0.0, %v1282
        %v1284 = vpop.f32.mrb[0].mxu0
        %1285 = vmatprep.mubr.bf16.mxu0 0
        %1286 = vmatmul.mubr.bf16.gmra.mrb[0].mxu0 %v1078
        %v1287 = vpop.f32.mrb[0].mxu0
        %v1288 = vadd.f32 0.0, %v1287
        %v1289 = vpop.f32.mrb[0].mxu0
        %v1290 = vpop.f32.mrb[0].mxu0
        %v1291 = vadd.f32 0.0, %v1290
        %v1292 = vpop.f32.mrb[0].mxu0
        %1293 = vmatprep.mubr.bf16.mxu0 0
        %1294 = vmatmul.mubr.bf16.gmra.mrb[0].mxu0 %v1079
        %v1295 = vpop.f32.mrb[0].mxu0
        %v1296 = vadd.f32 0.0, %v1295
        %v1297 = vpop.f32.mrb[0].mxu0
        %v1298 = vpop.f32.mrb[0].mxu0
        %v1299 = vadd.f32 0.0, %v1298
        %v1300 = vpop.f32.mrb[0].mxu0
        %1301 = vmatprep.mubr.bf16.mxu0 0
        %1302 = vmatmul.mubr.bf16.gmra.mrb[0].mxu0 %v1080
        %v1303 = vpop.f32.mrb[0].mxu0
        %v1304 = vadd.f32 0.0, %v1303
        %v1305 = vpop.f32.mrb[0].mxu0
        %v1306 = vpop.f32.mrb[0].mxu0
        %v1307 = vadd.f32 0.0, %v1306
        %v1308 = vpop.f32.mrb[0].mxu0
        %1309 = vmatprep.mubr.bf16.mxu0 0
        %1310 = vmatmul.mubr.bf16.gmra.mrb[0].mxu0 %v1081
        %v1311 = vpop.f32.mrb[0].mxu0
        %v1312 = vadd.f32 0.0, %v1311
        %v1313 = vpop.f32.mrb[0].mxu0
        %v1314 = vpop.f32.mrb[0].mxu0
        %v1315 = vadd.f32 0.0, %v1314
        %v1316 = vpop.f32.mrb[0].mxu0
        %1317 = vmatprep.mubr.bf16.mxu0 0
        %1318 = vmatmul.mubr.bf16.gmra.mrb[0].mxu0 %v1082
        %v1319 = vpop.f32.mrb[0].mxu0
        %v1320 = vadd.f32 0.0, %v1319
        %v1321 = vpop.f32.mrb[0].mxu0
        %v1322 = vpop.f32.mrb[0].mxu0
        %v1323 = vadd.f32 0.0, %v1322
        %v1324 = vpop.f32.mrb[0].mxu0
        %1325 = vmatprep.mubr.bf16.mxu0 0
        %1326 = vmatmul.mubr.bf16.gmra.mrb[0].mxu0 %v1083
        %v1327 = vpop.f32.mrb[0].mxu0
        %v1328 = vadd.f32 0.0, %v1327
        %v1329 = vpop.f32.mrb[0].mxu0
        %v1330 = vpop.f32.mrb[0].mxu0
        %v1331 = vadd.f32 0.0, %v1330
        %v1332 = vpop.f32.mrb[0].mxu0
        %1333 = vmatprep.mubr.bf16.mxu0 0
        %1334 = vmatmul.mubr.bf16.gmra.mrb[0].mxu0 %v1084
        %v1335 = vpop.f32.mrb[0].mxu0
        %v1336 = vadd.f32 0.0, %v1335
        %v1337 = vpop.f32.mrb[0].mxu0
        %v1338 = vpop.f32.mrb[0].mxu0
        %v1339 = vadd.f32 0.0, %v1338
        %v1340 = vpop.f32.mrb[0].mxu0
        %1341 = vmatprep.mubr.bf16.mxu0 0
        %1342 = vmatmul.mubr.bf16.gmra.mrb[0].mxu0 %v1085
        %v1343 = vpop.f32.mrb[0].mxu0
        %v1344 = vadd.f32 0.0, %v1343
        %v1345 = vpop.f32.mrb[0].mxu0
        %v1346 = vpop.f32.mrb[0].mxu0
        %v1347 = vadd.f32 0.0, %v1346
        %v1348 = vpop.f32.mrb[0].mxu0
        %1349 = vmatprep.mubr.bf16.mxu0 0
        %1350 = vmatmul.mubr.bf16.gmra.mrb[0].mxu0 %v1086
        %v1351 = vpop.f32.mrb[0].mxu0
        %v1352 = vadd.f32 0.0, %v1351
        %v1353 = vpop.f32.mrb[0].mxu0
        %v1354 = vpop.f32.mrb[0].mxu0
        %v1355 = vadd.f32 0.0, %v1354
        %v1356 = vpop.f32.mrb[0].mxu0
        %1357 = vmatprep.mubr.bf16.mxu0 0
        %1358 = vmatmul.mubr.bf16.gmra.mrb[0].mxu0 %v1087
        %v1359 = vpop.f32.mrb[0].mxu0
        %v1360 = vadd.f32 0.0, %v1359
        %v1361 = vpop.f32.mrb[0].mxu0
        %v1362 = vpop.f32.mrb[0].mxu0
        %v1363 = vadd.f32 0.0, %v1362
        %v1364 = vpop.f32.mrb[0].mxu0
        %1365 = vmatprep.mubr.bf16.mxu0 0
        %1366 = vmatmul.mubr.bf16.gmra.mrb[0].mxu0 %v1088
        %v1367 = vpop.f32.mrb[0].mxu0
        %v1368 = vadd.f32 0.0, %v1367
        %v1369 = vpop.f32.mrb[0].mxu0
        %v1370 = vpop.f32.mrb[0].mxu0
        %v1371 = vadd.f32 0.0, %v1370
        %v1372 = vpop.f32.mrb[0].mxu0
        %1373 = vmatprep.mubr.bf16.mxu0 0
        %1374 = vmatmul.mubr.bf16.gmra.mrb[0].mxu0 %v1089
        %v1375 = vpop.f32.mrb[0].mxu0
        %v1376 = vadd.f32 0.0, %v1375
        %v1377 = vpop.f32.mrb[0].mxu0
        %v1378 = vpop.f32.mrb[0].mxu0
        %v1379 = vadd.f32 0.0, %v1378
        %v1380 = vpop.f32.mrb[0].mxu0
        %1381 = vmatprep.mubr.bf16.mxu0 0
        %1382 = vmatmul.mubr.bf16.gmra.mrb[0].mxu0 %v1090
        %v1383 = vpop.f32.mrb[0].mxu0
        %v1384 = vadd.f32 0.0, %v1383
        %v1385 = vpop.f32.mrb[0].mxu0
        %v1386 = vpop.f32.mrb[0].mxu0
        %v1387 = vadd.f32 0.0, %v1386
        %v1388 = vpop.f32.mrb[0].mxu0
        %1389 = vmatprep.mubr.bf16.mxu0 0
        %1390 = vmatmul.mubr.bf16.gmra.mrb[0].mxu0 %v1091
        %v1391 = vpop.f32.mrb[0].mxu0
        %v1392 = vadd.f32 0.0, %v1391
        %v1393 = vpop.f32.mrb[0].mxu0
        %v1394 = vpop.f32.mrb[0].mxu0
        %v1395 = vadd.f32 0.0, %v1394
        %v1396 = vpop.f32.mrb[0].mxu0
        %1397 = vmatprep.mubr.bf16.mxu0 0
        %1398 = vmatmul.mubr.bf16.gmra.mrb[0].mxu0 %v1092
        %v1399 = vpop.f32.mrb[0].mxu0
        %v1400 = vadd.f32 0.0, %v1399
        %v1401 = vpop.f32.mrb[0].mxu0
        %v1402 = vpop.f32.mrb[0].mxu0
        %v1403 = vadd.f32 0.0, %v1402
        %v1404 = vpop.f32.mrb[0].mxu0
        %1405 = vdwg.mxu0
        %v1406 = vpack.c.bf16 %v1195, %v1192
        %v1407 = vpack.c.bf16 %v1203, %v1200
        %v1408 = vpack.c.bf16 %v1211, %v1208
        %v1409 = vpack.c.bf16 %v1219, %v1216
        %v1410 = vpack.c.bf16 %v1227, %v1224
        %v1411 = vpack.c.bf16 %v1235, %v1232
        %v1412 = vpack.c.bf16 %v1243, %v1240
        %v1413 = vpack.c.bf16 %v1251, %v1248
        %v1414 = vpack.c.bf16 %v1259, %v1256
        %v1415 = vpack.c.bf16 %v1267, %v1264
        %v1416 = vpack.c.bf16 %v1275, %v1272
        %v1417 = vpack.c.bf16 %v1283, %v1280
        %v1418 = vpack.c.bf16 %v1291, %v1288
        %v1419 = vpack.c.bf16 %v1299, %v1296
        %v1420 = vpack.c.bf16 %v1307, %v1304
        %v1421 = vpack.c.bf16 %v1315, %v1312
        %v1422 = vpack.c.bf16 %v1323, %v1320
        %v1423 = vpack.c.bf16 %v1331, %v1328
        %v1424 = vpack.c.bf16 %v1339, %v1336
        %v1425 = vpack.c.bf16 %v1347, %v1344
        %v1426 = vpack.c.bf16 %v1355, %v1352
        %v1427 = vpack.c.bf16 %v1363, %v1360
        %v1428 = vpack.c.bf16 %v1371, %v1368
        %v1429 = vpack.c.bf16 %v1379, %v1376
        %v1430 = vpack.c.bf16 %v1387, %v1384
        %v1431 = vpack.c.bf16 %v1395, %v1392
        %v1432 = vpack.c.bf16 %v1403, %v1400
        %v1460 = vunpack.c.l.b16 %v1406
        %v1461 = vunpack.c.h.b16 %v1406
        %v1462 = vunpack.c.l.b16 %v1407
        %v1463 = vunpack.c.h.b16 %v1407
        %v1464 = vunpack.c.l.b16 %v1408
        %v1465 = vunpack.c.h.b16 %v1408
        %v1466 = vunpack.c.l.b16 %v1409
        %v1467 = vunpack.c.h.b16 %v1409
        %v1468 = vunpack.c.l.b16 %v1410
        %v1469 = vunpack.c.h.b16 %v1410
        %v1470 = vunpack.c.l.b16 %v1411
        %v1471 = vunpack.c.h.b16 %v1411
        %v1472 = vunpack.c.l.b16 %v1412
        %v1473 = vunpack.c.h.b16 %v1412
        %v1474 = vunpack.c.l.b16 %v1413
        %v1475 = vunpack.c.h.b16 %v1413
        %v1476 = vunpack.c.l.b16 %v1414
        %v1477 = vunpack.c.h.b16 %v1414
        %v1478 = vunpack.c.l.b16 %v1415
        %v1479 = vunpack.c.h.b16 %v1415
        %v1480 = vunpack.c.l.b16 %v1416
        %v1481 = vunpack.c.h.b16 %v1416
        %v1482 = vunpack.c.l.b16 %v1417
        %v1483 = vunpack.c.h.b16 %v1417
        %v1484 = vunpack.c.l.b16 %v1418
        %v1485 = vunpack.c.h.b16 %v1418
        %v1486 = vunpack.c.l.b16 %v1419
        %v1487 = vunpack.c.h.b16 %v1419
        %v1488 = vunpack.c.l.b16 %v1420
        %v1489 = vunpack.c.h.b16 %v1420
        %v1490 = vunpack.c.l.b16 %v1421
        %v1491 = vunpack.c.h.b16 %v1421
        %v1492 = vunpack.c.l.b16 %v1422
        %v1493 = vunpack.c.h.b16 %v1422
        %v1494 = vunpack.c.l.b16 %v1423
        %v1495 = vunpack.c.h.b16 %v1423
        %v1496 = vunpack.c.l.b16 %v1424
        %v1497 = vunpack.c.h.b16 %v1424
        %v1498 = vunpack.c.l.b16 %v1425
        %v1499 = vunpack.c.h.b16 %v1425
        %v1500 = vunpack.c.l.b16 %v1426
        %v1501 = vunpack.c.h.b16 %v1426
        %v1502 = vunpack.c.l.b16 %v1427
        %v1503 = vunpack.c.h.b16 %v1427
        %v1504 = vunpack.c.l.b16 %v1428
        %v1505 = vunpack.c.h.b16 %v1428
        %v1506 = vunpack.c.l.b16 %v1429
        %v1507 = vunpack.c.h.b16 %v1429
        %v1508 = vunpack.c.l.b16 %v1430
        %v1509 = vunpack.c.h.b16 %v1430
        %v1510 = vunpack.c.l.b16 %v1431
        %v1511 = vunpack.c.h.b16 %v1431
        %v1512 = vunpack.c.l.b16 %v1432
        %v1513 = vunpack.c.h.b16 %v1432
        %v1514 = vpack.c.b16 %v1460, %v1460
        %v1515 = vpack.c.b16 %v1461, %v1461
        %v1516 = vpack.c.b16 %v1462, %v1462
        %v1517 = vpack.c.b16 %v1463, %v1463
        %v1518 = vpack.c.b16 %v1464, %v1464
        %v1519 = vpack.c.b16 %v1465, %v1465
        %v1520 = vpack.c.b16 %v1466, %v1466
        %v1521 = vpack.c.b16 %v1467, %v1467
        %v1522 = vpack.c.b16 %v1468, %v1468
        %v1523 = vpack.c.b16 %v1469, %v1469
        %v1524 = vpack.c.b16 %v1470, %v1470
        %v1525 = vpack.c.b16 %v1471, %v1471
        %v1526 = vpack.c.b16 %v1472, %v1472
        %v1527 = vpack.c.b16 %v1473, %v1473
        %v1528 = vpack.c.b16 %v1474, %v1474
        %v1529 = vpack.c.b16 %v1475, %v1475
        %v1530 = vpack.c.b16 %v1476, %v1476
        %v1531 = vpack.c.b16 %v1477, %v1477
        %v1532 = vpack.c.b16 %v1478, %v1478
        %v1533 = vpack.c.b16 %v1479, %v1479
        %v1534 = vpack.c.b16 %v1480, %v1480
        %v1535 = vpack.c.b16 %v1481, %v1481
        %v1536 = vpack.c.b16 %v1482, %v1482
        %v1537 = vpack.c.b16 %v1483, %v1483
        %v1538 = vpack.c.b16 %v1484, %v1484
        %v1539 = vpack.c.b16 %v1485, %v1485
        %v1540 = vpack.c.b16 %v1486, %v1486
        %v1541 = vpack.c.b16 %v1487, %v1487
        %v1542 = vpack.c.b16 %v1488, %v1488
        %v1543 = vpack.c.b16 %v1489, %v1489
        %v1544 = vpack.c.b16 %v1490, %v1490
        %v1545 = vpack.c.b16 %v1491, %v1491
        %v1546 = vpack.c.b16 %v1492, %v1492
        %v1547 = vpack.c.b16 %v1493, %v1493
        %v1548 = vpack.c.b16 %v1494, %v1494
        %v1549 = vpack.c.b16 %v1495, %v1495
        %v1550 = vpack.c.b16 %v1496, %v1496
        %v1551 = vpack.c.b16 %v1497, %v1497
        %v1552 = vpack.c.b16 %v1498, %v1498
        %v1553 = vpack.c.b16 %v1499, %v1499
        %v1554 = vpack.c.b16 %v1500, %v1500
        %v1555 = vpack.c.b16 %v1501, %v1501
        %v1556 = vpack.c.b16 %v1502, %v1502
        %v1557 = vpack.c.b16 %v1503, %v1503
        %v1558 = vpack.c.b16 %v1504, %v1504
        %v1559 = vpack.c.b16 %v1505, %v1505
        %v1560 = vpack.c.b16 %v1506, %v1506
        %v1561 = vpack.c.b16 %v1507, %v1507
        %v1562 = vpack.c.b16 %v1508, %v1508
        %v1563 = vpack.c.b16 %v1509, %v1509
        %v1564 = vpack.c.b16 %v1510, %v1510
        %v1565 = vpack.c.b16 %v1511, %v1511
        %v1566 = vpack.c.b16 %v1512, %v1512
        %v1567 = vpack.c.b16 %v1513, %v1513
        %1622 = vst [vmem:[%s383] sm:$0xf] %v1514
        %1623 = vst [vmem:[%s383 + $0x4] sm:$0xf] %v1515
        %1624 = vst [vmem:[%s383 + $0x8] sm:$0xf] %v1516
        %1625 = vst [vmem:[%s383 + $0xc] sm:$0xf] %v1517
        %1626 = vst [vmem:[%s383 + $0x10] sm:$0xf] %v1518
        %1627 = vst [vmem:[%s383 + $0x14] sm:$0xf] %v1519
        %1628 = vst [vmem:[%s383 + $0x18] sm:$0xf] %v1520
        %1629 = vst [vmem:[%s383 + $0x1c] sm:$0xf] %v1521
        %1630 = vst [vmem:[%s383 + $0x20] sm:$0xf] %v1522
        %1631 = vst [vmem:[%s383 + $0x24] sm:$0xf] %v1523
        %1632 = vst [vmem:[%s383 + $0x28] sm:$0xf] %v1524
        %1633 = vst [vmem:[%s383 + $0x2c] sm:$0xf] %v1525
        %1634 = vst [vmem:[%s383 + $0x30] sm:$0xf] %v1526
        %1635 = vst [vmem:[%s383 + $0x34] sm:$0xf] %v1527
        %1636 = vst [vmem:[%s383 + $0x38] sm:$0xf] %v1528
        %1637 = vst [vmem:[%s383 + $0x3c] sm:$0xf] %v1529
        %1638 = vst [vmem:[%s383 + $0x40] sm:$0xf] %v1530
        %1639 = vst [vmem:[%s383 + $0x44] sm:$0xf] %v1531
        %1640 = vst [vmem:[%s383 + $0x48] sm:$0xf] %v1532
        %1641 = vst [vmem:[%s383 + $0x4c] sm:$0xf] %v1533
        %1642 = vst [vmem:[%s383 + $0x50] sm:$0xf] %v1534
        %1643 = vst [vmem:[%s383 + $0x54] sm:$0xf] %v1535
        %1644 = vst [vmem:[%s383 + $0x58] sm:$0xf] %v1536
        %1645 = vst [vmem:[%s383 + $0x5c] sm:$0xf] %v1537
        %1646 = vst [vmem:[%s383 + $0x60] sm:$0xf] %v1538
        %1647 = vst [vmem:[%s383 + $0x64] sm:$0xf] %v1539
        %1648 = vst [vmem:[%s383 + $0x68] sm:$0xf] %v1540
        %1649 = vst [vmem:[%s383 + $0x6c] sm:$0xf] %v1541
        %1650 = vst [vmem:[%s383 + $0x70] sm:$0xf] %v1542
        %1651 = vst [vmem:[%s383 + $0x74] sm:$0xf] %v1543
        %1652 = vst [vmem:[%s383 + $0x78] sm:$0xf] %v1544
        %1653 = vst [vmem:[%s383 + $0x7c] sm:$0xf] %v1545
        %1654 = vst [vmem:[%s383 + $0x80] sm:$0xf] %v1546
        %1655 = vst [vmem:[%s383 + $0x84] sm:$0xf] %v1547
        %1656 = vst [vmem:[%s383 + $0x88] sm:$0xf] %v1548
        %1657 = vst [vmem:[%s383 + $0x8c] sm:$0xf] %v1549
        %1658 = vst [vmem:[%s383 + $0x90] sm:$0xf] %v1550
        %1659 = vst [vmem:[%s383 + $0x94] sm:$0xf] %v1551
        %1660 = vst [vmem:[%s383 + $0x98] sm:$0xf] %v1552
        %1661 = vst [vmem:[%s383 + $0x9c] sm:$0xf] %v1553
        %1662 = vst [vmem:[%s383 + $0xa0] sm:$0xf] %v1554
        %1663 = vst [vmem:[%s383 + $0xa4] sm:$0xf] %v1555
        %1664 = vst [vmem:[%s383 + $0xa8] sm:$0xf] %v1556
        %1665 = vst [vmem:[%s383 + $0xac] sm:$0xf] %v1557
        %1666 = vst [vmem:[%s383 + $0xb0] sm:$0xf] %v1558
        %1667 = vst [vmem:[%s383 + $0xb4] sm:$0xf] %v1559
        %1668 = vst [vmem:[%s383 + $0xb8] sm:$0xf] %v1560
        %1669 = vst [vmem:[%s383 + $0xbc] sm:$0xf] %v1561
        %1670 = vst [vmem:[%s383 + $0xc0] sm:$0xf] %v1562
        %1671 = vst [vmem:[%s383 + $0xc4] sm:$0xf] %v1563
        %1672 = vst [vmem:[%s383 + $0xc8] sm:$0xf] %v1564
        %1673 = vst [vmem:[%s383 + $0xcc] sm:$0xf] %v1565
        %1674 = vst [vmem:[%s383 + $0xd0] sm:$0xf] %v1566
        %1675 = vst [vmem:[%s383 + $0xd4] sm:$0xf] %v1567
        %v1676 = vunpack.c.l.bf16 %v1406
        %v1677 = vunpack.c.h.bf16 %v1406
        %v1678 = vunpack.c.l.bf16 %v1407
        %v1679 = vunpack.c.h.bf16 %v1407
        %v1680 = vunpack.c.l.bf16 %v1408
        %v1681 = vunpack.c.h.bf16 %v1408
        %v1682 = vunpack.c.l.bf16 %v1409
        %v1683 = vunpack.c.h.bf16 %v1409
        %v1684 = vunpack.c.l.bf16 %v1410
        %v1685 = vunpack.c.h.bf16 %v1410
        %v1686 = vunpack.c.l.bf16 %v1411
        %v1687 = vunpack.c.h.bf16 %v1411
        %v1688 = vunpack.c.l.bf16 %v1412
        %v1689 = vunpack.c.h.bf16 %v1412
        %v1690 = vunpack.c.l.bf16 %v1413
        %v1691 = vunpack.c.h.bf16 %v1413
        %v1692 = vunpack.c.l.bf16 %v1414
        %v1693 = vunpack.c.h.bf16 %v1414
        %v1694 = vunpack.c.l.bf16 %v1415
        %v1695 = vunpack.c.h.bf16 %v1415
        %v1696 = vunpack.c.l.bf16 %v1416
        %v1697 = vunpack.c.h.bf16 %v1416
        %v1698 = vunpack.c.l.bf16 %v1417
        %v1699 = vunpack.c.h.bf16 %v1417
        %v1700 = vunpack.c.l.bf16 %v1418
        %v1701 = vunpack.c.h.bf16 %v1418
        %v1702 = vunpack.c.l.bf16 %v1419
        %v1703 = vunpack.c.h.bf16 %v1419
        %v1704 = vunpack.c.l.bf16 %v1420
        %v1705 = vunpack.c.h.bf16 %v1420
        %v1706 = vunpack.c.l.bf16 %v1421
        %v1707 = vunpack.c.h.bf16 %v1421
        %v1708 = vunpack.c.l.bf16 %v1422
        %v1709 = vunpack.c.h.bf16 %v1422
        %v1710 = vunpack.c.l.bf16 %v1423
        %v1711 = vunpack.c.h.bf16 %v1423
        %v1712 = vunpack.c.l.bf16 %v1424
        %v1713 = vunpack.c.h.bf16 %v1424
        %v1714 = vunpack.c.l.bf16 %v1425
        %v1715 = vunpack.c.h.bf16 %v1425
        %v1716 = vunpack.c.l.bf16 %v1426
        %v1717 = vunpack.c.h.bf16 %v1426
        %v1718 = vunpack.c.l.bf16 %v1427
        %v1719 = vunpack.c.h.bf16 %v1427
        %v1720 = vunpack.c.l.bf16 %v1428
        %v1721 = vunpack.c.h.bf16 %v1428
        %v1722 = vunpack.c.l.bf16 %v1429
        %v1723 = vunpack.c.h.bf16 %v1429
        %v1724 = vunpack.c.l.bf16 %v1430
        %v1725 = vunpack.c.h.bf16 %v1430
        %v1726 = vunpack.c.l.bf16 %v1431
        %v1727 = vunpack.c.h.bf16 %v1431
        %v1728 = vunpack.c.l.bf16 %v1432
        %v1729 = vunpack.c.h.bf16 %v1432
        %v1730 = vadd.f32 %v1676, %v1677
        %v1731 = vadd.f32 %v1730, %v1678
        %v1732 = vadd.f32 %v1731, %v1679
        %v1733 = vadd.f32 %v1732, %v1680
        %v1734 = vadd.f32 %v1733, %v1681
        %v1735 = vadd.f32 %v1734, %v1682
        %v1736 = vadd.f32 %v1735, %v1683
        %v1737 = vadd.f32 %v1736, %v1684
        %v1738 = vadd.f32 %v1737, %v1685
        %v1739 = vadd.f32 %v1738, %v1686
        %v1740 = vadd.f32 %v1739, %v1687
        %v1741 = vadd.f32 %v1740, %v1688
        %v1742 = vadd.f32 %v1741, %v1689
        %v1743 = vadd.f32 %v1742, %v1690
        %v1744 = vadd.f32 %v1743, %v1691
        %v1745 = vadd.f32 %v1744, %v1692
        %v1746 = vadd.f32 %v1745, %v1693
        %v1747 = vadd.f32 %v1746, %v1694
        %v1748 = vadd.f32 %v1747, %v1695
        %v1749 = vadd.f32 %v1748, %v1696
        %v1750 = vadd.f32 %v1749, %v1697
        %v1751 = vadd.f32 %v1750, %v1698
        %v1752 = vadd.f32 %v1751, %v1699
        %v1753 = vadd.f32 %v1752, %v1700
        %v1754 = vadd.f32 %v1753, %v1701
        %v1755 = vadd.f32 %v1754, %v1702
        %v1756 = vadd.f32 %v1755, %v1703
        %v1757 = vadd.f32 %v1756, %v1704
        %v1758 = vadd.f32 %v1757, %v1705
        %v1759 = vadd.f32 %v1758, %v1706
        %v1760 = vadd.f32 %v1759, %v1707
        %v1761 = vadd.f32 %v1760, %v1708
        %v1762 = vadd.f32 %v1761, %v1709
        %v1763 = vadd.f32 %v1762, %v1710
        %v1764 = vadd.f32 %v1763, %v1711
        %v1765 = vadd.f32 %v1764, %v1712
        %v1766 = vadd.f32 %v1765, %v1713
        %v1767 = vadd.f32 %v1766, %v1714
        %v1768 = vadd.f32 %v1767, %v1715
        %v1769 = vadd.f32 %v1768, %v1716
        %v1770 = vadd.f32 %v1769, %v1717
        %v1771 = vadd.f32 %v1770, %v1718
        %v1772 = vadd.f32 %v1771, %v1719
        %v1773 = vadd.f32 %v1772, %v1720
        %v1774 = vadd.f32 %v1773, %v1721
        %v1775 = vadd.f32 %v1774, %v1722
        %v1776 = vadd.f32 %v1775, %v1723
        %v1777 = vadd.f32 %v1776, %v1724
        %v1778 = vadd.f32 %v1777, %v1725
        %v1779 = vadd.f32 %v1778, %v1726
        %v1780 = vadd.f32 %v1779, %v1727
        %v1781 = vadd.f32 %v1780, %v1728
        %v1782 = vadd.f32 %v1781, %v1729
        %v1783 = vrot.slane %v1782, 4
        %v1784 = vadd.f32 %v1782, %v1783
        %v1785 = vrot.slane %v1784, 2
        %v1786 = vadd.f32 %v1784, %v1785
        %v1787 = vrot.slane %v1786, 1
        %v1788 = vadd.f32 %v1786, %v1787
        %1789 = vst [vmem:[%s389] sm:$0x1] %v1788
        %v1790 = vmul.f32 %v1676, %v1676
        %v1791 = vmul.f32 %v1677, %v1677
        %v1792 = vmul.f32 %v1678, %v1678
        %v1793 = vmul.f32 %v1679, %v1679
        %v1794 = vmul.f32 %v1680, %v1680
        %v1795 = vmul.f32 %v1681, %v1681
        %v1796 = vmul.f32 %v1682, %v1682
        %v1797 = vmul.f32 %v1683, %v1683
        %v1798 = vmul.f32 %v1684, %v1684
        %v1799 = vmul.f32 %v1685, %v1685
        %v1800 = vmul.f32 %v1686, %v1686
        %v1801 = vmul.f32 %v1687, %v1687
        %v1802 = vmul.f32 %v1688, %v1688
        %v1803 = vmul.f32 %v1689, %v1689
        %v1804 = vmul.f32 %v1690, %v1690
        %v1805 = vmul.f32 %v1691, %v1691
        %v1806 = vmul.f32 %v1692, %v1692
        %v1807 = vmul.f32 %v1693, %v1693
        %v1808 = vmul.f32 %v1694, %v1694
        %v1809 = vmul.f32 %v1695, %v1695
        %v1810 = vmul.f32 %v1696, %v1696
        %v1811 = vmul.f32 %v1697, %v1697
        %v1812 = vmul.f32 %v1698, %v1698
        %v1813 = vmul.f32 %v1699, %v1699
        %v1814 = vmul.f32 %v1700, %v1700
        %v1815 = vmul.f32 %v1701, %v1701
        %v1816 = vmul.f32 %v1702, %v1702
        %v1817 = vmul.f32 %v1703, %v1703
        %v1818 = vmul.f32 %v1704, %v1704
        %v1819 = vmul.f32 %v1705, %v1705
        %v1820 = vmul.f32 %v1706, %v1706
        %v1821 = vmul.f32 %v1707, %v1707
        %v1822 = vmul.f32 %v1708, %v1708
        %v1823 = vmul.f32 %v1709, %v1709
        %v1824 = vmul.f32 %v1710, %v1710
        %v1825 = vmul.f32 %v1711, %v1711
        %v1826 = vmul.f32 %v1712, %v1712
        %v1827 = vmul.f32 %v1713, %v1713
        %v1828 = vmul.f32 %v1714, %v1714
        %v1829 = vmul.f32 %v1715, %v1715
        %v1830 = vmul.f32 %v1716, %v1716
        %v1831 = vmul.f32 %v1717, %v1717
        %v1832 = vmul.f32 %v1718, %v1718
        %v1833 = vmul.f32 %v1719, %v1719
        %v1834 = vmul.f32 %v1720, %v1720
        %v1835 = vmul.f32 %v1721, %v1721
        %v1836 = vmul.f32 %v1722, %v1722
        %v1837 = vmul.f32 %v1723, %v1723
        %v1838 = vmul.f32 %v1724, %v1724
        %v1839 = vmul.f32 %v1725, %v1725
        %v1840 = vmul.f32 %v1726, %v1726
        %v1841 = vmul.f32 %v1727, %v1727
        %v1842 = vmul.f32 %v1728, %v1728
        %v1843 = vmul.f32 %v1729, %v1729
        %v1844 = vadd.f32 %v1790, %v1791
        %v1845 = vadd.f32 %v1844, %v1792
        %v1846 = vadd.f32 %v1845, %v1793
        %v1847 = vadd.f32 %v1846, %v1794
        %v1848 = vadd.f32 %v1847, %v1795
        %v1849 = vadd.f32 %v1848, %v1796
        %v1850 = vadd.f32 %v1849, %v1797
        %v1851 = vadd.f32 %v1850, %v1798
        %v1852 = vadd.f32 %v1851, %v1799
        %v1853 = vadd.f32 %v1852, %v1800
        %v1854 = vadd.f32 %v1853, %v1801
        %v1855 = vadd.f32 %v1854, %v1802
        %v1856 = vadd.f32 %v1855, %v1803
        %v1857 = vadd.f32 %v1856, %v1804
        %v1858 = vadd.f32 %v1857, %v1805
        %v1859 = vadd.f32 %v1858, %v1806
        %v1860 = vadd.f32 %v1859, %v1807
        %v1861 = vadd.f32 %v1860, %v1808
        %v1862 = vadd.f32 %v1861, %v1809
        %v1863 = vadd.f32 %v1862, %v1810
        %v1864 = vadd.f32 %v1863, %v1811
        %v1865 = vadd.f32 %v1864, %v1812
        %v1866 = vadd.f32 %v1865, %v1813
        %v1867 = vadd.f32 %v1866, %v1814
        %v1868 = vadd.f32 %v1867, %v1815
        %v1869 = vadd.f32 %v1868, %v1816
        %v1870 = vadd.f32 %v1869, %v1817
        %v1871 = vadd.f32 %v1870, %v1818
        %v1872 = vadd.f32 %v1871, %v1819
        %v1873 = vadd.f32 %v1872, %v1820
        %v1874 = vadd.f32 %v1873, %v1821
        %v1875 = vadd.f32 %v1874, %v1822
        %v1876 = vadd.f32 %v1875, %v1823
        %v1877 = vadd.f32 %v1876, %v1824
        %v1878 = vadd.f32 %v1877, %v1825
        %v1879 = vadd.f32 %v1878, %v1826
        %v1880 = vadd.f32 %v1879, %v1827
        %v1881 = vadd.f32 %v1880, %v1828
        %v1882 = vadd.f32 %v1881, %v1829
        %v1883 = vadd.f32 %v1882, %v1830
        %v1884 = vadd.f32 %v1883, %v1831
        %v1885 = vadd.f32 %v1884, %v1832
        %v1886 = vadd.f32 %v1885, %v1833
        %v1887 = vadd.f32 %v1886, %v1834
        %v1888 = vadd.f32 %v1887, %v1835
        %v1889 = vadd.f32 %v1888, %v1836
        %v1890 = vadd.f32 %v1889, %v1837
        %v1891 = vadd.f32 %v1890, %v1838
        %v1892 = vadd.f32 %v1891, %v1839
        %v1893 = vadd.f32 %v1892, %v1840
        %v1894 = vadd.f32 %v1893, %v1841
        %v1895 = vadd.f32 %v1894, %v1842
        %v1896 = vadd.f32 %v1895, %v1843
        %v1897 = vrot.slane %v1896, 4
        %v1898 = vadd.f32 %v1896, %v1897
        %v1899 = vrot.slane %v1898, 2
        %v1900 = vadd.f32 %v1898, %v1899
        %v1901 = vrot.slane %v1900, 1
        %v1902 = vadd.f32 %v1900, %v1901
        %1903 = vst [vmem:[%s395] sm:$0x1] %v1902
        %s1904 = sand.u32 %s169, 1
        %s1905 = scalar_lea.sflag [#allocation4], %s1904
        %s1906 = sand.u32 %s169, 1
        %s1907 = smul.addr %s1906, 216
        %s1908 = scalar_lea.vmem [#allocation11], %s1907
        %s1909 = sand.u32 %s30, 1
        %s1910 = scalar_lea.sflag [#allocation13], %s1909
        %s1911 = sand.u32 %s197, 1
        %s1912 = scalar_lea.vmem [#allocation12], %s1911
        %s1913 = sand.u32 %s30, 1
        %s1914 = scalar_lea.sflag [#allocation13], %s1913
        %s1915 = sand.u32 %s225, 1
        %s1916 = scalar_lea.vmem [#allocation14], %s1915
        // Predicated region
        $region61: #{bottleneck_forward.6} parent=39 // pred_check
          %p1917 = pneg %p179
        $region62: #{bottleneck_forward.6} parent=39 // pred_check_branch
          %1919 = sbr.rel (%p1917) target = $region64
        $region63: #{bottleneck_forward.6} parent=39 // pred_region
          %s1920 = sadd.s32 %s34, %s35
          %s1921 = smul.u32 54, %s1920
          %s1923 = ssub.s32 3456, 3456
          %1924 = vsyncadd %s1905, %s1923
          %s1925 = smul.addr %s1921, 64
          %s1926 = scalar_lea.hbm %s5, %s1925
          %s1927 = sshll.u32 %s1908, 4
          %s1928 = int_to_ptr.vmem [resolvable:$true] %s1927
          %1933 = dma.vmem_to_hbm [thread:$0]  %s1928, 3456, %s1926, %s1905, 64, 64, 4
        $region64: #{bottleneck_forward.6} parent=39 // pred_fallthru
          _
        // Predicated region
        $region65: #{bottleneck_forward.6} parent=39 // pred_check
          %p1934 = pneg %p207
        $region66: #{bottleneck_forward.6} parent=39 // pred_check_branch
          %1936 = sbr.rel (%p1934) target = $region68
        $region67: #{bottleneck_forward.6} parent=39 // pred_region
          %s1937 = sadd.s32 %s34, %s35
          %s1939 = ssub.s32 16, 16
          %1940 = vsyncadd %s1910, %s1939
          %s1941 = smul.addr %s1937, 16
          %s1942 = scalar_lea.hbm %s6, %s1941
          %s1944 = sshll.u32 %s1912, 4
          %s1945 = int_to_ptr.vmem [resolvable:$true] %s1944
          %1947 = dma.vmem_to_hbm [thread:$0]  %s1945, 16, %s1942, %s1910
        $region68: #{bottleneck_forward.6} parent=39 // pred_fallthru
          _
        // Predicated region
        $region69: #{bottleneck_forward.6} parent=39 // pred_check
          %p1948 = pneg %p235
        $region70: #{bottleneck_forward.6} parent=39 // pred_check_branch
          %1950 = sbr.rel (%p1948) target = $region72
        $region71: #{bottleneck_forward.6} parent=39 // pred_region
          %s1951 = sadd.s32 %s34, %s35
          %s1953 = ssub.s32 16, 16
          %1954 = vsyncadd %s1914, %s1953
          %s1955 = smul.addr %s1951, 16
          %s1956 = scalar_lea.hbm %s7, %s1955
          %s1958 = sshll.u32 %s1916, 4
          %s1959 = int_to_ptr.vmem [resolvable:$true] %s1958
          %1961 = dma.vmem_to_hbm [thread:$0]  %s1959, 16, %s1956, %s1914
        $region72: #{bottleneck_forward.6} parent=39 // pred_fallthru
          _
      $region40: #{bottleneck_forward.6} parent=5 // pred_fallthru
        _
      %p1962 = scmp.le.s32.totalorder 2, %s25
      // Predicated region
      $region73: #{bottleneck_forward.6} parent=5 // pred_check
        %p1963 = pneg %p1962
      $region74: #{bottleneck_forward.6} parent=5 // pred_check_branch
        %1965 = sbr.rel (%p1963) target = $region76
      $region75: #{bottleneck_forward.6} parent=5 // pred_region
        %s1966 = ssub.s32 %s25, 2
        // Predicated region
        $region77: #{bottleneck_forward.6} parent=75 // pred_check
          %p1967 = pneg %p185
        $region78: #{bottleneck_forward.6} parent=75 // pred_check_branch
          %1969 = sbr.rel (%p1967) target = $region80
        $region79: #{bottleneck_forward.6} parent=75 // pred_region
          %s1970 = sand.u32 %s170, 1
          %s1971 = scalar_lea.sflag [#allocation4], %s1970
          %s1972 = sand.u32 %s170, 1
          %s1973 = smul.addr %s1972, 216
          %s1974 = scalar_lea.vmem [#allocation11], %s1973
          %1975 = dma.done %s1971, 3456
        $region80: #{bottleneck_forward.6} parent=75 // pred_fallthru
          _
        // Predicated region
        $region81: #{bottleneck_forward.6} parent=75 // pred_check
          %p1976 = pneg %p213
        $region82: #{bottleneck_forward.6} parent=75 // pred_check_branch
          %1978 = sbr.rel (%p1976) target = $region84
        $region83: #{bottleneck_forward.6} parent=75 // pred_region
          %s1979 = sand.u32 %s31, 1
          %s1980 = scalar_lea.sflag [#allocation13], %s1979
          %s1981 = sand.u32 %s198, 1
          %s1982 = scalar_lea.vmem [#allocation12], %s1981
          %1983 = dma.done %s1980, 16
        $region84: #{bottleneck_forward.6} parent=75 // pred_fallthru
          _
        // Predicated region
        $region85: #{bottleneck_forward.6} parent=75 // pred_check
          %p1984 = pneg %p241
        $region86: #{bottleneck_forward.6} parent=75 // pred_check_branch
          %1986 = sbr.rel (%p1984) target = $region88
        $region87: #{bottleneck_forward.6} parent=75 // pred_region
          %s1987 = sand.u32 %s31, 1
          %s1988 = scalar_lea.sflag [#allocation13], %s1987
          %s1989 = sand.u32 %s226, 1
          %s1990 = scalar_lea.vmem [#allocation14], %s1989
          %1991 = dma.done %s1988, 16
        $region88: #{bottleneck_forward.6} parent=75 // pred_fallthru
          _
      $region76: #{bottleneck_forward.6} parent=5 // pred_fallthru
        _
    $region6: #{bottleneck_forward.6} parent=1 // loop_footer
      %s29 = sadd.s32 1, %s25
    $region7: #{bottleneck_forward.6} parent=1 // loop_footer_branch
      %24 = sbr.rel target = $region3
    $region8: #{bottleneck_forward.6} parent=1 // loop_exit
      _
    %1992 = vsyncpa [#allocation3], 1
    %s1993 = scalar_lea.sflag [#allocation3], 1
    %1994 = vsyncpa %s1993, 1
    %1995 = vsyncpa [#allocation6], 1
    %1996 = vsyncpa [#allocation9], 1
    %1997 = vsyncpa [#allocation4], 1
    %s1998 = scalar_lea.sflag [#allocation4], 1
    %1999 = vsyncpa %s1998, 1
    %2000 = vsyncpa [#allocation13], 1
    %s2001 = scalar_lea.sflag [#allocation13], 1
    %2002 = vsyncpa %s2001, 1

// kernel: bottleneck_forward.5
$region0: #{bottleneck_forward.5}
  #allocation0 [shape = 'u32[]', space=smem, size = 0x4, offset = 0x4, fixed_abs, tag = 'smem constant byte address 0x4 - core index']
  #allocation1 [shape = 'u32[144,128]{1,0:T(1,128)}', space=vmem, size = 0x12000, scoped, tag = 'internal scratch']
  #allocation2 [shape = 'f32[496,128]{1,0:T(8,128)}', space=vmem, size = 0x3e000, scoped, tag = 'scratch operand']
  %s0 = inlined_call_operand.hbm [shape: bf16[864,128], index: 0, kind: input, shape index: {}]
  %s1 = inlined_call_operand.hbm [shape: f32[1,128], index: 1, kind: input, shape index: {}]
  %s2 = inlined_call_operand.hbm [shape: f32[1,128], index: 2, kind: input, shape index: {}]
  %s3 = inlined_call_operand.hbm [shape: f32[432,1], index: 3, kind: input, shape index: {}]
  %s4 = inlined_call_operand.hbm [shape: bf16[3,384,128], index: 4, kind: input, shape index: {}]
  %s5 = inlined_call_operand.hbm [shape: bf16[864,128], index: 5, kind: output, shape index: {0}]
  %s6 = inlined_call_operand.hbm [shape: f32[2,1,128], index: 6, kind: output, shape index: {1}]
  %s7 = inlined_call_operand.hbm [shape: f32[2,1,128], index: 7, kind: output, shape index: {2}]
  %8 = xla_tuple %s5, %s6, %s7
  %s9 = sld [smem:[#allocation0]]
  $region89: #{bottleneck_forward.5} parent=0
    _
  %s11 = ssub.s32 1, %s9
  %s12 = scalar_select 0, %s11, %s9
  $region1: #{bottleneck_forward.5} parent=0
    #allocation3 [shape = 'u8[221184]{0}', space=vmem, size = 0x36000, scoped, tag = 'input window, operand 0']
    #allocation4 [shape = 's32[2]{0}', space=sflag, size = 0x8, scoped, tag = 'scoped memory for bottleneck_forward.5']
    #allocation5 [shape = 's32[2]{0}', space=sflag, size = 0x8, scoped, tag = 'scoped memory for bottleneck_forward.5']
    #allocation6 [shape = 'u8[512]{0}', space=vmem, size = 0x400, scoped, tag = 'input window, operand 1, single buffered']
    #allocation7 [shape = 's32[1]{0}', space=sflag, size = 0x4, scoped, tag = 'scoped memory for bottleneck_forward.5']
    #allocation8 [shape = 'u8[512]{0}', space=vmem, size = 0x400, scoped, tag = 'input window, operand 2, single buffered']
    #allocation9 [shape = 'u8[221184]{0}', space=vmem, size = 0x36000, scoped, tag = 'input window, operand 3, single buffered']
    #allocation10 [shape = 's32[1]{0}', space=sflag, size = 0x4, scoped, tag = 'scoped memory for bottleneck_forward.5']
    #allocation11 [shape = 'u8[294912]{0}', space=vmem, size = 0x48000, scoped, tag = 'input window, operand 4, single buffered']
    #allocation12 [shape = 'u8[221184]{0}', space=vmem, size = 0x36000, scoped, tag = 'output window, operand 0']
    #allocation13 [shape = 'u8[1024]{0}', space=vmem, size = 0x400, scoped, tag = 'output window, operand 1']
    #allocation14 [shape = 's32[2]{0}', space=sflag, size = 0x8, scoped, tag = 'scoped memory for bottleneck_forward.5']
    #allocation15 [shape = 'u8[1024]{0}', space=vmem, size = 0x400, scoped, tag = 'output window, operand 2']
    %13 = vsyncpa [#allocation4], 0
    %s14 = scalar_lea.sflag [#allocation4], 1
    %15 = vsyncpa %s14, 0
    %16 = vsyncpa [#allocation7], 0
    %17 = vsyncpa [#allocation10], 0
    %18 = vsyncpa [#allocation5], 0
    %s19 = scalar_lea.sflag [#allocation5], 1
    %20 = vsyncpa %s19, 0
    %21 = vsyncpa [#allocation14], 0
    %s22 = scalar_lea.sflag [#allocation14], 1
    %23 = vsyncpa %s22, 0
    loop: start=0, step=1, limit=4
    $region2: #{bottleneck_forward.5} parent=1 // loop_pre_header
      _
    $region3: #{bottleneck_forward.5} parent=1 // loop_header
      %s25 = sphi 0, %s29
      %p26 = scmp.ge.s32.totalorder %s25, 4
      %s35 = sphi 0, %s37
      %s38 = sphi 0, %s35
      %s39 = sphi 0, %s38
      %s55 = sphi 0, %s39
      %s59 = sphi 0, %s59
      %s61 = sphi 0, %s59
      %s62 = sphi 0, %s61
      %s76 = sphi 0, %s62
      %s80 = sphi 0, %s80
      %s82 = sphi 0, %s80
      %s83 = sphi 0, %s82
      %s97 = sphi 0, %s83
      %s101 = sphi 0, %s101
      %s103 = sphi 0, %s101
      %s104 = sphi 0, %s103
      %s118 = sphi 0, %s104
      %s122 = sphi 0, %s122
      %s124 = sphi 0, %s122
      %s125 = sphi 0, %s124
      %s139 = sphi 0, %s125
      %s145 = sphi 0, %s147
      %s148 = sphi 0, %s145
      %s149 = sphi 0, %s148
      %s165 = sphi 0, %s149
      %s171 = sphi 0, %s173
      %s174 = sphi 0, %s171
      %s175 = sphi 0, %s174
      %s191 = sphi 0, %s175
      %s197 = sphi 0, %s199
      %s200 = sphi 0, %s197
      %s201 = sphi 0, %s200
      %s217 = sphi 0, %s201
    $region4: #{bottleneck_forward.5} parent=1 // loop_header_branch
      %28 = sbr.rel (%p26) target = $region8
    $region5: #{bottleneck_forward.5} parent=1 // loop_body
      %s30 = ssub.s32 %s25, 1
      %s31 = ssub.s32 %s25, 2
      %s32 = sadd.s32 %s25, 1
      %s33 = ssub.s32 %s25, %s32
      %p34 = scmp.eq.s32.totalorder %s33, 0
      %s36 = sadd.s32 %s35, 1
      %s37 = scalar_select %p34, %s35, %s36
      %p40 = pneg %p34
      %p41 = scmp.eq.s32.totalorder %s25, 1
      %p42 = por %p40, %p41
      %p43 = scmp.ne.s32.totalorder %s35, %s38
      %p44 = scmp.eq.s32.totalorder %s25, 0
      %p45 = por %p43, %p44
      %p46 = scmp.ne.s32.totalorder %s35, %s38
      %p47 = scmp.eq.s32.totalorder %s30, 1
      %p48 = por %p46, %p47
      %p49 = scmp.ne.s32.totalorder %s38, %s39
      %p50 = scmp.eq.s32.totalorder %s30, 0
      %p51 = por %p49, %p50
      %p52 = scmp.ne.s32.totalorder %s38, %s39
      %p53 = scmp.eq.s32.totalorder %s31, 1
      %p54 = por %p52, %p53
      %p56 = scmp.ne.s32.totalorder %s39, %s55
      %p57 = scmp.eq.s32.totalorder %s31, 0
      %p58 = por %p56, %p57
      %s60 = sadd.s32 %s59, 1
      %p63 = scmp.eq.s32.totalorder %s25, 1
      %p64 = scmp.ne.s32.totalorder %s59, %s61
      %p65 = scmp.eq.s32.totalorder %s25, 0
      %p66 = por %p64, %p65
      %p67 = scmp.ne.s32.totalorder %s59, %s61
      %p68 = scmp.eq.s32.totalorder %s30, 1
      %p69 = por %p67, %p68
      %p70 = scmp.ne.s32.totalorder %s61, %s62
      %p71 = scmp.eq.s32.totalorder %s30, 0
      %p72 = por %p70, %p71
      %p73 = scmp.ne.s32.totalorder %s61, %s62
      %p74 = scmp.eq.s32.totalorder %s31, 1
      %p75 = por %p73, %p74
      %p77 = scmp.ne.s32.totalorder %s62, %s76
      %p78 = scmp.eq.s32.totalorder %s31, 0
      %p79 = por %p77, %p78
      %s81 = sadd.s32 %s80, 1
      %p84 = scmp.eq.s32.totalorder %s25, 1
      %p85 = scmp.ne.s32.totalorder %s80, %s82
      %p86 = scmp.eq.s32.totalorder %s25, 0
      %p87 = por %p85, %p86
      %p88 = scmp.ne.s32.totalorder %s80, %s82
      %p89 = scmp.eq.s32.totalorder %s30, 1
      %p90 = por %p88, %p89
      %p91 = scmp.ne.s32.totalorder %s82, %s83
      %p92 = scmp.eq.s32.totalorder %s30, 0
      %p93 = por %p91, %p92
      %p94 = scmp.ne.s32.totalorder %s82, %s83
      %p95 = scmp.eq.s32.totalorder %s31, 1
      %p96 = por %p94, %p95
      %p98 = scmp.ne.s32.totalorder %s83, %s97
      %p99 = scmp.eq.s32.totalorder %s31, 0
      %p100 = por %p98, %p99
      %s102 = sadd.s32 %s101, 1
      %p105 = scmp.eq.s32.totalorder %s25, 1
      %p106 = scmp.ne.s32.totalorder %s101, %s103
      %p107 = scmp.eq.s32.totalorder %s25, 0
      %p108 = por %p106, %p107
      %p109 = scmp.ne.s32.totalorder %s101, %s103
      %p110 = scmp.eq.s32.totalorder %s30, 1
      %p111 = por %p109, %p110
      %p112 = scmp.ne.s32.totalorder %s103, %s104
      %p113 = scmp.eq.s32.totalorder %s30, 0
      %p114 = por %p112, %p113
      %p115 = scmp.ne.s32.totalorder %s103, %s104
      %p116 = scmp.eq.s32.totalorder %s31, 1
      %p117 = por %p115, %p116
      %p119 = scmp.ne.s32.totalorder %s104, %s118
      %p120 = scmp.eq.s32.totalorder %s31, 0
      %p121 = por %p119, %p120
      %s123 = sadd.s32 %s122, 1
      %p126 = scmp.eq.s32.totalorder %s25, 1
      %p127 = scmp.ne.s32.totalorder %s122, %s124
      %p128 = scmp.eq.s32.totalorder %s25, 0
      %p129 = por %p127, %p128
      %p130 = scmp.ne.s32.totalorder %s122, %s124
      %p131 = scmp.eq.s32.totalorder %s30, 1
      %p132 = por %p130, %p131
      %p133 = scmp.ne.s32.totalorder %s124, %s125
      %p134 = scmp.eq.s32.totalorder %s30, 0
      %p135 = por %p133, %p134
      %p136 = scmp.ne.s32.totalorder %s124, %s125
      %p137 = scmp.eq.s32.totalorder %s31, 1
      %p138 = por %p136, %p137
      %p140 = scmp.ne.s32.totalorder %s125, %s139
      %p141 = scmp.eq.s32.totalorder %s31, 0
      %p142 = por %p140, %p141
      %s143 = ssub.s32 %s25, %s32
      %p144 = scmp.eq.s32.totalorder %s143, 0
      %s146 = sadd.s32 %s145, 1
      %s147 = scalar_select %p144, %s145, %s146
      %p150 = pneg %p144
      %p151 = scmp.eq.s32.totalorder %s25, 1
      %p152 = por %p150, %p151
      %p153 = scmp.ne.s32.totalorder %s145, %s148
      %p154 = scmp.eq.s32.totalorder %s25, 0
      %p155 = por %p153, %p154
      %p156 = scmp.ne.s32.totalorder %s145, %s148
      %p157 = scmp.eq.s32.totalorder %s30, 1
      %p158 = por %p156, %p157
      %p159 = scmp.ne.s32.totalorder %s148, %s149
      %p160 = scmp.eq.s32.totalorder %s30, 0
      %p161 = por %p159, %p160
      %p162 = scmp.ne.s32.totalorder %s148, %s149
      %p163 = scmp.eq.s32.totalorder %s31, 1
      %p164 = por %p162, %p163
      %p166 = scmp.ne.s32.totalorder %s149, %s165
      %p167 = scmp.eq.s32.totalorder %s31, 0
      %p168 = por %p166, %p167
      %s169 = ssub.s32 %s25, %s32
      %p170 = scmp.eq.s32.totalorder %s169, 0
      %s172 = sadd.s32 %s171, 1
      %s173 = scalar_select %p170, %s171, %s172
      %p176 = pneg %p170
      %p177 = scmp.eq.s32.totalorder %s25, 1
      %p178 = por %p176, %p177
      %p179 = scmp.ne.s32.totalorder %s171, %s174
      %p180 = scmp.eq.s32.totalorder %s25, 0
      %p181 = por %p179, %p180
      %p182 = scmp.ne.s32.totalorder %s171, %s174
      %p183 = scmp.eq.s32.totalorder %s30, 1
      %p184 = por %p182, %p183
      %p185 = scmp.ne.s32.totalorder %s174, %s175
      %p186 = scmp.eq.s32.totalorder %s30, 0
      %p187 = por %p185, %p186
      %p188 = scmp.ne.s32.totalorder %s174, %s175
      %p189 = scmp.eq.s32.totalorder %s31, 1
      %p190 = por %p188, %p189
      %p192 = scmp.ne.s32.totalorder %s175, %s191
      %p193 = scmp.eq.s32.totalorder %s31, 0
      %p194 = por %p192, %p193
      %s195 = ssub.s32 %s25, %s32
      %p196 = scmp.eq.s32.totalorder %s195, 0
      %s198 = sadd.s32 %s197, 1
      %s199 = scalar_select %p196, %s197, %s198
      %p202 = pneg %p196
      %p203 = scmp.eq.s32.totalorder %s25, 1
      %p204 = por %p202, %p203
      %p205 = scmp.ne.s32.totalorder %s197, %s200
      %p206 = scmp.eq.s32.totalorder %s25, 0
      %p207 = por %p205, %p206
      %p208 = scmp.ne.s32.totalorder %s197, %s200
      %p209 = scmp.eq.s32.totalorder %s30, 1
      %p210 = por %p208, %p209
      %p211 = scmp.ne.s32.totalorder %s200, %s201
      %p212 = scmp.eq.s32.totalorder %s30, 0
      %p213 = por %p211, %p212
      %p214 = scmp.ne.s32.totalorder %s200, %s201
      %p215 = scmp.eq.s32.totalorder %s31, 1
      %p216 = por %p214, %p215
      %p218 = scmp.ne.s32.totalorder %s201, %s217
      %p219 = scmp.eq.s32.totalorder %s31, 0
      %p220 = por %p218, %p219
      %p221 = scmp.le.s32.totalorder 1, %s25
      %p222 = scmp.lt.s32.totalorder %s25, 3
      %p223 = pnand %p221, %p222
      %p224 = pneg %p223
      // Predicated region
      $region9: #{bottleneck_forward.5} parent=5 // pred_check
        _
      $region10: #{bottleneck_forward.5} parent=5 // pred_check_branch
        %226 = sbr.rel (%p223) target = $region12
      $region11: #{bottleneck_forward.5} parent=5 // pred_region
        %s227 = ssub.s32 %s25, 1
        // Predicated region
        $region13: #{bottleneck_forward.5} parent=11 // pred_check
          %p228 = pneg %p72
        $region14: #{bottleneck_forward.5} parent=11 // pred_check_branch
          %230 = sbr.rel (%p228) target = $region16
        $region15: #{bottleneck_forward.5} parent=11 // pred_region
          %s232 = ssub.s32 16, 16
          %233 = vsyncadd [#allocation7], %s232
          %s235 = sshll.u32 [#allocation6], 4
          %s236 = int_to_ptr.vmem [resolvable:$true] %s235
          %238 = dma.hbm_to_vmem [thread:$0]  %s1, 16, %s236, [#allocation7]
        $region16: #{bottleneck_forward.5} parent=11 // pred_fallthru
          _
        // Predicated region
        $region17: #{bottleneck_forward.5} parent=11 // pred_check
          %p239 = pneg %p93
        $region18: #{bottleneck_forward.5} parent=11 // pred_check_branch
          %241 = sbr.rel (%p239) target = $region20
        $region19: #{bottleneck_forward.5} parent=11 // pred_region
          %s243 = ssub.s32 16, 16
          %244 = vsyncadd [#allocation7], %s243
          %s246 = sshll.u32 [#allocation8], 4
          %s247 = int_to_ptr.vmem [resolvable:$true] %s246
          %249 = dma.hbm_to_vmem [thread:$0]  %s2, 16, %s247, [#allocation7]
        $region20: #{bottleneck_forward.5} parent=11 // pred_fallthru
          _
        // Predicated region
        $region21: #{bottleneck_forward.5} parent=11 // pred_check
          %p250 = pneg %p114
        $region22: #{bottleneck_forward.5} parent=11 // pred_check_branch
          %252 = sbr.rel (%p250) target = $region24
        $region23: #{bottleneck_forward.5} parent=11 // pred_region
          %s254 = ssub.s32 6912, 6912
          %255 = vsyncadd [#allocation10], %s254
          %s256 = sshll.u32 [#allocation9], 4
          %s257 = int_to_ptr.vmem [resolvable:$true] %s256
          %262 = dma.hbm_to_vmem [thread:$0]  %s3, 6912, %s257, [#allocation10], 128, 128, 8
        $region24: #{bottleneck_forward.5} parent=11 // pred_fallthru
          _
        // Predicated region
        $region25: #{bottleneck_forward.5} parent=11 // pred_check
          %p263 = pneg %p135
        $region26: #{bottleneck_forward.5} parent=11 // pred_check_branch
          %265 = sbr.rel (%p263) target = $region28
        $region27: #{bottleneck_forward.5} parent=11 // pred_region
          %s267 = ssub.s32 9216, 9216
          %268 = vsyncadd [#allocation10], %s267
          %s269 = sshll.u32 [#allocation11], 4
          %s270 = int_to_ptr.vmem [resolvable:$true] %s269
          %275 = dma.hbm_to_vmem [thread:$0]  %s4, 9216, %s270, [#allocation10], 64, 64, 4
        $region28: #{bottleneck_forward.5} parent=11 // pred_fallthru
          _
      $region12: #{bottleneck_forward.5} parent=5 // pred_fallthru
        _
      %p276 = scmp.lt.s32.totalorder %s25, 2
      // Predicated region
      $region29: #{bottleneck_forward.5} parent=5 // pred_check
        %p277 = pneg %p276
      $region30: #{bottleneck_forward.5} parent=5 // pred_check_branch
        %279 = sbr.rel (%p277) target = $region32
      $region31: #{bottleneck_forward.5} parent=5 // pred_region
        // Predicated region
        $region33: #{bottleneck_forward.5} parent=31 // pred_check
          %p280 = pneg %p45
        $region34: #{bottleneck_forward.5} parent=31 // pred_check_branch
          %282 = sbr.rel (%p280) target = $region36
        $region35: #{bottleneck_forward.5} parent=31 // pred_region
          %s283 = sand.u32 %s35, 1
          %s284 = scalar_lea.sflag [#allocation4], %s283
          %s285 = sand.u32 %s35, 1
          %s286 = smul.addr %s285, 216
          %s287 = scalar_lea.vmem [#allocation3], %s286
          %s288 = smul.u32 54, %s25
          %s290 = ssub.s32 3456, 3456
          %291 = vsyncadd %s284, %s290
          %s292 = smul.addr %s288, 64
          %s293 = scalar_lea.hbm %s0, %s292
          %s294 = sshll.u32 %s287, 4
          %s295 = int_to_ptr.vmem [resolvable:$true] %s294
          %300 = dma.hbm_to_vmem [thread:$0]  %s293, 3456, %s295, %s284, 64, 64, 4
        $region36: #{bottleneck_forward.5} parent=31 // pred_fallthru
          _
      $region32: #{bottleneck_forward.5} parent=5 // pred_fallthru
        _
      %p301 = scmp.le.s32.totalorder 1, %s25
      %p302 = scmp.lt.s32.totalorder %s25, 3
      %p303 = pnand %p301, %p302
      %p304 = pneg %p303
      // Predicated region
      $region37: #{bottleneck_forward.5} parent=5 // pred_check
        _
      $region38: #{bottleneck_forward.5} parent=5 // pred_check_branch
        %306 = sbr.rel (%p303) target = $region40
      $region39: #{bottleneck_forward.5} parent=5 // pred_region
        %s307 = ssub.s32 %s25, 1
        %s308 = sand.u32 %s38, 1
        %s309 = scalar_lea.sflag [#allocation4], %s308
        %s310 = sand.u32 %s38, 1
        %s311 = smul.addr %s310, 216
        %s312 = scalar_lea.vmem [#allocation3], %s311
        // Predicated region
        $region41: #{bottleneck_forward.5} parent=39 // pred_check
          %p313 = pneg %p51
        $region42: #{bottleneck_forward.5} parent=39 // pred_check_branch
          %315 = sbr.rel (%p313) target = $region44
        $region43: #{bottleneck_forward.5} parent=39 // pred_region
          %316 = dma.done %s309, 3456
        $region44: #{bottleneck_forward.5} parent=39 // pred_fallthru
          _
        // Predicated region
        $region45: #{bottleneck_forward.5} parent=39 // pred_check
          %p317 = pneg %p72
        $region46: #{bottleneck_forward.5} parent=39 // pred_check_branch
          %319 = sbr.rel (%p317) target = $region48
        $region47: #{bottleneck_forward.5} parent=39 // pred_region
          %320 = dma.done [#allocation7], 16
        $region48: #{bottleneck_forward.5} parent=39 // pred_fallthru
          _
        // Predicated region
        $region49: #{bottleneck_forward.5} parent=39 // pred_check
          %p321 = pneg %p93
        $region50: #{bottleneck_forward.5} parent=39 // pred_check_branch
          %323 = sbr.rel (%p321) target = $region52
        $region51: #{bottleneck_forward.5} parent=39 // pred_region
          %324 = dma.done [#allocation7], 16
        $region52: #{bottleneck_forward.5} parent=39 // pred_fallthru
          _
        // Predicated region
        $region53: #{bottleneck_forward.5} parent=39 // pred_check
          %p325 = pneg %p114
        $region54: #{bottleneck_forward.5} parent=39 // pred_check_branch
          %327 = sbr.rel (%p325) target = $region56
        $region55: #{bottleneck_forward.5} parent=39 // pred_region
          %328 = dma.done [#allocation10], 6912
        $region56: #{bottleneck_forward.5} parent=39 // pred_fallthru
          _
        // Predicated region
        $region57: #{bottleneck_forward.5} parent=39 // pred_check
          %p329 = pneg %p135
        $region58: #{bottleneck_forward.5} parent=39 // pred_check_branch
          %331 = sbr.rel (%p329) target = $region60
        $region59: #{bottleneck_forward.5} parent=39 // pred_region
          %332 = dma.done [#allocation10], 9216
        $region60: #{bottleneck_forward.5} parent=39 // pred_fallthru
          _
        %s333 = sand.u32 %s38, 1
        %s334 = scalar_lea.sflag [#allocation4], %s333
        %s335 = sand.u32 %s38, 1
        %s336 = smul.addr %s335, 216
        %s337 = scalar_lea.vmem [#allocation3], %s336
        %p338 = pneg %p51
        %p339 = pneg %p48
        %p340 = pneg %p72
        %p341 = pneg %p69
        %p342 = pneg %p93
        %p343 = pneg %p90
        %p344 = pneg %p114
        %p345 = pneg %p111
        %p346 = pneg %p135
        %p347 = pneg %p132
        %p348 = pneg %p161
        %p349 = pneg %p158
        %s350 = sand.u32 %s148, 1
        %s351 = scalar_lea.sflag [#allocation5], %s350
        %s352 = sand.u32 %s148, 1
        %s353 = smul.addr %s352, 216
        %s354 = scalar_lea.vmem [#allocation12], %s353
        %p355 = pneg %p187
        %p356 = pneg %p184
        %s357 = sand.u32 %s30, 1
        %s358 = scalar_lea.sflag [#allocation14], %s357
        %s359 = sand.u32 %s174, 1
        %s360 = scalar_lea.vmem [#allocation13], %s359
        %p361 = pneg %p213
        %p362 = pneg %p210
        %s363 = sand.u32 %s30, 1
        %s364 = scalar_lea.sflag [#allocation14], %s363
        %s365 = sand.u32 %s200, 1
        %s366 = scalar_lea.vmem [#allocation15], %s365
        %s367 = smul.u32 54, %s30
        %s368 = smul.u32 54, %s30
        %v370 = vld [vmem:[%s312] sm:$0xf]
        %v371 = vld [vmem:[%s312 + $0x4] sm:$0xf]
        %v372 = vld [vmem:[%s312 + $0x8] sm:$0xf]
        %v373 = vld [vmem:[%s312 + $0xc] sm:$0xf]
        %v374 = vld [vmem:[%s312 + $0x10] sm:$0xf]
        %v375 = vld [vmem:[%s312 + $0x14] sm:$0xf]
        %v376 = vld [vmem:[%s312 + $0x18] sm:$0xf]
        %v377 = vld [vmem:[%s312 + $0x1c] sm:$0xf]
        %v378 = vld [vmem:[%s312 + $0x20] sm:$0xf]
        %v379 = vld [vmem:[%s312 + $0x24] sm:$0xf]
        %v380 = vld [vmem:[%s312 + $0x28] sm:$0xf]
        %v381 = vld [vmem:[%s312 + $0x2c] sm:$0xf]
        %v382 = vld [vmem:[%s312 + $0x30] sm:$0xf]
        %v383 = vld [vmem:[%s312 + $0x34] sm:$0xf]
        %v384 = vld [vmem:[%s312 + $0x38] sm:$0xf]
        %v385 = vld [vmem:[%s312 + $0x3c] sm:$0xf]
        %v386 = vld [vmem:[%s312 + $0x40] sm:$0xf]
        %v387 = vld [vmem:[%s312 + $0x44] sm:$0xf]
        %v388 = vld [vmem:[%s312 + $0x48] sm:$0xf]
        %v389 = vld [vmem:[%s312 + $0x4c] sm:$0xf]
        %v390 = vld [vmem:[%s312 + $0x50] sm:$0xf]
        %v391 = vld [vmem:[%s312 + $0x54] sm:$0xf]
        %v392 = vld [vmem:[%s312 + $0x58] sm:$0xf]
        %v393 = vld [vmem:[%s312 + $0x5c] sm:$0xf]
        %v394 = vld [vmem:[%s312 + $0x60] sm:$0xf]
        %v395 = vld [vmem:[%s312 + $0x64] sm:$0xf]
        %v396 = vld [vmem:[%s312 + $0x68] sm:$0xf]
        %v397 = vld [vmem:[%s312 + $0x6c] sm:$0xf]
        %v398 = vld [vmem:[%s312 + $0x70] sm:$0xf]
        %v399 = vld [vmem:[%s312 + $0x74] sm:$0xf]
        %v400 = vld [vmem:[%s312 + $0x78] sm:$0xf]
        %v401 = vld [vmem:[%s312 + $0x7c] sm:$0xf]
        %v402 = vld [vmem:[%s312 + $0x80] sm:$0xf]
        %v403 = vld [vmem:[%s312 + $0x84] sm:$0xf]
        %v404 = vld [vmem:[%s312 + $0x88] sm:$0xf]
        %v405 = vld [vmem:[%s312 + $0x8c] sm:$0xf]
        %v406 = vld [vmem:[%s312 + $0x90] sm:$0xf]
        %v407 = vld [vmem:[%s312 + $0x94] sm:$0xf]
        %v408 = vld [vmem:[%s312 + $0x98] sm:$0xf]
        %v409 = vld [vmem:[%s312 + $0x9c] sm:$0xf]
        %v410 = vld [vmem:[%s312 + $0xa0] sm:$0xf]
        %v411 = vld [vmem:[%s312 + $0xa4] sm:$0xf]
        %v412 = vld [vmem:[%s312 + $0xa8] sm:$0xf]
        %v413 = vld [vmem:[%s312 + $0xac] sm:$0xf]
        %v414 = vld [vmem:[%s312 + $0xb0] sm:$0xf]
        %v415 = vld [vmem:[%s312 + $0xb4] sm:$0xf]
        %v416 = vld [vmem:[%s312 + $0xb8] sm:$0xf]
        %v417 = vld [vmem:[%s312 + $0xbc] sm:$0xf]
        %v418 = vld [vmem:[%s312 + $0xc0] sm:$0xf]
        %v419 = vld [vmem:[%s312 + $0xc4] sm:$0xf]
        %v420 = vld [vmem:[%s312 + $0xc8] sm:$0xf]
        %v421 = vld [vmem:[%s312 + $0xcc] sm:$0xf]
        %v422 = vld [vmem:[%s312 + $0xd0] sm:$0xf]
        %v423 = vld [vmem:[%s312 + $0xd4] sm:$0xf]
        %v424 = vunpack.c.l.bf16 %v370
        %v425 = vunpack.c.l.bf16 %v371
        %v426 = vunpack.c.l.bf16 %v372
        %v427 = vunpack.c.l.bf16 %v373
        %v428 = vunpack.c.l.bf16 %v374
        %v429 = vunpack.c.l.bf16 %v375
        %v430 = vunpack.c.l.bf16 %v376
        %v431 = vunpack.c.l.bf16 %v377
        %v432 = vunpack.c.l.bf16 %v378
        %v433 = vunpack.c.l.bf16 %v379
        %v434 = vunpack.c.l.bf16 %v380
        %v435 = vunpack.c.l.bf16 %v381
        %v436 = vunpack.c.l.bf16 %v382
        %v437 = vunpack.c.l.bf16 %v383
        %v438 = vunpack.c.l.bf16 %v384
        %v439 = vunpack.c.l.bf16 %v385
        %v440 = vunpack.c.l.bf16 %v386
        %v441 = vunpack.c.l.bf16 %v387
        %v442 = vunpack.c.l.bf16 %v388
        %v443 = vunpack.c.l.bf16 %v389
        %v444 = vunpack.c.l.bf16 %v390
        %v445 = vunpack.c.l.bf16 %v391
        %v446 = vunpack.c.l.bf16 %v392
        %v447 = vunpack.c.l.bf16 %v393
        %v448 = vunpack.c.l.bf16 %v394
        %v449 = vunpack.c.l.bf16 %v395
        %v450 = vunpack.c.l.bf16 %v396
        %v451 = vunpack.c.l.bf16 %v397
        %v452 = vunpack.c.l.bf16 %v398
        %v453 = vunpack.c.l.bf16 %v399
        %v454 = vunpack.c.l.bf16 %v400
        %v455 = vunpack.c.l.bf16 %v401
        %v456 = vunpack.c.l.bf16 %v402
        %v457 = vunpack.c.l.bf16 %v403
        %v458 = vunpack.c.l.bf16 %v404
        %v459 = vunpack.c.l.bf16 %v405
        %v460 = vunpack.c.l.bf16 %v406
        %v461 = vunpack.c.l.bf16 %v407
        %v462 = vunpack.c.l.bf16 %v408
        %v463 = vunpack.c.l.bf16 %v409
        %v464 = vunpack.c.l.bf16 %v410
        %v465 = vunpack.c.l.bf16 %v411
        %v466 = vunpack.c.l.bf16 %v412
        %v467 = vunpack.c.l.bf16 %v413
        %v468 = vunpack.c.l.bf16 %v414
        %v469 = vunpack.c.l.bf16 %v415
        %v470 = vunpack.c.l.bf16 %v416
        %v471 = vunpack.c.l.bf16 %v417
        %v472 = vunpack.c.l.bf16 %v418
        %v473 = vunpack.c.l.bf16 %v419
        %v474 = vunpack.c.l.bf16 %v420
        %v475 = vunpack.c.l.bf16 %v421
        %v476 = vunpack.c.l.bf16 %v422
        %v477 = vunpack.c.l.bf16 %v423
        %v478 = vld [vmem:[#allocation6] sm:$0x1]
        %v480 = vlaneseq
        %v481 = vshrl.u32 %v480, 7
        %v482 = vsub.s32 0, %v481
        %v483 = vrot.slane %v478, %v482
        %v485 = vmul.f32 %v424, %v483
        %v486 = vmul.f32 %v425, %v483
        %v487 = vmul.f32 %v426, %v483
        %v488 = vmul.f32 %v427, %v483
        %v489 = vmul.f32 %v428, %v483
        %v490 = vmul.f32 %v429, %v483
        %v491 = vmul.f32 %v430, %v483
        %v492 = vmul.f32 %v431, %v483
        %v493 = vmul.f32 %v432, %v483
        %v494 = vmul.f32 %v433, %v483
        %v495 = vmul.f32 %v434, %v483
        %v496 = vmul.f32 %v435, %v483
        %v497 = vmul.f32 %v436, %v483
        %v498 = vmul.f32 %v437, %v483
        %v499 = vmul.f32 %v438, %v483
        %v500 = vmul.f32 %v439, %v483
        %v501 = vmul.f32 %v440, %v483
        %v502 = vmul.f32 %v441, %v483
        %v503 = vmul.f32 %v442, %v483
        %v504 = vmul.f32 %v443, %v483
        %v505 = vmul.f32 %v444, %v483
        %v506 = vmul.f32 %v445, %v483
        %v507 = vmul.f32 %v446, %v483
        %v508 = vmul.f32 %v447, %v483
        %v509 = vmul.f32 %v448, %v483
        %v510 = vmul.f32 %v449, %v483
        %v511 = vmul.f32 %v450, %v483
        %v512 = vmul.f32 %v451, %v483
        %v513 = vmul.f32 %v452, %v483
        %v514 = vmul.f32 %v453, %v483
        %v515 = vmul.f32 %v454, %v483
        %v516 = vmul.f32 %v455, %v483
        %v517 = vmul.f32 %v456, %v483
        %v518 = vmul.f32 %v457, %v483
        %v519 = vmul.f32 %v458, %v483
        %v520 = vmul.f32 %v459, %v483
        %v521 = vmul.f32 %v460, %v483
        %v522 = vmul.f32 %v461, %v483
        %v523 = vmul.f32 %v462, %v483
        %v524 = vmul.f32 %v463, %v483
        %v525 = vmul.f32 %v464, %v483
        %v526 = vmul.f32 %v465, %v483
        %v527 = vmul.f32 %v466, %v483
        %v528 = vmul.f32 %v467, %v483
        %v529 = vmul.f32 %v468, %v483
        %v530 = vmul.f32 %v469, %v483
        %v531 = vmul.f32 %v470, %v483
        %v532 = vmul.f32 %v471, %v483
        %v533 = vmul.f32 %v472, %v483
        %v534 = vmul.f32 %v473, %v483
        %v535 = vmul.f32 %v474, %v483
        %v536 = vmul.f32 %v475, %v483
        %v537 = vmul.f32 %v476, %v483
        %v538 = vmul.f32 %v477, %v483
        %v539 = vld [vmem:[#allocation8] sm:$0x1]
        %v541 = vlaneseq
        %v542 = vshrl.u32 %v541, 7
        %v543 = vsub.s32 0, %v542
        %v544 = vrot.slane %v539, %v543
        %v546 = vadd.f32 %v485, %v544
        %v547 = vadd.f32 %v486, %v544
        %v548 = vadd.f32 %v487, %v544
        %v549 = vadd.f32 %v488, %v544
        %v550 = vadd.f32 %v489, %v544
        %v551 = vadd.f32 %v490, %v544
        %v552 = vadd.f32 %v491, %v544
        %v553 = vadd.f32 %v492, %v544
        %v554 = vadd.f32 %v493, %v544
        %v555 = vadd.f32 %v494, %v544
        %v556 = vadd.f32 %v495, %v544
        %v557 = vadd.f32 %v496, %v544
        %v558 = vadd.f32 %v497, %v544
        %v559 = vadd.f32 %v498, %v544
        %v560 = vadd.f32 %v499, %v544
        %v561 = vadd.f32 %v500, %v544
        %v562 = vadd.f32 %v501, %v544
        %v563 = vadd.f32 %v502, %v544
        %v564 = vadd.f32 %v503, %v544
        %v565 = vadd.f32 %v504, %v544
        %v566 = vadd.f32 %v505, %v544
        %v567 = vadd.f32 %v506, %v544
        %v568 = vadd.f32 %v507, %v544
        %v569 = vadd.f32 %v508, %v544
        %v570 = vadd.f32 %v509, %v544
        %v571 = vadd.f32 %v510, %v544
        %v572 = vadd.f32 %v511, %v544
        %v573 = vadd.f32 %v512, %v544
        %v574 = vadd.f32 %v513, %v544
        %v575 = vadd.f32 %v514, %v544
        %v576 = vadd.f32 %v515, %v544
        %v577 = vadd.f32 %v516, %v544
        %v578 = vadd.f32 %v517, %v544
        %v579 = vadd.f32 %v518, %v544
        %v580 = vadd.f32 %v519, %v544
        %v581 = vadd.f32 %v520, %v544
        %v582 = vadd.f32 %v521, %v544
        %v583 = vadd.f32 %v522, %v544
        %v584 = vadd.f32 %v523, %v544
        %v585 = vadd.f32 %v524, %v544
        %v586 = vadd.f32 %v525, %v544
        %v587 = vadd.f32 %v526, %v544
        %v588 = vadd.f32 %v527, %v544
        %v589 = vadd.f32 %v528, %v544
        %v590 = vadd.f32 %v529, %v544
        %v591 = vadd.f32 %v530, %v544
        %v592 = vadd.f32 %v531, %v544
        %v593 = vadd.f32 %v532, %v544
        %v594 = vadd.f32 %v533, %v544
        %v595 = vadd.f32 %v534, %v544
        %v596 = vadd.f32 %v535, %v544
        %v597 = vadd.f32 %v536, %v544
        %v598 = vadd.f32 %v537, %v544
        %v599 = vadd.f32 %v538, %v544
        %v600 = vmax.f32 %v546, 0.0
        %v601 = vmax.f32 %v547, 0.0
        %v602 = vmax.f32 %v548, 0.0
        %v603 = vmax.f32 %v549, 0.0
        %v604 = vmax.f32 %v550, 0.0
        %v605 = vmax.f32 %v551, 0.0
        %v606 = vmax.f32 %v552, 0.0
        %v607 = vmax.f32 %v553, 0.0
        %v608 = vmax.f32 %v554, 0.0
        %v609 = vmax.f32 %v555, 0.0
        %v610 = vmax.f32 %v556, 0.0
        %v611 = vmax.f32 %v557, 0.0
        %v612 = vmax.f32 %v558, 0.0
        %v613 = vmax.f32 %v559, 0.0
        %v614 = vmax.f32 %v560, 0.0
        %v615 = vmax.f32 %v561, 0.0
        %v616 = vmax.f32 %v562, 0.0
        %v617 = vmax.f32 %v563, 0.0
        %v618 = vmax.f32 %v564, 0.0
        %v619 = vmax.f32 %v565, 0.0
        %v620 = vmax.f32 %v566, 0.0
        %v621 = vmax.f32 %v567, 0.0
        %v622 = vmax.f32 %v568, 0.0
        %v623 = vmax.f32 %v569, 0.0
        %v624 = vmax.f32 %v570, 0.0
        %v625 = vmax.f32 %v571, 0.0
        %v626 = vmax.f32 %v572, 0.0
        %v627 = vmax.f32 %v573, 0.0
        %v628 = vmax.f32 %v574, 0.0
        %v629 = vmax.f32 %v575, 0.0
        %v630 = vmax.f32 %v576, 0.0
        %v631 = vmax.f32 %v577, 0.0
        %v632 = vmax.f32 %v578, 0.0
        %v633 = vmax.f32 %v579, 0.0
        %v634 = vmax.f32 %v580, 0.0
        %v635 = vmax.f32 %v581, 0.0
        %v636 = vmax.f32 %v582, 0.0
        %v637 = vmax.f32 %v583, 0.0
        %v638 = vmax.f32 %v584, 0.0
        %v639 = vmax.f32 %v585, 0.0
        %v640 = vmax.f32 %v586, 0.0
        %v641 = vmax.f32 %v587, 0.0
        %v642 = vmax.f32 %v588, 0.0
        %v643 = vmax.f32 %v589, 0.0
        %v644 = vmax.f32 %v590, 0.0
        %v645 = vmax.f32 %v591, 0.0
        %v646 = vmax.f32 %v592, 0.0
        %v647 = vmax.f32 %v593, 0.0
        %v648 = vmax.f32 %v594, 0.0
        %v649 = vmax.f32 %v595, 0.0
        %v650 = vmax.f32 %v596, 0.0
        %v651 = vmax.f32 %v597, 0.0
        %v652 = vmax.f32 %v598, 0.0
        %v653 = vmax.f32 %v599, 0.0
        %v654 = vld [vmem:[#allocation9] sm:$0xff]
        %v655 = vld [vmem:[#allocation9 + $0x8] sm:$0xff]
        %v656 = vld [vmem:[#allocation9 + $0x10] sm:$0xff]
        %v657 = vld [vmem:[#allocation9 + $0x18] sm:$0xff]
        %v658 = vld [vmem:[#allocation9 + $0x20] sm:$0xff]
        %v659 = vld [vmem:[#allocation9 + $0x28] sm:$0xff]
        %v660 = vld [vmem:[#allocation9 + $0x30] sm:$0xff]
        %v661 = vld [vmem:[#allocation9 + $0x38] sm:$0xff]
        %v662 = vld [vmem:[#allocation9 + $0x40] sm:$0xff]
        %v663 = vld [vmem:[#allocation9 + $0x48] sm:$0xff]
        %v664 = vld [vmem:[#allocation9 + $0x50] sm:$0xff]
        %v665 = vld [vmem:[#allocation9 + $0x58] sm:$0xff]
        %v666 = vld [vmem:[#allocation9 + $0x60] sm:$0xff]
        %v667 = vld [vmem:[#allocation9 + $0x68] sm:$0xff]
        %v668 = vld [vmem:[#allocation9 + $0x70] sm:$0xff]
        %v669 = vld [vmem:[#allocation9 + $0x78] sm:$0xff]
        %v670 = vld [vmem:[#allocation9 + $0x80] sm:$0xff]
        %v671 = vld [vmem:[#allocation9 + $0x88] sm:$0xff]
        %v672 = vld [vmem:[#allocation9 + $0x90] sm:$0xff]
        %v673 = vld [vmem:[#allocation9 + $0x98] sm:$0xff]
        %v674 = vld [vmem:[#allocation9 + $0xa0] sm:$0xff]
        %v675 = vld [vmem:[#allocation9 + $0xa8] sm:$0xff]
        %v676 = vld [vmem:[#allocation9 + $0xb0] sm:$0xff]
        %v677 = vld [vmem:[#allocation9 + $0xb8] sm:$0xff]
        %v678 = vld [vmem:[#allocation9 + $0xc0] sm:$0xff]
        %v679 = vld [vmem:[#allocation9 + $0xc8] sm:$0xff]
        %v680 = vld [vmem:[#allocation9 + $0xd0] sm:$0xff]
        %v681 = vld [vmem:[#allocation9 + $0xd8] sm:$0xff]
        %v682 = vld [vmem:[#allocation9 + $0xe0] sm:$0xff]
        %v683 = vld [vmem:[#allocation9 + $0xe8] sm:$0xff]
        %v684 = vld [vmem:[#allocation9 + $0xf0] sm:$0xff]
        %v685 = vld [vmem:[#allocation9 + $0xf8] sm:$0xff]
        %v686 = vld [vmem:[#allocation9 + $0x100] sm:$0xff]
        %v687 = vld [vmem:[#allocation9 + $0x108] sm:$0xff]
        %v688 = vld [vmem:[#allocation9 + $0x110] sm:$0xff]
        %v689 = vld [vmem:[#allocation9 + $0x118] sm:$0xff]
        %v690 = vld [vmem:[#allocation9 + $0x120] sm:$0xff]
        %v691 = vld [vmem:[#allocation9 + $0x128] sm:$0xff]
        %v692 = vld [vmem:[#allocation9 + $0x130] sm:$0xff]
        %v693 = vld [vmem:[#allocation9 + $0x138] sm:$0xff]
        %v694 = vld [vmem:[#allocation9 + $0x140] sm:$0xff]
        %v695 = vld [vmem:[#allocation9 + $0x148] sm:$0xff]
        %v696 = vld [vmem:[#allocation9 + $0x150] sm:$0xff]
        %v697 = vld [vmem:[#allocation9 + $0x158] sm:$0xff]
        %v698 = vld [vmem:[#allocation9 + $0x160] sm:$0xff]
        %v699 = vld [vmem:[#allocation9 + $0x168] sm:$0xff]
        %v700 = vld [vmem:[#allocation9 + $0x170] sm:$0xff]
        %v701 = vld [vmem:[#allocation9 + $0x178] sm:$0xff]
        %v702 = vld [vmem:[#allocation9 + $0x180] sm:$0xff]
        %v703 = vld [vmem:[#allocation9 + $0x188] sm:$0xff]
        %v704 = vld [vmem:[#allocation9 + $0x190] sm:$0xff]
        %v705 = vld [vmem:[#allocation9 + $0x198] sm:$0xff]
        %v706 = vld [vmem:[#allocation9 + $0x1a0] sm:$0xff]
        %v707 = vld [vmem:[#allocation9 + $0x1a8] sm:$0xff]
        %709 = vset.pattern.permute.xlu0 0
        %710 = vperm.xlu0 %709, %v654
        %v711 = vpop.permute.xlu0 %710
        %714 = vset.pattern.permute.xlu0 0
        %715 = vperm.xlu0 %714, %v655
        %v716 = vpop.permute.xlu0 %715
        %719 = vset.pattern.permute.xlu0 0
        %720 = vperm.xlu0 %719, %v656
        %v721 = vpop.permute.xlu0 %720
        %724 = vset.pattern.permute.xlu0 0
        %725 = vperm.xlu0 %724, %v657
        %v726 = vpop.permute.xlu0 %725
        %729 = vset.pattern.permute.xlu0 0
        %730 = vperm.xlu0 %729, %v658
        %v731 = vpop.permute.xlu0 %730
        %734 = vset.pattern.permute.xlu0 0
        %735 = vperm.xlu0 %734, %v659
        %v736 = vpop.permute.xlu0 %735
        %739 = vset.pattern.permute.xlu0 0
        %740 = vperm.xlu0 %739, %v660
        %v741 = vpop.permute.xlu0 %740
        %744 = vset.pattern.permute.xlu0 0
        %745 = vperm.xlu0 %744, %v661
        %v746 = vpop.permute.xlu0 %745
        %749 = vset.pattern.permute.xlu0 0
        %750 = vperm.xlu0 %749, %v662
        %v751 = vpop.permute.xlu0 %750
        %754 = vset.pattern.permute.xlu0 0
        %755 = vperm.xlu0 %754, %v663
        %v756 = vpop.permute.xlu0 %755
        %759 = vset.pattern.permute.xlu0 0
        %760 = vperm.xlu0 %759, %v664
        %v761 = vpop.permute.xlu0 %760
        %764 = vset.pattern.permute.xlu0 0
        %765 = vperm.xlu0 %764, %v665
        %v766 = vpop.permute.xlu0 %765
        %769 = vset.pattern.permute.xlu0 0
        %770 = vperm.xlu0 %769, %v666
        %v771 = vpop.permute.xlu0 %770
        %774 = vset.pattern.permute.xlu0 0
        %775 = vperm.xlu0 %774, %v667
        %v776 = vpop.permute.xlu0 %775
        %779 = vset.pattern.permute.xlu0 0
        %780 = vperm.xlu0 %779, %v668
        %v781 = vpop.permute.xlu0 %780
        %784 = vset.pattern.permute.xlu0 0
        %785 = vperm.xlu0 %784, %v669
        %v786 = vpop.permute.xlu0 %785
        %789 = vset.pattern.permute.xlu0 0
        %790 = vperm.xlu0 %789, %v670
        %v791 = vpop.permute.xlu0 %790
        %794 = vset.pattern.permute.xlu0 0
        %795 = vperm.xlu0 %794, %v671
        %v796 = vpop.permute.xlu0 %795
        %799 = vset.pattern.permute.xlu0 0
        %800 = vperm.xlu0 %799, %v672
        %v801 = vpop.permute.xlu0 %800
        %804 = vset.pattern.permute.xlu0 0
        %805 = vperm.xlu0 %804, %v673
        %v806 = vpop.permute.xlu0 %805
        %809 = vset.pattern.permute.xlu0 0
        %810 = vperm.xlu0 %809, %v674
        %v811 = vpop.permute.xlu0 %810
        %814 = vset.pattern.permute.xlu0 0
        %815 = vperm.xlu0 %814, %v675
        %v816 = vpop.permute.xlu0 %815
        %819 = vset.pattern.permute.xlu0 0
        %820 = vperm.xlu0 %819, %v676
        %v821 = vpop.permute.xlu0 %820
        %824 = vset.pattern.permute.xlu0 0
        %825 = vperm.xlu0 %824, %v677
        %v826 = vpop.permute.xlu0 %825
        %829 = vset.pattern.permute.xlu0 0
        %830 = vperm.xlu0 %829, %v678
        %v831 = vpop.permute.xlu0 %830
        %834 = vset.pattern.permute.xlu0 0
        %835 = vperm.xlu0 %834, %v679
        %v836 = vpop.permute.xlu0 %835
        %839 = vset.pattern.permute.xlu0 0
        %840 = vperm.xlu0 %839, %v680
        %v841 = vpop.permute.xlu0 %840
        %844 = vset.pattern.permute.xlu0 0
        %845 = vperm.xlu0 %844, %v681
        %v846 = vpop.permute.xlu0 %845
        %849 = vset.pattern.permute.xlu0 0
        %850 = vperm.xlu0 %849, %v682
        %v851 = vpop.permute.xlu0 %850
        %854 = vset.pattern.permute.xlu0 0
        %855 = vperm.xlu0 %854, %v683
        %v856 = vpop.permute.xlu0 %855
        %859 = vset.pattern.permute.xlu0 0
        %860 = vperm.xlu0 %859, %v684
        %v861 = vpop.permute.xlu0 %860
        %864 = vset.pattern.permute.xlu0 0
        %865 = vperm.xlu0 %864, %v685
        %v866 = vpop.permute.xlu0 %865
        %869 = vset.pattern.permute.xlu0 0
        %870 = vperm.xlu0 %869, %v686
        %v871 = vpop.permute.xlu0 %870
        %874 = vset.pattern.permute.xlu0 0
        %875 = vperm.xlu0 %874, %v687
        %v876 = vpop.permute.xlu0 %875
        %879 = vset.pattern.permute.xlu0 0
        %880 = vperm.xlu0 %879, %v688
        %v881 = vpop.permute.xlu0 %880
        %884 = vset.pattern.permute.xlu0 0
        %885 = vperm.xlu0 %884, %v689
        %v886 = vpop.permute.xlu0 %885
        %889 = vset.pattern.permute.xlu0 0
        %890 = vperm.xlu0 %889, %v690
        %v891 = vpop.permute.xlu0 %890
        %894 = vset.pattern.permute.xlu0 0
        %895 = vperm.xlu0 %894, %v691
        %v896 = vpop.permute.xlu0 %895
        %899 = vset.pattern.permute.xlu0 0
        %900 = vperm.xlu0 %899, %v692
        %v901 = vpop.permute.xlu0 %900
        %904 = vset.pattern.permute.xlu0 0
        %905 = vperm.xlu0 %904, %v693
        %v906 = vpop.permute.xlu0 %905
        %909 = vset.pattern.permute.xlu0 0
        %910 = vperm.xlu0 %909, %v694
        %v911 = vpop.permute.xlu0 %910
        %914 = vset.pattern.permute.xlu0 0
        %915 = vperm.xlu0 %914, %v695
        %v916 = vpop.permute.xlu0 %915
        %919 = vset.pattern.permute.xlu0 0
        %920 = vperm.xlu0 %919, %v696
        %v921 = vpop.permute.xlu0 %920
        %924 = vset.pattern.permute.xlu0 0
        %925 = vperm.xlu0 %924, %v697
        %v926 = vpop.permute.xlu0 %925
        %929 = vset.pattern.permute.xlu0 0
        %930 = vperm.xlu0 %929, %v698
        %v931 = vpop.permute.xlu0 %930
        %934 = vset.pattern.permute.xlu0 0
        %935 = vperm.xlu0 %934, %v699
        %v936 = vpop.permute.xlu0 %935
        %939 = vset.pattern.permute.xlu0 0
        %940 = vperm.xlu0 %939, %v700
        %v941 = vpop.permute.xlu0 %940
        %944 = vset.pattern.permute.xlu0 0
        %945 = vperm.xlu0 %944, %v701
        %v946 = vpop.permute.xlu0 %945
        %949 = vset.pattern.permute.xlu0 0
        %950 = vperm.xlu0 %949, %v702
        %v951 = vpop.permute.xlu0 %950
        %954 = vset.pattern.permute.xlu0 0
        %955 = vperm.xlu0 %954, %v703
        %v956 = vpop.permute.xlu0 %955
        %959 = vset.pattern.permute.xlu0 0
        %960 = vperm.xlu0 %959, %v704
        %v961 = vpop.permute.xlu0 %960
        %964 = vset.pattern.permute.xlu0 0
        %965 = vperm.xlu0 %964, %v705
        %v966 = vpop.permute.xlu0 %965
        %969 = vset.pattern.permute.xlu0 0
        %970 = vperm.xlu0 %969, %v706
        %v971 = vpop.permute.xlu0 %970
        %974 = vset.pattern.permute.xlu0 0
        %975 = vperm.xlu0 %974, %v707
        %v976 = vpop.permute.xlu0 %975
        %v978 = vmul.f32 %v600, %v711
        %v979 = vmul.f32 %v601, %v716
        %v980 = vmul.f32 %v602, %v721
        %v981 = vmul.f32 %v603, %v726
        %v982 = vmul.f32 %v604, %v731
        %v983 = vmul.f32 %v605, %v736
        %v984 = vmul.f32 %v606, %v741
        %v985 = vmul.f32 %v607, %v746
        %v986 = vmul.f32 %v608, %v751
        %v987 = vmul.f32 %v609, %v756
        %v988 = vmul.f32 %v610, %v761
        %v989 = vmul.f32 %v611, %v766
        %v990 = vmul.f32 %v612, %v771
        %v991 = vmul.f32 %v613, %v776
        %v992 = vmul.f32 %v614, %v781
        %v993 = vmul.f32 %v615, %v786
        %v994 = vmul.f32 %v616, %v791
        %v995 = vmul.f32 %v617, %v796
        %v996 = vmul.f32 %v618, %v801
        %v997 = vmul.f32 %v619, %v806
        %v998 = vmul.f32 %v620, %v811
        %v999 = vmul.f32 %v621, %v816
        %v1000 = vmul.f32 %v622, %v821
        %v1001 = vmul.f32 %v623, %v826
        %v1002 = vmul.f32 %v624, %v831
        %v1003 = vmul.f32 %v625, %v836
        %v1004 = vmul.f32 %v626, %v841
        %v1005 = vmul.f32 %v627, %v846
        %v1006 = vmul.f32 %v628, %v851
        %v1007 = vmul.f32 %v629, %v856
        %v1008 = vmul.f32 %v630, %v861
        %v1009 = vmul.f32 %v631, %v866
        %v1010 = vmul.f32 %v632, %v871
        %v1011 = vmul.f32 %v633, %v876
        %v1012 = vmul.f32 %v634, %v881
        %v1013 = vmul.f32 %v635, %v886
        %v1014 = vmul.f32 %v636, %v891
        %v1015 = vmul.f32 %v637, %v896
        %v1016 = vmul.f32 %v638, %v901
        %v1017 = vmul.f32 %v639, %v906
        %v1018 = vmul.f32 %v640, %v911
        %v1019 = vmul.f32 %v641, %v916
        %v1020 = vmul.f32 %v642, %v921
        %v1021 = vmul.f32 %v643, %v926
        %v1022 = vmul.f32 %v644, %v931
        %v1023 = vmul.f32 %v645, %v936
        %v1024 = vmul.f32 %v646, %v941
        %v1025 = vmul.f32 %v647, %v946
        %v1026 = vmul.f32 %v648, %v951
        %v1027 = vmul.f32 %v649, %v956
        %v1028 = vmul.f32 %v650, %v961
        %v1029 = vmul.f32 %v651, %v966
        %v1030 = vmul.f32 %v652, %v971
        %v1031 = vmul.f32 %v653, %v976
        %1032 = vst [vmem:[#allocation2] sm:$0xff] 0.0
        %1033 = vst [vmem:[#allocation2 + $0x8] sm:$0xff] 0.0
        %1034 = vst [vmem:[#allocation2 + $0x10] sm:$0xff] 0.0
        %1035 = vst [vmem:[#allocation2 + $0x18] sm:$0xff] 0.0
        %1036 = vst [vmem:[#allocation2 + $0x1d0] sm:$0xff] 0.0
        %1037 = vst [vmem:[#allocation2 + $0x1d8] sm:$0xff] 0.0
        %1038 = vst [vmem:[#allocation2 + $0x1e0] sm:$0xff] 0.0
        %1039 = vst [vmem:[#allocation2 + $0x1e8] sm:$0xff] 0.0
        %1040 = vst [vmem:[#allocation2 + $0x20] sm:$0xff] %v978
        %1041 = vst [vmem:[#allocation2 + $0x28] sm:$0xff] %v979
        %1042 = vst [vmem:[#allocation2 + $0x30] sm:$0xff] %v980
        %1043 = vst [vmem:[#allocation2 + $0x38] sm:$0xff] %v981
        %1044 = vst [vmem:[#allocation2 + $0x40] sm:$0xff] %v982
        %1045 = vst [vmem:[#allocation2 + $0x48] sm:$0xff] %v983
        %1046 = vst [vmem:[#allocation2 + $0x50] sm:$0xff] %v984
        %1047 = vst [vmem:[#allocation2 + $0x58] sm:$0xff] %v985
        %1048 = vst [vmem:[#allocation2 + $0x60] sm:$0xff] %v986
        %1049 = vst [vmem:[#allocation2 + $0x68] sm:$0xff] %v987
        %1050 = vst [vmem:[#allocation2 + $0x70] sm:$0xff] %v988
        %1051 = vst [vmem:[#allocation2 + $0x78] sm:$0xff] %v989
        %1052 = vst [vmem:[#allocation2 + $0x80] sm:$0xff] %v990
        %1053 = vst [vmem:[#allocation2 + $0x88] sm:$0xff] %v991
        %1054 = vst [vmem:[#allocation2 + $0x90] sm:$0xff] %v992
        %1055 = vst [vmem:[#allocation2 + $0x98] sm:$0xff] %v993
        %1056 = vst [vmem:[#allocation2 + $0xa0] sm:$0xff] %v994
        %1057 = vst [vmem:[#allocation2 + $0xa8] sm:$0xff] %v995
        %1058 = vst [vmem:[#allocation2 + $0xb0] sm:$0xff] %v996
        %1059 = vst [vmem:[#allocation2 + $0xb8] sm:$0xff] %v997
        %1060 = vst [vmem:[#allocation2 + $0xc0] sm:$0xff] %v998
        %1061 = vst [vmem:[#allocation2 + $0xc8] sm:$0xff] %v999
        %1062 = vst [vmem:[#allocation2 + $0xd0] sm:$0xff] %v1000
        %1063 = vst [vmem:[#allocation2 + $0xd8] sm:$0xff] %v1001
        %1064 = vst [vmem:[#allocation2 + $0xe0] sm:$0xff] %v1002
        %1065 = vst [vmem:[#allocation2 + $0xe8] sm:$0xff] %v1003
        %1066 = vst [vmem:[#allocation2 + $0xf0] sm:$0xff] %v1004
        %1067 = vst [vmem:[#allocation2 + $0xf8] sm:$0xff] %v1005
        %1068 = vst [vmem:[#allocation2 + $0x100] sm:$0xff] %v1006
        %1069 = vst [vmem:[#allocation2 + $0x108] sm:$0xff] %v1007
        %1070 = vst [vmem:[#allocation2 + $0x110] sm:$0xff] %v1008
        %1071 = vst [vmem:[#allocation2 + $0x118] sm:$0xff] %v1009
        %1072 = vst [vmem:[#allocation2 + $0x120] sm:$0xff] %v1010
        %1073 = vst [vmem:[#allocation2 + $0x128] sm:$0xff] %v1011
        %1074 = vst [vmem:[#allocation2 + $0x130] sm:$0xff] %v1012
        %1075 = vst [vmem:[#allocation2 + $0x138] sm:$0xff] %v1013
        %1076 = vst [vmem:[#allocation2 + $0x140] sm:$0xff] %v1014
        %1077 = vst [vmem:[#allocation2 + $0x148] sm:$0xff] %v1015
        %1078 = vst [vmem:[#allocation2 + $0x150] sm:$0xff] %v1016
        %1079 = vst [vmem:[#allocation2 + $0x158] sm:$0xff] %v1017
        %1080 = vst [vmem:[#allocation2 + $0x160] sm:$0xff] %v1018
        %1081 = vst [vmem:[#allocation2 + $0x168] sm:$0xff] %v1019
        %1082 = vst [vmem:[#allocation2 + $0x170] sm:$0xff] %v1020
        %1083 = vst [vmem:[#allocation2 + $0x178] sm:$0xff] %v1021
        %1084 = vst [vmem:[#allocation2 + $0x180] sm:$0xff] %v1022
        %1085 = vst [vmem:[#allocation2 + $0x188] sm:$0xff] %v1023
        %1086 = vst [vmem:[#allocation2 + $0x190] sm:$0xff] %v1024
        %1087 = vst [vmem:[#allocation2 + $0x198] sm:$0xff] %v1025
        %1088 = vst [vmem:[#allocation2 + $0x1a0] sm:$0xff] %v1026
        %1089 = vst [vmem:[#allocation2 + $0x1a8] sm:$0xff] %v1027
        %1090 = vst [vmem:[#allocation2 + $0x1b0] sm:$0xff] %v1028
        %1091 = vst [vmem:[#allocation2 + $0x1b8] sm:$0xff] %v1029
        %1092 = vst [vmem:[#allocation2 + $0x1c0] sm:$0xff] %v1030
        %1093 = vst [vmem:[#allocation2 + $0x1c8] sm:$0xff] %v1031
        %v1094 = vld [vmem:[#allocation2 + $0x7] sm:$0xff]
        %v1095 = vld [vmem:[#allocation2 + $0xf] sm:$0xff]
        %v1096 = vld [vmem:[#allocation2 + $0x17] sm:$0xff]
        %v1097 = vld [vmem:[#allocation2 + $0x1f] sm:$0xff]
        %v1098 = vld [vmem:[#allocation2 + $0x27] sm:$0xff]
        %v1099 = vld [vmem:[#allocation2 + $0x2f] sm:$0xff]
        %v1100 = vld [vmem:[#allocation2 + $0x37] sm:$0xff]
        %v1101 = vld [vmem:[#allocation2 + $0x3f] sm:$0xff]
        %v1102 = vld [vmem:[#allocation2 + $0x47] sm:$0xff]
        %v1103 = vld [vmem:[#allocation2 + $0x4f] sm:$0xff]
        %v1104 = vld [vmem:[#allocation2 + $0x57] sm:$0xff]
        %v1105 = vld [vmem:[#allocation2 + $0x5f] sm:$0xff]
        %v1106 = vld [vmem:[#allocation2 + $0x67] sm:$0xff]
        %v1107 = vld [vmem:[#allocation2 + $0x6f] sm:$0xff]
        %v1108 = vld [vmem:[#allocation2 + $0x77] sm:$0xff]
        %v1109 = vld [vmem:[#allocation2 + $0x7f] sm:$0xff]
        %v1110 = vld [vmem:[#allocation2 + $0x87] sm:$0xff]
        %v1111 = vld [vmem:[#allocation2 + $0x8f] sm:$0xff]
        %v1112 = vld [vmem:[#allocation2 + $0x97] sm:$0xff]
        %v1113 = vld [vmem:[#allocation2 + $0x9f] sm:$0xff]
        %v1114 = vld [vmem:[#allocation2 + $0xa7] sm:$0xff]
        %v1115 = vld [vmem:[#allocation2 + $0xaf] sm:$0xff]
        %v1116 = vld [vmem:[#allocation2 + $0xb7] sm:$0xff]
        %v1117 = vld [vmem:[#allocation2 + $0xbf] sm:$0xff]
        %v1118 = vld [vmem:[#allocation2 + $0xc7] sm:$0xff]
        %v1119 = vld [vmem:[#allocation2 + $0xcf] sm:$0xff]
        %v1120 = vld [vmem:[#allocation2 + $0xd7] sm:$0xff]
        %v1121 = vld [vmem:[#allocation2 + $0xdf] sm:$0xff]
        %v1122 = vld [vmem:[#allocation2 + $0xe7] sm:$0xff]
        %v1123 = vld [vmem:[#allocation2 + $0xef] sm:$0xff]
        %v1124 = vld [vmem:[#allocation2 + $0xf7] sm:$0xff]
        %v1125 = vld [vmem:[#allocation2 + $0xff] sm:$0xff]
        %v1126 = vld [vmem:[#allocation2 + $0x107] sm:$0xff]
        %v1127 = vld [vmem:[#allocation2 + $0x10f] sm:$0xff]
        %v1128 = vld [vmem:[#allocation2 + $0x117] sm:$0xff]
        %v1129 = vld [vmem:[#allocation2 + $0x11f] sm:$0xff]
        %v1130 = vld [vmem:[#allocation2 + $0x127] sm:$0xff]
        %v1131 = vld [vmem:[#allocation2 + $0x12f] sm:$0xff]
        %v1132 = vld [vmem:[#allocation2 + $0x137] sm:$0xff]
        %v1133 = vld [vmem:[#allocation2 + $0x13f] sm:$0xff]
        %v1134 = vld [vmem:[#allocation2 + $0x147] sm:$0xff]
        %v1135 = vld [vmem:[#allocation2 + $0x14f] sm:$0xff]
        %v1136 = vld [vmem:[#allocation2 + $0x157] sm:$0xff]
        %v1137 = vld [vmem:[#allocation2 + $0x15f] sm:$0xff]
        %v1138 = vld [vmem:[#allocation2 + $0x167] sm:$0xff]
        %v1139 = vld [vmem:[#allocation2 + $0x16f] sm:$0xff]
        %v1140 = vld [vmem:[#allocation2 + $0x177] sm:$0xff]
        %v1141 = vld [vmem:[#allocation2 + $0x17f] sm:$0xff]
        %v1142 = vld [vmem:[#allocation2 + $0x187] sm:$0xff]
        %v1143 = vld [vmem:[#allocation2 + $0x18f] sm:$0xff]
        %v1144 = vld [vmem:[#allocation2 + $0x197] sm:$0xff]
        %v1145 = vld [vmem:[#allocation2 + $0x19f] sm:$0xff]
        %v1146 = vld [vmem:[#allocation2 + $0x1a7] sm:$0xff]
        %v1147 = vld [vmem:[#allocation2 + $0x1af] sm:$0xff]
        %v1148 = vld [vmem:[#allocation2 + $0x8] sm:$0xff]
        %v1149 = vld [vmem:[#allocation2 + $0x10] sm:$0xff]
        %v1150 = vld [vmem:[#allocation2 + $0x18] sm:$0xff]
        %v1151 = vld [vmem:[#allocation2 + $0x20] sm:$0xff]
        %v1152 = vld [vmem:[#allocation2 + $0x28] sm:$0xff]
        %v1153 = vld [vmem:[#allocation2 + $0x30] sm:$0xff]
        %v1154 = vld [vmem:[#allocation2 + $0x38] sm:$0xff]
        %v1155 = vld [vmem:[#allocation2 + $0x40] sm:$0xff]
        %v1156 = vld [vmem:[#allocation2 + $0x48] sm:$0xff]
        %v1157 = vld [vmem:[#allocation2 + $0x50] sm:$0xff]
        %v1158 = vld [vmem:[#allocation2 + $0x58] sm:$0xff]
        %v1159 = vld [vmem:[#allocation2 + $0x60] sm:$0xff]
        %v1160 = vld [vmem:[#allocation2 + $0x68] sm:$0xff]
        %v1161 = vld [vmem:[#allocation2 + $0x70] sm:$0xff]
        %v1162 = vld [vmem:[#allocation2 + $0x78] sm:$0xff]
        %v1163 = vld [vmem:[#allocation2 + $0x80] sm:$0xff]
        %v1164 = vld [vmem:[#allocation2 + $0x88] sm:$0xff]
        %v1165 = vld [vmem:[#allocation2 + $0x90] sm:$0xff]
        %v1166 = vld [vmem:[#allocation2 + $0x98] sm:$0xff]
        %v1167 = vld [vmem:[#allocation2 + $0xa0] sm:$0xff]
        %v1168 = vld [vmem:[#allocation2 + $0xa8] sm:$0xff]
        %v1169 = vld [vmem:[#allocation2 + $0xb0] sm:$0xff]
        %v1170 = vld [vmem:[#allocation2 + $0xb8] sm:$0xff]
        %v1171 = vld [vmem:[#allocation2 + $0xc0] sm:$0xff]
        %v1172 = vld [vmem:[#allocation2 + $0xc8] sm:$0xff]
        %v1173 = vld [vmem:[#allocation2 + $0xd0] sm:$0xff]
        %v1174 = vld [vmem:[#allocation2 + $0xd8] sm:$0xff]
        %v1175 = vld [vmem:[#allocation2 + $0xe0] sm:$0xff]
        %v1176 = vld [vmem:[#allocation2 + $0xe8] sm:$0xff]
        %v1177 = vld [vmem:[#allocation2 + $0xf0] sm:$0xff]
        %v1178 = vld [vmem:[#allocation2 + $0xf8] sm:$0xff]
        %v1179 = vld [vmem:[#allocation2 + $0x100] sm:$0xff]
        %v1180 = vld [vmem:[#allocation2 + $0x108] sm:$0xff]
        %v1181 = vld [vmem:[#allocation2 + $0x110] sm:$0xff]
        %v1182 = vld [vmem:[#allocation2 + $0x118] sm:$0xff]
        %v1183 = vld [vmem:[#allocation2 + $0x120] sm:$0xff]
        %v1184 = vld [vmem:[#allocation2 + $0x128] sm:$0xff]
        %v1185 = vld [vmem:[#allocation2 + $0x130] sm:$0xff]
        %v1186 = vld [vmem:[#allocation2 + $0x138] sm:$0xff]
        %v1187 = vld [vmem:[#allocation2 + $0x140] sm:$0xff]
        %v1188 = vld [vmem:[#allocation2 + $0x148] sm:$0xff]
        %v1189 = vld [vmem:[#allocation2 + $0x150] sm:$0xff]
        %v1190 = vld [vmem:[#allocation2 + $0x158] sm:$0xff]
        %v1191 = vld [vmem:[#allocation2 + $0x160] sm:$0xff]
        %v1192 = vld [vmem:[#allocation2 + $0x168] sm:$0xff]
        %v1193 = vld [vmem:[#allocation2 + $0x170] sm:$0xff]
        %v1194 = vld [vmem:[#allocation2 + $0x178] sm:$0xff]
        %v1195 = vld [vmem:[#allocation2 + $0x180] sm:$0xff]
        %v1196 = vld [vmem:[#allocation2 + $0x188] sm:$0xff]
        %v1197 = vld [vmem:[#allocation2 + $0x190] sm:$0xff]
        %v1198 = vld [vmem:[#allocation2 + $0x198] sm:$0xff]
        %v1199 = vld [vmem:[#allocation2 + $0x1a0] sm:$0xff]
        %v1200 = vld [vmem:[#allocation2 + $0x1a8] sm:$0xff]
        %v1201 = vld [vmem:[#allocation2 + $0x1b0] sm:$0xff]
        %v1202 = vld [vmem:[#allocation2 + $0x9] sm:$0xff]
        %v1203 = vld [vmem:[#allocation2 + $0x11] sm:$0xff]
        %v1204 = vld [vmem:[#allocation2 + $0x19] sm:$0xff]
        %v1205 = vld [vmem:[#allocation2 + $0x21] sm:$0xff]
        %v1206 = vld [vmem:[#allocation2 + $0x29] sm:$0xff]
        %v1207 = vld [vmem:[#allocation2 + $0x31] sm:$0xff]
        %v1208 = vld [vmem:[#allocation2 + $0x39] sm:$0xff]
        %v1209 = vld [vmem:[#allocation2 + $0x41] sm:$0xff]
        %v1210 = vld [vmem:[#allocation2 + $0x49] sm:$0xff]
        %v1211 = vld [vmem:[#allocation2 + $0x51] sm:$0xff]
        %v1212 = vld [vmem:[#allocation2 + $0x59] sm:$0xff]
        %v1213 = vld [vmem:[#allocation2 + $0x61] sm:$0xff]
        %v1214 = vld [vmem:[#allocation2 + $0x69] sm:$0xff]
        %v1215 = vld [vmem:[#allocation2 + $0x71] sm:$0xff]
        %v1216 = vld [vmem:[#allocation2 + $0x79] sm:$0xff]
        %v1217 = vld [vmem:[#allocation2 + $0x81] sm:$0xff]
        %v1218 = vld [vmem:[#allocation2 + $0x89] sm:$0xff]
        %v1219 = vld [vmem:[#allocation2 + $0x91] sm:$0xff]
        %v1220 = vld [vmem:[#allocation2 + $0x99] sm:$0xff]
        %v1221 = vld [vmem:[#allocation2 + $0xa1] sm:$0xff]
        %v1222 = vld [vmem:[#allocation2 + $0xa9] sm:$0xff]
        %v1223 = vld [vmem:[#allocation2 + $0xb1] sm:$0xff]
        %v1224 = vld [vmem:[#allocation2 + $0xb9] sm:$0xff]
        %v1225 = vld [vmem:[#allocation2 + $0xc1] sm:$0xff]
        %v1226 = vld [vmem:[#allocation2 + $0xc9] sm:$0xff]
        %v1227 = vld [vmem:[#allocation2 + $0xd1] sm:$0xff]
        %v1228 = vld [vmem:[#allocation2 + $0xd9] sm:$0xff]
        %v1229 = vld [vmem:[#allocation2 + $0xe1] sm:$0xff]
        %v1230 = vld [vmem:[#allocation2 + $0xe9] sm:$0xff]
        %v1231 = vld [vmem:[#allocation2 + $0xf1] sm:$0xff]
        %v1232 = vld [vmem:[#allocation2 + $0xf9] sm:$0xff]
        %v1233 = vld [vmem:[#allocation2 + $0x101] sm:$0xff]
        %v1234 = vld [vmem:[#allocation2 + $0x109] sm:$0xff]
        %v1235 = vld [vmem:[#allocation2 + $0x111] sm:$0xff]
        %v1236 = vld [vmem:[#allocation2 + $0x119] sm:$0xff]
        %v1237 = vld [vmem:[#allocation2 + $0x121] sm:$0xff]
        %v1238 = vld [vmem:[#allocation2 + $0x129] sm:$0xff]
        %v1239 = vld [vmem:[#allocation2 + $0x131] sm:$0xff]
        %v1240 = vld [vmem:[#allocation2 + $0x139] sm:$0xff]
        %v1241 = vld [vmem:[#allocation2 + $0x141] sm:$0xff]
        %v1242 = vld [vmem:[#allocation2 + $0x149] sm:$0xff]
        %v1243 = vld [vmem:[#allocation2 + $0x151] sm:$0xff]
        %v1244 = vld [vmem:[#allocation2 + $0x159] sm:$0xff]
        %v1245 = vld [vmem:[#allocation2 + $0x161] sm:$0xff]
        %v1246 = vld [vmem:[#allocation2 + $0x169] sm:$0xff]
        %v1247 = vld [vmem:[#allocation2 + $0x171] sm:$0xff]
        %v1248 = vld [vmem:[#allocation2 + $0x179] sm:$0xff]
        %v1249 = vld [vmem:[#allocation2 + $0x181] sm:$0xff]
        %v1250 = vld [vmem:[#allocation2 + $0x189] sm:$0xff]
        %v1251 = vld [vmem:[#allocation2 + $0x191] sm:$0xff]
        %v1252 = vld [vmem:[#allocation2 + $0x199] sm:$0xff]
        %v1253 = vld [vmem:[#allocation2 + $0x1a1] sm:$0xff]
        %v1254 = vld [vmem:[#allocation2 + $0x1a9] sm:$0xff]
        %v1255 = vld [vmem:[#allocation2 + $0x1b1] sm:$0xff]
        %v1256 = vpack.c.bf16 %v1095, %v1094
        %v1257 = vpack.c.bf16 %v1149, %v1148
        %v1258 = vpack.c.bf16 %v1203, %v1202
        %v1259 = vpack.c.bf16 %v1097, %v1096
        %v1260 = vpack.c.bf16 %v1151, %v1150
        %v1261 = vpack.c.bf16 %v1205, %v1204
        %v1262 = vpack.c.bf16 %v1099, %v1098
        %v1263 = vpack.c.bf16 %v1153, %v1152
        %v1264 = vpack.c.bf16 %v1207, %v1206
        %v1265 = vpack.c.bf16 %v1101, %v1100
        %v1266 = vpack.c.bf16 %v1155, %v1154
        %v1267 = vpack.c.bf16 %v1209, %v1208
        %v1268 = vpack.c.bf16 %v1103, %v1102
        %v1269 = vpack.c.bf16 %v1157, %v1156
        %v1270 = vpack.c.bf16 %v1211, %v1210
        %v1271 = vpack.c.bf16 %v1105, %v1104
        %v1272 = vpack.c.bf16 %v1159, %v1158
        %v1273 = vpack.c.bf16 %v1213, %v1212
        %v1274 = vpack.c.bf16 %v1107, %v1106
        %v1275 = vpack.c.bf16 %v1161, %v1160
        %v1276 = vpack.c.bf16 %v1215, %v1214
        %v1277 = vpack.c.bf16 %v1109, %v1108
        %v1278 = vpack.c.bf16 %v1163, %v1162
        %v1279 = vpack.c.bf16 %v1217, %v1216
        %v1280 = vpack.c.bf16 %v1111, %v1110
        %v1281 = vpack.c.bf16 %v1165, %v1164
        %v1282 = vpack.c.bf16 %v1219, %v1218
        %v1283 = vpack.c.bf16 %v1113, %v1112
        %v1284 = vpack.c.bf16 %v1167, %v1166
        %v1285 = vpack.c.bf16 %v1221, %v1220
        %v1286 = vpack.c.bf16 %v1115, %v1114
        %v1287 = vpack.c.bf16 %v1169, %v1168
        %v1288 = vpack.c.bf16 %v1223, %v1222
        %v1289 = vpack.c.bf16 %v1117, %v1116
        %v1290 = vpack.c.bf16 %v1171, %v1170
        %v1291 = vpack.c.bf16 %v1225, %v1224
        %v1292 = vpack.c.bf16 %v1119, %v1118
        %v1293 = vpack.c.bf16 %v1173, %v1172
        %v1294 = vpack.c.bf16 %v1227, %v1226
        %v1295 = vpack.c.bf16 %v1121, %v1120
        %v1296 = vpack.c.bf16 %v1175, %v1174
        %v1297 = vpack.c.bf16 %v1229, %v1228
        %v1298 = vpack.c.bf16 %v1123, %v1122
        %v1299 = vpack.c.bf16 %v1177, %v1176
        %v1300 = vpack.c.bf16 %v1231, %v1230
        %v1301 = vpack.c.bf16 %v1125, %v1124
        %v1302 = vpack.c.bf16 %v1179, %v1178
        %v1303 = vpack.c.bf16 %v1233, %v1232
        %v1304 = vpack.c.bf16 %v1127, %v1126
        %v1305 = vpack.c.bf16 %v1181, %v1180
        %v1306 = vpack.c.bf16 %v1235, %v1234
        %v1307 = vpack.c.bf16 %v1129, %v1128
        %v1308 = vpack.c.bf16 %v1183, %v1182
        %v1309 = vpack.c.bf16 %v1237, %v1236
        %v1310 = vpack.c.bf16 %v1131, %v1130
        %v1311 = vpack.c.bf16 %v1185, %v1184
        %v1312 = vpack.c.bf16 %v1239, %v1238
        %v1313 = vpack.c.bf16 %v1133, %v1132
        %v1314 = vpack.c.bf16 %v1187, %v1186
        %v1315 = vpack.c.bf16 %v1241, %v1240
        %v1316 = vpack.c.bf16 %v1135, %v1134
        %v1317 = vpack.c.bf16 %v1189, %v1188
        %v1318 = vpack.c.bf16 %v1243, %v1242
        %v1319 = vpack.c.bf16 %v1137, %v1136
        %v1320 = vpack.c.bf16 %v1191, %v1190
        %v1321 = vpack.c.bf16 %v1245, %v1244
        %v1322 = vpack.c.bf16 %v1139, %v1138
        %v1323 = vpack.c.bf16 %v1193, %v1192
        %v1324 = vpack.c.bf16 %v1247, %v1246
        %v1325 = vpack.c.bf16 %v1141, %v1140
        %v1326 = vpack.c.bf16 %v1195, %v1194
        %v1327 = vpack.c.bf16 %v1249, %v1248
        %v1328 = vpack.c.bf16 %v1143, %v1142
        %v1329 = vpack.c.bf16 %v1197, %v1196
        %v1330 = vpack.c.bf16 %v1251, %v1250
        %v1331 = vpack.c.bf16 %v1145, %v1144
        %v1332 = vpack.c.bf16 %v1199, %v1198
        %v1333 = vpack.c.bf16 %v1253, %v1252
        %v1334 = vpack.c.bf16 %v1147, %v1146
        %v1335 = vpack.c.bf16 %v1201, %v1200
        %v1336 = vpack.c.bf16 %v1255, %v1254
        %v1337 = vld [vmem:[#allocation11] sm:$0xf]
        %v1338 = vld [vmem:[#allocation11 + $0x4] sm:$0xf]
        %v1339 = vld [vmem:[#allocation11 + $0x8] sm:$0xf]
        %v1340 = vld [vmem:[#allocation11 + $0xc] sm:$0xf]
        %v1341 = vld [vmem:[#allocation11 + $0x10] sm:$0xf]
        %v1342 = vld [vmem:[#allocation11 + $0x14] sm:$0xf]
        %v1343 = vld [vmem:[#allocation11 + $0x18] sm:$0xf]
        %v1344 = vld [vmem:[#allocation11 + $0x1c] sm:$0xf]
        %v1345 = vld [vmem:[#allocation11 + $0x20] sm:$0xf]
        %v1346 = vld [vmem:[#allocation11 + $0x24] sm:$0xf]
        %v1347 = vld [vmem:[#allocation11 + $0x28] sm:$0xf]
        %v1348 = vld [vmem:[#allocation11 + $0x2c] sm:$0xf]
        %v1349 = vld [vmem:[#allocation11 + $0x30] sm:$0xf]
        %v1350 = vld [vmem:[#allocation11 + $0x34] sm:$0xf]
        %v1351 = vld [vmem:[#allocation11 + $0x38] sm:$0xf]
        %v1352 = vld [vmem:[#allocation11 + $0x3c] sm:$0xf]
        %v1353 = vld [vmem:[#allocation11 + $0x40] sm:$0xf]
        %v1354 = vld [vmem:[#allocation11 + $0x44] sm:$0xf]
        %v1355 = vld [vmem:[#allocation11 + $0x48] sm:$0xf]
        %v1356 = vld [vmem:[#allocation11 + $0x4c] sm:$0xf]
        %v1357 = vld [vmem:[#allocation11 + $0x50] sm:$0xf]
        %v1358 = vld [vmem:[#allocation11 + $0x54] sm:$0xf]
        %v1359 = vld [vmem:[#allocation11 + $0x58] sm:$0xf]
        %v1360 = vld [vmem:[#allocation11 + $0x5c] sm:$0xf]
        %v1361 = vld [vmem:[#allocation11 + $0x60] sm:$0xf]
        %v1362 = vld [vmem:[#allocation11 + $0x64] sm:$0xf]
        %v1363 = vld [vmem:[#allocation11 + $0x68] sm:$0xf]
        %v1364 = vld [vmem:[#allocation11 + $0x6c] sm:$0xf]
        %v1365 = vld [vmem:[#allocation11 + $0x70] sm:$0xf]
        %v1366 = vld [vmem:[#allocation11 + $0x74] sm:$0xf]
        %v1367 = vld [vmem:[#allocation11 + $0x78] sm:$0xf]
        %v1368 = vld [vmem:[#allocation11 + $0x7c] sm:$0xf]
        %v1369 = vld [vmem:[#allocation11 + $0x80] sm:$0xf]
        %v1370 = vld [vmem:[#allocation11 + $0x84] sm:$0xf]
        %v1371 = vld [vmem:[#allocation11 + $0x88] sm:$0xf]
        %v1372 = vld [vmem:[#allocation11 + $0x8c] sm:$0xf]
        %v1373 = vld [vmem:[#allocation11 + $0x90] sm:$0xf]
        %v1374 = vld [vmem:[#allocation11 + $0x94] sm:$0xf]
        %v1375 = vld [vmem:[#allocation11 + $0x98] sm:$0xf]
        %v1376 = vld [vmem:[#allocation11 + $0x9c] sm:$0xf]
        %v1377 = vld [vmem:[#allocation11 + $0xa0] sm:$0xf]
        %v1378 = vld [vmem:[#allocation11 + $0xa4] sm:$0xf]
        %v1379 = vld [vmem:[#allocation11 + $0xa8] sm:$0xf]
        %v1380 = vld [vmem:[#allocation11 + $0xac] sm:$0xf]
        %v1381 = vld [vmem:[#allocation11 + $0xb0] sm:$0xf]
        %v1382 = vld [vmem:[#allocation11 + $0xb4] sm:$0xf]
        %v1383 = vld [vmem:[#allocation11 + $0xb8] sm:$0xf]
        %v1384 = vld [vmem:[#allocation11 + $0xbc] sm:$0xf]
        %v1385 = vld [vmem:[#allocation2 + $0x1b7] sm:$0xff]
        %v1386 = vld [vmem:[#allocation2 + $0x1bf] sm:$0xff]
        %v1387 = vld [vmem:[#allocation2 + $0x1c7] sm:$0xff]
        %v1388 = vld [vmem:[#allocation2 + $0x1b8] sm:$0xff]
        %v1389 = vld [vmem:[#allocation2 + $0x1c0] sm:$0xff]
        %v1390 = vld [vmem:[#allocation2 + $0x1c8] sm:$0xff]
        %v1391 = vld [vmem:[#allocation2 + $0x1b9] sm:$0xff]
        %v1392 = vld [vmem:[#allocation2 + $0x1c1] sm:$0xff]
        %v1393 = vld [vmem:[#allocation2 + $0x1c9] sm:$0xff]
        %v1394 = vpack.c.bf16 %v1098, %v1097
        %v1395 = vpack.c.bf16 %v1152, %v1151
        %v1396 = vpack.c.bf16 %v1206, %v1205
        %v1397 = vpack.c.bf16 %v1100, %v1099
        %v1398 = vpack.c.bf16 %v1154, %v1153
        %v1399 = vpack.c.bf16 %v1208, %v1207
        %v1400 = vpack.c.bf16 %v1102, %v1101
        %v1401 = vpack.c.bf16 %v1156, %v1155
        %v1402 = vpack.c.bf16 %v1210, %v1209
        %v1403 = vpack.c.bf16 %v1104, %v1103
        %v1404 = vpack.c.bf16 %v1158, %v1157
        %v1405 = vpack.c.bf16 %v1212, %v1211
        %v1406 = vpack.c.bf16 %v1106, %v1105
        %v1407 = vpack.c.bf16 %v1160, %v1159
        %v1408 = vpack.c.bf16 %v1214, %v1213
        %v1409 = vpack.c.bf16 %v1108, %v1107
        %v1410 = vpack.c.bf16 %v1162, %v1161
        %v1411 = vpack.c.bf16 %v1216, %v1215
        %v1412 = vpack.c.bf16 %v1110, %v1109
        %v1413 = vpack.c.bf16 %v1164, %v1163
        %v1414 = vpack.c.bf16 %v1218, %v1217
        %v1415 = vpack.c.bf16 %v1112, %v1111
        %v1416 = vpack.c.bf16 %v1166, %v1165
        %v1417 = vpack.c.bf16 %v1220, %v1219
        %v1418 = vpack.c.bf16 %v1114, %v1113
        %v1419 = vpack.c.bf16 %v1168, %v1167
        %v1420 = vpack.c.bf16 %v1222, %v1221
        %v1421 = vpack.c.bf16 %v1116, %v1115
        %v1422 = vpack.c.bf16 %v1170, %v1169
        %v1423 = vpack.c.bf16 %v1224, %v1223
        %v1424 = vpack.c.bf16 %v1118, %v1117
        %v1425 = vpack.c.bf16 %v1172, %v1171
        %v1426 = vpack.c.bf16 %v1226, %v1225
        %v1427 = vpack.c.bf16 %v1120, %v1119
        %v1428 = vpack.c.bf16 %v1174, %v1173
        %v1429 = vpack.c.bf16 %v1228, %v1227
        %v1430 = vpack.c.bf16 %v1122, %v1121
        %v1431 = vpack.c.bf16 %v1176, %v1175
        %v1432 = vpack.c.bf16 %v1230, %v1229
        %v1433 = vpack.c.bf16 %v1124, %v1123
        %v1434 = vpack.c.bf16 %v1178, %v1177
        %v1435 = vpack.c.bf16 %v1232, %v1231
        %v1436 = vpack.c.bf16 %v1126, %v1125
        %v1437 = vpack.c.bf16 %v1180, %v1179
        %v1438 = vpack.c.bf16 %v1234, %v1233
        %v1439 = vpack.c.bf16 %v1128, %v1127
        %v1440 = vpack.c.bf16 %v1182, %v1181
        %v1441 = vpack.c.bf16 %v1236, %v1235
        %v1442 = vpack.c.bf16 %v1130, %v1129
        %v1443 = vpack.c.bf16 %v1184, %v1183
        %v1444 = vpack.c.bf16 %v1238, %v1237
        %v1445 = vpack.c.bf16 %v1132, %v1131
        %v1446 = vpack.c.bf16 %v1186, %v1185
        %v1447 = vpack.c.bf16 %v1240, %v1239
        %v1448 = vpack.c.bf16 %v1134, %v1133
        %v1449 = vpack.c.bf16 %v1188, %v1187
        %v1450 = vpack.c.bf16 %v1242, %v1241
        %v1451 = vpack.c.bf16 %v1136, %v1135
        %v1452 = vpack.c.bf16 %v1190, %v1189
        %v1453 = vpack.c.bf16 %v1244, %v1243
        %v1454 = vpack.c.bf16 %v1138, %v1137
        %v1455 = vpack.c.bf16 %v1192, %v1191
        %v1456 = vpack.c.bf16 %v1246, %v1245
        %v1457 = vpack.c.bf16 %v1140, %v1139
        %v1458 = vpack.c.bf16 %v1194, %v1193
        %v1459 = vpack.c.bf16 %v1248, %v1247
        %v1460 = vpack.c.bf16 %v1142, %v1141
        %v1461 = vpack.c.bf16 %v1196, %v1195
        %v1462 = vpack.c.bf16 %v1250, %v1249
        %v1463 = vpack.c.bf16 %v1144, %v1143
        %v1464 = vpack.c.bf16 %v1198, %v1197
        %v1465 = vpack.c.bf16 %v1252, %v1251
        %v1466 = vpack.c.bf16 %v1146, %v1145
        %v1467 = vpack.c.bf16 %v1200, %v1199
        %v1468 = vpack.c.bf16 %v1254, %v1253
        %v1469 = vpack.c.bf16 %v1385, %v1147
        %v1470 = vpack.c.bf16 %v1388, %v1201
        %v1471 = vpack.c.bf16 %v1391, %v1255
        %v1472 = vpack.c.bf16 %v1387, %v1386
        %v1473 = vpack.c.bf16 %v1390, %v1389
        %v1474 = vpack.c.bf16 %v1393, %v1392
        %s1475 = scalar_lea.vmem [#allocation11], 192
        %v1476 = vld [vmem:[%s1475] sm:$0xf]
        %v1477 = vld [vmem:[%s1475 + $0x4] sm:$0xf]
        %v1478 = vld [vmem:[%s1475 + $0x8] sm:$0xf]
        %v1479 = vld [vmem:[%s1475 + $0xc] sm:$0xf]
        %v1480 = vld [vmem:[%s1475 + $0x10] sm:$0xf]
        %v1481 = vld [vmem:[%s1475 + $0x14] sm:$0xf]
        %v1482 = vld [vmem:[%s1475 + $0x18] sm:$0xf]
        %v1483 = vld [vmem:[%s1475 + $0x1c] sm:$0xf]
        %v1484 = vld [vmem:[%s1475 + $0x20] sm:$0xf]
        %v1485 = vld [vmem:[%s1475 + $0x24] sm:$0xf]
        %v1486 = vld [vmem:[%s1475 + $0x28] sm:$0xf]
        %v1487 = vld [vmem:[%s1475 + $0x2c] sm:$0xf]
        %v1488 = vld [vmem:[%s1475 + $0x30] sm:$0xf]
        %v1489 = vld [vmem:[%s1475 + $0x34] sm:$0xf]
        %v1490 = vld [vmem:[%s1475 + $0x38] sm:$0xf]
        %v1491 = vld [vmem:[%s1475 + $0x3c] sm:$0xf]
        %v1492 = vld [vmem:[%s1475 + $0x40] sm:$0xf]
        %v1493 = vld [vmem:[%s1475 + $0x44] sm:$0xf]
        %v1494 = vld [vmem:[%s1475 + $0x48] sm:$0xf]
        %v1495 = vld [vmem:[%s1475 + $0x4c] sm:$0xf]
        %v1496 = vld [vmem:[%s1475 + $0x50] sm:$0xf]
        %v1497 = vld [vmem:[%s1475 + $0x54] sm:$0xf]
        %v1498 = vld [vmem:[%s1475 + $0x58] sm:$0xf]
        %v1499 = vld [vmem:[%s1475 + $0x5c] sm:$0xf]
        %v1500 = vld [vmem:[%s1475 + $0x60] sm:$0xf]
        %v1501 = vld [vmem:[%s1475 + $0x64] sm:$0xf]
        %v1502 = vld [vmem:[%s1475 + $0x68] sm:$0xf]
        %v1503 = vld [vmem:[%s1475 + $0x6c] sm:$0xf]
        %v1504 = vld [vmem:[%s1475 + $0x70] sm:$0xf]
        %v1505 = vld [vmem:[%s1475 + $0x74] sm:$0xf]
        %v1506 = vld [vmem:[%s1475 + $0x78] sm:$0xf]
        %v1507 = vld [vmem:[%s1475 + $0x7c] sm:$0xf]
        %v1508 = vld [vmem:[%s1475 + $0x80] sm:$0xf]
        %v1509 = vld [vmem:[%s1475 + $0x84] sm:$0xf]
        %v1510 = vld [vmem:[%s1475 + $0x88] sm:$0xf]
        %v1511 = vld [vmem:[%s1475 + $0x8c] sm:$0xf]
        %v1512 = vld [vmem:[%s1475 + $0x90] sm:$0xf]
        %v1513 = vld [vmem:[%s1475 + $0x94] sm:$0xf]
        %v1514 = vld [vmem:[%s1475 + $0x98] sm:$0xf]
        %v1515 = vld [vmem:[%s1475 + $0x9c] sm:$0xf]
        %v1516 = vld [vmem:[%s1475 + $0xa0] sm:$0xf]
        %v1517 = vld [vmem:[%s1475 + $0xa4] sm:$0xf]
        %v1518 = vld [vmem:[%s1475 + $0xa8] sm:$0xf]
        %v1519 = vld [vmem:[%s1475 + $0xac] sm:$0xf]
        %v1520 = vld [vmem:[%s1475 + $0xb0] sm:$0xf]
        %v1521 = vld [vmem:[%s1475 + $0xb4] sm:$0xf]
        %v1522 = vld [vmem:[%s1475 + $0xb8] sm:$0xf]
        %v1523 = vld [vmem:[%s1475 + $0xbc] sm:$0xf]
        %v1572 = vunpack.c.l.b16 %v1476
        %v1573 = vunpack.c.l.b16 %v1477
        %v1574 = vunpack.c.l.b16 %v1478
        %v1575 = vunpack.c.l.b16 %v1479
        %v1576 = vunpack.c.l.b16 %v1480
        %v1577 = vunpack.c.l.b16 %v1481
        %v1578 = vunpack.c.l.b16 %v1482
        %v1579 = vunpack.c.l.b16 %v1483
        %v1580 = vunpack.c.l.b16 %v1484
        %v1581 = vunpack.c.l.b16 %v1485
        %v1582 = vunpack.c.l.b16 %v1486
        %v1583 = vunpack.c.l.b16 %v1487
        %v1584 = vunpack.c.l.b16 %v1488
        %v1585 = vunpack.c.l.b16 %v1489
        %v1586 = vunpack.c.l.b16 %v1490
        %v1587 = vunpack.c.l.b16 %v1491
        %v1588 = vunpack.c.l.b16 %v1492
        %v1589 = vunpack.c.l.b16 %v1493
        %v1590 = vunpack.c.l.b16 %v1494
        %v1591 = vunpack.c.l.b16 %v1495
        %v1592 = vunpack.c.l.b16 %v1496
        %v1593 = vunpack.c.l.b16 %v1497
        %v1594 = vunpack.c.l.b16 %v1498
        %v1595 = vunpack.c.l.b16 %v1499
        %v1596 = vunpack.c.l.b16 %v1500
        %v1597 = vunpack.c.l.b16 %v1501
        %v1598 = vunpack.c.l.b16 %v1502
        %v1599 = vunpack.c.l.b16 %v1503
        %v1600 = vunpack.c.l.b16 %v1504
        %v1601 = vunpack.c.l.b16 %v1505
        %v1602 = vunpack.c.l.b16 %v1506
        %v1603 = vunpack.c.l.b16 %v1507
        %v1604 = vunpack.c.l.b16 %v1508
        %v1605 = vunpack.c.l.b16 %v1509
        %v1606 = vunpack.c.l.b16 %v1510
        %v1607 = vunpack.c.l.b16 %v1511
        %v1608 = vunpack.c.l.b16 %v1512
        %v1609 = vunpack.c.l.b16 %v1513
        %v1610 = vunpack.c.l.b16 %v1514
        %v1611 = vunpack.c.l.b16 %v1515
        %v1612 = vunpack.c.l.b16 %v1516
        %v1613 = vunpack.c.l.b16 %v1517
        %v1614 = vunpack.c.l.b16 %v1518
        %v1615 = vunpack.c.l.b16 %v1519
        %v1616 = vunpack.c.l.b16 %v1520
        %v1617 = vunpack.c.l.b16 %v1521
        %v1618 = vunpack.c.l.b16 %v1522
        %v1619 = vunpack.c.l.b16 %v1523
        %v1620 = vpack.c.b16 %v1573, %v1572
        %v1621 = vpack.c.b16 %v1575, %v1574
        %v1622 = vpack.c.b16 %v1577, %v1576
        %v1623 = vpack.c.b16 %v1579, %v1578
        %v1624 = vpack.c.b16 %v1581, %v1580
        %v1625 = vpack.c.b16 %v1583, %v1582
        %v1626 = vpack.c.b16 %v1585, %v1584
        %v1627 = vpack.c.b16 %v1587, %v1586
        %v1628 = vpack.c.b16 %v1589, %v1588
        %v1629 = vpack.c.b16 %v1591, %v1590
        %v1630 = vpack.c.b16 %v1593, %v1592
        %v1631 = vpack.c.b16 %v1595, %v1594
        %v1632 = vpack.c.b16 %v1597, %v1596
        %v1633 = vpack.c.b16 %v1599, %v1598
        %v1634 = vpack.c.b16 %v1601, %v1600
        %v1635 = vpack.c.b16 %v1603, %v1602
        %v1636 = vpack.c.b16 %v1605, %v1604
        %v1637 = vpack.c.b16 %v1607, %v1606
        %v1638 = vpack.c.b16 %v1609, %v1608
        %v1639 = vpack.c.b16 %v1611, %v1610
        %v1640 = vpack.c.b16 %v1613, %v1612
        %v1641 = vpack.c.b16 %v1615, %v1614
        %v1642 = vpack.c.b16 %v1617, %v1616
        %v1643 = vpack.c.b16 %v1619, %v1618
        %1668 = vmatprep.subr.bf16.mxu0 0
        %1669 = vmatpush1.bf16.msra.mxu0 %v1620
        %1670 = vmatprep.subr.bf16.mxu0 0
        %1671 = vmatpush1.bf16.msra.mxu0 %v1621
        %1672 = vmatprep.subr.bf16.mxu0 0
        %1673 = vmatpush1.bf16.msra.mxu0 %v1622
        %1674 = vmatprep.subr.bf16.mxu0 0
        %1675 = vmatpush1.bf16.msra.mxu0 %v1623
        %1676 = vmatprep.subr.bf16.mxu0 0
        %1677 = vmatpush1.bf16.msra.mxu0 %v1624
        %1678 = vmatprep.subr.bf16.mxu0 0
        %1679 = vmatpush1.bf16.msra.mxu0 %v1625
        %1680 = vmatprep.subr.bf16.mxu0 0
        %1681 = vmatpush1.bf16.msra.mxu0 %v1626
        %1682 = vmatprep.subr.bf16.mxu0 0
        %1683 = vmatpush1.bf16.msra.mxu0 %v1627
        %1684 = vmatprep.subr.bf16.mxu0 0
        %1685 = vmatpush1.bf16.msra.mxu0 %v1628
        %1686 = vmatprep.subr.bf16.mxu0 0
        %1687 = vmatpush1.bf16.msra.mxu0 %v1629
        %1688 = vmatprep.subr.bf16.mxu0 0
        %1689 = vmatpush1.bf16.msra.mxu0 %v1630
        %1690 = vmatprep.subr.bf16.mxu0 0
        %1691 = vmatpush1.bf16.msra.mxu0 %v1631
        %1692 = vmatprep.subr.bf16.mxu0 0
        %1693 = vmatpush1.bf16.msra.mxu0 %v1632
        %1694 = vmatprep.subr.bf16.mxu0 0
        %1695 = vmatpush1.bf16.msra.mxu0 %v1633
        %1696 = vmatprep.subr.bf16.mxu0 0
        %1697 = vmatpush1.bf16.msra.mxu0 %v1634
        %1698 = vmatprep.subr.bf16.mxu0 0
        %1699 = vmatpush1.bf16.msra.mxu0 %v1635
        %1700 = vmatprep.mubr.bf16.mxu0 %v1395
        %1701 = vmatmul.mubr.bf16.gmra.mrb[0].mxu0 %v1394
        %v1702 = vpop.f32.mrb[0].mxu0
        %v1703 = vadd.f32 0.0, %v1702
        %v1704 = vpop.f32.mrb[0].mxu0
        %v1705 = vpop.f32.mrb[0].mxu0
        %v1706 = vadd.f32 0.0, %v1705
        %v1707 = vpop.f32.mrb[0].mxu0
        %1708 = vmatprep.mubr.bf16.mxu0 %v1398
        %1709 = vmatmul.mubr.bf16.gmra.mrb[0].mxu0 %v1397
        %v1710 = vpop.f32.mrb[0].mxu0
        %v1711 = vadd.f32 0.0, %v1710
        %v1712 = vpop.f32.mrb[0].mxu0
        %v1713 = vpop.f32.mrb[0].mxu0
        %v1714 = vadd.f32 0.0, %v1713
        %v1715 = vpop.f32.mrb[0].mxu0
        %1716 = vmatprep.mubr.bf16.mxu0 %v1401
        %1717 = vmatmul.mubr.bf16.gmra.mrb[0].mxu0 %v1400
        %v1718 = vpop.f32.mrb[0].mxu0
        %v1719 = vadd.f32 0.0, %v1718
        %v1720 = vpop.f32.mrb[0].mxu0
        %v1721 = vpop.f32.mrb[0].mxu0
        %v1722 = vadd.f32 0.0, %v1721
        %v1723 = vpop.f32.mrb[0].mxu0
        %1724 = vmatprep.mubr.bf16.mxu0 %v1404
        %1725 = vmatmul.mubr.bf16.gmra.mrb[0].mxu0 %v1403
        %v1726 = vpop.f32.mrb[0].mxu0
        %v1727 = vadd.f32 0.0, %v1726
        %v1728 = vpop.f32.mrb[0].mxu0
        %v1729 = vpop.f32.mrb[0].mxu0
        %v1730 = vadd.f32 0.0, %v1729
        %v1731 = vpop.f32.mrb[0].mxu0
        %1732 = vmatprep.mubr.bf16.mxu0 %v1407
        %1733 = vmatmul.mubr.bf16.gmra.mrb[0].mxu0 %v1406
        %v1734 = vpop.f32.mrb[0].mxu0
        %v1735 = vadd.f32 0.0, %v1734
        %v1736 = vpop.f32.mrb[0].mxu0
        %v1737 = vpop.f32.mrb[0].mxu0
        %v1738 = vadd.f32 0.0, %v1737
        %v1739 = vpop.f32.mrb[0].mxu0
        %1740 = vmatprep.mubr.bf16.mxu0 %v1410
        %1741 = vmatmul.mubr.bf16.gmra.mrb[0].mxu0 %v1409
        %v1742 = vpop.f32.mrb[0].mxu0
        %v1743 = vadd.f32 0.0, %v1742
        %v1744 = vpop.f32.mrb[0].mxu0
        %v1745 = vpop.f32.mrb[0].mxu0
        %v1746 = vadd.f32 0.0, %v1745
        %v1747 = vpop.f32.mrb[0].mxu0
        %1748 = vmatprep.mubr.bf16.mxu0 %v1413
        %1749 = vmatmul.mubr.bf16.gmra.mrb[0].mxu0 %v1412
        %v1750 = vpop.f32.mrb[0].mxu0
        %v1751 = vadd.f32 0.0, %v1750
        %v1752 = vpop.f32.mrb[0].mxu0
        %v1753 = vpop.f32.mrb[0].mxu0
        %v1754 = vadd.f32 0.0, %v1753
        %v1755 = vpop.f32.mrb[0].mxu0
        %1756 = vmatprep.mubr.bf16.mxu0 %v1416
        %1757 = vmatmul.mubr.bf16.gmra.mrb[0].mxu0 %v1415
        %v1758 = vpop.f32.mrb[0].mxu0
        %v1759 = vadd.f32 0.0, %v1758
        %v1760 = vpop.f32.mrb[0].mxu0
        %v1761 = vpop.f32.mrb[0].mxu0
        %v1762 = vadd.f32 0.0, %v1761
        %v1763 = vpop.f32.mrb[0].mxu0
        %1764 = vmatprep.mubr.bf16.mxu0 %v1419
        %1765 = vmatmul.mubr.bf16.gmra.mrb[0].mxu0 %v1418
        %v1766 = vpop.f32.mrb[0].mxu0
        %v1767 = vadd.f32 0.0, %v1766
        %v1768 = vpop.f32.mrb[0].mxu0
        %v1769 = vpop.f32.mrb[0].mxu0
        %v1770 = vadd.f32 0.0, %v1769
        %v1771 = vpop.f32.mrb[0].mxu0
        %1772 = vmatprep.mubr.bf16.mxu0 %v1422
        %1773 = vmatmul.mubr.bf16.gmra.mrb[0].mxu0 %v1421
        %v1774 = vpop.f32.mrb[0].mxu0
        %v1775 = vadd.f32 0.0, %v1774
        %v1776 = vpop.f32.mrb[0].mxu0
        %v1777 = vpop.f32.mrb[0].mxu0
        %v1778 = vadd.f32 0.0, %v1777
        %v1779 = vpop.f32.mrb[0].mxu0
        %1780 = vmatprep.mubr.bf16.mxu0 %v1425
        %1781 = vmatmul.mubr.bf16.gmra.mrb[0].mxu0 %v1424
        %v1782 = vpop.f32.mrb[0].mxu0
        %v1783 = vadd.f32 0.0, %v1782
        %v1784 = vpop.f32.mrb[0].mxu0
        %v1785 = vpop.f32.mrb[0].mxu0
        %v1786 = vadd.f32 0.0, %v1785
        %v1787 = vpop.f32.mrb[0].mxu0
        %1788 = vmatprep.mubr.bf16.mxu0 %v1428
        %1789 = vmatmul.mubr.bf16.gmra.mrb[0].mxu0 %v1427
        %v1790 = vpop.f32.mrb[0].mxu0
        %v1791 = vadd.f32 0.0, %v1790
        %v1792 = vpop.f32.mrb[0].mxu0
        %v1793 = vpop.f32.mrb[0].mxu0
        %v1794 = vadd.f32 0.0, %v1793
        %v1795 = vpop.f32.mrb[0].mxu0
        %1796 = vmatprep.mubr.bf16.mxu0 %v1431
        %1797 = vmatmul.mubr.bf16.gmra.mrb[0].mxu0 %v1430
        %v1798 = vpop.f32.mrb[0].mxu0
        %v1799 = vadd.f32 0.0, %v1798
        %v1800 = vpop.f32.mrb[0].mxu0
        %v1801 = vpop.f32.mrb[0].mxu0
        %v1802 = vadd.f32 0.0, %v1801
        %v1803 = vpop.f32.mrb[0].mxu0
        %1804 = vmatprep.mubr.bf16.mxu0 %v1434
        %1805 = vmatmul.mubr.bf16.gmra.mrb[0].mxu0 %v1433
        %v1806 = vpop.f32.mrb[0].mxu0
        %v1807 = vadd.f32 0.0, %v1806
        %v1808 = vpop.f32.mrb[0].mxu0
        %v1809 = vpop.f32.mrb[0].mxu0
        %v1810 = vadd.f32 0.0, %v1809
        %v1811 = vpop.f32.mrb[0].mxu0
        %1812 = vmatprep.mubr.bf16.mxu0 %v1437
        %1813 = vmatmul.mubr.bf16.gmra.mrb[0].mxu0 %v1436
        %v1814 = vpop.f32.mrb[0].mxu0
        %v1815 = vadd.f32 0.0, %v1814
        %v1816 = vpop.f32.mrb[0].mxu0
        %v1817 = vpop.f32.mrb[0].mxu0
        %v1818 = vadd.f32 0.0, %v1817
        %v1819 = vpop.f32.mrb[0].mxu0
        %1820 = vmatprep.mubr.bf16.mxu0 %v1440
        %1821 = vmatmul.mubr.bf16.gmra.mrb[0].mxu0 %v1439
        %v1822 = vpop.f32.mrb[0].mxu0
        %v1823 = vadd.f32 0.0, %v1822
        %v1824 = vpop.f32.mrb[0].mxu0
        %v1825 = vpop.f32.mrb[0].mxu0
        %v1826 = vadd.f32 0.0, %v1825
        %v1827 = vpop.f32.mrb[0].mxu0
        %1828 = vmatprep.mubr.bf16.mxu0 %v1443
        %1829 = vmatmul.mubr.bf16.gmra.mrb[0].mxu0 %v1442
        %v1830 = vpop.f32.mrb[0].mxu0
        %v1831 = vadd.f32 0.0, %v1830
        %v1832 = vpop.f32.mrb[0].mxu0
        %v1833 = vpop.f32.mrb[0].mxu0
        %v1834 = vadd.f32 0.0, %v1833
        %v1835 = vpop.f32.mrb[0].mxu0
        %1836 = vmatprep.mubr.bf16.mxu0 %v1446
        %1837 = vmatmul.mubr.bf16.gmra.mrb[0].mxu0 %v1445
        %v1838 = vpop.f32.mrb[0].mxu0
        %v1839 = vadd.f32 0.0, %v1838
        %v1840 = vpop.f32.mrb[0].mxu0
        %v1841 = vpop.f32.mrb[0].mxu0
        %v1842 = vadd.f32 0.0, %v1841
        %v1843 = vpop.f32.mrb[0].mxu0
        %1844 = vmatprep.mubr.bf16.mxu0 %v1449
        %1845 = vmatmul.mubr.bf16.gmra.mrb[0].mxu0 %v1448
        %v1846 = vpop.f32.mrb[0].mxu0
        %v1847 = vadd.f32 0.0, %v1846
        %v1848 = vpop.f32.mrb[0].mxu0
        %v1849 = vpop.f32.mrb[0].mxu0
        %v1850 = vadd.f32 0.0, %v1849
        %v1851 = vpop.f32.mrb[0].mxu0
        %1852 = vmatprep.mubr.bf16.mxu0 %v1452
        %1853 = vmatmul.mubr.bf16.gmra.mrb[0].mxu0 %v1451
        %v1854 = vpop.f32.mrb[0].mxu0
        %v1855 = vadd.f32 0.0, %v1854
        %v1856 = vpop.f32.mrb[0].mxu0
        %v1857 = vpop.f32.mrb[0].mxu0
        %v1858 = vadd.f32 0.0, %v1857
        %v1859 = vpop.f32.mrb[0].mxu0
        %1860 = vmatprep.mubr.bf16.mxu0 %v1455
        %1861 = vmatmul.mubr.bf16.gmra.mrb[0].mxu0 %v1454
        %v1862 = vpop.f32.mrb[0].mxu0
        %v1863 = vadd.f32 0.0, %v1862
        %v1864 = vpop.f32.mrb[0].mxu0
        %v1865 = vpop.f32.mrb[0].mxu0
        %v1866 = vadd.f32 0.0, %v1865
        %v1867 = vpop.f32.mrb[0].mxu0
        %1868 = vmatprep.mubr.bf16.mxu0 %v1458
        %1869 = vmatmul.mubr.bf16.gmra.mrb[0].mxu0 %v1457
        %v1870 = vpop.f32.mrb[0].mxu0
        %v1871 = vadd.f32 0.0, %v1870
        %v1872 = vpop.f32.mrb[0].mxu0
        %v1873 = vpop.f32.mrb[0].mxu0
        %v1874 = vadd.f32 0.0, %v1873
        %v1875 = vpop.f32.mrb[0].mxu0
        %1876 = vmatprep.mubr.bf16.mxu0 %v1461
        %1877 = vmatmul.mubr.bf16.gmra.mrb[0].mxu0 %v1460
        %v1878 = vpop.f32.mrb[0].mxu0
        %v1879 = vadd.f32 0.0, %v1878
        %v1880 = vpop.f32.mrb[0].mxu0
        %v1881 = vpop.f32.mrb[0].mxu0
        %v1882 = vadd.f32 0.0, %v1881
        %v1883 = vpop.f32.mrb[0].mxu0
        %1884 = vmatprep.mubr.bf16.mxu0 %v1464
        %1885 = vmatmul.mubr.bf16.gmra.mrb[0].mxu0 %v1463
        %v1886 = vpop.f32.mrb[0].mxu0
        %v1887 = vadd.f32 0.0, %v1886
        %v1888 = vpop.f32.mrb[0].mxu0
        %v1889 = vpop.f32.mrb[0].mxu0
        %v1890 = vadd.f32 0.0, %v1889
        %v1891 = vpop.f32.mrb[0].mxu0
        %1892 = vmatprep.mubr.bf16.mxu0 %v1467
        %1893 = vmatmul.mubr.bf16.gmra.mrb[0].mxu0 %v1466
        %v1894 = vpop.f32.mrb[0].mxu0
        %v1895 = vadd.f32 0.0, %v1894
        %v1896 = vpop.f32.mrb[0].mxu0
        %v1897 = vpop.f32.mrb[0].mxu0
        %v1898 = vadd.f32 0.0, %v1897
        %v1899 = vpop.f32.mrb[0].mxu0
        %1900 = vmatprep.mubr.bf16.mxu0 %v1470
        %1901 = vmatmul.mubr.bf16.gmra.mrb[0].mxu0 %v1469
        %v1902 = vpop.f32.mrb[0].mxu0
        %v1903 = vadd.f32 0.0, %v1902
        %v1904 = vpop.f32.mrb[0].mxu0
        %v1905 = vpop.f32.mrb[0].mxu0
        %v1906 = vadd.f32 0.0, %v1905
        %v1907 = vpop.f32.mrb[0].mxu0
        %1908 = vmatprep.mubr.bf16.mxu0 %v1473
        %1909 = vmatmul.mubr.bf16.gmra.mrb[0].mxu0 %v1472
        %v1910 = vpop.f32.mrb[0].mxu0
        %v1911 = vadd.f32 0.0, %v1910
        %v1912 = vpop.f32.mrb[0].mxu0
        %v1913 = vpop.f32.mrb[0].mxu0
        %v1914 = vadd.f32 0.0, %v1913
        %v1915 = vpop.f32.mrb[0].mxu0
        %1916 = vdwg.mxu0
        %1917 = vmatprep.subr.bf16.mxu0 0
        %1918 = vmatpush1.bf16.msra.mxu0 %v1636
        %1919 = vmatprep.subr.bf16.mxu0 0
        %1920 = vmatpush1.bf16.msra.mxu0 %v1637
        %1921 = vmatprep.subr.bf16.mxu0 0
        %1922 = vmatpush1.bf16.msra.mxu0 %v1638
        %1923 = vmatprep.subr.bf16.mxu0 0
        %1924 = vmatpush1.bf16.msra.mxu0 %v1639
        %1925 = vmatprep.subr.bf16.mxu0 0
        %1926 = vmatpush1.bf16.msra.mxu0 %v1640
        %1927 = vmatprep.subr.bf16.mxu0 0
        %1928 = vmatpush1.bf16.msra.mxu0 %v1641
        %1929 = vmatprep.subr.bf16.mxu0 0
        %1930 = vmatpush1.bf16.msra.mxu0 %v1642
        %1931 = vmatprep.subr.bf16.mxu0 0
        %1932 = vmatpush1.bf16.msra.mxu0 %v1643
        %1933 = vmatprep.subr.bf16.mxu0 0
        %1934 = vmatpush1.bf16.msra.mxu0 0
        %1935 = vmatprep.subr.bf16.mxu0 0
        %1936 = vmatpush1.bf16.msra.mxu0 0
        %1937 = vmatprep.subr.bf16.mxu0 0
        %1938 = vmatpush1.bf16.msra.mxu0 0
        %1939 = vmatprep.subr.bf16.mxu0 0
        %1940 = vmatpush1.bf16.msra.mxu0 0
        %1941 = vmatprep.subr.bf16.mxu0 0
        %1942 = vmatpush1.bf16.msra.mxu0 0
        %1943 = vmatprep.subr.bf16.mxu0 0
        %1944 = vmatpush1.bf16.msra.mxu0 0
        %1945 = vmatprep.subr.bf16.mxu0 0
        %1946 = vmatpush1.bf16.msra.mxu0 0
        %1947 = vmatprep.subr.bf16.mxu0 0
        %1948 = vmatpush1.bf16.msra.mxu0 0
        %1949 = vmatprep.mubr.bf16.mxu0 0
        %1950 = vmatmul.mubr.bf16.gmra.mrb[0].mxu0 %v1396
        %v1951 = vpop.f32.mrb[0].mxu0
        %v1952 = vadd.f32 %v1703, %v1951
        %v1953 = vpop.f32.mrb[0].mxu0
        %v1954 = vpop.f32.mrb[0].mxu0
        %v1955 = vadd.f32 %v1706, %v1954
        %v1956 = vpop.f32.mrb[0].mxu0
        %1957 = vmatprep.mubr.bf16.mxu0 0
        %1958 = vmatmul.mubr.bf16.gmra.mrb[0].mxu0 %v1399
        %v1959 = vpop.f32.mrb[0].mxu0
        %v1960 = vadd.f32 %v1711, %v1959
        %v1961 = vpop.f32.mrb[0].mxu0
        %v1962 = vpop.f32.mrb[0].mxu0
        %v1963 = vadd.f32 %v1714, %v1962
        %v1964 = vpop.f32.mrb[0].mxu0
        %1965 = vmatprep.mubr.bf16.mxu0 0
        %1966 = vmatmul.mubr.bf16.gmra.mrb[0].mxu0 %v1402
        %v1967 = vpop.f32.mrb[0].mxu0
        %v1968 = vadd.f32 %v1719, %v1967
        %v1969 = vpop.f32.mrb[0].mxu0
        %v1970 = vpop.f32.mrb[0].mxu0
        %v1971 = vadd.f32 %v1722, %v1970
        %v1972 = vpop.f32.mrb[0].mxu0
        %1973 = vmatprep.mubr.bf16.mxu0 0
        %1974 = vmatmul.mubr.bf16.gmra.mrb[0].mxu0 %v1405
        %v1975 = vpop.f32.mrb[0].mxu0
        %v1976 = vadd.f32 %v1727, %v1975
        %v1977 = vpop.f32.mrb[0].mxu0
        %v1978 = vpop.f32.mrb[0].mxu0
        %v1979 = vadd.f32 %v1730, %v1978
        %v1980 = vpop.f32.mrb[0].mxu0
        %1981 = vmatprep.mubr.bf16.mxu0 0
        %1982 = vmatmul.mubr.bf16.gmra.mrb[0].mxu0 %v1408
        %v1983 = vpop.f32.mrb[0].mxu0
        %v1984 = vadd.f32 %v1735, %v1983
        %v1985 = vpop.f32.mrb[0].mxu0
        %v1986 = vpop.f32.mrb[0].mxu0
        %v1987 = vadd.f32 %v1738, %v1986
        %v1988 = vpop.f32.mrb[0].mxu0
        %1989 = vmatprep.mubr.bf16.mxu0 0
        %1990 = vmatmul.mubr.bf16.gmra.mrb[0].mxu0 %v1411
        %v1991 = vpop.f32.mrb[0].mxu0
        %v1992 = vadd.f32 %v1743, %v1991
        %v1993 = vpop.f32.mrb[0].mxu0
        %v1994 = vpop.f32.mrb[0].mxu0
        %v1995 = vadd.f32 %v1746, %v1994
        %v1996 = vpop.f32.mrb[0].mxu0
        %1997 = vmatprep.mubr.bf16.mxu0 0
        %1998 = vmatmul.mubr.bf16.gmra.mrb[0].mxu0 %v1414
        %v1999 = vpop.f32.mrb[0].mxu0
        %v2000 = vadd.f32 %v1751, %v1999
        %v2001 = vpop.f32.mrb[0].mxu0
        %v2002 = vpop.f32.mrb[0].mxu0
        %v2003 = vadd.f32 %v1754, %v2002
        %v2004 = vpop.f32.mrb[0].mxu0
        %2005 = vmatprep.mubr.bf16.mxu0 0
        %2006 = vmatmul.mubr.bf16.gmra.mrb[0].mxu0 %v1417
        %v2007 = vpop.f32.mrb[0].mxu0
        %v2008 = vadd.f32 %v1759, %v2007
        %v2009 = vpop.f32.mrb[0].mxu0
        %v2010 = vpop.f32.mrb[0].mxu0
        %v2011 = vadd.f32 %v1762, %v2010
        %v2012 = vpop.f32.mrb[0].mxu0
        %2013 = vmatprep.mubr.bf16.mxu0 0
        %2014 = vmatmul.mubr.bf16.gmra.mrb[0].mxu0 %v1420
        %v2015 = vpop.f32.mrb[0].mxu0
        %v2016 = vadd.f32 %v1767, %v2015
        %v2017 = vpop.f32.mrb[0].mxu0
        %v2018 = vpop.f32.mrb[0].mxu0
        %v2019 = vadd.f32 %v1770, %v2018
        %v2020 = vpop.f32.mrb[0].mxu0
        %2021 = vmatprep.mubr.bf16.mxu0 0
        %2022 = vmatmul.mubr.bf16.gmra.mrb[0].mxu0 %v1423
        %v2023 = vpop.f32.mrb[0].mxu0
        %v2024 = vadd.f32 %v1775, %v2023
        %v2025 = vpop.f32.mrb[0].mxu0
        %v2026 = vpop.f32.mrb[0].mxu0
        %v2027 = vadd.f32 %v1778, %v2026
        %v2028 = vpop.f32.mrb[0].mxu0
        %2029 = vmatprep.mubr.bf16.mxu0 0
        %2030 = vmatmul.mubr.bf16.gmra.mrb[0].mxu0 %v1426
        %v2031 = vpop.f32.mrb[0].mxu0
        %v2032 = vadd.f32 %v1783, %v2031
        %v2033 = vpop.f32.mrb[0].mxu0
        %v2034 = vpop.f32.mrb[0].mxu0
        %v2035 = vadd.f32 %v1786, %v2034
        %v2036 = vpop.f32.mrb[0].mxu0
        %2037 = vmatprep.mubr.bf16.mxu0 0
        %2038 = vmatmul.mubr.bf16.gmra.mrb[0].mxu0 %v1429
        %v2039 = vpop.f32.mrb[0].mxu0
        %v2040 = vadd.f32 %v1791, %v2039
        %v2041 = vpop.f32.mrb[0].mxu0
        %v2042 = vpop.f32.mrb[0].mxu0
        %v2043 = vadd.f32 %v1794, %v2042
        %v2044 = vpop.f32.mrb[0].mxu0
        %2045 = vmatprep.mubr.bf16.mxu0 0
        %2046 = vmatmul.mubr.bf16.gmra.mrb[0].mxu0 %v1432
        %v2047 = vpop.f32.mrb[0].mxu0
        %v2048 = vadd.f32 %v1799, %v2047
        %v2049 = vpop.f32.mrb[0].mxu0
        %v2050 = vpop.f32.mrb[0].mxu0
        %v2051 = vadd.f32 %v1802, %v2050
        %v2052 = vpop.f32.mrb[0].mxu0
        %2053 = vmatprep.mubr.bf16.mxu0 0
        %2054 = vmatmul.mubr.bf16.gmra.mrb[0].mxu0 %v1435
        %v2055 = vpop.f32.mrb[0].mxu0
        %v2056 = vadd.f32 %v1807, %v2055
        %v2057 = vpop.f32.mrb[0].mxu0
        %v2058 = vpop.f32.mrb[0].mxu0
        %v2059 = vadd.f32 %v1810, %v2058
        %v2060 = vpop.f32.mrb[0].mxu0
        %2061 = vmatprep.mubr.bf16.mxu0 0
        %2062 = vmatmul.mubr.bf16.gmra.mrb[0].mxu0 %v1438
        %v2063 = vpop.f32.mrb[0].mxu0
        %v2064 = vadd.f32 %v1815, %v2063
        %v2065 = vpop.f32.mrb[0].mxu0
        %v2066 = vpop.f32.mrb[0].mxu0
        %v2067 = vadd.f32 %v1818, %v2066
        %v2068 = vpop.f32.mrb[0].mxu0
        %2069 = vmatprep.mubr.bf16.mxu0 0
        %2070 = vmatmul.mubr.bf16.gmra.mrb[0].mxu0 %v1441
        %v2071 = vpop.f32.mrb[0].mxu0
        %v2072 = vadd.f32 %v1823, %v2071
        %v2073 = vpop.f32.mrb[0].mxu0
        %v2074 = vpop.f32.mrb[0].mxu0
        %v2075 = vadd.f32 %v1826, %v2074
        %v2076 = vpop.f32.mrb[0].mxu0
        %2077 = vmatprep.mubr.bf16.mxu0 0
        %2078 = vmatmul.mubr.bf16.gmra.mrb[0].mxu0 %v1444
        %v2079 = vpop.f32.mrb[0].mxu0
        %v2080 = vadd.f32 %v1831, %v2079
        %v2081 = vpop.f32.mrb[0].mxu0
        %v2082 = vpop.f32.mrb[0].mxu0
        %v2083 = vadd.f32 %v1834, %v2082
        %v2084 = vpop.f32.mrb[0].mxu0
        %2085 = vmatprep.mubr.bf16.mxu0 0
        %2086 = vmatmul.mubr.bf16.gmra.mrb[0].mxu0 %v1447
        %v2087 = vpop.f32.mrb[0].mxu0
        %v2088 = vadd.f32 %v1839, %v2087
        %v2089 = vpop.f32.mrb[0].mxu0
        %v2090 = vpop.f32.mrb[0].mxu0
        %v2091 = vadd.f32 %v1842, %v2090
        %v2092 = vpop.f32.mrb[0].mxu0
        %2093 = vmatprep.mubr.bf16.mxu0 0
        %2094 = vmatmul.mubr.bf16.gmra.mrb[0].mxu0 %v1450
        %v2095 = vpop.f32.mrb[0].mxu0
        %v2096 = vadd.f32 %v1847, %v2095
        %v2097 = vpop.f32.mrb[0].mxu0
        %v2098 = vpop.f32.mrb[0].mxu0
        %v2099 = vadd.f32 %v1850, %v2098
        %v2100 = vpop.f32.mrb[0].mxu0
        %2101 = vmatprep.mubr.bf16.mxu0 0
        %2102 = vmatmul.mubr.bf16.gmra.mrb[0].mxu0 %v1453
        %v2103 = vpop.f32.mrb[0].mxu0
        %v2104 = vadd.f32 %v1855, %v2103
        %v2105 = vpop.f32.mrb[0].mxu0
        %v2106 = vpop.f32.mrb[0].mxu0
        %v2107 = vadd.f32 %v1858, %v2106
        %v2108 = vpop.f32.mrb[0].mxu0
        %2109 = vmatprep.mubr.bf16.mxu0 0
        %2110 = vmatmul.mubr.bf16.gmra.mrb[0].mxu0 %v1456
        %v2111 = vpop.f32.mrb[0].mxu0
        %v2112 = vadd.f32 %v1863, %v2111
        %v2113 = vpop.f32.mrb[0].mxu0
        %v2114 = vpop.f32.mrb[0].mxu0
        %v2115 = vadd.f32 %v1866, %v2114
        %v2116 = vpop.f32.mrb[0].mxu0
        %2117 = vmatprep.mubr.bf16.mxu0 0
        %2118 = vmatmul.mubr.bf16.gmra.mrb[0].mxu0 %v1459
        %v2119 = vpop.f32.mrb[0].mxu0
        %v2120 = vadd.f32 %v1871, %v2119
        %v2121 = vpop.f32.mrb[0].mxu0
        %v2122 = vpop.f32.mrb[0].mxu0
        %v2123 = vadd.f32 %v1874, %v2122
        %v2124 = vpop.f32.mrb[0].mxu0
        %2125 = vmatprep.mubr.bf16.mxu0 0
        %2126 = vmatmul.mubr.bf16.gmra.mrb[0].mxu0 %v1462
        %v2127 = vpop.f32.mrb[0].mxu0
        %v2128 = vadd.f32 %v1879, %v2127
        %v2129 = vpop.f32.mrb[0].mxu0
        %v2130 = vpop.f32.mrb[0].mxu0
        %v2131 = vadd.f32 %v1882, %v2130
        %v2132 = vpop.f32.mrb[0].mxu0
        %2133 = vmatprep.mubr.bf16.mxu0 0
        %2134 = vmatmul.mubr.bf16.gmra.mrb[0].mxu0 %v1465
        %v2135 = vpop.f32.mrb[0].mxu0
        %v2136 = vadd.f32 %v1887, %v2135
        %v2137 = vpop.f32.mrb[0].mxu0
        %v2138 = vpop.f32.mrb[0].mxu0
        %v2139 = vadd.f32 %v1890, %v2138
        %v2140 = vpop.f32.mrb[0].mxu0
        %2141 = vmatprep.mubr.bf16.mxu0 0
        %2142 = vmatmul.mubr.bf16.gmra.mrb[0].mxu0 %v1468
        %v2143 = vpop.f32.mrb[0].mxu0
        %v2144 = vadd.f32 %v1895, %v2143
        %v2145 = vpop.f32.mrb[0].mxu0
        %v2146 = vpop.f32.mrb[0].mxu0
        %v2147 = vadd.f32 %v1898, %v2146
        %v2148 = vpop.f32.mrb[0].mxu0
        %2149 = vmatprep.mubr.bf16.mxu0 0
        %2150 = vmatmul.mubr.bf16.gmra.mrb[0].mxu0 %v1471
        %v2151 = vpop.f32.mrb[0].mxu0
        %v2152 = vadd.f32 %v1903, %v2151
        %v2153 = vpop.f32.mrb[0].mxu0
        %v2154 = vpop.f32.mrb[0].mxu0
        %v2155 = vadd.f32 %v1906, %v2154
        %v2156 = vpop.f32.mrb[0].mxu0
        %2157 = vmatprep.mubr.bf16.mxu0 0
        %2158 = vmatmul.mubr.bf16.gmra.mrb[0].mxu0 %v1474
        %v2159 = vpop.f32.mrb[0].mxu0
        %v2160 = vadd.f32 %v1911, %v2159
        %v2161 = vpop.f32.mrb[0].mxu0
        %v2162 = vpop.f32.mrb[0].mxu0
        %v2163 = vadd.f32 %v1914, %v2162
        %v2164 = vpop.f32.mrb[0].mxu0
        %2165 = vdwg.mxu0
        %v2214 = vunpack.c.l.b16 %v1337
        %v2215 = vunpack.c.l.b16 %v1338
        %v2216 = vunpack.c.l.b16 %v1339
        %v2217 = vunpack.c.l.b16 %v1340
        %v2218 = vunpack.c.l.b16 %v1341
        %v2219 = vunpack.c.l.b16 %v1342
        %v2220 = vunpack.c.l.b16 %v1343
        %v2221 = vunpack.c.l.b16 %v1344
        %v2222 = vunpack.c.l.b16 %v1345
        %v2223 = vunpack.c.l.b16 %v1346
        %v2224 = vunpack.c.l.b16 %v1347
        %v2225 = vunpack.c.l.b16 %v1348
        %v2226 = vunpack.c.l.b16 %v1349
        %v2227 = vunpack.c.l.b16 %v1350
        %v2228 = vunpack.c.l.b16 %v1351
        %v2229 = vunpack.c.l.b16 %v1352
        %v2230 = vunpack.c.l.b16 %v1353
        %v2231 = vunpack.c.l.b16 %v1354
        %v2232 = vunpack.c.l.b16 %v1355
        %v2233 = vunpack.c.l.b16 %v1356
        %v2234 = vunpack.c.l.b16 %v1357
        %v2235 = vunpack.c.l.b16 %v1358
        %v2236 = vunpack.c.l.b16 %v1359
        %v2237 = vunpack.c.l.b16 %v1360
        %v2238 = vunpack.c.l.b16 %v1361
        %v2239 = vunpack.c.l.b16 %v1362
        %v2240 = vunpack.c.l.b16 %v1363
        %v2241 = vunpack.c.l.b16 %v1364
        %v2242 = vunpack.c.l.b16 %v1365
        %v2243 = vunpack.c.l.b16 %v1366
        %v2244 = vunpack.c.l.b16 %v1367
        %v2245 = vunpack.c.l.b16 %v1368
        %v2246 = vunpack.c.l.b16 %v1369
        %v2247 = vunpack.c.l.b16 %v1370
        %v2248 = vunpack.c.l.b16 %v1371
        %v2249 = vunpack.c.l.b16 %v1372
        %v2250 = vunpack.c.l.b16 %v1373
        %v2251 = vunpack.c.l.b16 %v1374
        %v2252 = vunpack.c.l.b16 %v1375
        %v2253 = vunpack.c.l.b16 %v1376
        %v2254 = vunpack.c.l.b16 %v1377
        %v2255 = vunpack.c.l.b16 %v1378
        %v2256 = vunpack.c.l.b16 %v1379
        %v2257 = vunpack.c.l.b16 %v1380
        %v2258 = vunpack.c.l.b16 %v1381
        %v2259 = vunpack.c.l.b16 %v1382
        %v2260 = vunpack.c.l.b16 %v1383
        %v2261 = vunpack.c.l.b16 %v1384
        %v2262 = vpack.c.b16 %v2215, %v2214
        %v2263 = vpack.c.b16 %v2217, %v2216
        %v2264 = vpack.c.b16 %v2219, %v2218
        %v2265 = vpack.c.b16 %v2221, %v2220
        %v2266 = vpack.c.b16 %v2223, %v2222
        %v2267 = vpack.c.b16 %v2225, %v2224
        %v2268 = vpack.c.b16 %v2227, %v2226
        %v2269 = vpack.c.b16 %v2229, %v2228
        %v2270 = vpack.c.b16 %v2231, %v2230
        %v2271 = vpack.c.b16 %v2233, %v2232
        %v2272 = vpack.c.b16 %v2235, %v2234
        %v2273 = vpack.c.b16 %v2237, %v2236
        %v2274 = vpack.c.b16 %v2239, %v2238
        %v2275 = vpack.c.b16 %v2241, %v2240
        %v2276 = vpack.c.b16 %v2243, %v2242
        %v2277 = vpack.c.b16 %v2245, %v2244
        %v2278 = vpack.c.b16 %v2247, %v2246
        %v2279 = vpack.c.b16 %v2249, %v2248
        %v2280 = vpack.c.b16 %v2251, %v2250
        %v2281 = vpack.c.b16 %v2253, %v2252
        %v2282 = vpack.c.b16 %v2255, %v2254
        %v2283 = vpack.c.b16 %v2257, %v2256
        %v2284 = vpack.c.b16 %v2259, %v2258
        %v2285 = vpack.c.b16 %v2261, %v2260
        %2310 = vmatprep.subr.bf16.mxu0 0
        %2311 = vmatpush1.bf16.msra.mxu0 %v2262
        %2312 = vmatprep.subr.bf16.mxu0 0
        %2313 = vmatpush1.bf16.msra.mxu0 %v2263
        %2314 = vmatprep.subr.bf16.mxu0 0
        %2315 = vmatpush1.bf16.msra.mxu0 %v2264
        %2316 = vmatprep.subr.bf16.mxu0 0
        %2317 = vmatpush1.bf16.msra.mxu0 %v2265
        %2318 = vmatprep.subr.bf16.mxu0 0
        %2319 = vmatpush1.bf16.msra.mxu0 %v2266
        %2320 = vmatprep.subr.bf16.mxu0 0
        %2321 = vmatpush1.bf16.msra.mxu0 %v2267
        %2322 = vmatprep.subr.bf16.mxu0 0
        %2323 = vmatpush1.bf16.msra.mxu0 %v2268
        %2324 = vmatprep.subr.bf16.mxu0 0
        %2325 = vmatpush1.bf16.msra.mxu0 %v2269
        %2326 = vmatprep.subr.bf16.mxu0 0
        %2327 = vmatpush1.bf16.msra.mxu0 %v2270
        %2328 = vmatprep.subr.bf16.mxu0 0
        %2329 = vmatpush1.bf16.msra.mxu0 %v2271
        %2330 = vmatprep.subr.bf16.mxu0 0
        %2331 = vmatpush1.bf16.msra.mxu0 %v2272
        %2332 = vmatprep.subr.bf16.mxu0 0
        %2333 = vmatpush1.bf16.msra.mxu0 %v2273
        %2334 = vmatprep.subr.bf16.mxu0 0
        %2335 = vmatpush1.bf16.msra.mxu0 %v2274
        %2336 = vmatprep.subr.bf16.mxu0 0
        %2337 = vmatpush1.bf16.msra.mxu0 %v2275
        %2338 = vmatprep.subr.bf16.mxu0 0
        %2339 = vmatpush1.bf16.msra.mxu0 %v2276
        %2340 = vmatprep.subr.bf16.mxu0 0
        %2341 = vmatpush1.bf16.msra.mxu0 %v2277
        %2342 = vmatprep.mubr.bf16.mxu0 %v1257
        %2343 = vmatmul.mubr.bf16.gmra.mrb[0].mxu0 %v1256
        %v2344 = vpop.f32.mrb[0].mxu0
        %v2345 = vadd.f32 %v1952, %v2344
        %v2346 = vpop.f32.mrb[0].mxu0
        %v2347 = vpop.f32.mrb[0].mxu0
        %v2348 = vadd.f32 %v1955, %v2347
        %v2349 = vpop.f32.mrb[0].mxu0
        %2350 = vmatprep.mubr.bf16.mxu0 %v1260
        %2351 = vmatmul.mubr.bf16.gmra.mrb[0].mxu0 %v1259
        %v2352 = vpop.f32.mrb[0].mxu0
        %v2353 = vadd.f32 %v1960, %v2352
        %v2354 = vpop.f32.mrb[0].mxu0
        %v2355 = vpop.f32.mrb[0].mxu0
        %v2356 = vadd.f32 %v1963, %v2355
        %v2357 = vpop.f32.mrb[0].mxu0
        %2358 = vmatprep.mubr.bf16.mxu0 %v1263
        %2359 = vmatmul.mubr.bf16.gmra.mrb[0].mxu0 %v1262
        %v2360 = vpop.f32.mrb[0].mxu0
        %v2361 = vadd.f32 %v1968, %v2360
        %v2362 = vpop.f32.mrb[0].mxu0
        %v2363 = vpop.f32.mrb[0].mxu0
        %v2364 = vadd.f32 %v1971, %v2363
        %v2365 = vpop.f32.mrb[0].mxu0
        %2366 = vmatprep.mubr.bf16.mxu0 %v1266
        %2367 = vmatmul.mubr.bf16.gmra.mrb[0].mxu0 %v1265
        %v2368 = vpop.f32.mrb[0].mxu0
        %v2369 = vadd.f32 %v1976, %v2368
        %v2370 = vpop.f32.mrb[0].mxu0
        %v2371 = vpop.f32.mrb[0].mxu0
        %v2372 = vadd.f32 %v1979, %v2371
        %v2373 = vpop.f32.mrb[0].mxu0
        %2374 = vmatprep.mubr.bf16.mxu0 %v1269
        %2375 = vmatmul.mubr.bf16.gmra.mrb[0].mxu0 %v1268
        %v2376 = vpop.f32.mrb[0].mxu0
        %v2377 = vadd.f32 %v1984, %v2376
        %v2378 = vpop.f32.mrb[0].mxu0
        %v2379 = vpop.f32.mrb[0].mxu0
        %v2380 = vadd.f32 %v1987, %v2379
        %v2381 = vpop.f32.mrb[0].mxu0
        %2382 = vmatprep.mubr.bf16.mxu0 %v1272
        %2383 = vmatmul.mubr.bf16.gmra.mrb[0].mxu0 %v1271
        %v2384 = vpop.f32.mrb[0].mxu0
        %v2385 = vadd.f32 %v1992, %v2384
        %v2386 = vpop.f32.mrb[0].mxu0
        %v2387 = vpop.f32.mrb[0].mxu0
        %v2388 = vadd.f32 %v1995, %v2387
        %v2389 = vpop.f32.mrb[0].mxu0
        %2390 = vmatprep.mubr.bf16.mxu0 %v1275
        %2391 = vmatmul.mubr.bf16.gmra.mrb[0].mxu0 %v1274
        %v2392 = vpop.f32.mrb[0].mxu0
        %v2393 = vadd.f32 %v2000, %v2392
        %v2394 = vpop.f32.mrb[0].mxu0
        %v2395 = vpop.f32.mrb[0].mxu0
        %v2396 = vadd.f32 %v2003, %v2395
        %v2397 = vpop.f32.mrb[0].mxu0
        %2398 = vmatprep.mubr.bf16.mxu0 %v1278
        %2399 = vmatmul.mubr.bf16.gmra.mrb[0].mxu0 %v1277
        %v2400 = vpop.f32.mrb[0].mxu0
        %v2401 = vadd.f32 %v2008, %v2400
        %v2402 = vpop.f32.mrb[0].mxu0
        %v2403 = vpop.f32.mrb[0].mxu0
        %v2404 = vadd.f32 %v2011, %v2403
        %v2405 = vpop.f32.mrb[0].mxu0
        %2406 = vmatprep.mubr.bf16.mxu0 %v1281
        %2407 = vmatmul.mubr.bf16.gmra.mrb[0].mxu0 %v1280
        %v2408 = vpop.f32.mrb[0].mxu0
        %v2409 = vadd.f32 %v2016, %v2408
        %v2410 = vpop.f32.mrb[0].mxu0
        %v2411 = vpop.f32.mrb[0].mxu0
        %v2412 = vadd.f32 %v2019, %v2411
        %v2413 = vpop.f32.mrb[0].mxu0
        %2414 = vmatprep.mubr.bf16.mxu0 %v1284
        %2415 = vmatmul.mubr.bf16.gmra.mrb[0].mxu0 %v1283
        %v2416 = vpop.f32.mrb[0].mxu0
        %v2417 = vadd.f32 %v2024, %v2416
        %v2418 = vpop.f32.mrb[0].mxu0
        %v2419 = vpop.f32.mrb[0].mxu0
        %v2420 = vadd.f32 %v2027, %v2419
        %v2421 = vpop.f32.mrb[0].mxu0
        %2422 = vmatprep.mubr.bf16.mxu0 %v1287
        %2423 = vmatmul.mubr.bf16.gmra.mrb[0].mxu0 %v1286
        %v2424 = vpop.f32.mrb[0].mxu0
        %v2425 = vadd.f32 %v2032, %v2424
        %v2426 = vpop.f32.mrb[0].mxu0
        %v2427 = vpop.f32.mrb[0].mxu0
        %v2428 = vadd.f32 %v2035, %v2427
        %v2429 = vpop.f32.mrb[0].mxu0
        %2430 = vmatprep.mubr.bf16.mxu0 %v1290
        %2431 = vmatmul.mubr.bf16.gmra.mrb[0].mxu0 %v1289
        %v2432 = vpop.f32.mrb[0].mxu0
        %v2433 = vadd.f32 %v2040, %v2432
        %v2434 = vpop.f32.mrb[0].mxu0
        %v2435 = vpop.f32.mrb[0].mxu0
        %v2436 = vadd.f32 %v2043, %v2435
        %v2437 = vpop.f32.mrb[0].mxu0
        %2438 = vmatprep.mubr.bf16.mxu0 %v1293
        %2439 = vmatmul.mubr.bf16.gmra.mrb[0].mxu0 %v1292
        %v2440 = vpop.f32.mrb[0].mxu0
        %v2441 = vadd.f32 %v2048, %v2440
        %v2442 = vpop.f32.mrb[0].mxu0
        %v2443 = vpop.f32.mrb[0].mxu0
        %v2444 = vadd.f32 %v2051, %v2443
        %v2445 = vpop.f32.mrb[0].mxu0
        %2446 = vmatprep.mubr.bf16.mxu0 %v1296
        %2447 = vmatmul.mubr.bf16.gmra.mrb[0].mxu0 %v1295
        %v2448 = vpop.f32.mrb[0].mxu0
        %v2449 = vadd.f32 %v2056, %v2448
        %v2450 = vpop.f32.mrb[0].mxu0
        %v2451 = vpop.f32.mrb[0].mxu0
        %v2452 = vadd.f32 %v2059, %v2451
        %v2453 = vpop.f32.mrb[0].mxu0
        %2454 = vmatprep.mubr.bf16.mxu0 %v1299
        %2455 = vmatmul.mubr.bf16.gmra.mrb[0].mxu0 %v1298
        %v2456 = vpop.f32.mrb[0].mxu0
        %v2457 = vadd.f32 %v2064, %v2456
        %v2458 = vpop.f32.mrb[0].mxu0
        %v2459 = vpop.f32.mrb[0].mxu0
        %v2460 = vadd.f32 %v2067, %v2459
        %v2461 = vpop.f32.mrb[0].mxu0
        %2462 = vmatprep.mubr.bf16.mxu0 %v1302
        %2463 = vmatmul.mubr.bf16.gmra.mrb[0].mxu0 %v1301
        %v2464 = vpop.f32.mrb[0].mxu0
        %v2465 = vadd.f32 %v2072, %v2464
        %v2466 = vpop.f32.mrb[0].mxu0
        %v2467 = vpop.f32.mrb[0].mxu0
        %v2468 = vadd.f32 %v2075, %v2467
        %v2469 = vpop.f32.mrb[0].mxu0
        %2470 = vmatprep.mubr.bf16.mxu0 %v1305
        %2471 = vmatmul.mubr.bf16.gmra.mrb[0].mxu0 %v1304
        %v2472 = vpop.f32.mrb[0].mxu0
        %v2473 = vadd.f32 %v2080, %v2472
        %v2474 = vpop.f32.mrb[0].mxu0
        %v2475 = vpop.f32.mrb[0].mxu0
        %v2476 = vadd.f32 %v2083, %v2475
        %v2477 = vpop.f32.mrb[0].mxu0
        %2478 = vmatprep.mubr.bf16.mxu0 %v1308
        %2479 = vmatmul.mubr.bf16.gmra.mrb[0].mxu0 %v1307
        %v2480 = vpop.f32.mrb[0].mxu0
        %v2481 = vadd.f32 %v2088, %v2480
        %v2482 = vpop.f32.mrb[0].mxu0
        %v2483 = vpop.f32.mrb[0].mxu0
        %v2484 = vadd.f32 %v2091, %v2483
        %v2485 = vpop.f32.mrb[0].mxu0
        %2486 = vmatprep.mubr.bf16.mxu0 %v1311
        %2487 = vmatmul.mubr.bf16.gmra.mrb[0].mxu0 %v1310
        %v2488 = vpop.f32.mrb[0].mxu0
        %v2489 = vadd.f32 %v2096, %v2488
        %v2490 = vpop.f32.mrb[0].mxu0
        %v2491 = vpop.f32.mrb[0].mxu0
        %v2492 = vadd.f32 %v2099, %v2491
        %v2493 = vpop.f32.mrb[0].mxu0
        %2494 = vmatprep.mubr.bf16.mxu0 %v1314
        %2495 = vmatmul.mubr.bf16.gmra.mrb[0].mxu0 %v1313
        %v2496 = vpop.f32.mrb[0].mxu0
        %v2497 = vadd.f32 %v2104, %v2496
        %v2498 = vpop.f32.mrb[0].mxu0
        %v2499 = vpop.f32.mrb[0].mxu0
        %v2500 = vadd.f32 %v2107, %v2499
        %v2501 = vpop.f32.mrb[0].mxu0
        %2502 = vmatprep.mubr.bf16.mxu0 %v1317
        %2503 = vmatmul.mubr.bf16.gmra.mrb[0].mxu0 %v1316
        %v2504 = vpop.f32.mrb[0].mxu0
        %v2505 = vadd.f32 %v2112, %v2504
        %v2506 = vpop.f32.mrb[0].mxu0
        %v2507 = vpop.f32.mrb[0].mxu0
        %v2508 = vadd.f32 %v2115, %v2507
        %v2509 = vpop.f32.mrb[0].mxu0
        %2510 = vmatprep.mubr.bf16.mxu0 %v1320
        %2511 = vmatmul.mubr.bf16.gmra.mrb[0].mxu0 %v1319
        %v2512 = vpop.f32.mrb[0].mxu0
        %v2513 = vadd.f32 %v2120, %v2512
        %v2514 = vpop.f32.mrb[0].mxu0
        %v2515 = vpop.f32.mrb[0].mxu0
        %v2516 = vadd.f32 %v2123, %v2515
        %v2517 = vpop.f32.mrb[0].mxu0
        %2518 = vmatprep.mubr.bf16.mxu0 %v1323
        %2519 = vmatmul.mubr.bf16.gmra.mrb[0].mxu0 %v1322
        %v2520 = vpop.f32.mrb[0].mxu0
        %v2521 = vadd.f32 %v2128, %v2520
        %v2522 = vpop.f32.mrb[0].mxu0
        %v2523 = vpop.f32.mrb[0].mxu0
        %v2524 = vadd.f32 %v2131, %v2523
        %v2525 = vpop.f32.mrb[0].mxu0
        %2526 = vmatprep.mubr.bf16.mxu0 %v1326
        %2527 = vmatmul.mubr.bf16.gmra.mrb[0].mxu0 %v1325
        %v2528 = vpop.f32.mrb[0].mxu0
        %v2529 = vadd.f32 %v2136, %v2528
        %v2530 = vpop.f32.mrb[0].mxu0
        %v2531 = vpop.f32.mrb[0].mxu0
        %v2532 = vadd.f32 %v2139, %v2531
        %v2533 = vpop.f32.mrb[0].mxu0
        %2534 = vmatprep.mubr.bf16.mxu0 %v1329
        %2535 = vmatmul.mubr.bf16.gmra.mrb[0].mxu0 %v1328
        %v2536 = vpop.f32.mrb[0].mxu0
        %v2537 = vadd.f32 %v2144, %v2536
        %v2538 = vpop.f32.mrb[0].mxu0
        %v2539 = vpop.f32.mrb[0].mxu0
        %v2540 = vadd.f32 %v2147, %v2539
        %v2541 = vpop.f32.mrb[0].mxu0
        %2542 = vmatprep.mubr.bf16.mxu0 %v1332
        %2543 = vmatmul.mubr.bf16.gmra.mrb[0].mxu0 %v1331
        %v2544 = vpop.f32.mrb[0].mxu0
        %v2545 = vadd.f32 %v2152, %v2544
        %v2546 = vpop.f32.mrb[0].mxu0
        %v2547 = vpop.f32.mrb[0].mxu0
        %v2548 = vadd.f32 %v2155, %v2547
        %v2549 = vpop.f32.mrb[0].mxu0
        %2550 = vmatprep.mubr.bf16.mxu0 %v1335
        %2551 = vmatmul.mubr.bf16.gmra.mrb[0].mxu0 %v1334
        %v2552 = vpop.f32.mrb[0].mxu0
        %v2553 = vadd.f32 %v2160, %v2552
        %v2554 = vpop.f32.mrb[0].mxu0
        %v2555 = vpop.f32.mrb[0].mxu0
        %v2556 = vadd.f32 %v2163, %v2555
        %v2557 = vpop.f32.mrb[0].mxu0
        %2558 = vdwg.mxu0
        %2559 = vmatprep.subr.bf16.mxu0 0
        %2560 = vmatpush1.bf16.msra.mxu0 %v2278
        %2561 = vmatprep.subr.bf16.mxu0 0
        %2562 = vmatpush1.bf16.msra.mxu0 %v2279
        %2563 = vmatprep.subr.bf16.mxu0 0
        %2564 = vmatpush1.bf16.msra.mxu0 %v2280
        %2565 = vmatprep.subr.bf16.mxu0 0
        %2566 = vmatpush1.bf16.msra.mxu0 %v2281
        %2567 = vmatprep.subr.bf16.mxu0 0
        %2568 = vmatpush1.bf16.msra.mxu0 %v2282
        %2569 = vmatprep.subr.bf16.mxu0 0
        %2570 = vmatpush1.bf16.msra.mxu0 %v2283
        %2571 = vmatprep.subr.bf16.mxu0 0
        %2572 = vmatpush1.bf16.msra.mxu0 %v2284
        %2573 = vmatprep.subr.bf16.mxu0 0
        %2574 = vmatpush1.bf16.msra.mxu0 %v2285
        %2575 = vmatprep.subr.bf16.mxu0 0
        %2576 = vmatpush1.bf16.msra.mxu0 0
        %2577 = vmatprep.subr.bf16.mxu0 0
        %2578 = vmatpush1.bf16.msra.mxu0 0
        %2579 = vmatprep.subr.bf16.mxu0 0
        %2580 = vmatpush1.bf16.msra.mxu0 0
        %2581 = vmatprep.subr.bf16.mxu0 0
        %2582 = vmatpush1.bf16.msra.mxu0 0
        %2583 = vmatprep.subr.bf16.mxu0 0
        %2584 = vmatpush1.bf16.msra.mxu0 0
        %2585 = vmatprep.subr.bf16.mxu0 0
        %2586 = vmatpush1.bf16.msra.mxu0 0
        %2587 = vmatprep.subr.bf16.mxu0 0
        %2588 = vmatpush1.bf16.msra.mxu0 0
        %2589 = vmatprep.subr.bf16.mxu0 0
        %2590 = vmatpush1.bf16.msra.mxu0 0
        %2591 = vmatprep.mubr.bf16.mxu0 0
        %2592 = vmatmul.mubr.bf16.gmra.mrb[0].mxu0 %v1258
        %v2593 = vpop.f32.mrb[0].mxu0
        %v2594 = vadd.f32 %v2345, %v2593
        %v2595 = vpop.f32.mrb[0].mxu0
        %v2596 = vpop.f32.mrb[0].mxu0
        %v2597 = vadd.f32 %v2348, %v2596
        %v2598 = vpop.f32.mrb[0].mxu0
        %2599 = vmatprep.mubr.bf16.mxu0 0
        %2600 = vmatmul.mubr.bf16.gmra.mrb[0].mxu0 %v1261
        %v2601 = vpop.f32.mrb[0].mxu0
        %v2602 = vadd.f32 %v2353, %v2601
        %v2603 = vpop.f32.mrb[0].mxu0
        %v2604 = vpop.f32.mrb[0].mxu0
        %v2605 = vadd.f32 %v2356, %v2604
        %v2606 = vpop.f32.mrb[0].mxu0
        %2607 = vmatprep.mubr.bf16.mxu0 0
        %2608 = vmatmul.mubr.bf16.gmra.mrb[0].mxu0 %v1264
        %v2609 = vpop.f32.mrb[0].mxu0
        %v2610 = vadd.f32 %v2361, %v2609
        %v2611 = vpop.f32.mrb[0].mxu0
        %v2612 = vpop.f32.mrb[0].mxu0
        %v2613 = vadd.f32 %v2364, %v2612
        %v2614 = vpop.f32.mrb[0].mxu0
        %2615 = vmatprep.mubr.bf16.mxu0 0
        %2616 = vmatmul.mubr.bf16.gmra.mrb[0].mxu0 %v1267
        %v2617 = vpop.f32.mrb[0].mxu0
        %v2618 = vadd.f32 %v2369, %v2617
        %v2619 = vpop.f32.mrb[0].mxu0
        %v2620 = vpop.f32.mrb[0].mxu0
        %v2621 = vadd.f32 %v2372, %v2620
        %v2622 = vpop.f32.mrb[0].mxu0
        %2623 = vmatprep.mubr.bf16.mxu0 0
        %2624 = vmatmul.mubr.bf16.gmra.mrb[0].mxu0 %v1270
        %v2625 = vpop.f32.mrb[0].mxu0
        %v2626 = vadd.f32 %v2377, %v2625
        %v2627 = vpop.f32.mrb[0].mxu0
        %v2628 = vpop.f32.mrb[0].mxu0
        %v2629 = vadd.f32 %v2380, %v2628
        %v2630 = vpop.f32.mrb[0].mxu0
        %2631 = vmatprep.mubr.bf16.mxu0 0
        %2632 = vmatmul.mubr.bf16.gmra.mrb[0].mxu0 %v1273
        %v2633 = vpop.f32.mrb[0].mxu0
        %v2634 = vadd.f32 %v2385, %v2633
        %v2635 = vpop.f32.mrb[0].mxu0
        %v2636 = vpop.f32.mrb[0].mxu0
        %v2637 = vadd.f32 %v2388, %v2636
        %v2638 = vpop.f32.mrb[0].mxu0
        %2639 = vmatprep.mubr.bf16.mxu0 0
        %2640 = vmatmul.mubr.bf16.gmra.mrb[0].mxu0 %v1276
        %v2641 = vpop.f32.mrb[0].mxu0
        %v2642 = vadd.f32 %v2393, %v2641
        %v2643 = vpop.f32.mrb[0].mxu0
        %v2644 = vpop.f32.mrb[0].mxu0
        %v2645 = vadd.f32 %v2396, %v2644
        %v2646 = vpop.f32.mrb[0].mxu0
        %2647 = vmatprep.mubr.bf16.mxu0 0
        %2648 = vmatmul.mubr.bf16.gmra.mrb[0].mxu0 %v1279
        %v2649 = vpop.f32.mrb[0].mxu0
        %v2650 = vadd.f32 %v2401, %v2649
        %v2651 = vpop.f32.mrb[0].mxu0
        %v2652 = vpop.f32.mrb[0].mxu0
        %v2653 = vadd.f32 %v2404, %v2652
        %v2654 = vpop.f32.mrb[0].mxu0
        %2655 = vmatprep.mubr.bf16.mxu0 0
        %2656 = vmatmul.mubr.bf16.gmra.mrb[0].mxu0 %v1282
        %v2657 = vpop.f32.mrb[0].mxu0
        %v2658 = vadd.f32 %v2409, %v2657
        %v2659 = vpop.f32.mrb[0].mxu0
        %v2660 = vpop.f32.mrb[0].mxu0
        %v2661 = vadd.f32 %v2412, %v2660
        %v2662 = vpop.f32.mrb[0].mxu0
        %2663 = vmatprep.mubr.bf16.mxu0 0
        %2664 = vmatmul.mubr.bf16.gmra.mrb[0].mxu0 %v1285
        %v2665 = vpop.f32.mrb[0].mxu0
        %v2666 = vadd.f32 %v2417, %v2665
        %v2667 = vpop.f32.mrb[0].mxu0
        %v2668 = vpop.f32.mrb[0].mxu0
        %v2669 = vadd.f32 %v2420, %v2668
        %v2670 = vpop.f32.mrb[0].mxu0
        %2671 = vmatprep.mubr.bf16.mxu0 0
        %2672 = vmatmul.mubr.bf16.gmra.mrb[0].mxu0 %v1288
        %v2673 = vpop.f32.mrb[0].mxu0
        %v2674 = vadd.f32 %v2425, %v2673
        %v2675 = vpop.f32.mrb[0].mxu0
        %v2676 = vpop.f32.mrb[0].mxu0
        %v2677 = vadd.f32 %v2428, %v2676
        %v2678 = vpop.f32.mrb[0].mxu0
        %2679 = vmatprep.mubr.bf16.mxu0 0
        %2680 = vmatmul.mubr.bf16.gmra.mrb[0].mxu0 %v1291
        %v2681 = vpop.f32.mrb[0].mxu0
        %v2682 = vadd.f32 %v2433, %v2681
        %v2683 = vpop.f32.mrb[0].mxu0
        %v2684 = vpop.f32.mrb[0].mxu0
        %v2685 = vadd.f32 %v2436, %v2684
        %v2686 = vpop.f32.mrb[0].mxu0
        %2687 = vmatprep.mubr.bf16.mxu0 0
        %2688 = vmatmul.mubr.bf16.gmra.mrb[0].mxu0 %v1294
        %v2689 = vpop.f32.mrb[0].mxu0
        %v2690 = vadd.f32 %v2441, %v2689
        %v2691 = vpop.f32.mrb[0].mxu0
        %v2692 = vpop.f32.mrb[0].mxu0
        %v2693 = vadd.f32 %v2444, %v2692
        %v2694 = vpop.f32.mrb[0].mxu0
        %2695 = vmatprep.mubr.bf16.mxu0 0
        %2696 = vmatmul.mubr.bf16.gmra.mrb[0].mxu0 %v1297
        %v2697 = vpop.f32.mrb[0].mxu0
        %v2698 = vadd.f32 %v2449, %v2697
        %v2699 = vpop.f32.mrb[0].mxu0
        %v2700 = vpop.f32.mrb[0].mxu0
        %v2701 = vadd.f32 %v2452, %v2700
        %v2702 = vpop.f32.mrb[0].mxu0
        %2703 = vmatprep.mubr.bf16.mxu0 0
        %2704 = vmatmul.mubr.bf16.gmra.mrb[0].mxu0 %v1300
        %v2705 = vpop.f32.mrb[0].mxu0
        %v2706 = vadd.f32 %v2457, %v2705
        %v2707 = vpop.f32.mrb[0].mxu0
        %v2708 = vpop.f32.mrb[0].mxu0
        %v2709 = vadd.f32 %v2460, %v2708
        %v2710 = vpop.f32.mrb[0].mxu0
        %2711 = vmatprep.mubr.bf16.mxu0 0
        %2712 = vmatmul.mubr.bf16.gmra.mrb[0].mxu0 %v1303
        %v2713 = vpop.f32.mrb[0].mxu0
        %v2714 = vadd.f32 %v2465, %v2713
        %v2715 = vpop.f32.mrb[0].mxu0
        %v2716 = vpop.f32.mrb[0].mxu0
        %v2717 = vadd.f32 %v2468, %v2716
        %v2718 = vpop.f32.mrb[0].mxu0
        %2719 = vmatprep.mubr.bf16.mxu0 0
        %2720 = vmatmul.mubr.bf16.gmra.mrb[0].mxu0 %v1306
        %v2721 = vpop.f32.mrb[0].mxu0
        %v2722 = vadd.f32 %v2473, %v2721
        %v2723 = vpop.f32.mrb[0].mxu0
        %v2724 = vpop.f32.mrb[0].mxu0
        %v2725 = vadd.f32 %v2476, %v2724
        %v2726 = vpop.f32.mrb[0].mxu0
        %2727 = vmatprep.mubr.bf16.mxu0 0
        %2728 = vmatmul.mubr.bf16.gmra.mrb[0].mxu0 %v1309
        %v2729 = vpop.f32.mrb[0].mxu0
        %v2730 = vadd.f32 %v2481, %v2729
        %v2731 = vpop.f32.mrb[0].mxu0
        %v2732 = vpop.f32.mrb[0].mxu0
        %v2733 = vadd.f32 %v2484, %v2732
        %v2734 = vpop.f32.mrb[0].mxu0
        %2735 = vmatprep.mubr.bf16.mxu0 0
        %2736 = vmatmul.mubr.bf16.gmra.mrb[0].mxu0 %v1312
        %v2737 = vpop.f32.mrb[0].mxu0
        %v2738 = vadd.f32 %v2489, %v2737
        %v2739 = vpop.f32.mrb[0].mxu0
        %v2740 = vpop.f32.mrb[0].mxu0
        %v2741 = vadd.f32 %v2492, %v2740
        %v2742 = vpop.f32.mrb[0].mxu0
        %2743 = vmatprep.mubr.bf16.mxu0 0
        %2744 = vmatmul.mubr.bf16.gmra.mrb[0].mxu0 %v1315
        %v2745 = vpop.f32.mrb[0].mxu0
        %v2746 = vadd.f32 %v2497, %v2745
        %v2747 = vpop.f32.mrb[0].mxu0
        %v2748 = vpop.f32.mrb[0].mxu0
        %v2749 = vadd.f32 %v2500, %v2748
        %v2750 = vpop.f32.mrb[0].mxu0
        %2751 = vmatprep.mubr.bf16.mxu0 0
        %2752 = vmatmul.mubr.bf16.gmra.mrb[0].mxu0 %v1318
        %v2753 = vpop.f32.mrb[0].mxu0
        %v2754 = vadd.f32 %v2505, %v2753
        %v2755 = vpop.f32.mrb[0].mxu0
        %v2756 = vpop.f32.mrb[0].mxu0
        %v2757 = vadd.f32 %v2508, %v2756
        %v2758 = vpop.f32.mrb[0].mxu0
        %2759 = vmatprep.mubr.bf16.mxu0 0
        %2760 = vmatmul.mubr.bf16.gmra.mrb[0].mxu0 %v1321
        %v2761 = vpop.f32.mrb[0].mxu0
        %v2762 = vadd.f32 %v2513, %v2761
        %v2763 = vpop.f32.mrb[0].mxu0
        %v2764 = vpop.f32.mrb[0].mxu0
        %v2765 = vadd.f32 %v2516, %v2764
        %v2766 = vpop.f32.mrb[0].mxu0
        %2767 = vmatprep.mubr.bf16.mxu0 0
        %2768 = vmatmul.mubr.bf16.gmra.mrb[0].mxu0 %v1324
        %v2769 = vpop.f32.mrb[0].mxu0
        %v2770 = vadd.f32 %v2521, %v2769
        %v2771 = vpop.f32.mrb[0].mxu0
        %v2772 = vpop.f32.mrb[0].mxu0
        %v2773 = vadd.f32 %v2524, %v2772
        %v2774 = vpop.f32.mrb[0].mxu0
        %2775 = vmatprep.mubr.bf16.mxu0 0
        %2776 = vmatmul.mubr.bf16.gmra.mrb[0].mxu0 %v1327
        %v2777 = vpop.f32.mrb[0].mxu0
        %v2778 = vadd.f32 %v2529, %v2777
        %v2779 = vpop.f32.mrb[0].mxu0
        %v2780 = vpop.f32.mrb[0].mxu0
        %v2781 = vadd.f32 %v2532, %v2780
        %v2782 = vpop.f32.mrb[0].mxu0
        %2783 = vmatprep.mubr.bf16.mxu0 0
        %2784 = vmatmul.mubr.bf16.gmra.mrb[0].mxu0 %v1330
        %v2785 = vpop.f32.mrb[0].mxu0
        %v2786 = vadd.f32 %v2537, %v2785
        %v2787 = vpop.f32.mrb[0].mxu0
        %v2788 = vpop.f32.mrb[0].mxu0
        %v2789 = vadd.f32 %v2540, %v2788
        %v2790 = vpop.f32.mrb[0].mxu0
        %2791 = vmatprep.mubr.bf16.mxu0 0
        %2792 = vmatmul.mubr.bf16.gmra.mrb[0].mxu0 %v1333
        %v2793 = vpop.f32.mrb[0].mxu0
        %v2794 = vadd.f32 %v2545, %v2793
        %v2795 = vpop.f32.mrb[0].mxu0
        %v2796 = vpop.f32.mrb[0].mxu0
        %v2797 = vadd.f32 %v2548, %v2796
        %v2798 = vpop.f32.mrb[0].mxu0
        %2799 = vmatprep.mubr.bf16.mxu0 0
        %2800 = vmatmul.mubr.bf16.gmra.mrb[0].mxu0 %v1336
        %v2801 = vpop.f32.mrb[0].mxu0
        %v2802 = vadd.f32 %v2553, %v2801
        %v2803 = vpop.f32.mrb[0].mxu0
        %v2804 = vpop.f32.mrb[0].mxu0
        %v2805 = vadd.f32 %v2556, %v2804
        %v2806 = vpop.f32.mrb[0].mxu0
        %2807 = vdwg.mxu0
        %v2808 = vld [vmem:[#allocation2 + $0x37] sm:$0xff]
        %v2809 = vld [vmem:[#allocation2 + $0x3f] sm:$0xff]
        %v2810 = vld [vmem:[#allocation2 + $0x47] sm:$0xff]
        %v2811 = vld [vmem:[#allocation2 + $0x4f] sm:$0xff]
        %v2812 = vld [vmem:[#allocation2 + $0x57] sm:$0xff]
        %v2813 = vld [vmem:[#allocation2 + $0x5f] sm:$0xff]
        %v2814 = vld [vmem:[#allocation2 + $0x67] sm:$0xff]
        %v2815 = vld [vmem:[#allocation2 + $0x6f] sm:$0xff]
        %v2816 = vld [vmem:[#allocation2 + $0x77] sm:$0xff]
        %v2817 = vld [vmem:[#allocation2 + $0x7f] sm:$0xff]
        %v2818 = vld [vmem:[#allocation2 + $0x87] sm:$0xff]
        %v2819 = vld [vmem:[#allocation2 + $0x8f] sm:$0xff]
        %v2820 = vld [vmem:[#allocation2 + $0x97] sm:$0xff]
        %v2821 = vld [vmem:[#allocation2 + $0x9f] sm:$0xff]
        %v2822 = vld [vmem:[#allocation2 + $0xa7] sm:$0xff]
        %v2823 = vld [vmem:[#allocation2 + $0xaf] sm:$0xff]
        %v2824 = vld [vmem:[#allocation2 + $0xb7] sm:$0xff]
        %v2825 = vld [vmem:[#allocation2 + $0xbf] sm:$0xff]
        %v2826 = vld [vmem:[#allocation2 + $0xc7] sm:$0xff]
        %v2827 = vld [vmem:[#allocation2 + $0xcf] sm:$0xff]
        %v2828 = vld [vmem:[#allocation2 + $0xd7] sm:$0xff]
        %v2829 = vld [vmem:[#allocation2 + $0xdf] sm:$0xff]
        %v2830 = vld [vmem:[#allocation2 + $0xe7] sm:$0xff]
        %v2831 = vld [vmem:[#allocation2 + $0xef] sm:$0xff]
        %v2832 = vld [vmem:[#allocation2 + $0xf7] sm:$0xff]
        %v2833 = vld [vmem:[#allocation2 + $0xff] sm:$0xff]
        %v2834 = vld [vmem:[#allocation2 + $0x107] sm:$0xff]
        %v2835 = vld [vmem:[#allocation2 + $0x10f] sm:$0xff]
        %v2836 = vld [vmem:[#allocation2 + $0x117] sm:$0xff]
        %v2837 = vld [vmem:[#allocation2 + $0x11f] sm:$0xff]
        %v2838 = vld [vmem:[#allocation2 + $0x127] sm:$0xff]
        %v2839 = vld [vmem:[#allocation2 + $0x12f] sm:$0xff]
        %v2840 = vld [vmem:[#allocation2 + $0x137] sm:$0xff]
        %v2841 = vld [vmem:[#allocation2 + $0x13f] sm:$0xff]
        %v2842 = vld [vmem:[#allocation2 + $0x147] sm:$0xff]
        %v2843 = vld [vmem:[#allocation2 + $0x14f] sm:$0xff]
        %v2844 = vld [vmem:[#allocation2 + $0x157] sm:$0xff]
        %v2845 = vld [vmem:[#allocation2 + $0x15f] sm:$0xff]
        %v2846 = vld [vmem:[#allocation2 + $0x167] sm:$0xff]
        %v2847 = vld [vmem:[#allocation2 + $0x16f] sm:$0xff]
        %v2848 = vld [vmem:[#allocation2 + $0x177] sm:$0xff]
        %v2849 = vld [vmem:[#allocation2 + $0x17f] sm:$0xff]
        %v2850 = vld [vmem:[#allocation2 + $0x187] sm:$0xff]
        %v2851 = vld [vmem:[#allocation2 + $0x18f] sm:$0xff]
        %v2852 = vld [vmem:[#allocation2 + $0x197] sm:$0xff]
        %v2853 = vld [vmem:[#allocation2 + $0x19f] sm:$0xff]
        %v2854 = vld [vmem:[#allocation2 + $0x1a7] sm:$0xff]
        %v2855 = vld [vmem:[#allocation2 + $0x1af] sm:$0xff]
        %v2856 = vld [vmem:[#allocation2 + $0x1b7] sm:$0xff]
        %v2857 = vld [vmem:[#allocation2 + $0x1bf] sm:$0xff]
        %v2858 = vld [vmem:[#allocation2 + $0x1c7] sm:$0xff]
        %v2859 = vld [vmem:[#allocation2 + $0x1cf] sm:$0xff]
        %v2860 = vld [vmem:[#allocation2 + $0x1d7] sm:$0xff]
        %v2861 = vld [vmem:[#allocation2 + $0x1df] sm:$0xff]
        %v2862 = vld [vmem:[#allocation2 + $0x38] sm:$0xff]
        %v2863 = vld [vmem:[#allocation2 + $0x40] sm:$0xff]
        %v2864 = vld [vmem:[#allocation2 + $0x48] sm:$0xff]
        %v2865 = vld [vmem:[#allocation2 + $0x50] sm:$0xff]
        %v2866 = vld [vmem:[#allocation2 + $0x58] sm:$0xff]
        %v2867 = vld [vmem:[#allocation2 + $0x60] sm:$0xff]
        %v2868 = vld [vmem:[#allocation2 + $0x68] sm:$0xff]
        %v2869 = vld [vmem:[#allocation2 + $0x70] sm:$0xff]
        %v2870 = vld [vmem:[#allocation2 + $0x78] sm:$0xff]
        %v2871 = vld [vmem:[#allocation2 + $0x80] sm:$0xff]
        %v2872 = vld [vmem:[#allocation2 + $0x88] sm:$0xff]
        %v2873 = vld [vmem:[#allocation2 + $0x90] sm:$0xff]
        %v2874 = vld [vmem:[#allocation2 + $0x98] sm:$0xff]
        %v2875 = vld [vmem:[#allocation2 + $0xa0] sm:$0xff]
        %v2876 = vld [vmem:[#allocation2 + $0xa8] sm:$0xff]
        %v2877 = vld [vmem:[#allocation2 + $0xb0] sm:$0xff]
        %v2878 = vld [vmem:[#allocation2 + $0xb8] sm:$0xff]
        %v2879 = vld [vmem:[#allocation2 + $0xc0] sm:$0xff]
        %v2880 = vld [vmem:[#allocation2 + $0xc8] sm:$0xff]
        %v2881 = vld [vmem:[#allocation2 + $0xd0] sm:$0xff]
        %v2882 = vld [vmem:[#allocation2 + $0xd8] sm:$0xff]
        %v2883 = vld [vmem:[#allocation2 + $0xe0] sm:$0xff]
        %v2884 = vld [vmem:[#allocation2 + $0xe8] sm:$0xff]
        %v2885 = vld [vmem:[#allocation2 + $0xf0] sm:$0xff]
        %v2886 = vld [vmem:[#allocation2 + $0xf8] sm:$0xff]
        %v2887 = vld [vmem:[#allocation2 + $0x100] sm:$0xff]
        %v2888 = vld [vmem:[#allocation2 + $0x108] sm:$0xff]
        %v2889 = vld [vmem:[#allocation2 + $0x110] sm:$0xff]
        %v2890 = vld [vmem:[#allocation2 + $0x118] sm:$0xff]
        %v2891 = vld [vmem:[#allocation2 + $0x120] sm:$0xff]
        %v2892 = vld [vmem:[#allocation2 + $0x128] sm:$0xff]
        %v2893 = vld [vmem:[#allocation2 + $0x130] sm:$0xff]
        %v2894 = vld [vmem:[#allocation2 + $0x138] sm:$0xff]
        %v2895 = vld [vmem:[#allocation2 + $0x140] sm:$0xff]
        %v2896 = vld [vmem:[#allocation2 + $0x148] sm:$0xff]
        %v2897 = vld [vmem:[#allocation2 + $0x150] sm:$0xff]
        %v2898 = vld [vmem:[#allocation2 + $0x158] sm:$0xff]
        %v2899 = vld [vmem:[#allocation2 + $0x160] sm:$0xff]
        %v2900 = vld [vmem:[#allocation2 + $0x168] sm:$0xff]
        %v2901 = vld [vmem:[#allocation2 + $0x170] sm:$0xff]
        %v2902 = vld [vmem:[#allocation2 + $0x178] sm:$0xff]
        %v2903 = vld [vmem:[#allocation2 + $0x180] sm:$0xff]
        %v2904 = vld [vmem:[#allocation2 + $0x188] sm:$0xff]
        %v2905 = vld [vmem:[#allocation2 + $0x190] sm:$0xff]
        %v2906 = vld [vmem:[#allocation2 + $0x198] sm:$0xff]
        %v2907 = vld [vmem:[#allocation2 + $0x1a0] sm:$0xff]
        %v2908 = vld [vmem:[#allocation2 + $0x1a8] sm:$0xff]
        %v2909 = vld [vmem:[#allocation2 + $0x1b0] sm:$0xff]
        %v2910 = vld [vmem:[#allocation2 + $0x1b8] sm:$0xff]
        %v2911 = vld [vmem:[#allocation2 + $0x1c0] sm:$0xff]
        %v2912 = vld [vmem:[#allocation2 + $0x1c8] sm:$0xff]
        %v2913 = vld [vmem:[#allocation2 + $0x1d0] sm:$0xff]
        %v2914 = vld [vmem:[#allocation2 + $0x1d8] sm:$0xff]
        %v2915 = vld [vmem:[#allocation2 + $0x1e0] sm:$0xff]
        %v2916 = vld [vmem:[#allocation2 + $0x39] sm:$0xff]
        %v2917 = vld [vmem:[#allocation2 + $0x41] sm:$0xff]
        %v2918 = vld [vmem:[#allocation2 + $0x49] sm:$0xff]
        %v2919 = vld [vmem:[#allocation2 + $0x51] sm:$0xff]
        %v2920 = vld [vmem:[#allocation2 + $0x59] sm:$0xff]
        %v2921 = vld [vmem:[#allocation2 + $0x61] sm:$0xff]
        %v2922 = vld [vmem:[#allocation2 + $0x69] sm:$0xff]
        %v2923 = vld [vmem:[#allocation2 + $0x71] sm:$0xff]
        %v2924 = vld [vmem:[#allocation2 + $0x79] sm:$0xff]
        %v2925 = vld [vmem:[#allocation2 + $0x81] sm:$0xff]
        %v2926 = vld [vmem:[#allocation2 + $0x89] sm:$0xff]
        %v2927 = vld [vmem:[#allocation2 + $0x91] sm:$0xff]
        %v2928 = vld [vmem:[#allocation2 + $0x99] sm:$0xff]
        %v2929 = vld [vmem:[#allocation2 + $0xa1] sm:$0xff]
        %v2930 = vld [vmem:[#allocation2 + $0xa9] sm:$0xff]
        %v2931 = vld [vmem:[#allocation2 + $0xb1] sm:$0xff]
        %v2932 = vld [vmem:[#allocation2 + $0xb9] sm:$0xff]
        %v2933 = vld [vmem:[#allocation2 + $0xc1] sm:$0xff]
        %v2934 = vld [vmem:[#allocation2 + $0xc9] sm:$0xff]
        %v2935 = vld [vmem:[#allocation2 + $0xd1] sm:$0xff]
        %v2936 = vld [vmem:[#allocation2 + $0xd9] sm:$0xff]
        %v2937 = vld [vmem:[#allocation2 + $0xe1] sm:$0xff]
        %v2938 = vld [vmem:[#allocation2 + $0xe9] sm:$0xff]
        %v2939 = vld [vmem:[#allocation2 + $0xf1] sm:$0xff]
        %v2940 = vld [vmem:[#allocation2 + $0xf9] sm:$0xff]
        %v2941 = vld [vmem:[#allocation2 + $0x101] sm:$0xff]
        %v2942 = vld [vmem:[#allocation2 + $0x109] sm:$0xff]
        %v2943 = vld [vmem:[#allocation2 + $0x111] sm:$0xff]
        %v2944 = vld [vmem:[#allocation2 + $0x119] sm:$0xff]
        %v2945 = vld [vmem:[#allocation2 + $0x121] sm:$0xff]
        %v2946 = vld [vmem:[#allocation2 + $0x129] sm:$0xff]
        %v2947 = vld [vmem:[#allocation2 + $0x131] sm:$0xff]
        %v2948 = vld [vmem:[#allocation2 + $0x139] sm:$0xff]
        %v2949 = vld [vmem:[#allocation2 + $0x141] sm:$0xff]
        %v2950 = vld [vmem:[#allocation2 + $0x149] sm:$0xff]
        %v2951 = vld [vmem:[#allocation2 + $0x151] sm:$0xff]
        %v2952 = vld [vmem:[#allocation2 + $0x159] sm:$0xff]
        %v2953 = vld [vmem:[#allocation2 + $0x161] sm:$0xff]
        %v2954 = vld [vmem:[#allocation2 + $0x169] sm:$0xff]
        %v2955 = vld [vmem:[#allocation2 + $0x171] sm:$0xff]
        %v2956 = vld [vmem:[#allocation2 + $0x179] sm:$0xff]
        %v2957 = vld [vmem:[#allocation2 + $0x181] sm:$0xff]
        %v2958 = vld [vmem:[#allocation2 + $0x189] sm:$0xff]
        %v2959 = vld [vmem:[#allocation2 + $0x191] sm:$0xff]
        %v2960 = vld [vmem:[#allocation2 + $0x199] sm:$0xff]
        %v2961 = vld [vmem:[#allocation2 + $0x1a1] sm:$0xff]
        %v2962 = vld [vmem:[#allocation2 + $0x1a9] sm:$0xff]
        %v2963 = vld [vmem:[#allocation2 + $0x1b1] sm:$0xff]
        %v2964 = vld [vmem:[#allocation2 + $0x1b9] sm:$0xff]
        %v2965 = vld [vmem:[#allocation2 + $0x1c1] sm:$0xff]
        %v2966 = vld [vmem:[#allocation2 + $0x1c9] sm:$0xff]
        %v2967 = vld [vmem:[#allocation2 + $0x1d1] sm:$0xff]
        %v2968 = vld [vmem:[#allocation2 + $0x1d9] sm:$0xff]
        %v2969 = vld [vmem:[#allocation2 + $0x1e1] sm:$0xff]
        %v2970 = vpack.c.bf16 %v2809, %v2808
        %v2971 = vpack.c.bf16 %v2863, %v2862
        %v2972 = vpack.c.bf16 %v2917, %v2916
        %v2973 = vpack.c.bf16 %v2811, %v2810
        %v2974 = vpack.c.bf16 %v2865, %v2864
        %v2975 = vpack.c.bf16 %v2919, %v2918
        %v2976 = vpack.c.bf16 %v2813, %v2812
        %v2977 = vpack.c.bf16 %v2867, %v2866
        %v2978 = vpack.c.bf16 %v2921, %v2920
        %v2979 = vpack.c.bf16 %v2815, %v2814
        %v2980 = vpack.c.bf16 %v2869, %v2868
        %v2981 = vpack.c.bf16 %v2923, %v2922
        %v2982 = vpack.c.bf16 %v2817, %v2816
        %v2983 = vpack.c.bf16 %v2871, %v2870
        %v2984 = vpack.c.bf16 %v2925, %v2924
        %v2985 = vpack.c.bf16 %v2819, %v2818
        %v2986 = vpack.c.bf16 %v2873, %v2872
        %v2987 = vpack.c.bf16 %v2927, %v2926
        %v2988 = vpack.c.bf16 %v2821, %v2820
        %v2989 = vpack.c.bf16 %v2875, %v2874
        %v2990 = vpack.c.bf16 %v2929, %v2928
        %v2991 = vpack.c.bf16 %v2823, %v2822
        %v2992 = vpack.c.bf16 %v2877, %v2876
        %v2993 = vpack.c.bf16 %v2931, %v2930
        %v2994 = vpack.c.bf16 %v2825, %v2824
        %v2995 = vpack.c.bf16 %v2879, %v2878
        %v2996 = vpack.c.bf16 %v2933, %v2932
        %v2997 = vpack.c.bf16 %v2827, %v2826
        %v2998 = vpack.c.bf16 %v2881, %v2880
        %v2999 = vpack.c.bf16 %v2935, %v2934
        %v3000 = vpack.c.bf16 %v2829, %v2828
        %v3001 = vpack.c.bf16 %v2883, %v2882
        %v3002 = vpack.c.bf16 %v2937, %v2936
        %v3003 = vpack.c.bf16 %v2831, %v2830
        %v3004 = vpack.c.bf16 %v2885, %v2884
        %v3005 = vpack.c.bf16 %v2939, %v2938
        %v3006 = vpack.c.bf16 %v2833, %v2832
        %v3007 = vpack.c.bf16 %v2887, %v2886
        %v3008 = vpack.c.bf16 %v2941, %v2940
        %v3009 = vpack.c.bf16 %v2835, %v2834
        %v3010 = vpack.c.bf16 %v2889, %v2888
        %v3011 = vpack.c.bf16 %v2943, %v2942
        %v3012 = vpack.c.bf16 %v2837, %v2836
        %v3013 = vpack.c.bf16 %v2891, %v2890
        %v3014 = vpack.c.bf16 %v2945, %v2944
        %v3015 = vpack.c.bf16 %v2839, %v2838
        %v3016 = vpack.c.bf16 %v2893, %v2892
        %v3017 = vpack.c.bf16 %v2947, %v2946
        %v3018 = vpack.c.bf16 %v2841, %v2840
        %v3019 = vpack.c.bf16 %v2895, %v2894
        %v3020 = vpack.c.bf16 %v2949, %v2948
        %v3021 = vpack.c.bf16 %v2843, %v2842
        %v3022 = vpack.c.bf16 %v2897, %v2896
        %v3023 = vpack.c.bf16 %v2951, %v2950
        %v3024 = vpack.c.bf16 %v2845, %v2844
        %v3025 = vpack.c.bf16 %v2899, %v2898
        %v3026 = vpack.c.bf16 %v2953, %v2952
        %v3027 = vpack.c.bf16 %v2847, %v2846
        %v3028 = vpack.c.bf16 %v2901, %v2900
        %v3029 = vpack.c.bf16 %v2955, %v2954
        %v3030 = vpack.c.bf16 %v2849, %v2848
        %v3031 = vpack.c.bf16 %v2903, %v2902
        %v3032 = vpack.c.bf16 %v2957, %v2956
        %v3033 = vpack.c.bf16 %v2851, %v2850
        %v3034 = vpack.c.bf16 %v2905, %v2904
        %v3035 = vpack.c.bf16 %v2959, %v2958
        %v3036 = vpack.c.bf16 %v2853, %v2852
        %v3037 = vpack.c.bf16 %v2907, %v2906
        %v3038 = vpack.c.bf16 %v2961, %v2960
        %v3039 = vpack.c.bf16 %v2855, %v2854
        %v3040 = vpack.c.bf16 %v2909, %v2908
        %v3041 = vpack.c.bf16 %v2963, %v2962
        %v3042 = vpack.c.bf16 %v2857, %v2856
        %v3043 = vpack.c.bf16 %v2911, %v2910
        %v3044 = vpack.c.bf16 %v2965, %v2964
        %v3045 = vpack.c.bf16 %v2859, %v2858
        %v3046 = vpack.c.bf16 %v2913, %v2912
        %v3047 = vpack.c.bf16 %v2967, %v2966
        %v3048 = vpack.c.bf16 %v2861, %v2860
        %v3049 = vpack.c.bf16 %v2915, %v2914
        %v3050 = vpack.c.bf16 %v2969, %v2968
        %s3051 = scalar_lea.vmem [#allocation11], 384
        %v3052 = vld [vmem:[%s3051] sm:$0xf]
        %v3053 = vld [vmem:[%s3051 + $0x4] sm:$0xf]
        %v3054 = vld [vmem:[%s3051 + $0x8] sm:$0xf]
        %v3055 = vld [vmem:[%s3051 + $0xc] sm:$0xf]
        %v3056 = vld [vmem:[%s3051 + $0x10] sm:$0xf]
        %v3057 = vld [vmem:[%s3051 + $0x14] sm:$0xf]
        %v3058 = vld [vmem:[%s3051 + $0x18] sm:$0xf]
        %v3059 = vld [vmem:[%s3051 + $0x1c] sm:$0xf]
        %v3060 = vld [vmem:[%s3051 + $0x20] sm:$0xf]
        %v3061 = vld [vmem:[%s3051 + $0x24] sm:$0xf]
        %v3062 = vld [vmem:[%s3051 + $0x28] sm:$0xf]
        %v3063 = vld [vmem:[%s3051 + $0x2c] sm:$0xf]
        %v3064 = vld [vmem:[%s3051 + $0x30] sm:$0xf]
        %v3065 = vld [vmem:[%s3051 + $0x34] sm:$0xf]
        %v3066 = vld [vmem:[%s3051 + $0x38] sm:$0xf]
        %v3067 = vld [vmem:[%s3051 + $0x3c] sm:$0xf]
        %v3068 = vld [vmem:[%s3051 + $0x40] sm:$0xf]
        %v3069 = vld [vmem:[%s3051 + $0x44] sm:$0xf]
        %v3070 = vld [vmem:[%s3051 + $0x48] sm:$0xf]
        %v3071 = vld [vmem:[%s3051 + $0x4c] sm:$0xf]
        %v3072 = vld [vmem:[%s3051 + $0x50] sm:$0xf]
        %v3073 = vld [vmem:[%s3051 + $0x54] sm:$0xf]
        %v3074 = vld [vmem:[%s3051 + $0x58] sm:$0xf]
        %v3075 = vld [vmem:[%s3051 + $0x5c] sm:$0xf]
        %v3076 = vld [vmem:[%s3051 + $0x60] sm:$0xf]
        %v3077 = vld [vmem:[%s3051 + $0x64] sm:$0xf]
        %v3078 = vld [vmem:[%s3051 + $0x68] sm:$0xf]
        %v3079 = vld [vmem:[%s3051 + $0x6c] sm:$0xf]
        %v3080 = vld [vmem:[%s3051 + $0x70] sm:$0xf]
        %v3081 = vld [vmem:[%s3051 + $0x74] sm:$0xf]
        %v3082 = vld [vmem:[%s3051 + $0x78] sm:$0xf]
        %v3083 = vld [vmem:[%s3051 + $0x7c] sm:$0xf]
        %v3084 = vld [vmem:[%s3051 + $0x80] sm:$0xf]
        %v3085 = vld [vmem:[%s3051 + $0x84] sm:$0xf]
        %v3086 = vld [vmem:[%s3051 + $0x88] sm:$0xf]
        %v3087 = vld [vmem:[%s3051 + $0x8c] sm:$0xf]
        %v3088 = vld [vmem:[%s3051 + $0x90] sm:$0xf]
        %v3089 = vld [vmem:[%s3051 + $0x94] sm:$0xf]
        %v3090 = vld [vmem:[%s3051 + $0x98] sm:$0xf]
        %v3091 = vld [vmem:[%s3051 + $0x9c] sm:$0xf]
        %v3092 = vld [vmem:[%s3051 + $0xa0] sm:$0xf]
        %v3093 = vld [vmem:[%s3051 + $0xa4] sm:$0xf]
        %v3094 = vld [vmem:[%s3051 + $0xa8] sm:$0xf]
        %v3095 = vld [vmem:[%s3051 + $0xac] sm:$0xf]
        %v3096 = vld [vmem:[%s3051 + $0xb0] sm:$0xf]
        %v3097 = vld [vmem:[%s3051 + $0xb4] sm:$0xf]
        %v3098 = vld [vmem:[%s3051 + $0xb8] sm:$0xf]
        %v3099 = vld [vmem:[%s3051 + $0xbc] sm:$0xf]
        %v3148 = vunpack.c.l.b16 %v3052
        %v3149 = vunpack.c.l.b16 %v3053
        %v3150 = vunpack.c.l.b16 %v3054
        %v3151 = vunpack.c.l.b16 %v3055
        %v3152 = vunpack.c.l.b16 %v3056
        %v3153 = vunpack.c.l.b16 %v3057
        %v3154 = vunpack.c.l.b16 %v3058
        %v3155 = vunpack.c.l.b16 %v3059
        %v3156 = vunpack.c.l.b16 %v3060
        %v3157 = vunpack.c.l.b16 %v3061
        %v3158 = vunpack.c.l.b16 %v3062
        %v3159 = vunpack.c.l.b16 %v3063
        %v3160 = vunpack.c.l.b16 %v3064
        %v3161 = vunpack.c.l.b16 %v3065
        %v3162 = vunpack.c.l.b16 %v3066
        %v3163 = vunpack.c.l.b16 %v3067
        %v3164 = vunpack.c.l.b16 %v3068
        %v3165 = vunpack.c.l.b16 %v3069
        %v3166 = vunpack.c.l.b16 %v3070
        %v3167 = vunpack.c.l.b16 %v3071
        %v3168 = vunpack.c.l.b16 %v3072
        %v3169 = vunpack.c.l.b16 %v3073
        %v3170 = vunpack.c.l.b16 %v3074
        %v3171 = vunpack.c.l.b16 %v3075
        %v3172 = vunpack.c.l.b16 %v3076
        %v3173 = vunpack.c.l.b16 %v3077
        %v3174 = vunpack.c.l.b16 %v3078
        %v3175 = vunpack.c.l.b16 %v3079
        %v3176 = vunpack.c.l.b16 %v3080
        %v3177 = vunpack.c.l.b16 %v3081
        %v3178 = vunpack.c.l.b16 %v3082
        %v3179 = vunpack.c.l.b16 %v3083
        %v3180 = vunpack.c.l.b16 %v3084
        %v3181 = vunpack.c.l.b16 %v3085
        %v3182 = vunpack.c.l.b16 %v3086
        %v3183 = vunpack.c.l.b16 %v3087
        %v3184 = vunpack.c.l.b16 %v3088
        %v3185 = vunpack.c.l.b16 %v3089
        %v3186 = vunpack.c.l.b16 %v3090
        %v3187 = vunpack.c.l.b16 %v3091
        %v3188 = vunpack.c.l.b16 %v3092
        %v3189 = vunpack.c.l.b16 %v3093
        %v3190 = vunpack.c.l.b16 %v3094
        %v3191 = vunpack.c.l.b16 %v3095
        %v3192 = vunpack.c.l.b16 %v3096
        %v3193 = vunpack.c.l.b16 %v3097
        %v3194 = vunpack.c.l.b16 %v3098
        %v3195 = vunpack.c.l.b16 %v3099
        %v3196 = vpack.c.b16 %v3149, %v3148
        %v3197 = vpack.c.b16 %v3151, %v3150
        %v3198 = vpack.c.b16 %v3153, %v3152
        %v3199 = vpack.c.b16 %v3155, %v3154
        %v3200 = vpack.c.b16 %v3157, %v3156
        %v3201 = vpack.c.b16 %v3159, %v3158
        %v3202 = vpack.c.b16 %v3161, %v3160
        %v3203 = vpack.c.b16 %v3163, %v3162
        %v3204 = vpack.c.b16 %v3165, %v3164
        %v3205 = vpack.c.b16 %v3167, %v3166
        %v3206 = vpack.c.b16 %v3169, %v3168
        %v3207 = vpack.c.b16 %v3171, %v3170
        %v3208 = vpack.c.b16 %v3173, %v3172
        %v3209 = vpack.c.b16 %v3175, %v3174
        %v3210 = vpack.c.b16 %v3177, %v3176
        %v3211 = vpack.c.b16 %v3179, %v3178
        %v3212 = vpack.c.b16 %v3181, %v3180
        %v3213 = vpack.c.b16 %v3183, %v3182
        %v3214 = vpack.c.b16 %v3185, %v3184
        %v3215 = vpack.c.b16 %v3187, %v3186
        %v3216 = vpack.c.b16 %v3189, %v3188
        %v3217 = vpack.c.b16 %v3191, %v3190
        %v3218 = vpack.c.b16 %v3193, %v3192
        %v3219 = vpack.c.b16 %v3195, %v3194
        %3244 = vmatprep.subr.bf16.mxu0 0
        %3245 = vmatpush1.bf16.msra.mxu0 %v3196
        %3246 = vmatprep.subr.bf16.mxu0 0
        %3247 = vmatpush1.bf16.msra.mxu0 %v3197
        %3248 = vmatprep.subr.bf16.mxu0 0
        %3249 = vmatpush1.bf16.msra.mxu0 %v3198
        %3250 = vmatprep.subr.bf16.mxu0 0
        %3251 = vmatpush1.bf16.msra.mxu0 %v3199
        %3252 = vmatprep.subr.bf16.mxu0 0
        %3253 = vmatpush1.bf16.msra.mxu0 %v3200
        %3254 = vmatprep.subr.bf16.mxu0 0
        %3255 = vmatpush1.bf16.msra.mxu0 %v3201
        %3256 = vmatprep.subr.bf16.mxu0 0
        %3257 = vmatpush1.bf16.msra.mxu0 %v3202
        %3258 = vmatprep.subr.bf16.mxu0 0
        %3259 = vmatpush1.bf16.msra.mxu0 %v3203
        %3260 = vmatprep.subr.bf16.mxu0 0
        %3261 = vmatpush1.bf16.msra.mxu0 %v3204
        %3262 = vmatprep.subr.bf16.mxu0 0
        %3263 = vmatpush1.bf16.msra.mxu0 %v3205
        %3264 = vmatprep.subr.bf16.mxu0 0
        %3265 = vmatpush1.bf16.msra.mxu0 %v3206
        %3266 = vmatprep.subr.bf16.mxu0 0
        %3267 = vmatpush1.bf16.msra.mxu0 %v3207
        %3268 = vmatprep.subr.bf16.mxu0 0
        %3269 = vmatpush1.bf16.msra.mxu0 %v3208
        %3270 = vmatprep.subr.bf16.mxu0 0
        %3271 = vmatpush1.bf16.msra.mxu0 %v3209
        %3272 = vmatprep.subr.bf16.mxu0 0
        %3273 = vmatpush1.bf16.msra.mxu0 %v3210
        %3274 = vmatprep.subr.bf16.mxu0 0
        %3275 = vmatpush1.bf16.msra.mxu0 %v3211
        %3276 = vmatprep.mubr.bf16.mxu0 %v2971
        %3277 = vmatmul.mubr.bf16.gmra.mrb[0].mxu0 %v2970
        %v3278 = vpop.f32.mrb[0].mxu0
        %v3279 = vadd.f32 0.0, %v3278
        %v3280 = vpop.f32.mrb[0].mxu0
        %v3281 = vpop.f32.mrb[0].mxu0
        %v3282 = vadd.f32 0.0, %v3281
        %v3283 = vpop.f32.mrb[0].mxu0
        %3284 = vmatprep.mubr.bf16.mxu0 %v2974
        %3285 = vmatmul.mubr.bf16.gmra.mrb[0].mxu0 %v2973
        %v3286 = vpop.f32.mrb[0].mxu0
        %v3287 = vadd.f32 0.0, %v3286
        %v3288 = vpop.f32.mrb[0].mxu0
        %v3289 = vpop.f32.mrb[0].mxu0
        %v3290 = vadd.f32 0.0, %v3289
        %v3291 = vpop.f32.mrb[0].mxu0
        %3292 = vmatprep.mubr.bf16.mxu0 %v2977
        %3293 = vmatmul.mubr.bf16.gmra.mrb[0].mxu0 %v2976
        %v3294 = vpop.f32.mrb[0].mxu0
        %v3295 = vadd.f32 0.0, %v3294
        %v3296 = vpop.f32.mrb[0].mxu0
        %v3297 = vpop.f32.mrb[0].mxu0
        %v3298 = vadd.f32 0.0, %v3297
        %v3299 = vpop.f32.mrb[0].mxu0
        %3300 = vmatprep.mubr.bf16.mxu0 %v2980
        %3301 = vmatmul.mubr.bf16.gmra.mrb[0].mxu0 %v2979
        %v3302 = vpop.f32.mrb[0].mxu0
        %v3303 = vadd.f32 0.0, %v3302
        %v3304 = vpop.f32.mrb[0].mxu0
        %v3305 = vpop.f32.mrb[0].mxu0
        %v3306 = vadd.f32 0.0, %v3305
        %v3307 = vpop.f32.mrb[0].mxu0
        %3308 = vmatprep.mubr.bf16.mxu0 %v2983
        %3309 = vmatmul.mubr.bf16.gmra.mrb[0].mxu0 %v2982
        %v3310 = vpop.f32.mrb[0].mxu0
        %v3311 = vadd.f32 0.0, %v3310
        %v3312 = vpop.f32.mrb[0].mxu0
        %v3313 = vpop.f32.mrb[0].mxu0
        %v3314 = vadd.f32 0.0, %v3313
        %v3315 = vpop.f32.mrb[0].mxu0
        %3316 = vmatprep.mubr.bf16.mxu0 %v2986
        %3317 = vmatmul.mubr.bf16.gmra.mrb[0].mxu0 %v2985
        %v3318 = vpop.f32.mrb[0].mxu0
        %v3319 = vadd.f32 0.0, %v3318
        %v3320 = vpop.f32.mrb[0].mxu0
        %v3321 = vpop.f32.mrb[0].mxu0
        %v3322 = vadd.f32 0.0, %v3321
        %v3323 = vpop.f32.mrb[0].mxu0
        %3324 = vmatprep.mubr.bf16.mxu0 %v2989
        %3325 = vmatmul.mubr.bf16.gmra.mrb[0].mxu0 %v2988
        %v3326 = vpop.f32.mrb[0].mxu0
        %v3327 = vadd.f32 0.0, %v3326
        %v3328 = vpop.f32.mrb[0].mxu0
        %v3329 = vpop.f32.mrb[0].mxu0
        %v3330 = vadd.f32 0.0, %v3329
        %v3331 = vpop.f32.mrb[0].mxu0
        %3332 = vmatprep.mubr.bf16.mxu0 %v2992
        %3333 = vmatmul.mubr.bf16.gmra.mrb[0].mxu0 %v2991
        %v3334 = vpop.f32.mrb[0].mxu0
        %v3335 = vadd.f32 0.0, %v3334
        %v3336 = vpop.f32.mrb[0].mxu0
        %v3337 = vpop.f32.mrb[0].mxu0
        %v3338 = vadd.f32 0.0, %v3337
        %v3339 = vpop.f32.mrb[0].mxu0
        %3340 = vmatprep.mubr.bf16.mxu0 %v2995
        %3341 = vmatmul.mubr.bf16.gmra.mrb[0].mxu0 %v2994
        %v3342 = vpop.f32.mrb[0].mxu0
        %v3343 = vadd.f32 0.0, %v3342
        %v3344 = vpop.f32.mrb[0].mxu0
        %v3345 = vpop.f32.mrb[0].mxu0
        %v3346 = vadd.f32 0.0, %v3345
        %v3347 = vpop.f32.mrb[0].mxu0
        %3348 = vmatprep.mubr.bf16.mxu0 %v2998
        %3349 = vmatmul.mubr.bf16.gmra.mrb[0].mxu0 %v2997
        %v3350 = vpop.f32.mrb[0].mxu0
        %v3351 = vadd.f32 0.0, %v3350
        %v3352 = vpop.f32.mrb[0].mxu0
        %v3353 = vpop.f32.mrb[0].mxu0
        %v3354 = vadd.f32 0.0, %v3353
        %v3355 = vpop.f32.mrb[0].mxu0
        %3356 = vmatprep.mubr.bf16.mxu0 %v3001
        %3357 = vmatmul.mubr.bf16.gmra.mrb[0].mxu0 %v3000
        %v3358 = vpop.f32.mrb[0].mxu0
        %v3359 = vadd.f32 0.0, %v3358
        %v3360 = vpop.f32.mrb[0].mxu0
        %v3361 = vpop.f32.mrb[0].mxu0
        %v3362 = vadd.f32 0.0, %v3361
        %v3363 = vpop.f32.mrb[0].mxu0
        %3364 = vmatprep.mubr.bf16.mxu0 %v3004
        %3365 = vmatmul.mubr.bf16.gmra.mrb[0].mxu0 %v3003
        %v3366 = vpop.f32.mrb[0].mxu0
        %v3367 = vadd.f32 0.0, %v3366
        %v3368 = vpop.f32.mrb[0].mxu0
        %v3369 = vpop.f32.mrb[0].mxu0
        %v3370 = vadd.f32 0.0, %v3369
        %v3371 = vpop.f32.mrb[0].mxu0
        %3372 = vmatprep.mubr.bf16.mxu0 %v3007
        %3373 = vmatmul.mubr.bf16.gmra.mrb[0].mxu0 %v3006
        %v3374 = vpop.f32.mrb[0].mxu0
        %v3375 = vadd.f32 0.0, %v3374
        %v3376 = vpop.f32.mrb[0].mxu0
        %v3377 = vpop.f32.mrb[0].mxu0
        %v3378 = vadd.f32 0.0, %v3377
        %v3379 = vpop.f32.mrb[0].mxu0
        %3380 = vmatprep.mubr.bf16.mxu0 %v3010
        %3381 = vmatmul.mubr.bf16.gmra.mrb[0].mxu0 %v3009
        %v3382 = vpop.f32.mrb[0].mxu0
        %v3383 = vadd.f32 0.0, %v3382
        %v3384 = vpop.f32.mrb[0].mxu0
        %v3385 = vpop.f32.mrb[0].mxu0
        %v3386 = vadd.f32 0.0, %v3385
        %v3387 = vpop.f32.mrb[0].mxu0
        %3388 = vmatprep.mubr.bf16.mxu0 %v3013
        %3389 = vmatmul.mubr.bf16.gmra.mrb[0].mxu0 %v3012
        %v3390 = vpop.f32.mrb[0].mxu0
        %v3391 = vadd.f32 0.0, %v3390
        %v3392 = vpop.f32.mrb[0].mxu0
        %v3393 = vpop.f32.mrb[0].mxu0
        %v3394 = vadd.f32 0.0, %v3393
        %v3395 = vpop.f32.mrb[0].mxu0
        %3396 = vmatprep.mubr.bf16.mxu0 %v3016
        %3397 = vmatmul.mubr.bf16.gmra.mrb[0].mxu0 %v3015
        %v3398 = vpop.f32.mrb[0].mxu0
        %v3399 = vadd.f32 0.0, %v3398
        %v3400 = vpop.f32.mrb[0].mxu0
        %v3401 = vpop.f32.mrb[0].mxu0
        %v3402 = vadd.f32 0.0, %v3401
        %v3403 = vpop.f32.mrb[0].mxu0
        %3404 = vmatprep.mubr.bf16.mxu0 %v3019
        %3405 = vmatmul.mubr.bf16.gmra.mrb[0].mxu0 %v3018
        %v3406 = vpop.f32.mrb[0].mxu0
        %v3407 = vadd.f32 0.0, %v3406
        %v3408 = vpop.f32.mrb[0].mxu0
        %v3409 = vpop.f32.mrb[0].mxu0
        %v3410 = vadd.f32 0.0, %v3409
        %v3411 = vpop.f32.mrb[0].mxu0
        %3412 = vmatprep.mubr.bf16.mxu0 %v3022
        %3413 = vmatmul.mubr.bf16.gmra.mrb[0].mxu0 %v3021
        %v3414 = vpop.f32.mrb[0].mxu0
        %v3415 = vadd.f32 0.0, %v3414
        %v3416 = vpop.f32.mrb[0].mxu0
        %v3417 = vpop.f32.mrb[0].mxu0
        %v3418 = vadd.f32 0.0, %v3417
        %v3419 = vpop.f32.mrb[0].mxu0
        %3420 = vmatprep.mubr.bf16.mxu0 %v3025
        %3421 = vmatmul.mubr.bf16.gmra.mrb[0].mxu0 %v3024
        %v3422 = vpop.f32.mrb[0].mxu0
        %v3423 = vadd.f32 0.0, %v3422
        %v3424 = vpop.f32.mrb[0].mxu0
        %v3425 = vpop.f32.mrb[0].mxu0
        %v3426 = vadd.f32 0.0, %v3425
        %v3427 = vpop.f32.mrb[0].mxu0
        %3428 = vmatprep.mubr.bf16.mxu0 %v3028
        %3429 = vmatmul.mubr.bf16.gmra.mrb[0].mxu0 %v3027
        %v3430 = vpop.f32.mrb[0].mxu0
        %v3431 = vadd.f32 0.0, %v3430
        %v3432 = vpop.f32.mrb[0].mxu0
        %v3433 = vpop.f32.mrb[0].mxu0
        %v3434 = vadd.f32 0.0, %v3433
        %v3435 = vpop.f32.mrb[0].mxu0
        %3436 = vmatprep.mubr.bf16.mxu0 %v3031
        %3437 = vmatmul.mubr.bf16.gmra.mrb[0].mxu0 %v3030
        %v3438 = vpop.f32.mrb[0].mxu0
        %v3439 = vadd.f32 0.0, %v3438
        %v3440 = vpop.f32.mrb[0].mxu0
        %v3441 = vpop.f32.mrb[0].mxu0
        %v3442 = vadd.f32 0.0, %v3441
        %v3443 = vpop.f32.mrb[0].mxu0
        %3444 = vmatprep.mubr.bf16.mxu0 %v3034
        %3445 = vmatmul.mubr.bf16.gmra.mrb[0].mxu0 %v3033
        %v3446 = vpop.f32.mrb[0].mxu0
        %v3447 = vadd.f32 0.0, %v3446
        %v3448 = vpop.f32.mrb[0].mxu0
        %v3449 = vpop.f32.mrb[0].mxu0
        %v3450 = vadd.f32 0.0, %v3449
        %v3451 = vpop.f32.mrb[0].mxu0
        %3452 = vmatprep.mubr.bf16.mxu0 %v3037
        %3453 = vmatmul.mubr.bf16.gmra.mrb[0].mxu0 %v3036
        %v3454 = vpop.f32.mrb[0].mxu0
        %v3455 = vadd.f32 0.0, %v3454
        %v3456 = vpop.f32.mrb[0].mxu0
        %v3457 = vpop.f32.mrb[0].mxu0
        %v3458 = vadd.f32 0.0, %v3457
        %v3459 = vpop.f32.mrb[0].mxu0
        %3460 = vmatprep.mubr.bf16.mxu0 %v3040
        %3461 = vmatmul.mubr.bf16.gmra.mrb[0].mxu0 %v3039
        %v3462 = vpop.f32.mrb[0].mxu0
        %v3463 = vadd.f32 0.0, %v3462
        %v3464 = vpop.f32.mrb[0].mxu0
        %v3465 = vpop.f32.mrb[0].mxu0
        %v3466 = vadd.f32 0.0, %v3465
        %v3467 = vpop.f32.mrb[0].mxu0
        %3468 = vmatprep.mubr.bf16.mxu0 %v3043
        %3469 = vmatmul.mubr.bf16.gmra.mrb[0].mxu0 %v3042
        %v3470 = vpop.f32.mrb[0].mxu0
        %v3471 = vadd.f32 0.0, %v3470
        %v3472 = vpop.f32.mrb[0].mxu0
        %v3473 = vpop.f32.mrb[0].mxu0
        %v3474 = vadd.f32 0.0, %v3473
        %v3475 = vpop.f32.mrb[0].mxu0
        %3476 = vmatprep.mubr.bf16.mxu0 %v3046
        %3477 = vmatmul.mubr.bf16.gmra.mrb[0].mxu0 %v3045
        %v3478 = vpop.f32.mrb[0].mxu0
        %v3479 = vadd.f32 0.0, %v3478
        %v3480 = vpop.f32.mrb[0].mxu0
        %v3481 = vpop.f32.mrb[0].mxu0
        %v3482 = vadd.f32 0.0, %v3481
        %v3483 = vpop.f32.mrb[0].mxu0
        %3484 = vmatprep.mubr.bf16.mxu0 %v3049
        %3485 = vmatmul.mubr.bf16.gmra.mrb[0].mxu0 %v3048
        %v3486 = vpop.f32.mrb[0].mxu0
        %v3487 = vadd.f32 0.0, %v3486
        %v3488 = vpop.f32.mrb[0].mxu0
        %v3489 = vpop.f32.mrb[0].mxu0
        %v3490 = vadd.f32 0.0, %v3489
        %v3491 = vpop.f32.mrb[0].mxu0
        %3492 = vdwg.mxu0
        %3493 = vmatprep.subr.bf16.mxu0 0
        %3494 = vmatpush1.bf16.msra.mxu0 %v3212
        %3495 = vmatprep.subr.bf16.mxu0 0
        %3496 = vmatpush1.bf16.msra.mxu0 %v3213
        %3497 = vmatprep.subr.bf16.mxu0 0
        %3498 = vmatpush1.bf16.msra.mxu0 %v3214
        %3499 = vmatprep.subr.bf16.mxu0 0
        %3500 = vmatpush1.bf16.msra.mxu0 %v3215
        %3501 = vmatprep.subr.bf16.mxu0 0
        %3502 = vmatpush1.bf16.msra.mxu0 %v3216
        %3503 = vmatprep.subr.bf16.mxu0 0
        %3504 = vmatpush1.bf16.msra.mxu0 %v3217
        %3505 = vmatprep.subr.bf16.mxu0 0
        %3506 = vmatpush1.bf16.msra.mxu0 %v3218
        %3507 = vmatprep.subr.bf16.mxu0 0
        %3508 = vmatpush1.bf16.msra.mxu0 %v3219
        %3509 = vmatprep.subr.bf16.mxu0 0
        %3510 = vmatpush1.bf16.msra.mxu0 0
        %3511 = vmatprep.subr.bf16.mxu0 0
        %3512 = vmatpush1.bf16.msra.mxu0 0
        %3513 = vmatprep.subr.bf16.mxu0 0
        %3514 = vmatpush1.bf16.msra.mxu0 0
        %3515 = vmatprep.subr.bf16.mxu0 0
        %3516 = vmatpush1.bf16.msra.mxu0 0
        %3517 = vmatprep.subr.bf16.mxu0 0
        %3518 = vmatpush1.bf16.msra.mxu0 0
        %3519 = vmatprep.subr.bf16.mxu0 0
        %3520 = vmatpush1.bf16.msra.mxu0 0
        %3521 = vmatprep.subr.bf16.mxu0 0
        %3522 = vmatpush1.bf16.msra.mxu0 0
        %3523 = vmatprep.subr.bf16.mxu0 0
        %3524 = vmatpush1.bf16.msra.mxu0 0
        %3525 = vmatprep.mubr.bf16.mxu0 0
        %3526 = vmatmul.mubr.bf16.gmra.mrb[0].mxu0 %v2972
        %v3527 = vpop.f32.mrb[0].mxu0
        %v3528 = vadd.f32 %v3279, %v3527
        %v3529 = vpop.f32.mrb[0].mxu0
        %v3530 = vpop.f32.mrb[0].mxu0
        %v3531 = vadd.f32 %v3282, %v3530
        %v3532 = vpop.f32.mrb[0].mxu0
        %3533 = vmatprep.mubr.bf16.mxu0 0
        %3534 = vmatmul.mubr.bf16.gmra.mrb[0].mxu0 %v2975
        %v3535 = vpop.f32.mrb[0].mxu0
        %v3536 = vadd.f32 %v3287, %v3535
        %v3537 = vpop.f32.mrb[0].mxu0
        %v3538 = vpop.f32.mrb[0].mxu0
        %v3539 = vadd.f32 %v3290, %v3538
        %v3540 = vpop.f32.mrb[0].mxu0
        %3541 = vmatprep.mubr.bf16.mxu0 0
        %3542 = vmatmul.mubr.bf16.gmra.mrb[0].mxu0 %v2978
        %v3543 = vpop.f32.mrb[0].mxu0
        %v3544 = vadd.f32 %v3295, %v3543
        %v3545 = vpop.f32.mrb[0].mxu0
        %v3546 = vpop.f32.mrb[0].mxu0
        %v3547 = vadd.f32 %v3298, %v3546
        %v3548 = vpop.f32.mrb[0].mxu0
        %3549 = vmatprep.mubr.bf16.mxu0 0
        %3550 = vmatmul.mubr.bf16.gmra.mrb[0].mxu0 %v2981
        %v3551 = vpop.f32.mrb[0].mxu0
        %v3552 = vadd.f32 %v3303, %v3551
        %v3553 = vpop.f32.mrb[0].mxu0
        %v3554 = vpop.f32.mrb[0].mxu0
        %v3555 = vadd.f32 %v3306, %v3554
        %v3556 = vpop.f32.mrb[0].mxu0
        %3557 = vmatprep.mubr.bf16.mxu0 0
        %3558 = vmatmul.mubr.bf16.gmra.mrb[0].mxu0 %v2984
        %v3559 = vpop.f32.mrb[0].mxu0
        %v3560 = vadd.f32 %v3311, %v3559
        %v3561 = vpop.f32.mrb[0].mxu0
        %v3562 = vpop.f32.mrb[0].mxu0
        %v3563 = vadd.f32 %v3314, %v3562
        %v3564 = vpop.f32.mrb[0].mxu0
        %3565 = vmatprep.mubr.bf16.mxu0 0
        %3566 = vmatmul.mubr.bf16.gmra.mrb[0].mxu0 %v2987
        %v3567 = vpop.f32.mrb[0].mxu0
        %v3568 = vadd.f32 %v3319, %v3567
        %v3569 = vpop.f32.mrb[0].mxu0
        %v3570 = vpop.f32.mrb[0].mxu0
        %v3571 = vadd.f32 %v3322, %v3570
        %v3572 = vpop.f32.mrb[0].mxu0
        %3573 = vmatprep.mubr.bf16.mxu0 0
        %3574 = vmatmul.mubr.bf16.gmra.mrb[0].mxu0 %v2990
        %v3575 = vpop.f32.mrb[0].mxu0
        %v3576 = vadd.f32 %v3327, %v3575
        %v3577 = vpop.f32.mrb[0].mxu0
        %v3578 = vpop.f32.mrb[0].mxu0
        %v3579 = vadd.f32 %v3330, %v3578
        %v3580 = vpop.f32.mrb[0].mxu0
        %3581 = vmatprep.mubr.bf16.mxu0 0
        %3582 = vmatmul.mubr.bf16.gmra.mrb[0].mxu0 %v2993
        %v3583 = vpop.f32.mrb[0].mxu0
        %v3584 = vadd.f32 %v3335, %v3583
        %v3585 = vpop.f32.mrb[0].mxu0
        %v3586 = vpop.f32.mrb[0].mxu0
        %v3587 = vadd.f32 %v3338, %v3586
        %v3588 = vpop.f32.mrb[0].mxu0
        %3589 = vmatprep.mubr.bf16.mxu0 0
        %3590 = vmatmul.mubr.bf16.gmra.mrb[0].mxu0 %v2996
        %v3591 = vpop.f32.mrb[0].mxu0
        %v3592 = vadd.f32 %v3343, %v3591
        %v3593 = vpop.f32.mrb[0].mxu0
        %v3594 = vpop.f32.mrb[0].mxu0
        %v3595 = vadd.f32 %v3346, %v3594
        %v3596 = vpop.f32.mrb[0].mxu0
        %3597 = vmatprep.mubr.bf16.mxu0 0
        %3598 = vmatmul.mubr.bf16.gmra.mrb[0].mxu0 %v2999
        %v3599 = vpop.f32.mrb[0].mxu0
        %v3600 = vadd.f32 %v3351, %v3599
        %v3601 = vpop.f32.mrb[0].mxu0
        %v3602 = vpop.f32.mrb[0].mxu0
        %v3603 = vadd.f32 %v3354, %v3602
        %v3604 = vpop.f32.mrb[0].mxu0
        %3605 = vmatprep.mubr.bf16.mxu0 0
        %3606 = vmatmul.mubr.bf16.gmra.mrb[0].mxu0 %v3002
        %v3607 = vpop.f32.mrb[0].mxu0
        %v3608 = vadd.f32 %v3359, %v3607
        %v3609 = vpop.f32.mrb[0].mxu0
        %v3610 = vpop.f32.mrb[0].mxu0
        %v3611 = vadd.f32 %v3362, %v3610
        %v3612 = vpop.f32.mrb[0].mxu0
        %3613 = vmatprep.mubr.bf16.mxu0 0
        %3614 = vmatmul.mubr.bf16.gmra.mrb[0].mxu0 %v3005
        %v3615 = vpop.f32.mrb[0].mxu0
        %v3616 = vadd.f32 %v3367, %v3615
        %v3617 = vpop.f32.mrb[0].mxu0
        %v3618 = vpop.f32.mrb[0].mxu0
        %v3619 = vadd.f32 %v3370, %v3618
        %v3620 = vpop.f32.mrb[0].mxu0
        %3621 = vmatprep.mubr.bf16.mxu0 0
        %3622 = vmatmul.mubr.bf16.gmra.mrb[0].mxu0 %v3008
        %v3623 = vpop.f32.mrb[0].mxu0
        %v3624 = vadd.f32 %v3375, %v3623
        %v3625 = vpop.f32.mrb[0].mxu0
        %v3626 = vpop.f32.mrb[0].mxu0
        %v3627 = vadd.f32 %v3378, %v3626
        %v3628 = vpop.f32.mrb[0].mxu0
        %3629 = vmatprep.mubr.bf16.mxu0 0
        %3630 = vmatmul.mubr.bf16.gmra.mrb[0].mxu0 %v3011
        %v3631 = vpop.f32.mrb[0].mxu0
        %v3632 = vadd.f32 %v3383, %v3631
        %v3633 = vpop.f32.mrb[0].mxu0
        %v3634 = vpop.f32.mrb[0].mxu0
        %v3635 = vadd.f32 %v3386, %v3634
        %v3636 = vpop.f32.mrb[0].mxu0
        %3637 = vmatprep.mubr.bf16.mxu0 0
        %3638 = vmatmul.mubr.bf16.gmra.mrb[0].mxu0 %v3014
        %v3639 = vpop.f32.mrb[0].mxu0
        %v3640 = vadd.f32 %v3391, %v3639
        %v3641 = vpop.f32.mrb[0].mxu0
        %v3642 = vpop.f32.mrb[0].mxu0
        %v3643 = vadd.f32 %v3394, %v3642
        %v3644 = vpop.f32.mrb[0].mxu0
        %3645 = vmatprep.mubr.bf16.mxu0 0
        %3646 = vmatmul.mubr.bf16.gmra.mrb[0].mxu0 %v3017
        %v3647 = vpop.f32.mrb[0].mxu0
        %v3648 = vadd.f32 %v3399, %v3647
        %v3649 = vpop.f32.mrb[0].mxu0
        %v3650 = vpop.f32.mrb[0].mxu0
        %v3651 = vadd.f32 %v3402, %v3650
        %v3652 = vpop.f32.mrb[0].mxu0
        %3653 = vmatprep.mubr.bf16.mxu0 0
        %3654 = vmatmul.mubr.bf16.gmra.mrb[0].mxu0 %v3020
        %v3655 = vpop.f32.mrb[0].mxu0
        %v3656 = vadd.f32 %v3407, %v3655
        %v3657 = vpop.f32.mrb[0].mxu0
        %v3658 = vpop.f32.mrb[0].mxu0
        %v3659 = vadd.f32 %v3410, %v3658
        %v3660 = vpop.f32.mrb[0].mxu0
        %3661 = vmatprep.mubr.bf16.mxu0 0
        %3662 = vmatmul.mubr.bf16.gmra.mrb[0].mxu0 %v3023
        %v3663 = vpop.f32.mrb[0].mxu0
        %v3664 = vadd.f32 %v3415, %v3663
        %v3665 = vpop.f32.mrb[0].mxu0
        %v3666 = vpop.f32.mrb[0].mxu0
        %v3667 = vadd.f32 %v3418, %v3666
        %v3668 = vpop.f32.mrb[0].mxu0
        %3669 = vmatprep.mubr.bf16.mxu0 0
        %3670 = vmatmul.mubr.bf16.gmra.mrb[0].mxu0 %v3026
        %v3671 = vpop.f32.mrb[0].mxu0
        %v3672 = vadd.f32 %v3423, %v3671
        %v3673 = vpop.f32.mrb[0].mxu0
        %v3674 = vpop.f32.mrb[0].mxu0
        %v3675 = vadd.f32 %v3426, %v3674
        %v3676 = vpop.f32.mrb[0].mxu0
        %3677 = vmatprep.mubr.bf16.mxu0 0
        %3678 = vmatmul.mubr.bf16.gmra.mrb[0].mxu0 %v3029
        %v3679 = vpop.f32.mrb[0].mxu0
        %v3680 = vadd.f32 %v3431, %v3679
        %v3681 = vpop.f32.mrb[0].mxu0
        %v3682 = vpop.f32.mrb[0].mxu0
        %v3683 = vadd.f32 %v3434, %v3682
        %v3684 = vpop.f32.mrb[0].mxu0
        %3685 = vmatprep.mubr.bf16.mxu0 0
        %3686 = vmatmul.mubr.bf16.gmra.mrb[0].mxu0 %v3032
        %v3687 = vpop.f32.mrb[0].mxu0
        %v3688 = vadd.f32 %v3439, %v3687
        %v3689 = vpop.f32.mrb[0].mxu0
        %v3690 = vpop.f32.mrb[0].mxu0
        %v3691 = vadd.f32 %v3442, %v3690
        %v3692 = vpop.f32.mrb[0].mxu0
        %3693 = vmatprep.mubr.bf16.mxu0 0
        %3694 = vmatmul.mubr.bf16.gmra.mrb[0].mxu0 %v3035
        %v3695 = vpop.f32.mrb[0].mxu0
        %v3696 = vadd.f32 %v3447, %v3695
        %v3697 = vpop.f32.mrb[0].mxu0
        %v3698 = vpop.f32.mrb[0].mxu0
        %v3699 = vadd.f32 %v3450, %v3698
        %v3700 = vpop.f32.mrb[0].mxu0
        %3701 = vmatprep.mubr.bf16.mxu0 0
        %3702 = vmatmul.mubr.bf16.gmra.mrb[0].mxu0 %v3038
        %v3703 = vpop.f32.mrb[0].mxu0
        %v3704 = vadd.f32 %v3455, %v3703
        %v3705 = vpop.f32.mrb[0].mxu0
        %v3706 = vpop.f32.mrb[0].mxu0
        %v3707 = vadd.f32 %v3458, %v3706
        %v3708 = vpop.f32.mrb[0].mxu0
        %3709 = vmatprep.mubr.bf16.mxu0 0
        %3710 = vmatmul.mubr.bf16.gmra.mrb[0].mxu0 %v3041
        %v3711 = vpop.f32.mrb[0].mxu0
        %v3712 = vadd.f32 %v3463, %v3711
        %v3713 = vpop.f32.mrb[0].mxu0
        %v3714 = vpop.f32.mrb[0].mxu0
        %v3715 = vadd.f32 %v3466, %v3714
        %v3716 = vpop.f32.mrb[0].mxu0
        %3717 = vmatprep.mubr.bf16.mxu0 0
        %3718 = vmatmul.mubr.bf16.gmra.mrb[0].mxu0 %v3044
        %v3719 = vpop.f32.mrb[0].mxu0
        %v3720 = vadd.f32 %v3471, %v3719
        %v3721 = vpop.f32.mrb[0].mxu0
        %v3722 = vpop.f32.mrb[0].mxu0
        %v3723 = vadd.f32 %v3474, %v3722
        %v3724 = vpop.f32.mrb[0].mxu0
        %3725 = vmatprep.mubr.bf16.mxu0 0
        %3726 = vmatmul.mubr.bf16.gmra.mrb[0].mxu0 %v3047
        %v3727 = vpop.f32.mrb[0].mxu0
        %v3728 = vadd.f32 %v3479, %v3727
        %v3729 = vpop.f32.mrb[0].mxu0
        %v3730 = vpop.f32.mrb[0].mxu0
        %v3731 = vadd.f32 %v3482, %v3730
        %v3732 = vpop.f32.mrb[0].mxu0
        %3733 = vmatprep.mubr.bf16.mxu0 0
        %3734 = vmatmul.mubr.bf16.gmra.mrb[0].mxu0 %v3050
        %v3735 = vpop.f32.mrb[0].mxu0
        %v3736 = vadd.f32 %v3487, %v3735
        %v3737 = vpop.f32.mrb[0].mxu0
        %v3738 = vpop.f32.mrb[0].mxu0
        %v3739 = vadd.f32 %v3490, %v3738
        %v3740 = vpop.f32.mrb[0].mxu0
        %3741 = vdwg.mxu0
        %v3742 = vadd.f32 %v2594, %v3528
        %v3743 = vadd.f32 %v2597, %v3531
        %v3744 = vadd.f32 %v2602, %v3536
        %v3745 = vadd.f32 %v2605, %v3539
        %v3746 = vadd.f32 %v2610, %v3544
        %v3747 = vadd.f32 %v2613, %v3547
        %v3748 = vadd.f32 %v2618, %v3552
        %v3749 = vadd.f32 %v2621, %v3555
        %v3750 = vadd.f32 %v2626, %v3560
        %v3751 = vadd.f32 %v2629, %v3563
        %v3752 = vadd.f32 %v2634, %v3568
        %v3753 = vadd.f32 %v2637, %v3571
        %v3754 = vadd.f32 %v2642, %v3576
        %v3755 = vadd.f32 %v2645, %v3579
        %v3756 = vadd.f32 %v2650, %v3584
        %v3757 = vadd.f32 %v2653, %v3587
        %v3758 = vadd.f32 %v2658, %v3592
        %v3759 = vadd.f32 %v2661, %v3595
        %v3760 = vadd.f32 %v2666, %v3600
        %v3761 = vadd.f32 %v2669, %v3603
        %v3762 = vadd.f32 %v2674, %v3608
        %v3763 = vadd.f32 %v2677, %v3611
        %v3764 = vadd.f32 %v2682, %v3616
        %v3765 = vadd.f32 %v2685, %v3619
        %v3766 = vadd.f32 %v2690, %v3624
        %v3767 = vadd.f32 %v2693, %v3627
        %v3768 = vadd.f32 %v2698, %v3632
        %v3769 = vadd.f32 %v2701, %v3635
        %v3770 = vadd.f32 %v2706, %v3640
        %v3771 = vadd.f32 %v2709, %v3643
        %v3772 = vadd.f32 %v2714, %v3648
        %v3773 = vadd.f32 %v2717, %v3651
        %v3774 = vadd.f32 %v2722, %v3656
        %v3775 = vadd.f32 %v2725, %v3659
        %v3776 = vadd.f32 %v2730, %v3664
        %v3777 = vadd.f32 %v2733, %v3667
        %v3778 = vadd.f32 %v2738, %v3672
        %v3779 = vadd.f32 %v2741, %v3675
        %v3780 = vadd.f32 %v2746, %v3680
        %v3781 = vadd.f32 %v2749, %v3683
        %v3782 = vadd.f32 %v2754, %v3688
        %v3783 = vadd.f32 %v2757, %v3691
        %v3784 = vadd.f32 %v2762, %v3696
        %v3785 = vadd.f32 %v2765, %v3699
        %v3786 = vadd.f32 %v2770, %v3704
        %v3787 = vadd.f32 %v2773, %v3707
        %v3788 = vadd.f32 %v2778, %v3712
        %v3789 = vadd.f32 %v2781, %v3715
        %v3790 = vadd.f32 %v2786, %v3720
        %v3791 = vadd.f32 %v2789, %v3723
        %v3792 = vadd.f32 %v2794, %v3728
        %v3793 = vadd.f32 %v2797, %v3731
        %v3794 = vadd.f32 %v2802, %v3736
        %v3795 = vadd.f32 %v2805, %v3739
        %v3796 = vpack.c.bf16 %v3743, %v3742
        %v3797 = vpack.c.bf16 %v3745, %v3744
        %v3798 = vpack.c.bf16 %v3747, %v3746
        %v3799 = vpack.c.bf16 %v3749, %v3748
        %v3800 = vpack.c.bf16 %v3751, %v3750
        %v3801 = vpack.c.bf16 %v3753, %v3752
        %v3802 = vpack.c.bf16 %v3755, %v3754
        %v3803 = vpack.c.bf16 %v3757, %v3756
        %v3804 = vpack.c.bf16 %v3759, %v3758
        %v3805 = vpack.c.bf16 %v3761, %v3760
        %v3806 = vpack.c.bf16 %v3763, %v3762
        %v3807 = vpack.c.bf16 %v3765, %v3764
        %v3808 = vpack.c.bf16 %v3767, %v3766
        %v3809 = vpack.c.bf16 %v3769, %v3768
        %v3810 = vpack.c.bf16 %v3771, %v3770
        %v3811 = vpack.c.bf16 %v3773, %v3772
        %v3812 = vpack.c.bf16 %v3775, %v3774
        %v3813 = vpack.c.bf16 %v3777, %v3776
        %v3814 = vpack.c.bf16 %v3779, %v3778
        %v3815 = vpack.c.bf16 %v3781, %v3780
        %v3816 = vpack.c.bf16 %v3783, %v3782
        %v3817 = vpack.c.bf16 %v3785, %v3784
        %v3818 = vpack.c.bf16 %v3787, %v3786
        %v3819 = vpack.c.bf16 %v3789, %v3788
        %v3820 = vpack.c.bf16 %v3791, %v3790
        %v3821 = vpack.c.bf16 %v3793, %v3792
        %v3822 = vpack.c.bf16 %v3795, %v3794
        %v3823 = vunpack.c.l.bf16 %v3796
        %v3824 = vunpack.c.h.bf16 %v3796
        %v3825 = vunpack.c.l.bf16 %v3797
        %v3826 = vunpack.c.h.bf16 %v3797
        %v3827 = vunpack.c.l.bf16 %v3798
        %v3828 = vunpack.c.h.bf16 %v3798
        %v3829 = vunpack.c.l.bf16 %v3799
        %v3830 = vunpack.c.h.bf16 %v3799
        %v3831 = vunpack.c.l.bf16 %v3800
        %v3832 = vunpack.c.h.bf16 %v3800
        %v3833 = vunpack.c.l.bf16 %v3801
        %v3834 = vunpack.c.h.bf16 %v3801
        %v3835 = vunpack.c.l.bf16 %v3802
        %v3836 = vunpack.c.h.bf16 %v3802
        %v3837 = vunpack.c.l.bf16 %v3803
        %v3838 = vunpack.c.h.bf16 %v3803
        %v3839 = vunpack.c.l.bf16 %v3804
        %v3840 = vunpack.c.h.bf16 %v3804
        %v3841 = vunpack.c.l.bf16 %v3805
        %v3842 = vunpack.c.h.bf16 %v3805
        %v3843 = vunpack.c.l.bf16 %v3806
        %v3844 = vunpack.c.h.bf16 %v3806
        %v3845 = vunpack.c.l.bf16 %v3807
        %v3846 = vunpack.c.h.bf16 %v3807
        %v3847 = vunpack.c.l.bf16 %v3808
        %v3848 = vunpack.c.h.bf16 %v3808
        %v3849 = vunpack.c.l.bf16 %v3809
        %v3850 = vunpack.c.h.bf16 %v3809
        %v3851 = vunpack.c.l.bf16 %v3810
        %v3852 = vunpack.c.h.bf16 %v3810
        %v3853 = vunpack.c.l.bf16 %v3811
        %v3854 = vunpack.c.h.bf16 %v3811
        %v3855 = vunpack.c.l.bf16 %v3812
        %v3856 = vunpack.c.h.bf16 %v3812
        %v3857 = vunpack.c.l.bf16 %v3813
        %v3858 = vunpack.c.h.bf16 %v3813
        %v3859 = vunpack.c.l.bf16 %v3814
        %v3860 = vunpack.c.h.bf16 %v3814
        %v3861 = vunpack.c.l.bf16 %v3815
        %v3862 = vunpack.c.h.bf16 %v3815
        %v3863 = vunpack.c.l.bf16 %v3816
        %v3864 = vunpack.c.h.bf16 %v3816
        %v3865 = vunpack.c.l.bf16 %v3817
        %v3866 = vunpack.c.h.bf16 %v3817
        %v3867 = vunpack.c.l.bf16 %v3818
        %v3868 = vunpack.c.h.bf16 %v3818
        %v3869 = vunpack.c.l.bf16 %v3819
        %v3870 = vunpack.c.h.bf16 %v3819
        %v3871 = vunpack.c.l.bf16 %v3820
        %v3872 = vunpack.c.h.bf16 %v3820
        %v3873 = vunpack.c.l.bf16 %v3821
        %v3874 = vunpack.c.h.bf16 %v3821
        %v3875 = vunpack.c.l.bf16 %v3822
        %v3876 = vunpack.c.h.bf16 %v3822
        %v3877 = vld [vmem:[#allocation9] sm:$0xff]
        %v3878 = vld [vmem:[#allocation9 + $0x8] sm:$0xff]
        %v3879 = vld [vmem:[#allocation9 + $0x10] sm:$0xff]
        %v3880 = vld [vmem:[#allocation9 + $0x18] sm:$0xff]
        %v3881 = vld [vmem:[#allocation9 + $0x20] sm:$0xff]
        %v3882 = vld [vmem:[#allocation9 + $0x28] sm:$0xff]
        %v3883 = vld [vmem:[#allocation9 + $0x30] sm:$0xff]
        %v3884 = vld [vmem:[#allocation9 + $0x38] sm:$0xff]
        %v3885 = vld [vmem:[#allocation9 + $0x40] sm:$0xff]
        %v3886 = vld [vmem:[#allocation9 + $0x48] sm:$0xff]
        %v3887 = vld [vmem:[#allocation9 + $0x50] sm:$0xff]
        %v3888 = vld [vmem:[#allocation9 + $0x58] sm:$0xff]
        %v3889 = vld [vmem:[#allocation9 + $0x60] sm:$0xff]
        %v3890 = vld [vmem:[#allocation9 + $0x68] sm:$0xff]
        %v3891 = vld [vmem:[#allocation9 + $0x70] sm:$0xff]
        %v3892 = vld [vmem:[#allocation9 + $0x78] sm:$0xff]
        %v3893 = vld [vmem:[#allocation9 + $0x80] sm:$0xff]
        %v3894 = vld [vmem:[#allocation9 + $0x88] sm:$0xff]
        %v3895 = vld [vmem:[#allocation9 + $0x90] sm:$0xff]
        %v3896 = vld [vmem:[#allocation9 + $0x98] sm:$0xff]
        %v3897 = vld [vmem:[#allocation9 + $0xa0] sm:$0xff]
        %v3898 = vld [vmem:[#allocation9 + $0xa8] sm:$0xff]
        %v3899 = vld [vmem:[#allocation9 + $0xb0] sm:$0xff]
        %v3900 = vld [vmem:[#allocation9 + $0xb8] sm:$0xff]
        %v3901 = vld [vmem:[#allocation9 + $0xc0] sm:$0xff]
        %v3902 = vld [vmem:[#allocation9 + $0xc8] sm:$0xff]
        %v3903 = vld [vmem:[#allocation9 + $0xd0] sm:$0xff]
        %v3904 = vld [vmem:[#allocation9 + $0xd8] sm:$0xff]
        %v3905 = vld [vmem:[#allocation9 + $0xe0] sm:$0xff]
        %v3906 = vld [vmem:[#allocation9 + $0xe8] sm:$0xff]
        %v3907 = vld [vmem:[#allocation9 + $0xf0] sm:$0xff]
        %v3908 = vld [vmem:[#allocation9 + $0xf8] sm:$0xff]
        %v3909 = vld [vmem:[#allocation9 + $0x100] sm:$0xff]
        %v3910 = vld [vmem:[#allocation9 + $0x108] sm:$0xff]
        %v3911 = vld [vmem:[#allocation9 + $0x110] sm:$0xff]
        %v3912 = vld [vmem:[#allocation9 + $0x118] sm:$0xff]
        %v3913 = vld [vmem:[#allocation9 + $0x120] sm:$0xff]
        %v3914 = vld [vmem:[#allocation9 + $0x128] sm:$0xff]
        %v3915 = vld [vmem:[#allocation9 + $0x130] sm:$0xff]
        %v3916 = vld [vmem:[#allocation9 + $0x138] sm:$0xff]
        %v3917 = vld [vmem:[#allocation9 + $0x140] sm:$0xff]
        %v3918 = vld [vmem:[#allocation9 + $0x148] sm:$0xff]
        %v3919 = vld [vmem:[#allocation9 + $0x150] sm:$0xff]
        %v3920 = vld [vmem:[#allocation9 + $0x158] sm:$0xff]
        %v3921 = vld [vmem:[#allocation9 + $0x160] sm:$0xff]
        %v3922 = vld [vmem:[#allocation9 + $0x168] sm:$0xff]
        %v3923 = vld [vmem:[#allocation9 + $0x170] sm:$0xff]
        %v3924 = vld [vmem:[#allocation9 + $0x178] sm:$0xff]
        %v3925 = vld [vmem:[#allocation9 + $0x180] sm:$0xff]
        %v3926 = vld [vmem:[#allocation9 + $0x188] sm:$0xff]
        %v3927 = vld [vmem:[#allocation9 + $0x190] sm:$0xff]
        %v3928 = vld [vmem:[#allocation9 + $0x198] sm:$0xff]
        %v3929 = vld [vmem:[#allocation9 + $0x1a0] sm:$0xff]
        %v3930 = vld [vmem:[#allocation9 + $0x1a8] sm:$0xff]
        %3932 = vset.pattern.permute.xlu0 0
        %3933 = vperm.xlu0 %3932, %v3877
        %v3934 = vpop.permute.xlu0 %3933
        %3937 = vset.pattern.permute.xlu0 0
        %3938 = vperm.xlu0 %3937, %v3878
        %v3939 = vpop.permute.xlu0 %3938
        %3942 = vset.pattern.permute.xlu0 0
        %3943 = vperm.xlu0 %3942, %v3879
        %v3944 = vpop.permute.xlu0 %3943
        %3947 = vset.pattern.permute.xlu0 0
        %3948 = vperm.xlu0 %3947, %v3880
        %v3949 = vpop.permute.xlu0 %3948
        %3952 = vset.pattern.permute.xlu0 0
        %3953 = vperm.xlu0 %3952, %v3881
        %v3954 = vpop.permute.xlu0 %3953
        %3957 = vset.pattern.permute.xlu0 0
        %3958 = vperm.xlu0 %3957, %v3882
        %v3959 = vpop.permute.xlu0 %3958
        %3962 = vset.pattern.permute.xlu0 0
        %3963 = vperm.xlu0 %3962, %v3883
        %v3964 = vpop.permute.xlu0 %3963
        %3967 = vset.pattern.permute.xlu0 0
        %3968 = vperm.xlu0 %3967, %v3884
        %v3969 = vpop.permute.xlu0 %3968
        %3972 = vset.pattern.permute.xlu0 0
        %3973 = vperm.xlu0 %3972, %v3885
        %v3974 = vpop.permute.xlu0 %3973
        %3977 = vset.pattern.permute.xlu0 0
        %3978 = vperm.xlu0 %3977, %v3886
        %v3979 = vpop.permute.xlu0 %3978
        %3982 = vset.pattern.permute.xlu0 0
        %3983 = vperm.xlu0 %3982, %v3887
        %v3984 = vpop.permute.xlu0 %3983
        %3987 = vset.pattern.permute.xlu0 0
        %3988 = vperm.xlu0 %3987, %v3888
        %v3989 = vpop.permute.xlu0 %3988
        %3992 = vset.pattern.permute.xlu0 0
        %3993 = vperm.xlu0 %3992, %v3889
        %v3994 = vpop.permute.xlu0 %3993
        %3997 = vset.pattern.permute.xlu0 0
        %3998 = vperm.xlu0 %3997, %v3890
        %v3999 = vpop.permute.xlu0 %3998
        %4002 = vset.pattern.permute.xlu0 0
        %4003 = vperm.xlu0 %4002, %v3891
        %v4004 = vpop.permute.xlu0 %4003
        %4007 = vset.pattern.permute.xlu0 0
        %4008 = vperm.xlu0 %4007, %v3892
        %v4009 = vpop.permute.xlu0 %4008
        %4012 = vset.pattern.permute.xlu0 0
        %4013 = vperm.xlu0 %4012, %v3893
        %v4014 = vpop.permute.xlu0 %4013
        %4017 = vset.pattern.permute.xlu0 0
        %4018 = vperm.xlu0 %4017, %v3894
        %v4019 = vpop.permute.xlu0 %4018
        %4022 = vset.pattern.permute.xlu0 0
        %4023 = vperm.xlu0 %4022, %v3895
        %v4024 = vpop.permute.xlu0 %4023
        %4027 = vset.pattern.permute.xlu0 0
        %4028 = vperm.xlu0 %4027, %v3896
        %v4029 = vpop.permute.xlu0 %4028
        %4032 = vset.pattern.permute.xlu0 0
        %4033 = vperm.xlu0 %4032, %v3897
        %v4034 = vpop.permute.xlu0 %4033
        %4037 = vset.pattern.permute.xlu0 0
        %4038 = vperm.xlu0 %4037, %v3898
        %v4039 = vpop.permute.xlu0 %4038
        %4042 = vset.pattern.permute.xlu0 0
        %4043 = vperm.xlu0 %4042, %v3899
        %v4044 = vpop.permute.xlu0 %4043
        %4047 = vset.pattern.permute.xlu0 0
        %4048 = vperm.xlu0 %4047, %v3900
        %v4049 = vpop.permute.xlu0 %4048
        %4052 = vset.pattern.permute.xlu0 0
        %4053 = vperm.xlu0 %4052, %v3901
        %v4054 = vpop.permute.xlu0 %4053
        %4057 = vset.pattern.permute.xlu0 0
        %4058 = vperm.xlu0 %4057, %v3902
        %v4059 = vpop.permute.xlu0 %4058
        %4062 = vset.pattern.permute.xlu0 0
        %4063 = vperm.xlu0 %4062, %v3903
        %v4064 = vpop.permute.xlu0 %4063
        %4067 = vset.pattern.permute.xlu0 0
        %4068 = vperm.xlu0 %4067, %v3904
        %v4069 = vpop.permute.xlu0 %4068
        %4072 = vset.pattern.permute.xlu0 0
        %4073 = vperm.xlu0 %4072, %v3905
        %v4074 = vpop.permute.xlu0 %4073
        %4077 = vset.pattern.permute.xlu0 0
        %4078 = vperm.xlu0 %4077, %v3906
        %v4079 = vpop.permute.xlu0 %4078
        %4082 = vset.pattern.permute.xlu0 0
        %4083 = vperm.xlu0 %4082, %v3907
        %v4084 = vpop.permute.xlu0 %4083
        %4087 = vset.pattern.permute.xlu0 0
        %4088 = vperm.xlu0 %4087, %v3908
        %v4089 = vpop.permute.xlu0 %4088
        %4092 = vset.pattern.permute.xlu0 0
        %4093 = vperm.xlu0 %4092, %v3909
        %v4094 = vpop.permute.xlu0 %4093
        %4097 = vset.pattern.permute.xlu0 0
        %4098 = vperm.xlu0 %4097, %v3910
        %v4099 = vpop.permute.xlu0 %4098
        %4102 = vset.pattern.permute.xlu0 0
        %4103 = vperm.xlu0 %4102, %v3911
        %v4104 = vpop.permute.xlu0 %4103
        %4107 = vset.pattern.permute.xlu0 0
        %4108 = vperm.xlu0 %4107, %v3912
        %v4109 = vpop.permute.xlu0 %4108
        %4112 = vset.pattern.permute.xlu0 0
        %4113 = vperm.xlu0 %4112, %v3913
        %v4114 = vpop.permute.xlu0 %4113
        %4117 = vset.pattern.permute.xlu0 0
        %4118 = vperm.xlu0 %4117, %v3914
        %v4119 = vpop.permute.xlu0 %4118
        %4122 = vset.pattern.permute.xlu0 0
        %4123 = vperm.xlu0 %4122, %v3915
        %v4124 = vpop.permute.xlu0 %4123
        %4127 = vset.pattern.permute.xlu0 0
        %4128 = vperm.xlu0 %4127, %v3916
        %v4129 = vpop.permute.xlu0 %4128
        %4132 = vset.pattern.permute.xlu0 0
        %4133 = vperm.xlu0 %4132, %v3917
        %v4134 = vpop.permute.xlu0 %4133
        %4137 = vset.pattern.permute.xlu0 0
        %4138 = vperm.xlu0 %4137, %v3918
        %v4139 = vpop.permute.xlu0 %4138
        %4142 = vset.pattern.permute.xlu0 0
        %4143 = vperm.xlu0 %4142, %v3919
        %v4144 = vpop.permute.xlu0 %4143
        %4147 = vset.pattern.permute.xlu0 0
        %4148 = vperm.xlu0 %4147, %v3920
        %v4149 = vpop.permute.xlu0 %4148
        %4152 = vset.pattern.permute.xlu0 0
        %4153 = vperm.xlu0 %4152, %v3921
        %v4154 = vpop.permute.xlu0 %4153
        %4157 = vset.pattern.permute.xlu0 0
        %4158 = vperm.xlu0 %4157, %v3922
        %v4159 = vpop.permute.xlu0 %4158
        %4162 = vset.pattern.permute.xlu0 0
        %4163 = vperm.xlu0 %4162, %v3923
        %v4164 = vpop.permute.xlu0 %4163
        %4167 = vset.pattern.permute.xlu0 0
        %4168 = vperm.xlu0 %4167, %v3924
        %v4169 = vpop.permute.xlu0 %4168
        %4172 = vset.pattern.permute.xlu0 0
        %4173 = vperm.xlu0 %4172, %v3925
        %v4174 = vpop.permute.xlu0 %4173
        %4177 = vset.pattern.permute.xlu0 0
        %4178 = vperm.xlu0 %4177, %v3926
        %v4179 = vpop.permute.xlu0 %4178
        %4182 = vset.pattern.permute.xlu0 0
        %4183 = vperm.xlu0 %4182, %v3927
        %v4184 = vpop.permute.xlu0 %4183
        %4187 = vset.pattern.permute.xlu0 0
        %4188 = vperm.xlu0 %4187, %v3928
        %v4189 = vpop.permute.xlu0 %4188
        %4192 = vset.pattern.permute.xlu0 0
        %4193 = vperm.xlu0 %4192, %v3929
        %v4194 = vpop.permute.xlu0 %4193
        %4197 = vset.pattern.permute.xlu0 0
        %4198 = vperm.xlu0 %4197, %v3930
        %v4199 = vpop.permute.xlu0 %4198
        %v4201 = vmul.f32 %v3823, %v3934
        %v4202 = vmul.f32 %v3824, %v3939
        %v4203 = vmul.f32 %v3825, %v3944
        %v4204 = vmul.f32 %v3826, %v3949
        %v4205 = vmul.f32 %v3827, %v3954
        %v4206 = vmul.f32 %v3828, %v3959
        %v4207 = vmul.f32 %v3829, %v3964
        %v4208 = vmul.f32 %v3830, %v3969
        %v4209 = vmul.f32 %v3831, %v3974
        %v4210 = vmul.f32 %v3832, %v3979
        %v4211 = vmul.f32 %v3833, %v3984
        %v4212 = vmul.f32 %v3834, %v3989
        %v4213 = vmul.f32 %v3835, %v3994
        %v4214 = vmul.f32 %v3836, %v3999
        %v4215 = vmul.f32 %v3837, %v4004
        %v4216 = vmul.f32 %v3838, %v4009
        %v4217 = vmul.f32 %v3839, %v4014
        %v4218 = vmul.f32 %v3840, %v4019
        %v4219 = vmul.f32 %v3841, %v4024
        %v4220 = vmul.f32 %v3842, %v4029
        %v4221 = vmul.f32 %v3843, %v4034
        %v4222 = vmul.f32 %v3844, %v4039
        %v4223 = vmul.f32 %v3845, %v4044
        %v4224 = vmul.f32 %v3846, %v4049
        %v4225 = vmul.f32 %v3847, %v4054
        %v4226 = vmul.f32 %v3848, %v4059
        %v4227 = vmul.f32 %v3849, %v4064
        %v4228 = vmul.f32 %v3850, %v4069
        %v4229 = vmul.f32 %v3851, %v4074
        %v4230 = vmul.f32 %v3852, %v4079
        %v4231 = vmul.f32 %v3853, %v4084
        %v4232 = vmul.f32 %v3854, %v4089
        %v4233 = vmul.f32 %v3855, %v4094
        %v4234 = vmul.f32 %v3856, %v4099
        %v4235 = vmul.f32 %v3857, %v4104
        %v4236 = vmul.f32 %v3858, %v4109
        %v4237 = vmul.f32 %v3859, %v4114
        %v4238 = vmul.f32 %v3860, %v4119
        %v4239 = vmul.f32 %v3861, %v4124
        %v4240 = vmul.f32 %v3862, %v4129
        %v4241 = vmul.f32 %v3863, %v4134
        %v4242 = vmul.f32 %v3864, %v4139
        %v4243 = vmul.f32 %v3865, %v4144
        %v4244 = vmul.f32 %v3866, %v4149
        %v4245 = vmul.f32 %v3867, %v4154
        %v4246 = vmul.f32 %v3868, %v4159
        %v4247 = vmul.f32 %v3869, %v4164
        %v4248 = vmul.f32 %v3870, %v4169
        %v4249 = vmul.f32 %v3871, %v4174
        %v4250 = vmul.f32 %v3872, %v4179
        %v4251 = vmul.f32 %v3873, %v4184
        %v4252 = vmul.f32 %v3874, %v4189
        %v4253 = vmul.f32 %v3875, %v4194
        %v4254 = vmul.f32 %v3876, %v4199
        %v4255 = vpack.c.bf16 %v4202, %v4201
        %v4256 = vpack.c.bf16 %v4204, %v4203
        %v4257 = vpack.c.bf16 %v4206, %v4205
        %v4258 = vpack.c.bf16 %v4208, %v4207
        %v4259 = vpack.c.bf16 %v4210, %v4209
        %v4260 = vpack.c.bf16 %v4212, %v4211
        %v4261 = vpack.c.bf16 %v4214, %v4213
        %v4262 = vpack.c.bf16 %v4216, %v4215
        %v4263 = vpack.c.bf16 %v4218, %v4217
        %v4264 = vpack.c.bf16 %v4220, %v4219
        %v4265 = vpack.c.bf16 %v4222, %v4221
        %v4266 = vpack.c.bf16 %v4224, %v4223
        %v4267 = vpack.c.bf16 %v4226, %v4225
        %v4268 = vpack.c.bf16 %v4228, %v4227
        %v4269 = vpack.c.bf16 %v4230, %v4229
        %v4270 = vpack.c.bf16 %v4232, %v4231
        %v4271 = vpack.c.bf16 %v4234, %v4233
        %v4272 = vpack.c.bf16 %v4236, %v4235
        %v4273 = vpack.c.bf16 %v4238, %v4237
        %v4274 = vpack.c.bf16 %v4240, %v4239
        %v4275 = vpack.c.bf16 %v4242, %v4241
        %v4276 = vpack.c.bf16 %v4244, %v4243
        %v4277 = vpack.c.bf16 %v4246, %v4245
        %v4278 = vpack.c.bf16 %v4248, %v4247
        %v4279 = vpack.c.bf16 %v4250, %v4249
        %v4280 = vpack.c.bf16 %v4252, %v4251
        %v4281 = vpack.c.bf16 %v4254, %v4253
        %v4309 = vunpack.c.l.b16 %v4255
        %v4310 = vunpack.c.h.b16 %v4255
        %v4311 = vunpack.c.l.b16 %v4256
        %v4312 = vunpack.c.h.b16 %v4256
        %v4313 = vunpack.c.l.b16 %v4257
        %v4314 = vunpack.c.h.b16 %v4257
        %v4315 = vunpack.c.l.b16 %v4258
        %v4316 = vunpack.c.h.b16 %v4258
        %v4317 = vunpack.c.l.b16 %v4259
        %v4318 = vunpack.c.h.b16 %v4259
        %v4319 = vunpack.c.l.b16 %v4260
        %v4320 = vunpack.c.h.b16 %v4260
        %v4321 = vunpack.c.l.b16 %v4261
        %v4322 = vunpack.c.h.b16 %v4261
        %v4323 = vunpack.c.l.b16 %v4262
        %v4324 = vunpack.c.h.b16 %v4262
        %v4325 = vunpack.c.l.b16 %v4263
        %v4326 = vunpack.c.h.b16 %v4263
        %v4327 = vunpack.c.l.b16 %v4264
        %v4328 = vunpack.c.h.b16 %v4264
        %v4329 = vunpack.c.l.b16 %v4265
        %v4330 = vunpack.c.h.b16 %v4265
        %v4331 = vunpack.c.l.b16 %v4266
        %v4332 = vunpack.c.h.b16 %v4266
        %v4333 = vunpack.c.l.b16 %v4267
        %v4334 = vunpack.c.h.b16 %v4267
        %v4335 = vunpack.c.l.b16 %v4268
        %v4336 = vunpack.c.h.b16 %v4268
        %v4337 = vunpack.c.l.b16 %v4269
        %v4338 = vunpack.c.h.b16 %v4269
        %v4339 = vunpack.c.l.b16 %v4270
        %v4340 = vunpack.c.h.b16 %v4270
        %v4341 = vunpack.c.l.b16 %v4271
        %v4342 = vunpack.c.h.b16 %v4271
        %v4343 = vunpack.c.l.b16 %v4272
        %v4344 = vunpack.c.h.b16 %v4272
        %v4345 = vunpack.c.l.b16 %v4273
        %v4346 = vunpack.c.h.b16 %v4273
        %v4347 = vunpack.c.l.b16 %v4274
        %v4348 = vunpack.c.h.b16 %v4274
        %v4349 = vunpack.c.l.b16 %v4275
        %v4350 = vunpack.c.h.b16 %v4275
        %v4351 = vunpack.c.l.b16 %v4276
        %v4352 = vunpack.c.h.b16 %v4276
        %v4353 = vunpack.c.l.b16 %v4277
        %v4354 = vunpack.c.h.b16 %v4277
        %v4355 = vunpack.c.l.b16 %v4278
        %v4356 = vunpack.c.h.b16 %v4278
        %v4357 = vunpack.c.l.b16 %v4279
        %v4358 = vunpack.c.h.b16 %v4279
        %v4359 = vunpack.c.l.b16 %v4280
        %v4360 = vunpack.c.h.b16 %v4280
        %v4361 = vunpack.c.l.b16 %v4281
        %v4362 = vunpack.c.h.b16 %v4281
        %v4363 = vpack.c.b16 %v4309, %v4309
        %v4364 = vpack.c.b16 %v4310, %v4310
        %v4365 = vpack.c.b16 %v4311, %v4311
        %v4366 = vpack.c.b16 %v4312, %v4312
        %v4367 = vpack.c.b16 %v4313, %v4313
        %v4368 = vpack.c.b16 %v4314, %v4314
        %v4369 = vpack.c.b16 %v4315, %v4315
        %v4370 = vpack.c.b16 %v4316, %v4316
        %v4371 = vpack.c.b16 %v4317, %v4317
        %v4372 = vpack.c.b16 %v4318, %v4318
        %v4373 = vpack.c.b16 %v4319, %v4319
        %v4374 = vpack.c.b16 %v4320, %v4320
        %v4375 = vpack.c.b16 %v4321, %v4321
        %v4376 = vpack.c.b16 %v4322, %v4322
        %v4377 = vpack.c.b16 %v4323, %v4323
        %v4378 = vpack.c.b16 %v4324, %v4324
        %v4379 = vpack.c.b16 %v4325, %v4325
        %v4380 = vpack.c.b16 %v4326, %v4326
        %v4381 = vpack.c.b16 %v4327, %v4327
        %v4382 = vpack.c.b16 %v4328, %v4328
        %v4383 = vpack.c.b16 %v4329, %v4329
        %v4384 = vpack.c.b16 %v4330, %v4330
        %v4385 = vpack.c.b16 %v4331, %v4331
        %v4386 = vpack.c.b16 %v4332, %v4332
        %v4387 = vpack.c.b16 %v4333, %v4333
        %v4388 = vpack.c.b16 %v4334, %v4334
        %v4389 = vpack.c.b16 %v4335, %v4335
        %v4390 = vpack.c.b16 %v4336, %v4336
        %v4391 = vpack.c.b16 %v4337, %v4337
        %v4392 = vpack.c.b16 %v4338, %v4338
        %v4393 = vpack.c.b16 %v4339, %v4339
        %v4394 = vpack.c.b16 %v4340, %v4340
        %v4395 = vpack.c.b16 %v4341, %v4341
        %v4396 = vpack.c.b16 %v4342, %v4342
        %v4397 = vpack.c.b16 %v4343, %v4343
        %v4398 = vpack.c.b16 %v4344, %v4344
        %v4399 = vpack.c.b16 %v4345, %v4345
        %v4400 = vpack.c.b16 %v4346, %v4346
        %v4401 = vpack.c.b16 %v4347, %v4347
        %v4402 = vpack.c.b16 %v4348, %v4348
        %v4403 = vpack.c.b16 %v4349, %v4349
        %v4404 = vpack.c.b16 %v4350, %v4350
        %v4405 = vpack.c.b16 %v4351, %v4351
        %v4406 = vpack.c.b16 %v4352, %v4352
        %v4407 = vpack.c.b16 %v4353, %v4353
        %v4408 = vpack.c.b16 %v4354, %v4354
        %v4409 = vpack.c.b16 %v4355, %v4355
        %v4410 = vpack.c.b16 %v4356, %v4356
        %v4411 = vpack.c.b16 %v4357, %v4357
        %v4412 = vpack.c.b16 %v4358, %v4358
        %v4413 = vpack.c.b16 %v4359, %v4359
        %v4414 = vpack.c.b16 %v4360, %v4360
        %v4415 = vpack.c.b16 %v4361, %v4361
        %v4416 = vpack.c.b16 %v4362, %v4362
        %4471 = vst [vmem:[%s354] sm:$0xf] %v4363
        %4472 = vst [vmem:[%s354 + $0x4] sm:$0xf] %v4364
        %4473 = vst [vmem:[%s354 + $0x8] sm:$0xf] %v4365
        %4474 = vst [vmem:[%s354 + $0xc] sm:$0xf] %v4366
        %4475 = vst [vmem:[%s354 + $0x10] sm:$0xf] %v4367
        %4476 = vst [vmem:[%s354 + $0x14] sm:$0xf] %v4368
        %4477 = vst [vmem:[%s354 + $0x18] sm:$0xf] %v4369
        %4478 = vst [vmem:[%s354 + $0x1c] sm:$0xf] %v4370
        %4479 = vst [vmem:[%s354 + $0x20] sm:$0xf] %v4371
        %4480 = vst [vmem:[%s354 + $0x24] sm:$0xf] %v4372
        %4481 = vst [vmem:[%s354 + $0x28] sm:$0xf] %v4373
        %4482 = vst [vmem:[%s354 + $0x2c] sm:$0xf] %v4374
        %4483 = vst [vmem:[%s354 + $0x30] sm:$0xf] %v4375
        %4484 = vst [vmem:[%s354 + $0x34] sm:$0xf] %v4376
        %4485 = vst [vmem:[%s354 + $0x38] sm:$0xf] %v4377
        %4486 = vst [vmem:[%s354 + $0x3c] sm:$0xf] %v4378
        %4487 = vst [vmem:[%s354 + $0x40] sm:$0xf] %v4379
        %4488 = vst [vmem:[%s354 + $0x44] sm:$0xf] %v4380
        %4489 = vst [vmem:[%s354 + $0x48] sm:$0xf] %v4381
        %4490 = vst [vmem:[%s354 + $0x4c] sm:$0xf] %v4382
        %4491 = vst [vmem:[%s354 + $0x50] sm:$0xf] %v4383
        %4492 = vst [vmem:[%s354 + $0x54] sm:$0xf] %v4384
        %4493 = vst [vmem:[%s354 + $0x58] sm:$0xf] %v4385
        %4494 = vst [vmem:[%s354 + $0x5c] sm:$0xf] %v4386
        %4495 = vst [vmem:[%s354 + $0x60] sm:$0xf] %v4387
        %4496 = vst [vmem:[%s354 + $0x64] sm:$0xf] %v4388
        %4497 = vst [vmem:[%s354 + $0x68] sm:$0xf] %v4389
        %4498 = vst [vmem:[%s354 + $0x6c] sm:$0xf] %v4390
        %4499 = vst [vmem:[%s354 + $0x70] sm:$0xf] %v4391
        %4500 = vst [vmem:[%s354 + $0x74] sm:$0xf] %v4392
        %4501 = vst [vmem:[%s354 + $0x78] sm:$0xf] %v4393
        %4502 = vst [vmem:[%s354 + $0x7c] sm:$0xf] %v4394
        %4503 = vst [vmem:[%s354 + $0x80] sm:$0xf] %v4395
        %4504 = vst [vmem:[%s354 + $0x84] sm:$0xf] %v4396
        %4505 = vst [vmem:[%s354 + $0x88] sm:$0xf] %v4397
        %4506 = vst [vmem:[%s354 + $0x8c] sm:$0xf] %v4398
        %4507 = vst [vmem:[%s354 + $0x90] sm:$0xf] %v4399
        %4508 = vst [vmem:[%s354 + $0x94] sm:$0xf] %v4400
        %4509 = vst [vmem:[%s354 + $0x98] sm:$0xf] %v4401
        %4510 = vst [vmem:[%s354 + $0x9c] sm:$0xf] %v4402
        %4511 = vst [vmem:[%s354 + $0xa0] sm:$0xf] %v4403
        %4512 = vst [vmem:[%s354 + $0xa4] sm:$0xf] %v4404
        %4513 = vst [vmem:[%s354 + $0xa8] sm:$0xf] %v4405
        %4514 = vst [vmem:[%s354 + $0xac] sm:$0xf] %v4406
        %4515 = vst [vmem:[%s354 + $0xb0] sm:$0xf] %v4407
        %4516 = vst [vmem:[%s354 + $0xb4] sm:$0xf] %v4408
        %4517 = vst [vmem:[%s354 + $0xb8] sm:$0xf] %v4409
        %4518 = vst [vmem:[%s354 + $0xbc] sm:$0xf] %v4410
        %4519 = vst [vmem:[%s354 + $0xc0] sm:$0xf] %v4411
        %4520 = vst [vmem:[%s354 + $0xc4] sm:$0xf] %v4412
        %4521 = vst [vmem:[%s354 + $0xc8] sm:$0xf] %v4413
        %4522 = vst [vmem:[%s354 + $0xcc] sm:$0xf] %v4414
        %4523 = vst [vmem:[%s354 + $0xd0] sm:$0xf] %v4415
        %4524 = vst [vmem:[%s354 + $0xd4] sm:$0xf] %v4416
        %v4525 = vadd.f32 %v4201, %v4202
        %v4526 = vadd.f32 %v4525, %v4203
        %v4527 = vadd.f32 %v4526, %v4204
        %v4528 = vadd.f32 %v4527, %v4205
        %v4529 = vadd.f32 %v4528, %v4206
        %v4530 = vadd.f32 %v4529, %v4207
        %v4531 = vadd.f32 %v4530, %v4208
        %v4532 = vadd.f32 %v4531, %v4209
        %v4533 = vadd.f32 %v4532, %v4210
        %v4534 = vadd.f32 %v4533, %v4211
        %v4535 = vadd.f32 %v4534, %v4212
        %v4536 = vadd.f32 %v4535, %v4213
        %v4537 = vadd.f32 %v4536, %v4214
        %v4538 = vadd.f32 %v4537, %v4215
        %v4539 = vadd.f32 %v4538, %v4216
        %v4540 = vadd.f32 %v4539, %v4217
        %v4541 = vadd.f32 %v4540, %v4218
        %v4542 = vadd.f32 %v4541, %v4219
        %v4543 = vadd.f32 %v4542, %v4220
        %v4544 = vadd.f32 %v4543, %v4221
        %v4545 = vadd.f32 %v4544, %v4222
        %v4546 = vadd.f32 %v4545, %v4223
        %v4547 = vadd.f32 %v4546, %v4224
        %v4548 = vadd.f32 %v4547, %v4225
        %v4549 = vadd.f32 %v4548, %v4226
        %v4550 = vadd.f32 %v4549, %v4227
        %v4551 = vadd.f32 %v4550, %v4228
        %v4552 = vadd.f32 %v4551, %v4229
        %v4553 = vadd.f32 %v4552, %v4230
        %v4554 = vadd.f32 %v4553, %v4231
        %v4555 = vadd.f32 %v4554, %v4232
        %v4556 = vadd.f32 %v4555, %v4233
        %v4557 = vadd.f32 %v4556, %v4234
        %v4558 = vadd.f32 %v4557, %v4235
        %v4559 = vadd.f32 %v4558, %v4236
        %v4560 = vadd.f32 %v4559, %v4237
        %v4561 = vadd.f32 %v4560, %v4238
        %v4562 = vadd.f32 %v4561, %v4239
        %v4563 = vadd.f32 %v4562, %v4240
        %v4564 = vadd.f32 %v4563, %v4241
        %v4565 = vadd.f32 %v4564, %v4242
        %v4566 = vadd.f32 %v4565, %v4243
        %v4567 = vadd.f32 %v4566, %v4244
        %v4568 = vadd.f32 %v4567, %v4245
        %v4569 = vadd.f32 %v4568, %v4246
        %v4570 = vadd.f32 %v4569, %v4247
        %v4571 = vadd.f32 %v4570, %v4248
        %v4572 = vadd.f32 %v4571, %v4249
        %v4573 = vadd.f32 %v4572, %v4250
        %v4574 = vadd.f32 %v4573, %v4251
        %v4575 = vadd.f32 %v4574, %v4252
        %v4576 = vadd.f32 %v4575, %v4253
        %v4577 = vadd.f32 %v4576, %v4254
        %v4578 = vrot.slane %v4577, 4
        %v4579 = vadd.f32 %v4577, %v4578
        %v4580 = vrot.slane %v4579, 2
        %v4581 = vadd.f32 %v4579, %v4580
        %v4582 = vrot.slane %v4581, 1
        %v4583 = vadd.f32 %v4581, %v4582
        %4584 = vst [vmem:[%s360] sm:$0x1] %v4583
        %v4585 = vmul.f32 %v4201, %v4201
        %v4586 = vmul.f32 %v4202, %v4202
        %v4587 = vmul.f32 %v4203, %v4203
        %v4588 = vmul.f32 %v4204, %v4204
        %v4589 = vmul.f32 %v4205, %v4205
        %v4590 = vmul.f32 %v4206, %v4206
        %v4591 = vmul.f32 %v4207, %v4207
        %v4592 = vmul.f32 %v4208, %v4208
        %v4593 = vmul.f32 %v4209, %v4209
        %v4594 = vmul.f32 %v4210, %v4210
        %v4595 = vmul.f32 %v4211, %v4211
        %v4596 = vmul.f32 %v4212, %v4212
        %v4597 = vmul.f32 %v4213, %v4213
        %v4598 = vmul.f32 %v4214, %v4214
        %v4599 = vmul.f32 %v4215, %v4215
        %v4600 = vmul.f32 %v4216, %v4216
        %v4601 = vmul.f32 %v4217, %v4217
        %v4602 = vmul.f32 %v4218, %v4218
        %v4603 = vmul.f32 %v4219, %v4219
        %v4604 = vmul.f32 %v4220, %v4220
        %v4605 = vmul.f32 %v4221, %v4221
        %v4606 = vmul.f32 %v4222, %v4222
        %v4607 = vmul.f32 %v4223, %v4223
        %v4608 = vmul.f32 %v4224, %v4224
        %v4609 = vmul.f32 %v4225, %v4225
        %v4610 = vmul.f32 %v4226, %v4226
        %v4611 = vmul.f32 %v4227, %v4227
        %v4612 = vmul.f32 %v4228, %v4228
        %v4613 = vmul.f32 %v4229, %v4229
        %v4614 = vmul.f32 %v4230, %v4230
        %v4615 = vmul.f32 %v4231, %v4231
        %v4616 = vmul.f32 %v4232, %v4232
        %v4617 = vmul.f32 %v4233, %v4233
        %v4618 = vmul.f32 %v4234, %v4234
        %v4619 = vmul.f32 %v4235, %v4235
        %v4620 = vmul.f32 %v4236, %v4236
        %v4621 = vmul.f32 %v4237, %v4237
        %v4622 = vmul.f32 %v4238, %v4238
        %v4623 = vmul.f32 %v4239, %v4239
        %v4624 = vmul.f32 %v4240, %v4240
        %v4625 = vmul.f32 %v4241, %v4241
        %v4626 = vmul.f32 %v4242, %v4242
        %v4627 = vmul.f32 %v4243, %v4243
        %v4628 = vmul.f32 %v4244, %v4244
        %v4629 = vmul.f32 %v4245, %v4245
        %v4630 = vmul.f32 %v4246, %v4246
        %v4631 = vmul.f32 %v4247, %v4247
        %v4632 = vmul.f32 %v4248, %v4248
        %v4633 = vmul.f32 %v4249, %v4249
        %v4634 = vmul.f32 %v4250, %v4250
        %v4635 = vmul.f32 %v4251, %v4251
        %v4636 = vmul.f32 %v4252, %v4252
        %v4637 = vmul.f32 %v4253, %v4253
        %v4638 = vmul.f32 %v4254, %v4254
        %v4639 = vadd.f32 %v4585, %v4586
        %v4640 = vadd.f32 %v4639, %v4587
        %v4641 = vadd.f32 %v4640, %v4588
        %v4642 = vadd.f32 %v4641, %v4589
        %v4643 = vadd.f32 %v4642, %v4590
        %v4644 = vadd.f32 %v4643, %v4591
        %v4645 = vadd.f32 %v4644, %v4592
        %v4646 = vadd.f32 %v4645, %v4593
        %v4647 = vadd.f32 %v4646, %v4594
        %v4648 = vadd.f32 %v4647, %v4595
        %v4649 = vadd.f32 %v4648, %v4596
        %v4650 = vadd.f32 %v4649, %v4597
        %v4651 = vadd.f32 %v4650, %v4598
        %v4652 = vadd.f32 %v4651, %v4599
        %v4653 = vadd.f32 %v4652, %v4600
        %v4654 = vadd.f32 %v4653, %v4601
        %v4655 = vadd.f32 %v4654, %v4602
        %v4656 = vadd.f32 %v4655, %v4603
        %v4657 = vadd.f32 %v4656, %v4604
        %v4658 = vadd.f32 %v4657, %v4605
        %v4659 = vadd.f32 %v4658, %v4606
        %v4660 = vadd.f32 %v4659, %v4607
        %v4661 = vadd.f32 %v4660, %v4608
        %v4662 = vadd.f32 %v4661, %v4609
        %v4663 = vadd.f32 %v4662, %v4610
        %v4664 = vadd.f32 %v4663, %v4611
        %v4665 = vadd.f32 %v4664, %v4612
        %v4666 = vadd.f32 %v4665, %v4613
        %v4667 = vadd.f32 %v4666, %v4614
        %v4668 = vadd.f32 %v4667, %v4615
        %v4669 = vadd.f32 %v4668, %v4616
        %v4670 = vadd.f32 %v4669, %v4617
        %v4671 = vadd.f32 %v4670, %v4618
        %v4672 = vadd.f32 %v4671, %v4619
        %v4673 = vadd.f32 %v4672, %v4620
        %v4674 = vadd.f32 %v4673, %v4621
        %v4675 = vadd.f32 %v4674, %v4622
        %v4676 = vadd.f32 %v4675, %v4623
        %v4677 = vadd.f32 %v4676, %v4624
        %v4678 = vadd.f32 %v4677, %v4625
        %v4679 = vadd.f32 %v4678, %v4626
        %v4680 = vadd.f32 %v4679, %v4627
        %v4681 = vadd.f32 %v4680, %v4628
        %v4682 = vadd.f32 %v4681, %v4629
        %v4683 = vadd.f32 %v4682, %v4630
        %v4684 = vadd.f32 %v4683, %v4631
        %v4685 = vadd.f32 %v4684, %v4632
        %v4686 = vadd.f32 %v4685, %v4633
        %v4687 = vadd.f32 %v4686, %v4634
        %v4688 = vadd.f32 %v4687, %v4635
        %v4689 = vadd.f32 %v4688, %v4636
        %v4690 = vadd.f32 %v4689, %v4637
        %v4691 = vadd.f32 %v4690, %v4638
        %v4692 = vrot.slane %v4691, 4
        %v4693 = vadd.f32 %v4691, %v4692
        %v4694 = vrot.slane %v4693, 2
        %v4695 = vadd.f32 %v4693, %v4694
        %v4696 = vrot.slane %v4695, 1
        %v4697 = vadd.f32 %v4695, %v4696
        %4698 = vst [vmem:[%s366] sm:$0x1] %v4697
        %s4699 = sand.u32 %s148, 1
        %s4700 = scalar_lea.sflag [#allocation5], %s4699
        %s4701 = sand.u32 %s148, 1
        %s4702 = smul.addr %s4701, 216
        %s4703 = scalar_lea.vmem [#allocation12], %s4702
        %s4704 = sand.u32 %s30, 1
        %s4705 = scalar_lea.sflag [#allocation14], %s4704
        %s4706 = sand.u32 %s174, 1
        %s4707 = scalar_lea.vmem [#allocation13], %s4706
        %s4708 = sand.u32 %s30, 1
        %s4709 = scalar_lea.sflag [#allocation14], %s4708
        %s4710 = sand.u32 %s200, 1
        %s4711 = scalar_lea.vmem [#allocation15], %s4710
        // Predicated region
        $region61: #{bottleneck_forward.5} parent=39 // pred_check
          %p4712 = pneg %p158
        $region62: #{bottleneck_forward.5} parent=39 // pred_check_branch
          %4714 = sbr.rel (%p4712) target = $region64
        $region63: #{bottleneck_forward.5} parent=39 // pred_region
          %s4715 = smul.u32 54, %s30
          %s4717 = ssub.s32 3456, 3456
          %4718 = vsyncadd %s4700, %s4717
          %s4719 = smul.addr %s4715, 64
          %s4720 = scalar_lea.hbm %s5, %s4719
          %s4721 = sshll.u32 %s4703, 4
          %s4722 = int_to_ptr.vmem [resolvable:$true] %s4721
          %4727 = dma.vmem_to_hbm [thread:$0]  %s4722, 3456, %s4720, %s4700, 64, 64, 4
        $region64: #{bottleneck_forward.5} parent=39 // pred_fallthru
          _
        // Predicated region
        $region65: #{bottleneck_forward.5} parent=39 // pred_check
          %p4728 = pneg %p184
        $region66: #{bottleneck_forward.5} parent=39 // pred_check_branch
          %4730 = sbr.rel (%p4728) target = $region68
        $region67: #{bottleneck_forward.5} parent=39 // pred_region
          %s4732 = ssub.s32 16, 16
          %4733 = vsyncadd %s4705, %s4732
          %s4734 = smul.addr %s30, 16
          %s4735 = scalar_lea.hbm %s6, %s4734
          %s4737 = sshll.u32 %s4707, 4
          %s4738 = int_to_ptr.vmem [resolvable:$true] %s4737
          %4740 = dma.vmem_to_hbm [thread:$0]  %s4738, 16, %s4735, %s4705
        $region68: #{bottleneck_forward.5} parent=39 // pred_fallthru
          _
        // Predicated region
        $region69: #{bottleneck_forward.5} parent=39 // pred_check
          %p4741 = pneg %p210
        $region70: #{bottleneck_forward.5} parent=39 // pred_check_branch
          %4743 = sbr.rel (%p4741) target = $region72
        $region71: #{bottleneck_forward.5} parent=39 // pred_region
          %s4745 = ssub.s32 16, 16
          %4746 = vsyncadd %s4709, %s4745
          %s4747 = smul.addr %s30, 16
          %s4748 = scalar_lea.hbm %s7, %s4747
          %s4750 = sshll.u32 %s4711, 4
          %s4751 = int_to_ptr.vmem [resolvable:$true] %s4750
          %4753 = dma.vmem_to_hbm [thread:$0]  %s4751, 16, %s4748, %s4709
        $region72: #{bottleneck_forward.5} parent=39 // pred_fallthru
          _
      $region40: #{bottleneck_forward.5} parent=5 // pred_fallthru
        _
      %p4754 = scmp.le.s32.totalorder 2, %s25
      // Predicated region
      $region73: #{bottleneck_forward.5} parent=5 // pred_check
        %p4755 = pneg %p4754
      $region74: #{bottleneck_forward.5} parent=5 // pred_check_branch
        %4757 = sbr.rel (%p4755) target = $region76
      $region75: #{bottleneck_forward.5} parent=5 // pred_region
        %s4758 = ssub.s32 %s25, 2
        // Predicated region
        $region77: #{bottleneck_forward.5} parent=75 // pred_check
          %p4759 = pneg %p164
        $region78: #{bottleneck_forward.5} parent=75 // pred_check_branch
          %4761 = sbr.rel (%p4759) target = $region80
        $region79: #{bottleneck_forward.5} parent=75 // pred_region
          %s4762 = sand.u32 %s149, 1
          %s4763 = scalar_lea.sflag [#allocation5], %s4762
          %s4764 = sand.u32 %s149, 1
          %s4765 = smul.addr %s4764, 216
          %s4766 = scalar_lea.vmem [#allocation12], %s4765
          %4767 = dma.done %s4763, 3456
        $region80: #{bottleneck_forward.5} parent=75 // pred_fallthru
          _
        // Predicated region
        $region81: #{bottleneck_forward.5} parent=75 // pred_check
          %p4768 = pneg %p190
        $region82: #{bottleneck_forward.5} parent=75 // pred_check_branch
          %4770 = sbr.rel (%p4768) target = $region84
        $region83: #{bottleneck_forward.5} parent=75 // pred_region
          %s4771 = sand.u32 %s31, 1
          %s4772 = scalar_lea.sflag [#allocation14], %s4771
          %s4773 = sand.u32 %s175, 1
          %s4774 = scalar_lea.vmem [#allocation13], %s4773
          %4775 = dma.done %s4772, 16
        $region84: #{bottleneck_forward.5} parent=75 // pred_fallthru
          _
        // Predicated region
        $region85: #{bottleneck_forward.5} parent=75 // pred_check
          %p4776 = pneg %p216
        $region86: #{bottleneck_forward.5} parent=75 // pred_check_branch
          %4778 = sbr.rel (%p4776) target = $region88
        $region87: #{bottleneck_forward.5} parent=75 // pred_region
          %s4779 = sand.u32 %s31, 1
          %s4780 = scalar_lea.sflag [#allocation14], %s4779
          %s4781 = sand.u32 %s201, 1
          %s4782 = scalar_lea.vmem [#allocation15], %s4781
          %4783 = dma.done %s4780, 16
        $region88: #{bottleneck_forward.5} parent=75 // pred_fallthru
          _
      $region76: #{bottleneck_forward.5} parent=5 // pred_fallthru
        _
    $region6: #{bottleneck_forward.5} parent=1 // loop_footer
      %s29 = sadd.s32 1, %s25
    $region7: #{bottleneck_forward.5} parent=1 // loop_footer_branch
      %24 = sbr.rel target = $region3
    $region8: #{bottleneck_forward.5} parent=1 // loop_exit
      _
    %4784 = vsyncpa [#allocation4], 1
    %s4785 = scalar_lea.sflag [#allocation4], 1
    %4786 = vsyncpa %s4785, 1
    %4787 = vsyncpa [#allocation7], 1
    %4788 = vsyncpa [#allocation10], 1
    %4789 = vsyncpa [#allocation5], 1
    %s4790 = scalar_lea.sflag [#allocation5], 1
    %4791 = vsyncpa %s4790, 1
    %4792 = vsyncpa [#allocation14], 1
    %s4793 = scalar_lea.sflag [#allocation14], 1
    %4794 = vsyncpa %s4793, 1

</llo_original>
